<compile_context>
chip_gen: v7x
topology: tpu7x:2x2x1
jax: 0.10.0
libtpu: 0.0.40
codegen_flags: <defaults>
</compile_context>

<pallas_src>
import functools

import numpy as np
import jax
import jax.numpy as jnp
from jax.experimental import pallas as pl
from jax.experimental.pallas import tpu as pltpu


# --------------------------------------------------------------------------
# Parameter setup (deterministic, mirrors DCT2Net.__init__)
# --------------------------------------------------------------------------
def _alpha(u):
    return 1.0 / np.sqrt(2.0) if u == 0 else 1.0


def make_dct_matrix(p):
    P = np.zeros((p * p, p * p))
    for x in range(p):
        for y in range(p):
            for u in range(p):
                for v in range(p):
                    P[x * p + y, u * p + v] += (
                        2.0 / p
                        * _alpha(u) * _alpha(v)
                        * np.cos((2 * x + 1) * u * np.pi / (2 * p))
                        * np.cos((2 * y + 1) * v * np.pi / (2 * p)))
    return P.astype(np.float32)


# --------------------------------------------------------------------------
# Fused kernel: one (batch, row-tile, col-tile) grid step -> (TH, TW) output.
# --------------------------------------------------------------------------
def dct2net_fused_kernel(slab_ref, o_ref, *, p, TH, TW, H, W, inv3th, PT, PTI):
    # slab_ref: (TH+2(p-1), TW+2(p-1)) VMEM  zero-padded image tile incl. halo
    # o_ref:    (TH, TW)               VMEM  output tile
    pad = p - 1
    ps2 = p * p
    PR = TH + pad                 # patch-position rows handled by this tile
    PC = TW + pad                 # patch-position cols handled by this tile
    R0 = pl.program_id(1) * TH    # global extended-row origin of this tile
    C0 = pl.program_id(2) * TW    # global extended-col origin of this tile

    # Fused im2col: p column(lane)-shifted planes of the slab; the p row shifts
    # below are static sublane-offset slices of these planes (p live planes
    # instead of p^2 materialized im2col planes).
    Xc = [slab_ref[:, pl.ds(b, PC)] for b in range(p)]       # p x (THe, PC)

    # conv1 (patch transform P.T), m-major: each patch-element plane feeds all
    # p^2 channel accumulators (register blocking over k); the coefficients are
    # compile-time immediates.
    c1 = [None] * ps2
    for a in range(p):
        for b in range(p):
            m = a * p + b
            xm = Xc[b][a:a + PR, :]                           # (PR, PC)
            for k in range(ps2):
                t = xm * PT[k][m]
                c1[k] = t if c1[k] is None else c1[k] + t

    # DifferentiableThreshold (m=32, th=1.5) + shrink.
    ssum = None
    ys = []
    for k in range(ps2):
        xs = c1[k] * inv3th
        z = xs * xs
        z = z * z
        z = z * z
        z = z * z
        z = z * z
        z = z * z                                             # xs^64
        # NOTE: for |xs| large, z overflows to inf and z*recip(z+1) is NaN; the
        # jnp.where SELECT masks it (identical to the torch masked assignment).
        # Do not refactor into a multiply-by-mask or the NaN propagates.  The
        # divide is an EUP approx reciprocal (review item), still NaN-safe.
        s = jnp.where(jnp.abs(xs) >= 1.5, 1.0,
                      z * pl.reciprocal(z + 1.0, approx=True))
        ys.append(c1[k] * s)                                  # y_shrink channel k
        ssum = s if ssum is None else ssum + s

    # Aggregation weight w = 1/(1 + sum_k shrink), masked to patches that lie
    # fully inside the original image; invalid patches then contribute nothing
    # to numerator or denominator (exactly the zero-padded col2im behaviour).
    rr = jax.lax.broadcasted_iota(jnp.int32, (PR, PC), 0) + R0
    cc = jax.lax.broadcasted_iota(jnp.int32, (PR, PC), 1) + C0
    valid = ((rr >= pad) & (rr <= H - 1) & (cc >= pad) & (cc <= W - 1))
    w = jnp.where(valid, pl.reciprocal(1.0 + ssum, approx=True), 0.0)

    # conv2 (1x1 inverse transform) * w, fused with the overlap-add (conv3).
    # Register-blocked: 4 output channels per sweep over the ys planes so each
    # ys[m] load feeds 4 accumulators.
    # NOTE: for patch_size >= 8 this (and conv1) should move to the MXU via a
    # lane-dense (p^2, L) jnp.dot; at p=4 the scalar-FMA VPU path wins.
    KB = 4
    num = jnp.zeros((TH, TW), jnp.float32)
    for k0 in range(0, ps2, KB):
        ks = list(range(k0, min(k0 + KB, ps2)))
        acc = [None] * len(ks)
        for m in range(ps2):
            ym = ys[m]
            for i, k in enumerate(ks):
                t = ym * PTI[k][m]
                acc[i] = t if acc[i] is None else acc[i] + t
        for i, k in enumerate(ks):
            v = acc[i] * w                                    # weighted coeff plane
            a, b = k // p, k % p
            num = num + v[pad - a:pad - a + TH, pad - b:pad - b + TW]

    # conv4 (box sum of w), separable: p row shifts then p column shifts.
    dr = w[pad:pad + TH, :]
    for a in range(1, p):
        dr = dr + w[pad - a:pad - a + TH, :]
    den = dr[:, pad:pad + TW]
    for b in range(1, p):
        den = den + dr[:, pad - b:pad - b + TW]

    o_ref[...] = num * pl.reciprocal(den, approx=True)


# --------------------------------------------------------------------------
# Wrapper
# --------------------------------------------------------------------------
def _vmem_limit_bytes():
    try:
        info = pltpu.get_tpu_info()
        cap = int(getattr(info, "vmem_capacity_bytes", 0) or 0)
    except Exception:
        cap = 0
    if cap <= 0:
        cap = 128 * 1024 * 1024
    # ~25% headroom for double buffers / Mosaic scratch; cap at 100 MiB.
    return min(int(0.75 * cap), 100 * 1024 * 1024)


def _pick_tiles(H, W, pad, vmem_limit):
    # Lane-dense width tile (multiple of 128) when one divides W, else full W.
    TW = next((c for c in (512, 384, 256, 128) if c <= W and W % c == 0), W)
    # Row tile: largest divisor of H (multiple of 8) whose ~26 live f32 planes
    # of (TH+2pad)x(TW+2pad) stay under ~55% of the VMEM limit.
    budget = int(0.55 * vmem_limit)
    live_planes = 26
    TH = next((c for c in (512, 256, 128, 64, 32, 16, 8)
               if c <= H and H % c == 0
               and live_planes * (c + 2 * pad) * (TW + 2 * pad) * 4 <= budget),
              H)
    return TH, TW


def dct2net_forward(y, P_T, P_T_inv, patch_size, threshold,
                    row_tile=None, col_tile=None):
    """y: (N, 1, H, W) float32 -> (N, 1, H, W) float32."""
    N, C, H, W = y.shape
    assert C == 1
    p = patch_size
    pad = p - 1
    assert H >= p and W >= p

    vmem_limit = _vmem_limit_bytes()
    auto_TH, auto_TW = _pick_tiles(H, W, pad, vmem_limit)
    TH = row_tile if row_tile is not None else auto_TH
    TW = col_tile if col_tile is not None else auto_TW
    assert H % TH == 0 and (TH % 8 == 0 or TH == H)
    assert W % TW == 0 and (TW % 128 == 0 or TW == W)
    nTh, nTw = H // TH, W // TW
    THe, TWe = TH + 2 * pad, TW + 2 * pad

    # Glue: zero-pad the image by (p-1) and cut it into per-tile slabs WITH
    # halos, so each grid step's input block is exactly one slab.  VMEM use is
    # ~2 slabs + ~26 tile-sized planes, independent of the image size.
    ypad = jnp.pad(y[:, 0].astype(jnp.float32),
                   ((0, 0), (pad, pad), (pad, pad)))          # (N, Hp, Wp)
    rows = [ypad[:, i * TH:i * TH + THe, :] for i in range(nTh)]
    tiles = jnp.stack(
        [jnp.stack([r[:, :, j * TW:j * TW + TWe] for j in range(nTw)], axis=1)
         for r in rows], axis=1)                              # (N,nTh,nTw,THe,TWe)

    # Bake the two p^2 x p^2 matrices as Python float immediates (no SMEM refs,
    # no per-step scalar loads; Mosaic folds them into the FMA sequence).
    PT = tuple(map(tuple, np.asarray(P_T, np.float32).tolist()))
    PTI = tuple(map(tuple, np.asarray(P_T_inv, np.float32).tolist()))

    kernel = functools.partial(
        dct2net_fused_kernel, p=p, TH=TH, TW=TW, H=H, W=W,
        inv3th=float(1.0 / (3.0 * threshold)), PT=PT, PTI=PTI)

    out = pl.pallas_call(
        kernel,
        out_shape=jax.ShapeDtypeStruct((N, H, W), jnp.float32),
        grid=(N, nTh, nTw),
        in_specs=[pl.BlockSpec((None, None, None, THe, TWe),
                               lambda n, i, j: (n, i, j, 0, 0))],
        out_specs=pl.BlockSpec((None, TH, TW), lambda n, i, j: (n, i, j)),
        compiler_params=pltpu.CompilerParams(
            # All axes independent -> megacore / dual-TC (v7x) can shard any.
            dimension_semantics=("parallel", "parallel", "parallel"),
            vmem_limit_bytes=vmem_limit),
    )(tiles)

    return out[:, None, :, :]                                 # (N, 1, H, W)


# --------------------------------------------------------------------------
# Pure-JAX reference (sanity check only)
# --------------------------------------------------------------------------
def reference_forward(y, P_T, P_T_inv, p, threshold):
    N, _, H, W = y.shape
    Hc, Wc = H - p + 1, W - p + 1
    yi = y[:, 0]
    X = jnp.stack([yi[:, a:a + Hc, b:b + Wc]
                   for a in range(p) for b in range(p)], axis=1)
    c1 = jnp.einsum('km,nmij->nkij', P_T, X)
    xs = c1 / (3.0 * threshold)
    z = xs ** 64
    s = jnp.where(jnp.abs(xs) >= 1.5, 1.0, z / (z + 1.0))
    ys = c1 * s
    w = 1.0 / (1.0 + jnp.sum(s, axis=1, keepdims=True))
    c2 = jnp.einsum('km,nmij->nkij', P_T_inv, ys)
    v = c2 * w
    num = jnp.zeros((N, H, W))
    den = jnp.zeros((N, H, W))
    for a in range(p):
        for b in range(p):
            m = a * p + b
            num = num.at[:, a:a + Hc, b:b + Wc].add(v[:, m])
            den = den.at[:, a:a + Hc, b:b + Wc].add(w[:, 0])
    return (num / den)[:, None]


# --------------------------------------------------------------------------
if __name__ == "__main__":
    patch_size = 4
    threshold = 0.3

    # Deterministic parameters (built in-script, no checkpoint).
    P = make_dct_matrix(patch_size)                        # (p^2, p^2) float32
    P_T = P.T.copy()
    P_T_inv = np.linalg.inv(P.T).astype(np.float32)

    key = jax.random.PRNGKey(0)
    k1, k2 = jax.random.split(key)

    # Case 1: batch of 2, 32x32, explicit 16-row tiles (exercises row halos).
    y1 = jax.random.normal(k1, (2, 1, 32, 32), dtype=jnp.float32)
    o1 = jax.block_until_ready(
        dct2net_forward(y1, P_T, P_T_inv, patch_size, threshold, row_tile=16))
    assert o1.shape == (2, 1, 32, 32)
    r1 = reference_forward(y1, P_T, P_T_inv, patch_size, threshold)
    e1 = float(jnp.max(jnp.abs(o1 - r1)))
    assert e1 < 5e-2, f"case1 mismatch vs reference: {e1}"

    # Case 2: 16x256, explicit 128-col tiles (exercises the lane-dense width
    # tiling axis and column halos).
    y2 = jax.random.normal(k2, (1, 1, 16, 256), dtype=jnp.float32)
    o2 = jax.block_until_ready(
        dct2net_forward(y2, P_T, P_T_inv, patch_size, threshold, col_tile=128))
    assert o2.shape == (1, 1, 16, 256)
    r2 = reference_forward(y2, P_T, P_T_inv, patch_size, threshold)
    e2 = float(jnp.max(jnp.abs(o2 - r2)))
    assert e2 < 5e-2, f"case2 mismatch vs reference: {e2}"

    print("KERNEL_OK")
</pallas_src>

<mosaic_0001>
module attributes {stable_mosaic.version = 11 : i64} {
  func.func @dct2net_fused_kernel(%arg0: i32, %arg1: i32, %arg2: i32, %arg3: memref<1x1x1x22x38xf32, #tpu.memory_space<vmem>>, %arg4: memref<1x16x32xf32, #tpu.memory_space<vmem>>) attributes {dimension_semantics = [#tpu.dimension_semantics<parallel>, #tpu.dimension_semantics<parallel>, #tpu.dimension_semantics<parallel>], iteration_bounds = array<i64: 2, 2, 1>, scalar_prefetch = 0 : i64, scratch_operands = 0 : i64, tpu.core_type = #tpu.core_type<tc>, window_params = [{transform_indices = @transform_0, window_bounds = array<i64: 1, 1, 1, 22, 38>}, {transform_indices = @transform_1, window_bounds = array<i64: 1, 16, 32>}]} {
    %c16_i32 = arith.constant 16 : i32
    %0 = arith.muli %arg1, %c16_i32 : i32
    %c32_i32 = arith.constant 32 : i32
    %1 = arith.muli %arg2, %c32_i32 : i32
    %c0 = arith.constant 0 : index
    %c0_0 = arith.constant 0 : index
    %c0_1 = arith.constant 0 : index
    %c0_2 = arith.constant 0 : index
    %c0_3 = arith.constant 0 : index
    %2 = vector.load %arg3[%c0, %c0_0, %c0_1, %c0_2, %c0_3] : memref<1x1x1x22x38xf32, #tpu.memory_space<vmem>>, vector<1x1x1x22x35xf32>
    %3 = vector.shape_cast %2 : vector<1x1x1x22x35xf32> to vector<22x35xf32>
    %c0_4 = arith.constant 0 : index
    %c0_5 = arith.constant 0 : index
    %c0_6 = arith.constant 0 : index
    %c0_7 = arith.constant 0 : index
    %c1 = arith.constant 1 : index
    %4 = vector.load %arg3[%c0_4, %c0_5, %c0_6, %c0_7, %c1] : memref<1x1x1x22x38xf32, #tpu.memory_space<vmem>>, vector<1x1x1x22x35xf32>
    %5 = vector.shape_cast %4 : vector<1x1x1x22x35xf32> to vector<22x35xf32>
    %c0_8 = arith.constant 0 : index
    %c0_9 = arith.constant 0 : index
    %c0_10 = arith.constant 0 : index
    %c0_11 = arith.constant 0 : index
    %c2 = arith.constant 2 : index
    %6 = vector.load %arg3[%c0_8, %c0_9, %c0_10, %c0_11, %c2] : memref<1x1x1x22x38xf32, #tpu.memory_space<vmem>>, vector<1x1x1x22x35xf32>
    %7 = vector.shape_cast %6 : vector<1x1x1x22x35xf32> to vector<22x35xf32>
    %c0_12 = arith.constant 0 : index
    %c0_13 = arith.constant 0 : index
    %c0_14 = arith.constant 0 : index
    %c0_15 = arith.constant 0 : index
    %c3 = arith.constant 3 : index
    %8 = vector.load %arg3[%c0_12, %c0_13, %c0_14, %c0_15, %c3] : memref<1x1x1x22x38xf32, #tpu.memory_space<vmem>>, vector<1x1x1x22x35xf32>
    %9 = vector.shape_cast %8 : vector<1x1x1x22x35xf32> to vector<22x35xf32>
    %10 = vector.extract_strided_slice %3 {offsets = [0, 0], sizes = [19, 35], strides = [1, 1]} : vector<22x35xf32> to vector<19x35xf32>
    %cst = arith.constant 2.500000e-01 : f32
    %11 = vector.broadcast %cst : f32 to vector<19x35xf32>
    %12 = arith.mulf %10, %11 : vector<19x35xf32>
    %cst_16 = arith.constant 0.326640755 : f32
    %13 = vector.broadcast %cst_16 : f32 to vector<19x35xf32>
    %14 = arith.mulf %10, %13 : vector<19x35xf32>
    %cst_17 = arith.constant 2.500000e-01 : f32
    %15 = vector.broadcast %cst_17 : f32 to vector<19x35xf32>
    %16 = arith.mulf %10, %15 : vector<19x35xf32>
    %cst_18 = arith.constant 0.135299027 : f32
    %17 = vector.broadcast %cst_18 : f32 to vector<19x35xf32>
    %18 = arith.mulf %10, %17 : vector<19x35xf32>
    %cst_19 = arith.constant 0.326640755 : f32
    %19 = vector.broadcast %cst_19 : f32 to vector<19x35xf32>
    %20 = arith.mulf %10, %19 : vector<19x35xf32>
    %cst_20 = arith.constant 0.426776707 : f32
    %21 = vector.broadcast %cst_20 : f32 to vector<19x35xf32>
    %22 = arith.mulf %10, %21 : vector<19x35xf32>
    %cst_21 = arith.constant 0.326640755 : f32
    %23 = vector.broadcast %cst_21 : f32 to vector<19x35xf32>
    %24 = arith.mulf %10, %23 : vector<19x35xf32>
    %cst_22 = arith.constant 0.176776692 : f32
    %25 = vector.broadcast %cst_22 : f32 to vector<19x35xf32>
    %26 = arith.mulf %10, %25 : vector<19x35xf32>
    %cst_23 = arith.constant 2.500000e-01 : f32
    %27 = vector.broadcast %cst_23 : f32 to vector<19x35xf32>
    %28 = arith.mulf %10, %27 : vector<19x35xf32>
    %cst_24 = arith.constant 0.326640755 : f32
    %29 = vector.broadcast %cst_24 : f32 to vector<19x35xf32>
    %30 = arith.mulf %10, %29 : vector<19x35xf32>
    %cst_25 = arith.constant 2.500000e-01 : f32
    %31 = vector.broadcast %cst_25 : f32 to vector<19x35xf32>
    %32 = arith.mulf %10, %31 : vector<19x35xf32>
    %cst_26 = arith.constant 0.135299027 : f32
    %33 = vector.broadcast %cst_26 : f32 to vector<19x35xf32>
    %34 = arith.mulf %10, %33 : vector<19x35xf32>
    %cst_27 = arith.constant 0.135299027 : f32
    %35 = vector.broadcast %cst_27 : f32 to vector<19x35xf32>
    %36 = arith.mulf %10, %35 : vector<19x35xf32>
    %cst_28 = arith.constant 0.176776692 : f32
    %37 = vector.broadcast %cst_28 : f32 to vector<19x35xf32>
    %38 = arith.mulf %10, %37 : vector<19x35xf32>
    %cst_29 = arith.constant 0.135299027 : f32
    %39 = vector.broadcast %cst_29 : f32 to vector<19x35xf32>
    %40 = arith.mulf %10, %39 : vector<19x35xf32>
    %cst_30 = arith.constant 0.0732233077 : f32
    %41 = vector.broadcast %cst_30 : f32 to vector<19x35xf32>
    %42 = arith.mulf %10, %41 : vector<19x35xf32>
    %43 = vector.extract_strided_slice %5 {offsets = [0, 0], sizes = [19, 35], strides = [1, 1]} : vector<22x35xf32> to vector<19x35xf32>
    %cst_31 = arith.constant 2.500000e-01 : f32
    %44 = vector.broadcast %cst_31 : f32 to vector<19x35xf32>
    %45 = arith.mulf %43, %44 : vector<19x35xf32>
    %46 = arith.addf %12, %45 : vector<19x35xf32>
    %cst_32 = arith.constant 0.135299027 : f32
    %47 = vector.broadcast %cst_32 : f32 to vector<19x35xf32>
    %48 = arith.mulf %43, %47 : vector<19x35xf32>
    %49 = arith.addf %14, %48 : vector<19x35xf32>
    %cst_33 = arith.constant -2.500000e-01 : f32
    %50 = vector.broadcast %cst_33 : f32 to vector<19x35xf32>
    %51 = arith.mulf %43, %50 : vector<19x35xf32>
    %52 = arith.addf %16, %51 : vector<19x35xf32>
    %cst_34 = arith.constant -0.326640755 : f32
    %53 = vector.broadcast %cst_34 : f32 to vector<19x35xf32>
    %54 = arith.mulf %43, %53 : vector<19x35xf32>
    %55 = arith.addf %18, %54 : vector<19x35xf32>
    %cst_35 = arith.constant 0.326640755 : f32
    %56 = vector.broadcast %cst_35 : f32 to vector<19x35xf32>
    %57 = arith.mulf %43, %56 : vector<19x35xf32>
    %58 = arith.addf %20, %57 : vector<19x35xf32>
    %cst_36 = arith.constant 0.176776692 : f32
    %59 = vector.broadcast %cst_36 : f32 to vector<19x35xf32>
    %60 = arith.mulf %43, %59 : vector<19x35xf32>
    %61 = arith.addf %22, %60 : vector<19x35xf32>
    %cst_37 = arith.constant -0.326640755 : f32
    %62 = vector.broadcast %cst_37 : f32 to vector<19x35xf32>
    %63 = arith.mulf %43, %62 : vector<19x35xf32>
    %64 = arith.addf %24, %63 : vector<19x35xf32>
    %cst_38 = arith.constant -0.426776707 : f32
    %65 = vector.broadcast %cst_38 : f32 to vector<19x35xf32>
    %66 = arith.mulf %43, %65 : vector<19x35xf32>
    %67 = arith.addf %26, %66 : vector<19x35xf32>
    %cst_39 = arith.constant 2.500000e-01 : f32
    %68 = vector.broadcast %cst_39 : f32 to vector<19x35xf32>
    %69 = arith.mulf %43, %68 : vector<19x35xf32>
    %70 = arith.addf %28, %69 : vector<19x35xf32>
    %cst_40 = arith.constant 0.135299027 : f32
    %71 = vector.broadcast %cst_40 : f32 to vector<19x35xf32>
    %72 = arith.mulf %43, %71 : vector<19x35xf32>
    %73 = arith.addf %30, %72 : vector<19x35xf32>
    %cst_41 = arith.constant -2.500000e-01 : f32
    %74 = vector.broadcast %cst_41 : f32 to vector<19x35xf32>
    %75 = arith.mulf %43, %74 : vector<19x35xf32>
    %76 = arith.addf %32, %75 : vector<19x35xf32>
    %cst_42 = arith.constant -0.326640755 : f32
    %77 = vector.broadcast %cst_42 : f32 to vector<19x35xf32>
    %78 = arith.mulf %43, %77 : vector<19x35xf32>
    %79 = arith.addf %34, %78 : vector<19x35xf32>
    %cst_43 = arith.constant 0.135299027 : f32
    %80 = vector.broadcast %cst_43 : f32 to vector<19x35xf32>
    %81 = arith.mulf %43, %80 : vector<19x35xf32>
    %82 = arith.addf %36, %81 : vector<19x35xf32>
    %cst_44 = arith.constant 0.0732233077 : f32
    %83 = vector.broadcast %cst_44 : f32 to vector<19x35xf32>
    %84 = arith.mulf %43, %83 : vector<19x35xf32>
    %85 = arith.addf %38, %84 : vector<19x35xf32>
    %cst_45 = arith.constant -0.135299027 : f32
    %86 = vector.broadcast %cst_45 : f32 to vector<19x35xf32>
    %87 = arith.mulf %43, %86 : vector<19x35xf32>
    %88 = arith.addf %40, %87 : vector<19x35xf32>
    %cst_46 = arith.constant -0.176776692 : f32
    %89 = vector.broadcast %cst_46 : f32 to vector<19x35xf32>
    %90 = arith.mulf %43, %89 : vector<19x35xf32>
    %91 = arith.addf %42, %90 : vector<19x35xf32>
    %92 = vector.extract_strided_slice %7 {offsets = [0, 0], sizes = [19, 35], strides = [1, 1]} : vector<22x35xf32> to vector<19x35xf32>
    %cst_47 = arith.constant 2.500000e-01 : f32
    %93 = vector.broadcast %cst_47 : f32 to vector<19x35xf32>
    %94 = arith.mulf %92, %93 : vector<19x35xf32>
    %95 = arith.addf %46, %94 : vector<19x35xf32>
    %cst_48 = arith.constant -0.135299027 : f32
    %96 = vector.broadcast %cst_48 : f32 to vector<19x35xf32>
    %97 = arith.mulf %92, %96 : vector<19x35xf32>
    %98 = arith.addf %49, %97 : vector<19x35xf32>
    %cst_49 = arith.constant -2.500000e-01 : f32
    %99 = vector.broadcast %cst_49 : f32 to vector<19x35xf32>
    %100 = arith.mulf %92, %99 : vector<19x35xf32>
    %101 = arith.addf %52, %100 : vector<19x35xf32>
    %cst_50 = arith.constant 0.326640755 : f32
    %102 = vector.broadcast %cst_50 : f32 to vector<19x35xf32>
    %103 = arith.mulf %92, %102 : vector<19x35xf32>
    %104 = arith.addf %55, %103 : vector<19x35xf32>
    %cst_51 = arith.constant 0.326640755 : f32
    %105 = vector.broadcast %cst_51 : f32 to vector<19x35xf32>
    %106 = arith.mulf %92, %105 : vector<19x35xf32>
    %107 = arith.addf %58, %106 : vector<19x35xf32>
    %cst_52 = arith.constant -0.176776692 : f32
    %108 = vector.broadcast %cst_52 : f32 to vector<19x35xf32>
    %109 = arith.mulf %92, %108 : vector<19x35xf32>
    %110 = arith.addf %61, %109 : vector<19x35xf32>
    %cst_53 = arith.constant -0.326640755 : f32
    %111 = vector.broadcast %cst_53 : f32 to vector<19x35xf32>
    %112 = arith.mulf %92, %111 : vector<19x35xf32>
    %113 = arith.addf %64, %112 : vector<19x35xf32>
    %cst_54 = arith.constant 0.426776707 : f32
    %114 = vector.broadcast %cst_54 : f32 to vector<19x35xf32>
    %115 = arith.mulf %92, %114 : vector<19x35xf32>
    %116 = arith.addf %67, %115 : vector<19x35xf32>
    %cst_55 = arith.constant 2.500000e-01 : f32
    %117 = vector.broadcast %cst_55 : f32 to vector<19x35xf32>
    %118 = arith.mulf %92, %117 : vector<19x35xf32>
    %119 = arith.addf %70, %118 : vector<19x35xf32>
    %cst_56 = arith.constant -0.135299027 : f32
    %120 = vector.broadcast %cst_56 : f32 to vector<19x35xf32>
    %121 = arith.mulf %92, %120 : vector<19x35xf32>
    %122 = arith.addf %73, %121 : vector<19x35xf32>
    %cst_57 = arith.constant -2.500000e-01 : f32
    %123 = vector.broadcast %cst_57 : f32 to vector<19x35xf32>
    %124 = arith.mulf %92, %123 : vector<19x35xf32>
    %125 = arith.addf %76, %124 : vector<19x35xf32>
    %cst_58 = arith.constant 0.326640755 : f32
    %126 = vector.broadcast %cst_58 : f32 to vector<19x35xf32>
    %127 = arith.mulf %92, %126 : vector<19x35xf32>
    %128 = arith.addf %79, %127 : vector<19x35xf32>
    %cst_59 = arith.constant 0.135299027 : f32
    %129 = vector.broadcast %cst_59 : f32 to vector<19x35xf32>
    %130 = arith.mulf %92, %129 : vector<19x35xf32>
    %131 = arith.addf %82, %130 : vector<19x35xf32>
    %cst_60 = arith.constant -0.0732233077 : f32
    %132 = vector.broadcast %cst_60 : f32 to vector<19x35xf32>
    %133 = arith.mulf %92, %132 : vector<19x35xf32>
    %134 = arith.addf %85, %133 : vector<19x35xf32>
    %cst_61 = arith.constant -0.135299027 : f32
    %135 = vector.broadcast %cst_61 : f32 to vector<19x35xf32>
    %136 = arith.mulf %92, %135 : vector<19x35xf32>
    %137 = arith.addf %88, %136 : vector<19x35xf32>
    %cst_62 = arith.constant 0.176776692 : f32
    %138 = vector.broadcast %cst_62 : f32 to vector<19x35xf32>
    %139 = arith.mulf %92, %138 : vector<19x35xf32>
    %140 = arith.addf %91, %139 : vector<19x35xf32>
    %141 = vector.extract_strided_slice %9 {offsets = [0, 0], sizes = [19, 35], strides = [1, 1]} : vector<22x35xf32> to vector<19x35xf32>
    %cst_63 = arith.constant 2.500000e-01 : f32
    %142 = vector.broadcast %cst_63 : f32 to vector<19x35xf32>
    %143 = arith.mulf %141, %142 : vector<19x35xf32>
    %144 = arith.addf %95, %143 : vector<19x35xf32>
    %cst_64 = arith.constant -0.326640755 : f32
    %145 = vector.broadcast %cst_64 : f32 to vector<19x35xf32>
    %146 = arith.mulf %141, %145 : vector<19x35xf32>
    %147 = arith.addf %98, %146 : vector<19x35xf32>
    %cst_65 = arith.constant 2.500000e-01 : f32
    %148 = vector.broadcast %cst_65 : f32 to vector<19x35xf32>
    %149 = arith.mulf %141, %148 : vector<19x35xf32>
    %150 = arith.addf %101, %149 : vector<19x35xf32>
    %cst_66 = arith.constant -0.135299027 : f32
    %151 = vector.broadcast %cst_66 : f32 to vector<19x35xf32>
    %152 = arith.mulf %141, %151 : vector<19x35xf32>
    %153 = arith.addf %104, %152 : vector<19x35xf32>
    %cst_67 = arith.constant 0.326640755 : f32
    %154 = vector.broadcast %cst_67 : f32 to vector<19x35xf32>
    %155 = arith.mulf %141, %154 : vector<19x35xf32>
    %156 = arith.addf %107, %155 : vector<19x35xf32>
    %cst_68 = arith.constant -0.426776707 : f32
    %157 = vector.broadcast %cst_68 : f32 to vector<19x35xf32>
    %158 = arith.mulf %141, %157 : vector<19x35xf32>
    %159 = arith.addf %110, %158 : vector<19x35xf32>
    %cst_69 = arith.constant 0.326640755 : f32
    %160 = vector.broadcast %cst_69 : f32 to vector<19x35xf32>
    %161 = arith.mulf %141, %160 : vector<19x35xf32>
    %162 = arith.addf %113, %161 : vector<19x35xf32>
    %cst_70 = arith.constant -0.176776692 : f32
    %163 = vector.broadcast %cst_70 : f32 to vector<19x35xf32>
    %164 = arith.mulf %141, %163 : vector<19x35xf32>
    %165 = arith.addf %116, %164 : vector<19x35xf32>
    %cst_71 = arith.constant 2.500000e-01 : f32
    %166 = vector.broadcast %cst_71 : f32 to vector<19x35xf32>
    %167 = arith.mulf %141, %166 : vector<19x35xf32>
    %168 = arith.addf %119, %167 : vector<19x35xf32>
    %cst_72 = arith.constant -0.326640755 : f32
    %169 = vector.broadcast %cst_72 : f32 to vector<19x35xf32>
    %170 = arith.mulf %141, %169 : vector<19x35xf32>
    %171 = arith.addf %122, %170 : vector<19x35xf32>
    %cst_73 = arith.constant 2.500000e-01 : f32
    %172 = vector.broadcast %cst_73 : f32 to vector<19x35xf32>
    %173 = arith.mulf %141, %172 : vector<19x35xf32>
    %174 = arith.addf %125, %173 : vector<19x35xf32>
    %cst_74 = arith.constant -0.135299027 : f32
    %175 = vector.broadcast %cst_74 : f32 to vector<19x35xf32>
    %176 = arith.mulf %141, %175 : vector<19x35xf32>
    %177 = arith.addf %128, %176 : vector<19x35xf32>
    %cst_75 = arith.constant 0.135299027 : f32
    %178 = vector.broadcast %cst_75 : f32 to vector<19x35xf32>
    %179 = arith.mulf %141, %178 : vector<19x35xf32>
    %180 = arith.addf %131, %179 : vector<19x35xf32>
    %cst_76 = arith.constant -0.176776692 : f32
    %181 = vector.broadcast %cst_76 : f32 to vector<19x35xf32>
    %182 = arith.mulf %141, %181 : vector<19x35xf32>
    %183 = arith.addf %134, %182 : vector<19x35xf32>
    %cst_77 = arith.constant 0.135299027 : f32
    %184 = vector.broadcast %cst_77 : f32 to vector<19x35xf32>
    %185 = arith.mulf %141, %184 : vector<19x35xf32>
    %186 = arith.addf %137, %185 : vector<19x35xf32>
    %cst_78 = arith.constant -0.0732233077 : f32
    %187 = vector.broadcast %cst_78 : f32 to vector<19x35xf32>
    %188 = arith.mulf %141, %187 : vector<19x35xf32>
    %189 = arith.addf %140, %188 : vector<19x35xf32>
    %190 = vector.extract_strided_slice %3 {offsets = [1, 0], sizes = [19, 35], strides = [1, 1]} : vector<22x35xf32> to vector<19x35xf32>
    %cst_79 = arith.constant 2.500000e-01 : f32
    %191 = vector.broadcast %cst_79 : f32 to vector<19x35xf32>
    %192 = arith.mulf %190, %191 : vector<19x35xf32>
    %193 = arith.addf %144, %192 : vector<19x35xf32>
    %cst_80 = arith.constant 0.326640755 : f32
    %194 = vector.broadcast %cst_80 : f32 to vector<19x35xf32>
    %195 = arith.mulf %190, %194 : vector<19x35xf32>
    %196 = arith.addf %147, %195 : vector<19x35xf32>
    %cst_81 = arith.constant 2.500000e-01 : f32
    %197 = vector.broadcast %cst_81 : f32 to vector<19x35xf32>
    %198 = arith.mulf %190, %197 : vector<19x35xf32>
    %199 = arith.addf %150, %198 : vector<19x35xf32>
    %cst_82 = arith.constant 0.135299027 : f32
    %200 = vector.broadcast %cst_82 : f32 to vector<19x35xf32>
    %201 = arith.mulf %190, %200 : vector<19x35xf32>
    %202 = arith.addf %153, %201 : vector<19x35xf32>
    %cst_83 = arith.constant 0.135299027 : f32
    %203 = vector.broadcast %cst_83 : f32 to vector<19x35xf32>
    %204 = arith.mulf %190, %203 : vector<19x35xf32>
    %205 = arith.addf %156, %204 : vector<19x35xf32>
    %cst_84 = arith.constant 0.176776692 : f32
    %206 = vector.broadcast %cst_84 : f32 to vector<19x35xf32>
    %207 = arith.mulf %190, %206 : vector<19x35xf32>
    %208 = arith.addf %159, %207 : vector<19x35xf32>
    %cst_85 = arith.constant 0.135299027 : f32
    %209 = vector.broadcast %cst_85 : f32 to vector<19x35xf32>
    %210 = arith.mulf %190, %209 : vector<19x35xf32>
    %211 = arith.addf %162, %210 : vector<19x35xf32>
    %cst_86 = arith.constant 0.0732233077 : f32
    %212 = vector.broadcast %cst_86 : f32 to vector<19x35xf32>
    %213 = arith.mulf %190, %212 : vector<19x35xf32>
    %214 = arith.addf %165, %213 : vector<19x35xf32>
    %cst_87 = arith.constant -2.500000e-01 : f32
    %215 = vector.broadcast %cst_87 : f32 to vector<19x35xf32>
    %216 = arith.mulf %190, %215 : vector<19x35xf32>
    %217 = arith.addf %168, %216 : vector<19x35xf32>
    %cst_88 = arith.constant -0.326640755 : f32
    %218 = vector.broadcast %cst_88 : f32 to vector<19x35xf32>
    %219 = arith.mulf %190, %218 : vector<19x35xf32>
    %220 = arith.addf %171, %219 : vector<19x35xf32>
    %cst_89 = arith.constant -2.500000e-01 : f32
    %221 = vector.broadcast %cst_89 : f32 to vector<19x35xf32>
    %222 = arith.mulf %190, %221 : vector<19x35xf32>
    %223 = arith.addf %174, %222 : vector<19x35xf32>
    %cst_90 = arith.constant -0.135299027 : f32
    %224 = vector.broadcast %cst_90 : f32 to vector<19x35xf32>
    %225 = arith.mulf %190, %224 : vector<19x35xf32>
    %226 = arith.addf %177, %225 : vector<19x35xf32>
    %cst_91 = arith.constant -0.326640755 : f32
    %227 = vector.broadcast %cst_91 : f32 to vector<19x35xf32>
    %228 = arith.mulf %190, %227 : vector<19x35xf32>
    %229 = arith.addf %180, %228 : vector<19x35xf32>
    %cst_92 = arith.constant -0.426776707 : f32
    %230 = vector.broadcast %cst_92 : f32 to vector<19x35xf32>
    %231 = arith.mulf %190, %230 : vector<19x35xf32>
    %232 = arith.addf %183, %231 : vector<19x35xf32>
    %cst_93 = arith.constant -0.326640755 : f32
    %233 = vector.broadcast %cst_93 : f32 to vector<19x35xf32>
    %234 = arith.mulf %190, %233 : vector<19x35xf32>
    %235 = arith.addf %186, %234 : vector<19x35xf32>
    %cst_94 = arith.constant -0.176776692 : f32
    %236 = vector.broadcast %cst_94 : f32 to vector<19x35xf32>
    %237 = arith.mulf %190, %236 : vector<19x35xf32>
    %238 = arith.addf %189, %237 : vector<19x35xf32>
    %239 = vector.extract_strided_slice %5 {offsets = [1, 0], sizes = [19, 35], strides = [1, 1]} : vector<22x35xf32> to vector<19x35xf32>
    %cst_95 = arith.constant 2.500000e-01 : f32
    %240 = vector.broadcast %cst_95 : f32 to vector<19x35xf32>
    %241 = arith.mulf %239, %240 : vector<19x35xf32>
    %242 = arith.addf %193, %241 : vector<19x35xf32>
    %cst_96 = arith.constant 0.135299027 : f32
    %243 = vector.broadcast %cst_96 : f32 to vector<19x35xf32>
    %244 = arith.mulf %239, %243 : vector<19x35xf32>
    %245 = arith.addf %196, %244 : vector<19x35xf32>
    %cst_97 = arith.constant -2.500000e-01 : f32
    %246 = vector.broadcast %cst_97 : f32 to vector<19x35xf32>
    %247 = arith.mulf %239, %246 : vector<19x35xf32>
    %248 = arith.addf %199, %247 : vector<19x35xf32>
    %cst_98 = arith.constant -0.326640755 : f32
    %249 = vector.broadcast %cst_98 : f32 to vector<19x35xf32>
    %250 = arith.mulf %239, %249 : vector<19x35xf32>
    %251 = arith.addf %202, %250 : vector<19x35xf32>
    %cst_99 = arith.constant 0.135299027 : f32
    %252 = vector.broadcast %cst_99 : f32 to vector<19x35xf32>
    %253 = arith.mulf %239, %252 : vector<19x35xf32>
    %254 = arith.addf %205, %253 : vector<19x35xf32>
    %cst_100 = arith.constant 0.0732233077 : f32
    %255 = vector.broadcast %cst_100 : f32 to vector<19x35xf32>
    %256 = arith.mulf %239, %255 : vector<19x35xf32>
    %257 = arith.addf %208, %256 : vector<19x35xf32>
    %cst_101 = arith.constant -0.135299027 : f32
    %258 = vector.broadcast %cst_101 : f32 to vector<19x35xf32>
    %259 = arith.mulf %239, %258 : vector<19x35xf32>
    %260 = arith.addf %211, %259 : vector<19x35xf32>
    %cst_102 = arith.constant -0.176776692 : f32
    %261 = vector.broadcast %cst_102 : f32 to vector<19x35xf32>
    %262 = arith.mulf %239, %261 : vector<19x35xf32>
    %263 = arith.addf %214, %262 : vector<19x35xf32>
    %cst_103 = arith.constant -2.500000e-01 : f32
    %264 = vector.broadcast %cst_103 : f32 to vector<19x35xf32>
    %265 = arith.mulf %239, %264 : vector<19x35xf32>
    %266 = arith.addf %217, %265 : vector<19x35xf32>
    %cst_104 = arith.constant -0.135299027 : f32
    %267 = vector.broadcast %cst_104 : f32 to vector<19x35xf32>
    %268 = arith.mulf %239, %267 : vector<19x35xf32>
    %269 = arith.addf %220, %268 : vector<19x35xf32>
    %cst_105 = arith.constant 2.500000e-01 : f32
    %270 = vector.broadcast %cst_105 : f32 to vector<19x35xf32>
    %271 = arith.mulf %239, %270 : vector<19x35xf32>
    %272 = arith.addf %223, %271 : vector<19x35xf32>
    %cst_106 = arith.constant 0.326640755 : f32
    %273 = vector.broadcast %cst_106 : f32 to vector<19x35xf32>
    %274 = arith.mulf %239, %273 : vector<19x35xf32>
    %275 = arith.addf %226, %274 : vector<19x35xf32>
    %cst_107 = arith.constant -0.326640755 : f32
    %276 = vector.broadcast %cst_107 : f32 to vector<19x35xf32>
    %277 = arith.mulf %239, %276 : vector<19x35xf32>
    %278 = arith.addf %229, %277 : vector<19x35xf32>
    %cst_108 = arith.constant -0.176776692 : f32
    %279 = vector.broadcast %cst_108 : f32 to vector<19x35xf32>
    %280 = arith.mulf %239, %279 : vector<19x35xf32>
    %281 = arith.addf %232, %280 : vector<19x35xf32>
    %cst_109 = arith.constant 0.326640755 : f32
    %282 = vector.broadcast %cst_109 : f32 to vector<19x35xf32>
    %283 = arith.mulf %239, %282 : vector<19x35xf32>
    %284 = arith.addf %235, %283 : vector<19x35xf32>
    %cst_110 = arith.constant 0.426776707 : f32
    %285 = vector.broadcast %cst_110 : f32 to vector<19x35xf32>
    %286 = arith.mulf %239, %285 : vector<19x35xf32>
    %287 = arith.addf %238, %286 : vector<19x35xf32>
    %288 = vector.extract_strided_slice %7 {offsets = [1, 0], sizes = [19, 35], strides = [1, 1]} : vector<22x35xf32> to vector<19x35xf32>
    %cst_111 = arith.constant 2.500000e-01 : f32
    %289 = vector.broadcast %cst_111 : f32 to vector<19x35xf32>
    %290 = arith.mulf %288, %289 : vector<19x35xf32>
    %291 = arith.addf %242, %290 : vector<19x35xf32>
    %cst_112 = arith.constant -0.135299027 : f32
    %292 = vector.broadcast %cst_112 : f32 to vector<19x35xf32>
    %293 = arith.mulf %288, %292 : vector<19x35xf32>
    %294 = arith.addf %245, %293 : vector<19x35xf32>
    %cst_113 = arith.constant -2.500000e-01 : f32
    %295 = vector.broadcast %cst_113 : f32 to vector<19x35xf32>
    %296 = arith.mulf %288, %295 : vector<19x35xf32>
    %297 = arith.addf %248, %296 : vector<19x35xf32>
    %cst_114 = arith.constant 0.326640755 : f32
    %298 = vector.broadcast %cst_114 : f32 to vector<19x35xf32>
    %299 = arith.mulf %288, %298 : vector<19x35xf32>
    %300 = arith.addf %251, %299 : vector<19x35xf32>
    %cst_115 = arith.constant 0.135299027 : f32
    %301 = vector.broadcast %cst_115 : f32 to vector<19x35xf32>
    %302 = arith.mulf %288, %301 : vector<19x35xf32>
    %303 = arith.addf %254, %302 : vector<19x35xf32>
    %cst_116 = arith.constant -0.0732233077 : f32
    %304 = vector.broadcast %cst_116 : f32 to vector<19x35xf32>
    %305 = arith.mulf %288, %304 : vector<19x35xf32>
    %306 = arith.addf %257, %305 : vector<19x35xf32>
    %cst_117 = arith.constant -0.135299027 : f32
    %307 = vector.broadcast %cst_117 : f32 to vector<19x35xf32>
    %308 = arith.mulf %288, %307 : vector<19x35xf32>
    %309 = arith.addf %260, %308 : vector<19x35xf32>
    %cst_118 = arith.constant 0.176776692 : f32
    %310 = vector.broadcast %cst_118 : f32 to vector<19x35xf32>
    %311 = arith.mulf %288, %310 : vector<19x35xf32>
    %312 = arith.addf %263, %311 : vector<19x35xf32>
    %cst_119 = arith.constant -2.500000e-01 : f32
    %313 = vector.broadcast %cst_119 : f32 to vector<19x35xf32>
    %314 = arith.mulf %288, %313 : vector<19x35xf32>
    %315 = arith.addf %266, %314 : vector<19x35xf32>
    %cst_120 = arith.constant 0.135299027 : f32
    %316 = vector.broadcast %cst_120 : f32 to vector<19x35xf32>
    %317 = arith.mulf %288, %316 : vector<19x35xf32>
    %318 = arith.addf %269, %317 : vector<19x35xf32>
    %cst_121 = arith.constant 2.500000e-01 : f32
    %319 = vector.broadcast %cst_121 : f32 to vector<19x35xf32>
    %320 = arith.mulf %288, %319 : vector<19x35xf32>
    %321 = arith.addf %272, %320 : vector<19x35xf32>
    %cst_122 = arith.constant -0.326640755 : f32
    %322 = vector.broadcast %cst_122 : f32 to vector<19x35xf32>
    %323 = arith.mulf %288, %322 : vector<19x35xf32>
    %324 = arith.addf %275, %323 : vector<19x35xf32>
    %cst_123 = arith.constant -0.326640755 : f32
    %325 = vector.broadcast %cst_123 : f32 to vector<19x35xf32>
    %326 = arith.mulf %288, %325 : vector<19x35xf32>
    %327 = arith.addf %278, %326 : vector<19x35xf32>
    %cst_124 = arith.constant 0.176776692 : f32
    %328 = vector.broadcast %cst_124 : f32 to vector<19x35xf32>
    %329 = arith.mulf %288, %328 : vector<19x35xf32>
    %330 = arith.addf %281, %329 : vector<19x35xf32>
    %cst_125 = arith.constant 0.326640755 : f32
    %331 = vector.broadcast %cst_125 : f32 to vector<19x35xf32>
    %332 = arith.mulf %288, %331 : vector<19x35xf32>
    %333 = arith.addf %284, %332 : vector<19x35xf32>
    %cst_126 = arith.constant -0.426776707 : f32
    %334 = vector.broadcast %cst_126 : f32 to vector<19x35xf32>
    %335 = arith.mulf %288, %334 : vector<19x35xf32>
    %336 = arith.addf %287, %335 : vector<19x35xf32>
    %337 = vector.extract_strided_slice %9 {offsets = [1, 0], sizes = [19, 35], strides = [1, 1]} : vector<22x35xf32> to vector<19x35xf32>
    %cst_127 = arith.constant 2.500000e-01 : f32
    %338 = vector.broadcast %cst_127 : f32 to vector<19x35xf32>
    %339 = arith.mulf %337, %338 : vector<19x35xf32>
    %340 = arith.addf %291, %339 : vector<19x35xf32>
    %cst_128 = arith.constant -0.326640755 : f32
    %341 = vector.broadcast %cst_128 : f32 to vector<19x35xf32>
    %342 = arith.mulf %337, %341 : vector<19x35xf32>
    %343 = arith.addf %294, %342 : vector<19x35xf32>
    %cst_129 = arith.constant 2.500000e-01 : f32
    %344 = vector.broadcast %cst_129 : f32 to vector<19x35xf32>
    %345 = arith.mulf %337, %344 : vector<19x35xf32>
    %346 = arith.addf %297, %345 : vector<19x35xf32>
    %cst_130 = arith.constant -0.135299027 : f32
    %347 = vector.broadcast %cst_130 : f32 to vector<19x35xf32>
    %348 = arith.mulf %337, %347 : vector<19x35xf32>
    %349 = arith.addf %300, %348 : vector<19x35xf32>
    %cst_131 = arith.constant 0.135299027 : f32
    %350 = vector.broadcast %cst_131 : f32 to vector<19x35xf32>
    %351 = arith.mulf %337, %350 : vector<19x35xf32>
    %352 = arith.addf %303, %351 : vector<19x35xf32>
    %cst_132 = arith.constant -0.176776692 : f32
    %353 = vector.broadcast %cst_132 : f32 to vector<19x35xf32>
    %354 = arith.mulf %337, %353 : vector<19x35xf32>
    %355 = arith.addf %306, %354 : vector<19x35xf32>
    %cst_133 = arith.constant 0.135299027 : f32
    %356 = vector.broadcast %cst_133 : f32 to vector<19x35xf32>
    %357 = arith.mulf %337, %356 : vector<19x35xf32>
    %358 = arith.addf %309, %357 : vector<19x35xf32>
    %cst_134 = arith.constant -0.0732233077 : f32
    %359 = vector.broadcast %cst_134 : f32 to vector<19x35xf32>
    %360 = arith.mulf %337, %359 : vector<19x35xf32>
    %361 = arith.addf %312, %360 : vector<19x35xf32>
    %cst_135 = arith.constant -2.500000e-01 : f32
    %362 = vector.broadcast %cst_135 : f32 to vector<19x35xf32>
    %363 = arith.mulf %337, %362 : vector<19x35xf32>
    %364 = arith.addf %315, %363 : vector<19x35xf32>
    %cst_136 = arith.constant 0.326640755 : f32
    %365 = vector.broadcast %cst_136 : f32 to vector<19x35xf32>
    %366 = arith.mulf %337, %365 : vector<19x35xf32>
    %367 = arith.addf %318, %366 : vector<19x35xf32>
    %cst_137 = arith.constant -2.500000e-01 : f32
    %368 = vector.broadcast %cst_137 : f32 to vector<19x35xf32>
    %369 = arith.mulf %337, %368 : vector<19x35xf32>
    %370 = arith.addf %321, %369 : vector<19x35xf32>
    %cst_138 = arith.constant 0.135299027 : f32
    %371 = vector.broadcast %cst_138 : f32 to vector<19x35xf32>
    %372 = arith.mulf %337, %371 : vector<19x35xf32>
    %373 = arith.addf %324, %372 : vector<19x35xf32>
    %cst_139 = arith.constant -0.326640755 : f32
    %374 = vector.broadcast %cst_139 : f32 to vector<19x35xf32>
    %375 = arith.mulf %337, %374 : vector<19x35xf32>
    %376 = arith.addf %327, %375 : vector<19x35xf32>
    %cst_140 = arith.constant 0.426776707 : f32
    %377 = vector.broadcast %cst_140 : f32 to vector<19x35xf32>
    %378 = arith.mulf %337, %377 : vector<19x35xf32>
    %379 = arith.addf %330, %378 : vector<19x35xf32>
    %cst_141 = arith.constant -0.326640755 : f32
    %380 = vector.broadcast %cst_141 : f32 to vector<19x35xf32>
    %381 = arith.mulf %337, %380 : vector<19x35xf32>
    %382 = arith.addf %333, %381 : vector<19x35xf32>
    %cst_142 = arith.constant 0.176776692 : f32
    %383 = vector.broadcast %cst_142 : f32 to vector<19x35xf32>
    %384 = arith.mulf %337, %383 : vector<19x35xf32>
    %385 = arith.addf %336, %384 : vector<19x35xf32>
    %386 = vector.extract_strided_slice %3 {offsets = [2, 0], sizes = [19, 35], strides = [1, 1]} : vector<22x35xf32> to vector<19x35xf32>
    %cst_143 = arith.constant 2.500000e-01 : f32
    %387 = vector.broadcast %cst_143 : f32 to vector<19x35xf32>
    %388 = arith.mulf %386, %387 : vector<19x35xf32>
    %389 = arith.addf %340, %388 : vector<19x35xf32>
    %cst_144 = arith.constant 0.326640755 : f32
    %390 = vector.broadcast %cst_144 : f32 to vector<19x35xf32>
    %391 = arith.mulf %386, %390 : vector<19x35xf32>
    %392 = arith.addf %343, %391 : vector<19x35xf32>
    %cst_145 = arith.constant 2.500000e-01 : f32
    %393 = vector.broadcast %cst_145 : f32 to vector<19x35xf32>
    %394 = arith.mulf %386, %393 : vector<19x35xf32>
    %395 = arith.addf %346, %394 : vector<19x35xf32>
    %cst_146 = arith.constant 0.135299027 : f32
    %396 = vector.broadcast %cst_146 : f32 to vector<19x35xf32>
    %397 = arith.mulf %386, %396 : vector<19x35xf32>
    %398 = arith.addf %349, %397 : vector<19x35xf32>
    %cst_147 = arith.constant -0.135299027 : f32
    %399 = vector.broadcast %cst_147 : f32 to vector<19x35xf32>
    %400 = arith.mulf %386, %399 : vector<19x35xf32>
    %401 = arith.addf %352, %400 : vector<19x35xf32>
    %cst_148 = arith.constant -0.176776692 : f32
    %402 = vector.broadcast %cst_148 : f32 to vector<19x35xf32>
    %403 = arith.mulf %386, %402 : vector<19x35xf32>
    %404 = arith.addf %355, %403 : vector<19x35xf32>
    %cst_149 = arith.constant -0.135299027 : f32
    %405 = vector.broadcast %cst_149 : f32 to vector<19x35xf32>
    %406 = arith.mulf %386, %405 : vector<19x35xf32>
    %407 = arith.addf %358, %406 : vector<19x35xf32>
    %cst_150 = arith.constant -0.0732233077 : f32
    %408 = vector.broadcast %cst_150 : f32 to vector<19x35xf32>
    %409 = arith.mulf %386, %408 : vector<19x35xf32>
    %410 = arith.addf %361, %409 : vector<19x35xf32>
    %cst_151 = arith.constant -2.500000e-01 : f32
    %411 = vector.broadcast %cst_151 : f32 to vector<19x35xf32>
    %412 = arith.mulf %386, %411 : vector<19x35xf32>
    %413 = arith.addf %364, %412 : vector<19x35xf32>
    %cst_152 = arith.constant -0.326640755 : f32
    %414 = vector.broadcast %cst_152 : f32 to vector<19x35xf32>
    %415 = arith.mulf %386, %414 : vector<19x35xf32>
    %416 = arith.addf %367, %415 : vector<19x35xf32>
    %cst_153 = arith.constant -2.500000e-01 : f32
    %417 = vector.broadcast %cst_153 : f32 to vector<19x35xf32>
    %418 = arith.mulf %386, %417 : vector<19x35xf32>
    %419 = arith.addf %370, %418 : vector<19x35xf32>
    %cst_154 = arith.constant -0.135299027 : f32
    %420 = vector.broadcast %cst_154 : f32 to vector<19x35xf32>
    %421 = arith.mulf %386, %420 : vector<19x35xf32>
    %422 = arith.addf %373, %421 : vector<19x35xf32>
    %cst_155 = arith.constant 0.326640755 : f32
    %423 = vector.broadcast %cst_155 : f32 to vector<19x35xf32>
    %424 = arith.mulf %386, %423 : vector<19x35xf32>
    %425 = arith.addf %376, %424 : vector<19x35xf32>
    %cst_156 = arith.constant 0.426776707 : f32
    %426 = vector.broadcast %cst_156 : f32 to vector<19x35xf32>
    %427 = arith.mulf %386, %426 : vector<19x35xf32>
    %428 = arith.addf %379, %427 : vector<19x35xf32>
    %cst_157 = arith.constant 0.326640755 : f32
    %429 = vector.broadcast %cst_157 : f32 to vector<19x35xf32>
    %430 = arith.mulf %386, %429 : vector<19x35xf32>
    %431 = arith.addf %382, %430 : vector<19x35xf32>
    %cst_158 = arith.constant 0.176776692 : f32
    %432 = vector.broadcast %cst_158 : f32 to vector<19x35xf32>
    %433 = arith.mulf %386, %432 : vector<19x35xf32>
    %434 = arith.addf %385, %433 : vector<19x35xf32>
    %435 = vector.extract_strided_slice %5 {offsets = [2, 0], sizes = [19, 35], strides = [1, 1]} : vector<22x35xf32> to vector<19x35xf32>
    %cst_159 = arith.constant 2.500000e-01 : f32
    %436 = vector.broadcast %cst_159 : f32 to vector<19x35xf32>
    %437 = arith.mulf %435, %436 : vector<19x35xf32>
    %438 = arith.addf %389, %437 : vector<19x35xf32>
    %cst_160 = arith.constant 0.135299027 : f32
    %439 = vector.broadcast %cst_160 : f32 to vector<19x35xf32>
    %440 = arith.mulf %435, %439 : vector<19x35xf32>
    %441 = arith.addf %392, %440 : vector<19x35xf32>
    %cst_161 = arith.constant -2.500000e-01 : f32
    %442 = vector.broadcast %cst_161 : f32 to vector<19x35xf32>
    %443 = arith.mulf %435, %442 : vector<19x35xf32>
    %444 = arith.addf %395, %443 : vector<19x35xf32>
    %cst_162 = arith.constant -0.326640755 : f32
    %445 = vector.broadcast %cst_162 : f32 to vector<19x35xf32>
    %446 = arith.mulf %435, %445 : vector<19x35xf32>
    %447 = arith.addf %398, %446 : vector<19x35xf32>
    %cst_163 = arith.constant -0.135299027 : f32
    %448 = vector.broadcast %cst_163 : f32 to vector<19x35xf32>
    %449 = arith.mulf %435, %448 : vector<19x35xf32>
    %450 = arith.addf %401, %449 : vector<19x35xf32>
    %cst_164 = arith.constant -0.0732233077 : f32
    %451 = vector.broadcast %cst_164 : f32 to vector<19x35xf32>
    %452 = arith.mulf %435, %451 : vector<19x35xf32>
    %453 = arith.addf %404, %452 : vector<19x35xf32>
    %cst_165 = arith.constant 0.135299027 : f32
    %454 = vector.broadcast %cst_165 : f32 to vector<19x35xf32>
    %455 = arith.mulf %435, %454 : vector<19x35xf32>
    %456 = arith.addf %407, %455 : vector<19x35xf32>
    %cst_166 = arith.constant 0.176776692 : f32
    %457 = vector.broadcast %cst_166 : f32 to vector<19x35xf32>
    %458 = arith.mulf %435, %457 : vector<19x35xf32>
    %459 = arith.addf %410, %458 : vector<19x35xf32>
    %cst_167 = arith.constant -2.500000e-01 : f32
    %460 = vector.broadcast %cst_167 : f32 to vector<19x35xf32>
    %461 = arith.mulf %435, %460 : vector<19x35xf32>
    %462 = arith.addf %413, %461 : vector<19x35xf32>
    %cst_168 = arith.constant -0.135299027 : f32
    %463 = vector.broadcast %cst_168 : f32 to vector<19x35xf32>
    %464 = arith.mulf %435, %463 : vector<19x35xf32>
    %465 = arith.addf %416, %464 : vector<19x35xf32>
    %cst_169 = arith.constant 2.500000e-01 : f32
    %466 = vector.broadcast %cst_169 : f32 to vector<19x35xf32>
    %467 = arith.mulf %435, %466 : vector<19x35xf32>
    %468 = arith.addf %419, %467 : vector<19x35xf32>
    %cst_170 = arith.constant 0.326640755 : f32
    %469 = vector.broadcast %cst_170 : f32 to vector<19x35xf32>
    %470 = arith.mulf %435, %469 : vector<19x35xf32>
    %471 = arith.addf %422, %470 : vector<19x35xf32>
    %cst_171 = arith.constant 0.326640755 : f32
    %472 = vector.broadcast %cst_171 : f32 to vector<19x35xf32>
    %473 = arith.mulf %435, %472 : vector<19x35xf32>
    %474 = arith.addf %425, %473 : vector<19x35xf32>
    %cst_172 = arith.constant 0.176776692 : f32
    %475 = vector.broadcast %cst_172 : f32 to vector<19x35xf32>
    %476 = arith.mulf %435, %475 : vector<19x35xf32>
    %477 = arith.addf %428, %476 : vector<19x35xf32>
    %cst_173 = arith.constant -0.326640755 : f32
    %478 = vector.broadcast %cst_173 : f32 to vector<19x35xf32>
    %479 = arith.mulf %435, %478 : vector<19x35xf32>
    %480 = arith.addf %431, %479 : vector<19x35xf32>
    %cst_174 = arith.constant -0.426776707 : f32
    %481 = vector.broadcast %cst_174 : f32 to vector<19x35xf32>
    %482 = arith.mulf %435, %481 : vector<19x35xf32>
    %483 = arith.addf %434, %482 : vector<19x35xf32>
    %484 = vector.extract_strided_slice %7 {offsets = [2, 0], sizes = [19, 35], strides = [1, 1]} : vector<22x35xf32> to vector<19x35xf32>
    %cst_175 = arith.constant 2.500000e-01 : f32
    %485 = vector.broadcast %cst_175 : f32 to vector<19x35xf32>
    %486 = arith.mulf %484, %485 : vector<19x35xf32>
    %487 = arith.addf %438, %486 : vector<19x35xf32>
    %cst_176 = arith.constant -0.135299027 : f32
    %488 = vector.broadcast %cst_176 : f32 to vector<19x35xf32>
    %489 = arith.mulf %484, %488 : vector<19x35xf32>
    %490 = arith.addf %441, %489 : vector<19x35xf32>
    %cst_177 = arith.constant -2.500000e-01 : f32
    %491 = vector.broadcast %cst_177 : f32 to vector<19x35xf32>
    %492 = arith.mulf %484, %491 : vector<19x35xf32>
    %493 = arith.addf %444, %492 : vector<19x35xf32>
    %cst_178 = arith.constant 0.326640755 : f32
    %494 = vector.broadcast %cst_178 : f32 to vector<19x35xf32>
    %495 = arith.mulf %484, %494 : vector<19x35xf32>
    %496 = arith.addf %447, %495 : vector<19x35xf32>
    %cst_179 = arith.constant -0.135299027 : f32
    %497 = vector.broadcast %cst_179 : f32 to vector<19x35xf32>
    %498 = arith.mulf %484, %497 : vector<19x35xf32>
    %499 = arith.addf %450, %498 : vector<19x35xf32>
    %cst_180 = arith.constant 0.0732233077 : f32
    %500 = vector.broadcast %cst_180 : f32 to vector<19x35xf32>
    %501 = arith.mulf %484, %500 : vector<19x35xf32>
    %502 = arith.addf %453, %501 : vector<19x35xf32>
    %cst_181 = arith.constant 0.135299027 : f32
    %503 = vector.broadcast %cst_181 : f32 to vector<19x35xf32>
    %504 = arith.mulf %484, %503 : vector<19x35xf32>
    %505 = arith.addf %456, %504 : vector<19x35xf32>
    %cst_182 = arith.constant -0.176776692 : f32
    %506 = vector.broadcast %cst_182 : f32 to vector<19x35xf32>
    %507 = arith.mulf %484, %506 : vector<19x35xf32>
    %508 = arith.addf %459, %507 : vector<19x35xf32>
    %cst_183 = arith.constant -2.500000e-01 : f32
    %509 = vector.broadcast %cst_183 : f32 to vector<19x35xf32>
    %510 = arith.mulf %484, %509 : vector<19x35xf32>
    %511 = arith.addf %462, %510 : vector<19x35xf32>
    %cst_184 = arith.constant 0.135299027 : f32
    %512 = vector.broadcast %cst_184 : f32 to vector<19x35xf32>
    %513 = arith.mulf %484, %512 : vector<19x35xf32>
    %514 = arith.addf %465, %513 : vector<19x35xf32>
    %cst_185 = arith.constant 2.500000e-01 : f32
    %515 = vector.broadcast %cst_185 : f32 to vector<19x35xf32>
    %516 = arith.mulf %484, %515 : vector<19x35xf32>
    %517 = arith.addf %468, %516 : vector<19x35xf32>
    %cst_186 = arith.constant -0.326640755 : f32
    %518 = vector.broadcast %cst_186 : f32 to vector<19x35xf32>
    %519 = arith.mulf %484, %518 : vector<19x35xf32>
    %520 = arith.addf %471, %519 : vector<19x35xf32>
    %cst_187 = arith.constant 0.326640755 : f32
    %521 = vector.broadcast %cst_187 : f32 to vector<19x35xf32>
    %522 = arith.mulf %484, %521 : vector<19x35xf32>
    %523 = arith.addf %474, %522 : vector<19x35xf32>
    %cst_188 = arith.constant -0.176776692 : f32
    %524 = vector.broadcast %cst_188 : f32 to vector<19x35xf32>
    %525 = arith.mulf %484, %524 : vector<19x35xf32>
    %526 = arith.addf %477, %525 : vector<19x35xf32>
    %cst_189 = arith.constant -0.326640755 : f32
    %527 = vector.broadcast %cst_189 : f32 to vector<19x35xf32>
    %528 = arith.mulf %484, %527 : vector<19x35xf32>
    %529 = arith.addf %480, %528 : vector<19x35xf32>
    %cst_190 = arith.constant 0.426776707 : f32
    %530 = vector.broadcast %cst_190 : f32 to vector<19x35xf32>
    %531 = arith.mulf %484, %530 : vector<19x35xf32>
    %532 = arith.addf %483, %531 : vector<19x35xf32>
    %533 = vector.extract_strided_slice %9 {offsets = [2, 0], sizes = [19, 35], strides = [1, 1]} : vector<22x35xf32> to vector<19x35xf32>
    %cst_191 = arith.constant 2.500000e-01 : f32
    %534 = vector.broadcast %cst_191 : f32 to vector<19x35xf32>
    %535 = arith.mulf %533, %534 : vector<19x35xf32>
    %536 = arith.addf %487, %535 : vector<19x35xf32>
    %cst_192 = arith.constant -0.326640755 : f32
    %537 = vector.broadcast %cst_192 : f32 to vector<19x35xf32>
    %538 = arith.mulf %533, %537 : vector<19x35xf32>
    %539 = arith.addf %490, %538 : vector<19x35xf32>
    %cst_193 = arith.constant 2.500000e-01 : f32
    %540 = vector.broadcast %cst_193 : f32 to vector<19x35xf32>
    %541 = arith.mulf %533, %540 : vector<19x35xf32>
    %542 = arith.addf %493, %541 : vector<19x35xf32>
    %cst_194 = arith.constant -0.135299027 : f32
    %543 = vector.broadcast %cst_194 : f32 to vector<19x35xf32>
    %544 = arith.mulf %533, %543 : vector<19x35xf32>
    %545 = arith.addf %496, %544 : vector<19x35xf32>
    %cst_195 = arith.constant -0.135299027 : f32
    %546 = vector.broadcast %cst_195 : f32 to vector<19x35xf32>
    %547 = arith.mulf %533, %546 : vector<19x35xf32>
    %548 = arith.addf %499, %547 : vector<19x35xf32>
    %cst_196 = arith.constant 0.176776692 : f32
    %549 = vector.broadcast %cst_196 : f32 to vector<19x35xf32>
    %550 = arith.mulf %533, %549 : vector<19x35xf32>
    %551 = arith.addf %502, %550 : vector<19x35xf32>
    %cst_197 = arith.constant -0.135299027 : f32
    %552 = vector.broadcast %cst_197 : f32 to vector<19x35xf32>
    %553 = arith.mulf %533, %552 : vector<19x35xf32>
    %554 = arith.addf %505, %553 : vector<19x35xf32>
    %cst_198 = arith.constant 0.0732233077 : f32
    %555 = vector.broadcast %cst_198 : f32 to vector<19x35xf32>
    %556 = arith.mulf %533, %555 : vector<19x35xf32>
    %557 = arith.addf %508, %556 : vector<19x35xf32>
    %cst_199 = arith.constant -2.500000e-01 : f32
    %558 = vector.broadcast %cst_199 : f32 to vector<19x35xf32>
    %559 = arith.mulf %533, %558 : vector<19x35xf32>
    %560 = arith.addf %511, %559 : vector<19x35xf32>
    %cst_200 = arith.constant 0.326640755 : f32
    %561 = vector.broadcast %cst_200 : f32 to vector<19x35xf32>
    %562 = arith.mulf %533, %561 : vector<19x35xf32>
    %563 = arith.addf %514, %562 : vector<19x35xf32>
    %cst_201 = arith.constant -2.500000e-01 : f32
    %564 = vector.broadcast %cst_201 : f32 to vector<19x35xf32>
    %565 = arith.mulf %533, %564 : vector<19x35xf32>
    %566 = arith.addf %517, %565 : vector<19x35xf32>
    %cst_202 = arith.constant 0.135299027 : f32
    %567 = vector.broadcast %cst_202 : f32 to vector<19x35xf32>
    %568 = arith.mulf %533, %567 : vector<19x35xf32>
    %569 = arith.addf %520, %568 : vector<19x35xf32>
    %cst_203 = arith.constant 0.326640755 : f32
    %570 = vector.broadcast %cst_203 : f32 to vector<19x35xf32>
    %571 = arith.mulf %533, %570 : vector<19x35xf32>
    %572 = arith.addf %523, %571 : vector<19x35xf32>
    %cst_204 = arith.constant -0.426776707 : f32
    %573 = vector.broadcast %cst_204 : f32 to vector<19x35xf32>
    %574 = arith.mulf %533, %573 : vector<19x35xf32>
    %575 = arith.addf %526, %574 : vector<19x35xf32>
    %cst_205 = arith.constant 0.326640755 : f32
    %576 = vector.broadcast %cst_205 : f32 to vector<19x35xf32>
    %577 = arith.mulf %533, %576 : vector<19x35xf32>
    %578 = arith.addf %529, %577 : vector<19x35xf32>
    %cst_206 = arith.constant -0.176776692 : f32
    %579 = vector.broadcast %cst_206 : f32 to vector<19x35xf32>
    %580 = arith.mulf %533, %579 : vector<19x35xf32>
    %581 = arith.addf %532, %580 : vector<19x35xf32>
    %582 = vector.extract_strided_slice %3 {offsets = [3, 0], sizes = [19, 35], strides = [1, 1]} : vector<22x35xf32> to vector<19x35xf32>
    %cst_207 = arith.constant 2.500000e-01 : f32
    %583 = vector.broadcast %cst_207 : f32 to vector<19x35xf32>
    %584 = arith.mulf %582, %583 : vector<19x35xf32>
    %585 = arith.addf %536, %584 : vector<19x35xf32>
    %cst_208 = arith.constant 0.326640755 : f32
    %586 = vector.broadcast %cst_208 : f32 to vector<19x35xf32>
    %587 = arith.mulf %582, %586 : vector<19x35xf32>
    %588 = arith.addf %539, %587 : vector<19x35xf32>
    %cst_209 = arith.constant 2.500000e-01 : f32
    %589 = vector.broadcast %cst_209 : f32 to vector<19x35xf32>
    %590 = arith.mulf %582, %589 : vector<19x35xf32>
    %591 = arith.addf %542, %590 : vector<19x35xf32>
    %cst_210 = arith.constant 0.135299027 : f32
    %592 = vector.broadcast %cst_210 : f32 to vector<19x35xf32>
    %593 = arith.mulf %582, %592 : vector<19x35xf32>
    %594 = arith.addf %545, %593 : vector<19x35xf32>
    %cst_211 = arith.constant -0.326640755 : f32
    %595 = vector.broadcast %cst_211 : f32 to vector<19x35xf32>
    %596 = arith.mulf %582, %595 : vector<19x35xf32>
    %597 = arith.addf %548, %596 : vector<19x35xf32>
    %cst_212 = arith.constant -0.426776707 : f32
    %598 = vector.broadcast %cst_212 : f32 to vector<19x35xf32>
    %599 = arith.mulf %582, %598 : vector<19x35xf32>
    %600 = arith.addf %551, %599 : vector<19x35xf32>
    %cst_213 = arith.constant -0.326640755 : f32
    %601 = vector.broadcast %cst_213 : f32 to vector<19x35xf32>
    %602 = arith.mulf %582, %601 : vector<19x35xf32>
    %603 = arith.addf %554, %602 : vector<19x35xf32>
    %cst_214 = arith.constant -0.176776692 : f32
    %604 = vector.broadcast %cst_214 : f32 to vector<19x35xf32>
    %605 = arith.mulf %582, %604 : vector<19x35xf32>
    %606 = arith.addf %557, %605 : vector<19x35xf32>
    %cst_215 = arith.constant 2.500000e-01 : f32
    %607 = vector.broadcast %cst_215 : f32 to vector<19x35xf32>
    %608 = arith.mulf %582, %607 : vector<19x35xf32>
    %609 = arith.addf %560, %608 : vector<19x35xf32>
    %cst_216 = arith.constant 0.326640755 : f32
    %610 = vector.broadcast %cst_216 : f32 to vector<19x35xf32>
    %611 = arith.mulf %582, %610 : vector<19x35xf32>
    %612 = arith.addf %563, %611 : vector<19x35xf32>
    %cst_217 = arith.constant 2.500000e-01 : f32
    %613 = vector.broadcast %cst_217 : f32 to vector<19x35xf32>
    %614 = arith.mulf %582, %613 : vector<19x35xf32>
    %615 = arith.addf %566, %614 : vector<19x35xf32>
    %cst_218 = arith.constant 0.135299027 : f32
    %616 = vector.broadcast %cst_218 : f32 to vector<19x35xf32>
    %617 = arith.mulf %582, %616 : vector<19x35xf32>
    %618 = arith.addf %569, %617 : vector<19x35xf32>
    %cst_219 = arith.constant -0.135299027 : f32
    %619 = vector.broadcast %cst_219 : f32 to vector<19x35xf32>
    %620 = arith.mulf %582, %619 : vector<19x35xf32>
    %621 = arith.addf %572, %620 : vector<19x35xf32>
    %cst_220 = arith.constant -0.176776692 : f32
    %622 = vector.broadcast %cst_220 : f32 to vector<19x35xf32>
    %623 = arith.mulf %582, %622 : vector<19x35xf32>
    %624 = arith.addf %575, %623 : vector<19x35xf32>
    %cst_221 = arith.constant -0.135299027 : f32
    %625 = vector.broadcast %cst_221 : f32 to vector<19x35xf32>
    %626 = arith.mulf %582, %625 : vector<19x35xf32>
    %627 = arith.addf %578, %626 : vector<19x35xf32>
    %cst_222 = arith.constant -0.0732233077 : f32
    %628 = vector.broadcast %cst_222 : f32 to vector<19x35xf32>
    %629 = arith.mulf %582, %628 : vector<19x35xf32>
    %630 = arith.addf %581, %629 : vector<19x35xf32>
    %631 = vector.extract_strided_slice %5 {offsets = [3, 0], sizes = [19, 35], strides = [1, 1]} : vector<22x35xf32> to vector<19x35xf32>
    %cst_223 = arith.constant 2.500000e-01 : f32
    %632 = vector.broadcast %cst_223 : f32 to vector<19x35xf32>
    %633 = arith.mulf %631, %632 : vector<19x35xf32>
    %634 = arith.addf %585, %633 : vector<19x35xf32>
    %cst_224 = arith.constant 0.135299027 : f32
    %635 = vector.broadcast %cst_224 : f32 to vector<19x35xf32>
    %636 = arith.mulf %631, %635 : vector<19x35xf32>
    %637 = arith.addf %588, %636 : vector<19x35xf32>
    %cst_225 = arith.constant -2.500000e-01 : f32
    %638 = vector.broadcast %cst_225 : f32 to vector<19x35xf32>
    %639 = arith.mulf %631, %638 : vector<19x35xf32>
    %640 = arith.addf %591, %639 : vector<19x35xf32>
    %cst_226 = arith.constant -0.326640755 : f32
    %641 = vector.broadcast %cst_226 : f32 to vector<19x35xf32>
    %642 = arith.mulf %631, %641 : vector<19x35xf32>
    %643 = arith.addf %594, %642 : vector<19x35xf32>
    %cst_227 = arith.constant -0.326640755 : f32
    %644 = vector.broadcast %cst_227 : f32 to vector<19x35xf32>
    %645 = arith.mulf %631, %644 : vector<19x35xf32>
    %646 = arith.addf %597, %645 : vector<19x35xf32>
    %cst_228 = arith.constant -0.176776692 : f32
    %647 = vector.broadcast %cst_228 : f32 to vector<19x35xf32>
    %648 = arith.mulf %631, %647 : vector<19x35xf32>
    %649 = arith.addf %600, %648 : vector<19x35xf32>
    %cst_229 = arith.constant 0.326640755 : f32
    %650 = vector.broadcast %cst_229 : f32 to vector<19x35xf32>
    %651 = arith.mulf %631, %650 : vector<19x35xf32>
    %652 = arith.addf %603, %651 : vector<19x35xf32>
    %cst_230 = arith.constant 0.426776707 : f32
    %653 = vector.broadcast %cst_230 : f32 to vector<19x35xf32>
    %654 = arith.mulf %631, %653 : vector<19x35xf32>
    %655 = arith.addf %606, %654 : vector<19x35xf32>
    %cst_231 = arith.constant 2.500000e-01 : f32
    %656 = vector.broadcast %cst_231 : f32 to vector<19x35xf32>
    %657 = arith.mulf %631, %656 : vector<19x35xf32>
    %658 = arith.addf %609, %657 : vector<19x35xf32>
    %cst_232 = arith.constant 0.135299027 : f32
    %659 = vector.broadcast %cst_232 : f32 to vector<19x35xf32>
    %660 = arith.mulf %631, %659 : vector<19x35xf32>
    %661 = arith.addf %612, %660 : vector<19x35xf32>
    %cst_233 = arith.constant -2.500000e-01 : f32
    %662 = vector.broadcast %cst_233 : f32 to vector<19x35xf32>
    %663 = arith.mulf %631, %662 : vector<19x35xf32>
    %664 = arith.addf %615, %663 : vector<19x35xf32>
    %cst_234 = arith.constant -0.326640755 : f32
    %665 = vector.broadcast %cst_234 : f32 to vector<19x35xf32>
    %666 = arith.mulf %631, %665 : vector<19x35xf32>
    %667 = arith.addf %618, %666 : vector<19x35xf32>
    %cst_235 = arith.constant -0.135299027 : f32
    %668 = vector.broadcast %cst_235 : f32 to vector<19x35xf32>
    %669 = arith.mulf %631, %668 : vector<19x35xf32>
    %670 = arith.addf %621, %669 : vector<19x35xf32>
    %cst_236 = arith.constant -0.0732233077 : f32
    %671 = vector.broadcast %cst_236 : f32 to vector<19x35xf32>
    %672 = arith.mulf %631, %671 : vector<19x35xf32>
    %673 = arith.addf %624, %672 : vector<19x35xf32>
    %cst_237 = arith.constant 0.135299027 : f32
    %674 = vector.broadcast %cst_237 : f32 to vector<19x35xf32>
    %675 = arith.mulf %631, %674 : vector<19x35xf32>
    %676 = arith.addf %627, %675 : vector<19x35xf32>
    %cst_238 = arith.constant 0.176776692 : f32
    %677 = vector.broadcast %cst_238 : f32 to vector<19x35xf32>
    %678 = arith.mulf %631, %677 : vector<19x35xf32>
    %679 = arith.addf %630, %678 : vector<19x35xf32>
    %680 = vector.extract_strided_slice %7 {offsets = [3, 0], sizes = [19, 35], strides = [1, 1]} : vector<22x35xf32> to vector<19x35xf32>
    %cst_239 = arith.constant 2.500000e-01 : f32
    %681 = vector.broadcast %cst_239 : f32 to vector<19x35xf32>
    %682 = arith.mulf %680, %681 : vector<19x35xf32>
    %683 = arith.addf %634, %682 : vector<19x35xf32>
    %cst_240 = arith.constant -0.135299027 : f32
    %684 = vector.broadcast %cst_240 : f32 to vector<19x35xf32>
    %685 = arith.mulf %680, %684 : vector<19x35xf32>
    %686 = arith.addf %637, %685 : vector<19x35xf32>
    %cst_241 = arith.constant -2.500000e-01 : f32
    %687 = vector.broadcast %cst_241 : f32 to vector<19x35xf32>
    %688 = arith.mulf %680, %687 : vector<19x35xf32>
    %689 = arith.addf %640, %688 : vector<19x35xf32>
    %cst_242 = arith.constant 0.326640755 : f32
    %690 = vector.broadcast %cst_242 : f32 to vector<19x35xf32>
    %691 = arith.mulf %680, %690 : vector<19x35xf32>
    %692 = arith.addf %643, %691 : vector<19x35xf32>
    %cst_243 = arith.constant -0.326640755 : f32
    %693 = vector.broadcast %cst_243 : f32 to vector<19x35xf32>
    %694 = arith.mulf %680, %693 : vector<19x35xf32>
    %695 = arith.addf %646, %694 : vector<19x35xf32>
    %cst_244 = arith.constant 0.176776692 : f32
    %696 = vector.broadcast %cst_244 : f32 to vector<19x35xf32>
    %697 = arith.mulf %680, %696 : vector<19x35xf32>
    %698 = arith.addf %649, %697 : vector<19x35xf32>
    %cst_245 = arith.constant 0.326640755 : f32
    %699 = vector.broadcast %cst_245 : f32 to vector<19x35xf32>
    %700 = arith.mulf %680, %699 : vector<19x35xf32>
    %701 = arith.addf %652, %700 : vector<19x35xf32>
    %cst_246 = arith.constant -0.426776707 : f32
    %702 = vector.broadcast %cst_246 : f32 to vector<19x35xf32>
    %703 = arith.mulf %680, %702 : vector<19x35xf32>
    %704 = arith.addf %655, %703 : vector<19x35xf32>
    %cst_247 = arith.constant 2.500000e-01 : f32
    %705 = vector.broadcast %cst_247 : f32 to vector<19x35xf32>
    %706 = arith.mulf %680, %705 : vector<19x35xf32>
    %707 = arith.addf %658, %706 : vector<19x35xf32>
    %cst_248 = arith.constant -0.135299027 : f32
    %708 = vector.broadcast %cst_248 : f32 to vector<19x35xf32>
    %709 = arith.mulf %680, %708 : vector<19x35xf32>
    %710 = arith.addf %661, %709 : vector<19x35xf32>
    %cst_249 = arith.constant -2.500000e-01 : f32
    %711 = vector.broadcast %cst_249 : f32 to vector<19x35xf32>
    %712 = arith.mulf %680, %711 : vector<19x35xf32>
    %713 = arith.addf %664, %712 : vector<19x35xf32>
    %cst_250 = arith.constant 0.326640755 : f32
    %714 = vector.broadcast %cst_250 : f32 to vector<19x35xf32>
    %715 = arith.mulf %680, %714 : vector<19x35xf32>
    %716 = arith.addf %667, %715 : vector<19x35xf32>
    %cst_251 = arith.constant -0.135299027 : f32
    %717 = vector.broadcast %cst_251 : f32 to vector<19x35xf32>
    %718 = arith.mulf %680, %717 : vector<19x35xf32>
    %719 = arith.addf %670, %718 : vector<19x35xf32>
    %cst_252 = arith.constant 0.0732233077 : f32
    %720 = vector.broadcast %cst_252 : f32 to vector<19x35xf32>
    %721 = arith.mulf %680, %720 : vector<19x35xf32>
    %722 = arith.addf %673, %721 : vector<19x35xf32>
    %cst_253 = arith.constant 0.135299027 : f32
    %723 = vector.broadcast %cst_253 : f32 to vector<19x35xf32>
    %724 = arith.mulf %680, %723 : vector<19x35xf32>
    %725 = arith.addf %676, %724 : vector<19x35xf32>
    %cst_254 = arith.constant -0.176776692 : f32
    %726 = vector.broadcast %cst_254 : f32 to vector<19x35xf32>
    %727 = arith.mulf %680, %726 : vector<19x35xf32>
    %728 = arith.addf %679, %727 : vector<19x35xf32>
    %729 = vector.extract_strided_slice %9 {offsets = [3, 0], sizes = [19, 35], strides = [1, 1]} : vector<22x35xf32> to vector<19x35xf32>
    %cst_255 = arith.constant 2.500000e-01 : f32
    %730 = vector.broadcast %cst_255 : f32 to vector<19x35xf32>
    %731 = arith.mulf %729, %730 : vector<19x35xf32>
    %732 = arith.addf %683, %731 : vector<19x35xf32>
    %cst_256 = arith.constant -0.326640755 : f32
    %733 = vector.broadcast %cst_256 : f32 to vector<19x35xf32>
    %734 = arith.mulf %729, %733 : vector<19x35xf32>
    %735 = arith.addf %686, %734 : vector<19x35xf32>
    %cst_257 = arith.constant 2.500000e-01 : f32
    %736 = vector.broadcast %cst_257 : f32 to vector<19x35xf32>
    %737 = arith.mulf %729, %736 : vector<19x35xf32>
    %738 = arith.addf %689, %737 : vector<19x35xf32>
    %cst_258 = arith.constant -0.135299027 : f32
    %739 = vector.broadcast %cst_258 : f32 to vector<19x35xf32>
    %740 = arith.mulf %729, %739 : vector<19x35xf32>
    %741 = arith.addf %692, %740 : vector<19x35xf32>
    %cst_259 = arith.constant -0.326640755 : f32
    %742 = vector.broadcast %cst_259 : f32 to vector<19x35xf32>
    %743 = arith.mulf %729, %742 : vector<19x35xf32>
    %744 = arith.addf %695, %743 : vector<19x35xf32>
    %cst_260 = arith.constant 0.426776707 : f32
    %745 = vector.broadcast %cst_260 : f32 to vector<19x35xf32>
    %746 = arith.mulf %729, %745 : vector<19x35xf32>
    %747 = arith.addf %698, %746 : vector<19x35xf32>
    %cst_261 = arith.constant -0.326640755 : f32
    %748 = vector.broadcast %cst_261 : f32 to vector<19x35xf32>
    %749 = arith.mulf %729, %748 : vector<19x35xf32>
    %750 = arith.addf %701, %749 : vector<19x35xf32>
    %cst_262 = arith.constant 0.176776692 : f32
    %751 = vector.broadcast %cst_262 : f32 to vector<19x35xf32>
    %752 = arith.mulf %729, %751 : vector<19x35xf32>
    %753 = arith.addf %704, %752 : vector<19x35xf32>
    %cst_263 = arith.constant 2.500000e-01 : f32
    %754 = vector.broadcast %cst_263 : f32 to vector<19x35xf32>
    %755 = arith.mulf %729, %754 : vector<19x35xf32>
    %756 = arith.addf %707, %755 : vector<19x35xf32>
    %cst_264 = arith.constant -0.326640755 : f32
    %757 = vector.broadcast %cst_264 : f32 to vector<19x35xf32>
    %758 = arith.mulf %729, %757 : vector<19x35xf32>
    %759 = arith.addf %710, %758 : vector<19x35xf32>
    %cst_265 = arith.constant 2.500000e-01 : f32
    %760 = vector.broadcast %cst_265 : f32 to vector<19x35xf32>
    %761 = arith.mulf %729, %760 : vector<19x35xf32>
    %762 = arith.addf %713, %761 : vector<19x35xf32>
    %cst_266 = arith.constant -0.135299027 : f32
    %763 = vector.broadcast %cst_266 : f32 to vector<19x35xf32>
    %764 = arith.mulf %729, %763 : vector<19x35xf32>
    %765 = arith.addf %716, %764 : vector<19x35xf32>
    %cst_267 = arith.constant -0.135299027 : f32
    %766 = vector.broadcast %cst_267 : f32 to vector<19x35xf32>
    %767 = arith.mulf %729, %766 : vector<19x35xf32>
    %768 = arith.addf %719, %767 : vector<19x35xf32>
    %cst_268 = arith.constant 0.176776692 : f32
    %769 = vector.broadcast %cst_268 : f32 to vector<19x35xf32>
    %770 = arith.mulf %729, %769 : vector<19x35xf32>
    %771 = arith.addf %722, %770 : vector<19x35xf32>
    %cst_269 = arith.constant -0.135299027 : f32
    %772 = vector.broadcast %cst_269 : f32 to vector<19x35xf32>
    %773 = arith.mulf %729, %772 : vector<19x35xf32>
    %774 = arith.addf %725, %773 : vector<19x35xf32>
    %cst_270 = arith.constant 0.0732233077 : f32
    %775 = vector.broadcast %cst_270 : f32 to vector<19x35xf32>
    %776 = arith.mulf %729, %775 : vector<19x35xf32>
    %777 = arith.addf %728, %776 : vector<19x35xf32>
    %cst_271 = arith.constant 1.11111116 : f32
    %778 = vector.broadcast %cst_271 : f32 to vector<19x35xf32>
    %779 = arith.mulf %732, %778 : vector<19x35xf32>
    %780 = arith.mulf %779, %779 : vector<19x35xf32>
    %781 = arith.mulf %780, %780 : vector<19x35xf32>
    %782 = arith.mulf %781, %781 : vector<19x35xf32>
    %783 = arith.mulf %782, %782 : vector<19x35xf32>
    %784 = arith.mulf %783, %783 : vector<19x35xf32>
    %785 = arith.mulf %784, %784 : vector<19x35xf32>
    %786 = math.absf %779 : vector<19x35xf32>
    %cst_272 = arith.constant 1.500000e+00 : f32
    %787 = vector.broadcast %cst_272 : f32 to vector<19x35xf32>
    %788 = arith.cmpf oge, %786, %787 : vector<19x35xf32>
    %cst_273 = arith.constant 1.000000e+00 : f32
    %789 = vector.broadcast %cst_273 : f32 to vector<19x35xf32>
    %790 = arith.addf %785, %789 : vector<19x35xf32>
    %791 = tpu.reciprocal %790 {approx = true} : vector<19x35xf32> -> vector<19x35xf32>
    %792 = arith.mulf %785, %791 : vector<19x35xf32>
    %cst_274 = arith.constant 1.000000e+00 : f32
    %793 = vector.broadcast %cst_274 : f32 to vector<19x35xf32>
    %794 = arith.select %788, %793, %792 : vector<19x35xi1>, vector<19x35xf32>
    %795 = arith.mulf %732, %794 : vector<19x35xf32>
    %cst_275 = arith.constant 1.11111116 : f32
    %796 = vector.broadcast %cst_275 : f32 to vector<19x35xf32>
    %797 = arith.mulf %735, %796 : vector<19x35xf32>
    %798 = arith.mulf %797, %797 : vector<19x35xf32>
    %799 = arith.mulf %798, %798 : vector<19x35xf32>
    %800 = arith.mulf %799, %799 : vector<19x35xf32>
    %801 = arith.mulf %800, %800 : vector<19x35xf32>
    %802 = arith.mulf %801, %801 : vector<19x35xf32>
    %803 = arith.mulf %802, %802 : vector<19x35xf32>
    %804 = math.absf %797 : vector<19x35xf32>
    %cst_276 = arith.constant 1.500000e+00 : f32
    %805 = vector.broadcast %cst_276 : f32 to vector<19x35xf32>
    %806 = arith.cmpf oge, %804, %805 : vector<19x35xf32>
    %cst_277 = arith.constant 1.000000e+00 : f32
    %807 = vector.broadcast %cst_277 : f32 to vector<19x35xf32>
    %808 = arith.addf %803, %807 : vector<19x35xf32>
    %809 = tpu.reciprocal %808 {approx = true} : vector<19x35xf32> -> vector<19x35xf32>
    %810 = arith.mulf %803, %809 : vector<19x35xf32>
    %cst_278 = arith.constant 1.000000e+00 : f32
    %811 = vector.broadcast %cst_278 : f32 to vector<19x35xf32>
    %812 = arith.select %806, %811, %810 : vector<19x35xi1>, vector<19x35xf32>
    %813 = arith.mulf %735, %812 : vector<19x35xf32>
    %814 = arith.addf %794, %812 : vector<19x35xf32>
    %cst_279 = arith.constant 1.11111116 : f32
    %815 = vector.broadcast %cst_279 : f32 to vector<19x35xf32>
    %816 = arith.mulf %738, %815 : vector<19x35xf32>
    %817 = arith.mulf %816, %816 : vector<19x35xf32>
    %818 = arith.mulf %817, %817 : vector<19x35xf32>
    %819 = arith.mulf %818, %818 : vector<19x35xf32>
    %820 = arith.mulf %819, %819 : vector<19x35xf32>
    %821 = arith.mulf %820, %820 : vector<19x35xf32>
    %822 = arith.mulf %821, %821 : vector<19x35xf32>
    %823 = math.absf %816 : vector<19x35xf32>
    %cst_280 = arith.constant 1.500000e+00 : f32
    %824 = vector.broadcast %cst_280 : f32 to vector<19x35xf32>
    %825 = arith.cmpf oge, %823, %824 : vector<19x35xf32>
    %cst_281 = arith.constant 1.000000e+00 : f32
    %826 = vector.broadcast %cst_281 : f32 to vector<19x35xf32>
    %827 = arith.addf %822, %826 : vector<19x35xf32>
    %828 = tpu.reciprocal %827 {approx = true} : vector<19x35xf32> -> vector<19x35xf32>
    %829 = arith.mulf %822, %828 : vector<19x35xf32>
    %cst_282 = arith.constant 1.000000e+00 : f32
    %830 = vector.broadcast %cst_282 : f32 to vector<19x35xf32>
    %831 = arith.select %825, %830, %829 : vector<19x35xi1>, vector<19x35xf32>
    %832 = arith.mulf %738, %831 : vector<19x35xf32>
    %833 = arith.addf %814, %831 : vector<19x35xf32>
    %cst_283 = arith.constant 1.11111116 : f32
    %834 = vector.broadcast %cst_283 : f32 to vector<19x35xf32>
    %835 = arith.mulf %741, %834 : vector<19x35xf32>
    %836 = arith.mulf %835, %835 : vector<19x35xf32>
    %837 = arith.mulf %836, %836 : vector<19x35xf32>
    %838 = arith.mulf %837, %837 : vector<19x35xf32>
    %839 = arith.mulf %838, %838 : vector<19x35xf32>
    %840 = arith.mulf %839, %839 : vector<19x35xf32>
    %841 = arith.mulf %840, %840 : vector<19x35xf32>
    %842 = math.absf %835 : vector<19x35xf32>
    %cst_284 = arith.constant 1.500000e+00 : f32
    %843 = vector.broadcast %cst_284 : f32 to vector<19x35xf32>
    %844 = arith.cmpf oge, %842, %843 : vector<19x35xf32>
    %cst_285 = arith.constant 1.000000e+00 : f32
    %845 = vector.broadcast %cst_285 : f32 to vector<19x35xf32>
    %846 = arith.addf %841, %845 : vector<19x35xf32>
    %847 = tpu.reciprocal %846 {approx = true} : vector<19x35xf32> -> vector<19x35xf32>
    %848 = arith.mulf %841, %847 : vector<19x35xf32>
    %cst_286 = arith.constant 1.000000e+00 : f32
    %849 = vector.broadcast %cst_286 : f32 to vector<19x35xf32>
    %850 = arith.select %844, %849, %848 : vector<19x35xi1>, vector<19x35xf32>
    %851 = arith.mulf %741, %850 : vector<19x35xf32>
    %852 = arith.addf %833, %850 : vector<19x35xf32>
    %cst_287 = arith.constant 1.11111116 : f32
    %853 = vector.broadcast %cst_287 : f32 to vector<19x35xf32>
    %854 = arith.mulf %744, %853 : vector<19x35xf32>
    %855 = arith.mulf %854, %854 : vector<19x35xf32>
    %856 = arith.mulf %855, %855 : vector<19x35xf32>
    %857 = arith.mulf %856, %856 : vector<19x35xf32>
    %858 = arith.mulf %857, %857 : vector<19x35xf32>
    %859 = arith.mulf %858, %858 : vector<19x35xf32>
    %860 = arith.mulf %859, %859 : vector<19x35xf32>
    %861 = math.absf %854 : vector<19x35xf32>
    %cst_288 = arith.constant 1.500000e+00 : f32
    %862 = vector.broadcast %cst_288 : f32 to vector<19x35xf32>
    %863 = arith.cmpf oge, %861, %862 : vector<19x35xf32>
    %cst_289 = arith.constant 1.000000e+00 : f32
    %864 = vector.broadcast %cst_289 : f32 to vector<19x35xf32>
    %865 = arith.addf %860, %864 : vector<19x35xf32>
    %866 = tpu.reciprocal %865 {approx = true} : vector<19x35xf32> -> vector<19x35xf32>
    %867 = arith.mulf %860, %866 : vector<19x35xf32>
    %cst_290 = arith.constant 1.000000e+00 : f32
    %868 = vector.broadcast %cst_290 : f32 to vector<19x35xf32>
    %869 = arith.select %863, %868, %867 : vector<19x35xi1>, vector<19x35xf32>
    %870 = arith.mulf %744, %869 : vector<19x35xf32>
    %871 = arith.addf %852, %869 : vector<19x35xf32>
    %cst_291 = arith.constant 1.11111116 : f32
    %872 = vector.broadcast %cst_291 : f32 to vector<19x35xf32>
    %873 = arith.mulf %747, %872 : vector<19x35xf32>
    %874 = arith.mulf %873, %873 : vector<19x35xf32>
    %875 = arith.mulf %874, %874 : vector<19x35xf32>
    %876 = arith.mulf %875, %875 : vector<19x35xf32>
    %877 = arith.mulf %876, %876 : vector<19x35xf32>
    %878 = arith.mulf %877, %877 : vector<19x35xf32>
    %879 = arith.mulf %878, %878 : vector<19x35xf32>
    %880 = math.absf %873 : vector<19x35xf32>
    %cst_292 = arith.constant 1.500000e+00 : f32
    %881 = vector.broadcast %cst_292 : f32 to vector<19x35xf32>
    %882 = arith.cmpf oge, %880, %881 : vector<19x35xf32>
    %cst_293 = arith.constant 1.000000e+00 : f32
    %883 = vector.broadcast %cst_293 : f32 to vector<19x35xf32>
    %884 = arith.addf %879, %883 : vector<19x35xf32>
    %885 = tpu.reciprocal %884 {approx = true} : vector<19x35xf32> -> vector<19x35xf32>
    %886 = arith.mulf %879, %885 : vector<19x35xf32>
    %cst_294 = arith.constant 1.000000e+00 : f32
    %887 = vector.broadcast %cst_294 : f32 to vector<19x35xf32>
    %888 = arith.select %882, %887, %886 : vector<19x35xi1>, vector<19x35xf32>
    %889 = arith.mulf %747, %888 : vector<19x35xf32>
    %890 = arith.addf %871, %888 : vector<19x35xf32>
    %cst_295 = arith.constant 1.11111116 : f32
    %891 = vector.broadcast %cst_295 : f32 to vector<19x35xf32>
    %892 = arith.mulf %750, %891 : vector<19x35xf32>
    %893 = arith.mulf %892, %892 : vector<19x35xf32>
    %894 = arith.mulf %893, %893 : vector<19x35xf32>
    %895 = arith.mulf %894, %894 : vector<19x35xf32>
    %896 = arith.mulf %895, %895 : vector<19x35xf32>
    %897 = arith.mulf %896, %896 : vector<19x35xf32>
    %898 = arith.mulf %897, %897 : vector<19x35xf32>
    %899 = math.absf %892 : vector<19x35xf32>
    %cst_296 = arith.constant 1.500000e+00 : f32
    %900 = vector.broadcast %cst_296 : f32 to vector<19x35xf32>
    %901 = arith.cmpf oge, %899, %900 : vector<19x35xf32>
    %cst_297 = arith.constant 1.000000e+00 : f32
    %902 = vector.broadcast %cst_297 : f32 to vector<19x35xf32>
    %903 = arith.addf %898, %902 : vector<19x35xf32>
    %904 = tpu.reciprocal %903 {approx = true} : vector<19x35xf32> -> vector<19x35xf32>
    %905 = arith.mulf %898, %904 : vector<19x35xf32>
    %cst_298 = arith.constant 1.000000e+00 : f32
    %906 = vector.broadcast %cst_298 : f32 to vector<19x35xf32>
    %907 = arith.select %901, %906, %905 : vector<19x35xi1>, vector<19x35xf32>
    %908 = arith.mulf %750, %907 : vector<19x35xf32>
    %909 = arith.addf %890, %907 : vector<19x35xf32>
    %cst_299 = arith.constant 1.11111116 : f32
    %910 = vector.broadcast %cst_299 : f32 to vector<19x35xf32>
    %911 = arith.mulf %753, %910 : vector<19x35xf32>
    %912 = arith.mulf %911, %911 : vector<19x35xf32>
    %913 = arith.mulf %912, %912 : vector<19x35xf32>
    %914 = arith.mulf %913, %913 : vector<19x35xf32>
    %915 = arith.mulf %914, %914 : vector<19x35xf32>
    %916 = arith.mulf %915, %915 : vector<19x35xf32>
    %917 = arith.mulf %916, %916 : vector<19x35xf32>
    %918 = math.absf %911 : vector<19x35xf32>
    %cst_300 = arith.constant 1.500000e+00 : f32
    %919 = vector.broadcast %cst_300 : f32 to vector<19x35xf32>
    %920 = arith.cmpf oge, %918, %919 : vector<19x35xf32>
    %cst_301 = arith.constant 1.000000e+00 : f32
    %921 = vector.broadcast %cst_301 : f32 to vector<19x35xf32>
    %922 = arith.addf %917, %921 : vector<19x35xf32>
    %923 = tpu.reciprocal %922 {approx = true} : vector<19x35xf32> -> vector<19x35xf32>
    %924 = arith.mulf %917, %923 : vector<19x35xf32>
    %cst_302 = arith.constant 1.000000e+00 : f32
    %925 = vector.broadcast %cst_302 : f32 to vector<19x35xf32>
    %926 = arith.select %920, %925, %924 : vector<19x35xi1>, vector<19x35xf32>
    %927 = arith.mulf %753, %926 : vector<19x35xf32>
    %928 = arith.addf %909, %926 : vector<19x35xf32>
    %cst_303 = arith.constant 1.11111116 : f32
    %929 = vector.broadcast %cst_303 : f32 to vector<19x35xf32>
    %930 = arith.mulf %756, %929 : vector<19x35xf32>
    %931 = arith.mulf %930, %930 : vector<19x35xf32>
    %932 = arith.mulf %931, %931 : vector<19x35xf32>
    %933 = arith.mulf %932, %932 : vector<19x35xf32>
    %934 = arith.mulf %933, %933 : vector<19x35xf32>
    %935 = arith.mulf %934, %934 : vector<19x35xf32>
    %936 = arith.mulf %935, %935 : vector<19x35xf32>
    %937 = math.absf %930 : vector<19x35xf32>
    %cst_304 = arith.constant 1.500000e+00 : f32
    %938 = vector.broadcast %cst_304 : f32 to vector<19x35xf32>
    %939 = arith.cmpf oge, %937, %938 : vector<19x35xf32>
    %cst_305 = arith.constant 1.000000e+00 : f32
    %940 = vector.broadcast %cst_305 : f32 to vector<19x35xf32>
    %941 = arith.addf %936, %940 : vector<19x35xf32>
    %942 = tpu.reciprocal %941 {approx = true} : vector<19x35xf32> -> vector<19x35xf32>
    %943 = arith.mulf %936, %942 : vector<19x35xf32>
    %cst_306 = arith.constant 1.000000e+00 : f32
    %944 = vector.broadcast %cst_306 : f32 to vector<19x35xf32>
    %945 = arith.select %939, %944, %943 : vector<19x35xi1>, vector<19x35xf32>
    %946 = arith.mulf %756, %945 : vector<19x35xf32>
    %947 = arith.addf %928, %945 : vector<19x35xf32>
    %cst_307 = arith.constant 1.11111116 : f32
    %948 = vector.broadcast %cst_307 : f32 to vector<19x35xf32>
    %949 = arith.mulf %759, %948 : vector<19x35xf32>
    %950 = arith.mulf %949, %949 : vector<19x35xf32>
    %951 = arith.mulf %950, %950 : vector<19x35xf32>
    %952 = arith.mulf %951, %951 : vector<19x35xf32>
    %953 = arith.mulf %952, %952 : vector<19x35xf32>
    %954 = arith.mulf %953, %953 : vector<19x35xf32>
    %955 = arith.mulf %954, %954 : vector<19x35xf32>
    %956 = math.absf %949 : vector<19x35xf32>
    %cst_308 = arith.constant 1.500000e+00 : f32
    %957 = vector.broadcast %cst_308 : f32 to vector<19x35xf32>
    %958 = arith.cmpf oge, %956, %957 : vector<19x35xf32>
    %cst_309 = arith.constant 1.000000e+00 : f32
    %959 = vector.broadcast %cst_309 : f32 to vector<19x35xf32>
    %960 = arith.addf %955, %959 : vector<19x35xf32>
    %961 = tpu.reciprocal %960 {approx = true} : vector<19x35xf32> -> vector<19x35xf32>
    %962 = arith.mulf %955, %961 : vector<19x35xf32>
    %cst_310 = arith.constant 1.000000e+00 : f32
    %963 = vector.broadcast %cst_310 : f32 to vector<19x35xf32>
    %964 = arith.select %958, %963, %962 : vector<19x35xi1>, vector<19x35xf32>
    %965 = arith.mulf %759, %964 : vector<19x35xf32>
    %966 = arith.addf %947, %964 : vector<19x35xf32>
    %cst_311 = arith.constant 1.11111116 : f32
    %967 = vector.broadcast %cst_311 : f32 to vector<19x35xf32>
    %968 = arith.mulf %762, %967 : vector<19x35xf32>
    %969 = arith.mulf %968, %968 : vector<19x35xf32>
    %970 = arith.mulf %969, %969 : vector<19x35xf32>
    %971 = arith.mulf %970, %970 : vector<19x35xf32>
    %972 = arith.mulf %971, %971 : vector<19x35xf32>
    %973 = arith.mulf %972, %972 : vector<19x35xf32>
    %974 = arith.mulf %973, %973 : vector<19x35xf32>
    %975 = math.absf %968 : vector<19x35xf32>
    %cst_312 = arith.constant 1.500000e+00 : f32
    %976 = vector.broadcast %cst_312 : f32 to vector<19x35xf32>
    %977 = arith.cmpf oge, %975, %976 : vector<19x35xf32>
    %cst_313 = arith.constant 1.000000e+00 : f32
    %978 = vector.broadcast %cst_313 : f32 to vector<19x35xf32>
    %979 = arith.addf %974, %978 : vector<19x35xf32>
    %980 = tpu.reciprocal %979 {approx = true} : vector<19x35xf32> -> vector<19x35xf32>
    %981 = arith.mulf %974, %980 : vector<19x35xf32>
    %cst_314 = arith.constant 1.000000e+00 : f32
    %982 = vector.broadcast %cst_314 : f32 to vector<19x35xf32>
    %983 = arith.select %977, %982, %981 : vector<19x35xi1>, vector<19x35xf32>
    %984 = arith.mulf %762, %983 : vector<19x35xf32>
    %985 = arith.addf %966, %983 : vector<19x35xf32>
    %cst_315 = arith.constant 1.11111116 : f32
    %986 = vector.broadcast %cst_315 : f32 to vector<19x35xf32>
    %987 = arith.mulf %765, %986 : vector<19x35xf32>
    %988 = arith.mulf %987, %987 : vector<19x35xf32>
    %989 = arith.mulf %988, %988 : vector<19x35xf32>
    %990 = arith.mulf %989, %989 : vector<19x35xf32>
    %991 = arith.mulf %990, %990 : vector<19x35xf32>
    %992 = arith.mulf %991, %991 : vector<19x35xf32>
    %993 = arith.mulf %992, %992 : vector<19x35xf32>
    %994 = math.absf %987 : vector<19x35xf32>
    %cst_316 = arith.constant 1.500000e+00 : f32
    %995 = vector.broadcast %cst_316 : f32 to vector<19x35xf32>
    %996 = arith.cmpf oge, %994, %995 : vector<19x35xf32>
    %cst_317 = arith.constant 1.000000e+00 : f32
    %997 = vector.broadcast %cst_317 : f32 to vector<19x35xf32>
    %998 = arith.addf %993, %997 : vector<19x35xf32>
    %999 = tpu.reciprocal %998 {approx = true} : vector<19x35xf32> -> vector<19x35xf32>
    %1000 = arith.mulf %993, %999 : vector<19x35xf32>
    %cst_318 = arith.constant 1.000000e+00 : f32
    %1001 = vector.broadcast %cst_318 : f32 to vector<19x35xf32>
    %1002 = arith.select %996, %1001, %1000 : vector<19x35xi1>, vector<19x35xf32>
    %1003 = arith.mulf %765, %1002 : vector<19x35xf32>
    %1004 = arith.addf %985, %1002 : vector<19x35xf32>
    %cst_319 = arith.constant 1.11111116 : f32
    %1005 = vector.broadcast %cst_319 : f32 to vector<19x35xf32>
    %1006 = arith.mulf %768, %1005 : vector<19x35xf32>
    %1007 = arith.mulf %1006, %1006 : vector<19x35xf32>
    %1008 = arith.mulf %1007, %1007 : vector<19x35xf32>
    %1009 = arith.mulf %1008, %1008 : vector<19x35xf32>
    %1010 = arith.mulf %1009, %1009 : vector<19x35xf32>
    %1011 = arith.mulf %1010, %1010 : vector<19x35xf32>
    %1012 = arith.mulf %1011, %1011 : vector<19x35xf32>
    %1013 = math.absf %1006 : vector<19x35xf32>
    %cst_320 = arith.constant 1.500000e+00 : f32
    %1014 = vector.broadcast %cst_320 : f32 to vector<19x35xf32>
    %1015 = arith.cmpf oge, %1013, %1014 : vector<19x35xf32>
    %cst_321 = arith.constant 1.000000e+00 : f32
    %1016 = vector.broadcast %cst_321 : f32 to vector<19x35xf32>
    %1017 = arith.addf %1012, %1016 : vector<19x35xf32>
    %1018 = tpu.reciprocal %1017 {approx = true} : vector<19x35xf32> -> vector<19x35xf32>
    %1019 = arith.mulf %1012, %1018 : vector<19x35xf32>
    %cst_322 = arith.constant 1.000000e+00 : f32
    %1020 = vector.broadcast %cst_322 : f32 to vector<19x35xf32>
    %1021 = arith.select %1015, %1020, %1019 : vector<19x35xi1>, vector<19x35xf32>
    %1022 = arith.mulf %768, %1021 : vector<19x35xf32>
    %1023 = arith.addf %1004, %1021 : vector<19x35xf32>
    %cst_323 = arith.constant 1.11111116 : f32
    %1024 = vector.broadcast %cst_323 : f32 to vector<19x35xf32>
    %1025 = arith.mulf %771, %1024 : vector<19x35xf32>
    %1026 = arith.mulf %1025, %1025 : vector<19x35xf32>
    %1027 = arith.mulf %1026, %1026 : vector<19x35xf32>
    %1028 = arith.mulf %1027, %1027 : vector<19x35xf32>
    %1029 = arith.mulf %1028, %1028 : vector<19x35xf32>
    %1030 = arith.mulf %1029, %1029 : vector<19x35xf32>
    %1031 = arith.mulf %1030, %1030 : vector<19x35xf32>
    %1032 = math.absf %1025 : vector<19x35xf32>
    %cst_324 = arith.constant 1.500000e+00 : f32
    %1033 = vector.broadcast %cst_324 : f32 to vector<19x35xf32>
    %1034 = arith.cmpf oge, %1032, %1033 : vector<19x35xf32>
    %cst_325 = arith.constant 1.000000e+00 : f32
    %1035 = vector.broadcast %cst_325 : f32 to vector<19x35xf32>
    %1036 = arith.addf %1031, %1035 : vector<19x35xf32>
    %1037 = tpu.reciprocal %1036 {approx = true} : vector<19x35xf32> -> vector<19x35xf32>
    %1038 = arith.mulf %1031, %1037 : vector<19x35xf32>
    %cst_326 = arith.constant 1.000000e+00 : f32
    %1039 = vector.broadcast %cst_326 : f32 to vector<19x35xf32>
    %1040 = arith.select %1034, %1039, %1038 : vector<19x35xi1>, vector<19x35xf32>
    %1041 = arith.mulf %771, %1040 : vector<19x35xf32>
    %1042 = arith.addf %1023, %1040 : vector<19x35xf32>
    %cst_327 = arith.constant 1.11111116 : f32
    %1043 = vector.broadcast %cst_327 : f32 to vector<19x35xf32>
    %1044 = arith.mulf %774, %1043 : vector<19x35xf32>
    %1045 = arith.mulf %1044, %1044 : vector<19x35xf32>
    %1046 = arith.mulf %1045, %1045 : vector<19x35xf32>
    %1047 = arith.mulf %1046, %1046 : vector<19x35xf32>
    %1048 = arith.mulf %1047, %1047 : vector<19x35xf32>
    %1049 = arith.mulf %1048, %1048 : vector<19x35xf32>
    %1050 = arith.mulf %1049, %1049 : vector<19x35xf32>
    %1051 = math.absf %1044 : vector<19x35xf32>
    %cst_328 = arith.constant 1.500000e+00 : f32
    %1052 = vector.broadcast %cst_328 : f32 to vector<19x35xf32>
    %1053 = arith.cmpf oge, %1051, %1052 : vector<19x35xf32>
    %cst_329 = arith.constant 1.000000e+00 : f32
    %1054 = vector.broadcast %cst_329 : f32 to vector<19x35xf32>
    %1055 = arith.addf %1050, %1054 : vector<19x35xf32>
    %1056 = tpu.reciprocal %1055 {approx = true} : vector<19x35xf32> -> vector<19x35xf32>
    %1057 = arith.mulf %1050, %1056 : vector<19x35xf32>
    %cst_330 = arith.constant 1.000000e+00 : f32
    %1058 = vector.broadcast %cst_330 : f32 to vector<19x35xf32>
    %1059 = arith.select %1053, %1058, %1057 : vector<19x35xi1>, vector<19x35xf32>
    %1060 = arith.mulf %774, %1059 : vector<19x35xf32>
    %1061 = arith.addf %1042, %1059 : vector<19x35xf32>
    %cst_331 = arith.constant 1.11111116 : f32
    %1062 = vector.broadcast %cst_331 : f32 to vector<19x35xf32>
    %1063 = arith.mulf %777, %1062 : vector<19x35xf32>
    %1064 = arith.mulf %1063, %1063 : vector<19x35xf32>
    %1065 = arith.mulf %1064, %1064 : vector<19x35xf32>
    %1066 = arith.mulf %1065, %1065 : vector<19x35xf32>
    %1067 = arith.mulf %1066, %1066 : vector<19x35xf32>
    %1068 = arith.mulf %1067, %1067 : vector<19x35xf32>
    %1069 = arith.mulf %1068, %1068 : vector<19x35xf32>
    %1070 = math.absf %1063 : vector<19x35xf32>
    %cst_332 = arith.constant 1.500000e+00 : f32
    %1071 = vector.broadcast %cst_332 : f32 to vector<19x35xf32>
    %1072 = arith.cmpf oge, %1070, %1071 : vector<19x35xf32>
    %cst_333 = arith.constant 1.000000e+00 : f32
    %1073 = vector.broadcast %cst_333 : f32 to vector<19x35xf32>
    %1074 = arith.addf %1069, %1073 : vector<19x35xf32>
    %1075 = tpu.reciprocal %1074 {approx = true} : vector<19x35xf32> -> vector<19x35xf32>
    %1076 = arith.mulf %1069, %1075 : vector<19x35xf32>
    %cst_334 = arith.constant 1.000000e+00 : f32
    %1077 = vector.broadcast %cst_334 : f32 to vector<19x35xf32>
    %1078 = arith.select %1072, %1077, %1076 : vector<19x35xi1>, vector<19x35xf32>
    %1079 = arith.mulf %777, %1078 : vector<19x35xf32>
    %1080 = arith.addf %1061, %1078 : vector<19x35xf32>
    %1081 = tpu.iota {dimensions = array<i32: 0>} : vector<19x35xi32>
    %1082 = vector.broadcast %0 : i32 to vector<19x35xi32>
    %1083 = arith.addi %1081, %1082 : vector<19x35xi32>
    %1084 = tpu.iota {dimensions = array<i32: 1>} : vector<19x35xi32>
    %1085 = vector.broadcast %1 : i32 to vector<19x35xi32>
    %1086 = arith.addi %1084, %1085 : vector<19x35xi32>
    %c3_i32 = arith.constant 3 : i32
    %1087 = vector.broadcast %c3_i32 : i32 to vector<19x35xi32>
    %1088 = arith.cmpi sge, %1083, %1087 : vector<19x35xi32>
    %c31_i32 = arith.constant 31 : i32
    %1089 = vector.broadcast %c31_i32 : i32 to vector<19x35xi32>
    %1090 = arith.cmpi sle, %1083, %1089 : vector<19x35xi32>
    %1091 = arith.andi %1088, %1090 : vector<19x35xi1>
    %c3_i32_335 = arith.constant 3 : i32
    %1092 = vector.broadcast %c3_i32_335 : i32 to vector<19x35xi32>
    %1093 = arith.cmpi sge, %1086, %1092 : vector<19x35xi32>
    %1094 = arith.andi %1091, %1093 : vector<19x35xi1>
    %c31_i32_336 = arith.constant 31 : i32
    %1095 = vector.broadcast %c31_i32_336 : i32 to vector<19x35xi32>
    %1096 = arith.cmpi sle, %1086, %1095 : vector<19x35xi32>
    %1097 = arith.andi %1094, %1096 : vector<19x35xi1>
    %cst_337 = arith.constant 1.000000e+00 : f32
    %1098 = vector.broadcast %cst_337 : f32 to vector<19x35xf32>
    %1099 = arith.addf %1098, %1080 : vector<19x35xf32>
    %1100 = tpu.reciprocal %1099 {approx = true} : vector<19x35xf32> -> vector<19x35xf32>
    %cst_338 = arith.constant 0.000000e+00 : f32
    %1101 = vector.broadcast %cst_338 : f32 to vector<19x35xf32>
    %1102 = arith.select %1097, %1100, %1101 : vector<19x35xi1>, vector<19x35xf32>
    %cst_339 = arith.constant 0.000000e+00 : f32
    %1103 = vector.broadcast %cst_339 : f32 to vector<16x32xf32>
    %cst_340 = arith.constant 2.500000e-01 : f32
    %1104 = vector.broadcast %cst_340 : f32 to vector<19x35xf32>
    %1105 = arith.mulf %795, %1104 : vector<19x35xf32>
    %cst_341 = arith.constant 2.500000e-01 : f32
    %1106 = vector.broadcast %cst_341 : f32 to vector<19x35xf32>
    %1107 = arith.mulf %795, %1106 : vector<19x35xf32>
    %cst_342 = arith.constant 2.500000e-01 : f32
    %1108 = vector.broadcast %cst_342 : f32 to vector<19x35xf32>
    %1109 = arith.mulf %795, %1108 : vector<19x35xf32>
    %cst_343 = arith.constant 2.500000e-01 : f32
    %1110 = vector.broadcast %cst_343 : f32 to vector<19x35xf32>
    %1111 = arith.mulf %795, %1110 : vector<19x35xf32>
    %cst_344 = arith.constant 0.326640725 : f32
    %1112 = vector.broadcast %cst_344 : f32 to vector<19x35xf32>
    %1113 = arith.mulf %813, %1112 : vector<19x35xf32>
    %1114 = arith.addf %1105, %1113 : vector<19x35xf32>
    %cst_345 = arith.constant 0.135299012 : f32
    %1115 = vector.broadcast %cst_345 : f32 to vector<19x35xf32>
    %1116 = arith.mulf %813, %1115 : vector<19x35xf32>
    %1117 = arith.addf %1107, %1116 : vector<19x35xf32>
    %cst_346 = arith.constant -0.135299012 : f32
    %1118 = vector.broadcast %cst_346 : f32 to vector<19x35xf32>
    %1119 = arith.mulf %813, %1118 : vector<19x35xf32>
    %1120 = arith.addf %1109, %1119 : vector<19x35xf32>
    %cst_347 = arith.constant -0.326640725 : f32
    %1121 = vector.broadcast %cst_347 : f32 to vector<19x35xf32>
    %1122 = arith.mulf %813, %1121 : vector<19x35xf32>
    %1123 = arith.addf %1111, %1122 : vector<19x35xf32>
    %cst_348 = arith.constant 2.500000e-01 : f32
    %1124 = vector.broadcast %cst_348 : f32 to vector<19x35xf32>
    %1125 = arith.mulf %832, %1124 : vector<19x35xf32>
    %1126 = arith.addf %1114, %1125 : vector<19x35xf32>
    %cst_349 = arith.constant -2.500000e-01 : f32
    %1127 = vector.broadcast %cst_349 : f32 to vector<19x35xf32>
    %1128 = arith.mulf %832, %1127 : vector<19x35xf32>
    %1129 = arith.addf %1117, %1128 : vector<19x35xf32>
    %cst_350 = arith.constant -2.500000e-01 : f32
    %1130 = vector.broadcast %cst_350 : f32 to vector<19x35xf32>
    %1131 = arith.mulf %832, %1130 : vector<19x35xf32>
    %1132 = arith.addf %1120, %1131 : vector<19x35xf32>
    %cst_351 = arith.constant 2.500000e-01 : f32
    %1133 = vector.broadcast %cst_351 : f32 to vector<19x35xf32>
    %1134 = arith.mulf %832, %1133 : vector<19x35xf32>
    %1135 = arith.addf %1123, %1134 : vector<19x35xf32>
    %cst_352 = arith.constant 0.135299012 : f32
    %1136 = vector.broadcast %cst_352 : f32 to vector<19x35xf32>
    %1137 = arith.mulf %851, %1136 : vector<19x35xf32>
    %1138 = arith.addf %1126, %1137 : vector<19x35xf32>
    %cst_353 = arith.constant -0.326640725 : f32
    %1139 = vector.broadcast %cst_353 : f32 to vector<19x35xf32>
    %1140 = arith.mulf %851, %1139 : vector<19x35xf32>
    %1141 = arith.addf %1129, %1140 : vector<19x35xf32>
    %cst_354 = arith.constant 0.326640725 : f32
    %1142 = vector.broadcast %cst_354 : f32 to vector<19x35xf32>
    %1143 = arith.mulf %851, %1142 : vector<19x35xf32>
    %1144 = arith.addf %1132, %1143 : vector<19x35xf32>
    %cst_355 = arith.constant -0.135299012 : f32
    %1145 = vector.broadcast %cst_355 : f32 to vector<19x35xf32>
    %1146 = arith.mulf %851, %1145 : vector<19x35xf32>
    %1147 = arith.addf %1135, %1146 : vector<19x35xf32>
    %cst_356 = arith.constant 0.326640725 : f32
    %1148 = vector.broadcast %cst_356 : f32 to vector<19x35xf32>
    %1149 = arith.mulf %870, %1148 : vector<19x35xf32>
    %1150 = arith.addf %1138, %1149 : vector<19x35xf32>
    %cst_357 = arith.constant 0.326640725 : f32
    %1151 = vector.broadcast %cst_357 : f32 to vector<19x35xf32>
    %1152 = arith.mulf %870, %1151 : vector<19x35xf32>
    %1153 = arith.addf %1141, %1152 : vector<19x35xf32>
    %cst_358 = arith.constant 0.326640725 : f32
    %1154 = vector.broadcast %cst_358 : f32 to vector<19x35xf32>
    %1155 = arith.mulf %870, %1154 : vector<19x35xf32>
    %1156 = arith.addf %1144, %1155 : vector<19x35xf32>
    %cst_359 = arith.constant 0.326640725 : f32
    %1157 = vector.broadcast %cst_359 : f32 to vector<19x35xf32>
    %1158 = arith.mulf %870, %1157 : vector<19x35xf32>
    %1159 = arith.addf %1147, %1158 : vector<19x35xf32>
    %cst_360 = arith.constant 0.426776677 : f32
    %1160 = vector.broadcast %cst_360 : f32 to vector<19x35xf32>
    %1161 = arith.mulf %889, %1160 : vector<19x35xf32>
    %1162 = arith.addf %1150, %1161 : vector<19x35xf32>
    %cst_361 = arith.constant 0.176776692 : f32
    %1163 = vector.broadcast %cst_361 : f32 to vector<19x35xf32>
    %1164 = arith.mulf %889, %1163 : vector<19x35xf32>
    %1165 = arith.addf %1153, %1164 : vector<19x35xf32>
    %cst_362 = arith.constant -0.176776692 : f32
    %1166 = vector.broadcast %cst_362 : f32 to vector<19x35xf32>
    %1167 = arith.mulf %889, %1166 : vector<19x35xf32>
    %1168 = arith.addf %1156, %1167 : vector<19x35xf32>
    %cst_363 = arith.constant -0.426776677 : f32
    %1169 = vector.broadcast %cst_363 : f32 to vector<19x35xf32>
    %1170 = arith.mulf %889, %1169 : vector<19x35xf32>
    %1171 = arith.addf %1159, %1170 : vector<19x35xf32>
    %cst_364 = arith.constant 0.326640725 : f32
    %1172 = vector.broadcast %cst_364 : f32 to vector<19x35xf32>
    %1173 = arith.mulf %908, %1172 : vector<19x35xf32>
    %1174 = arith.addf %1162, %1173 : vector<19x35xf32>
    %cst_365 = arith.constant -0.326640725 : f32
    %1175 = vector.broadcast %cst_365 : f32 to vector<19x35xf32>
    %1176 = arith.mulf %908, %1175 : vector<19x35xf32>
    %1177 = arith.addf %1165, %1176 : vector<19x35xf32>
    %cst_366 = arith.constant -0.326640725 : f32
    %1178 = vector.broadcast %cst_366 : f32 to vector<19x35xf32>
    %1179 = arith.mulf %908, %1178 : vector<19x35xf32>
    %1180 = arith.addf %1168, %1179 : vector<19x35xf32>
    %cst_367 = arith.constant 0.326640725 : f32
    %1181 = vector.broadcast %cst_367 : f32 to vector<19x35xf32>
    %1182 = arith.mulf %908, %1181 : vector<19x35xf32>
    %1183 = arith.addf %1171, %1182 : vector<19x35xf32>
    %cst_368 = arith.constant 0.176776692 : f32
    %1184 = vector.broadcast %cst_368 : f32 to vector<19x35xf32>
    %1185 = arith.mulf %927, %1184 : vector<19x35xf32>
    %1186 = arith.addf %1174, %1185 : vector<19x35xf32>
    %cst_369 = arith.constant -0.426776677 : f32
    %1187 = vector.broadcast %cst_369 : f32 to vector<19x35xf32>
    %1188 = arith.mulf %927, %1187 : vector<19x35xf32>
    %1189 = arith.addf %1177, %1188 : vector<19x35xf32>
    %cst_370 = arith.constant 0.426776677 : f32
    %1190 = vector.broadcast %cst_370 : f32 to vector<19x35xf32>
    %1191 = arith.mulf %927, %1190 : vector<19x35xf32>
    %1192 = arith.addf %1180, %1191 : vector<19x35xf32>
    %cst_371 = arith.constant -0.176776692 : f32
    %1193 = vector.broadcast %cst_371 : f32 to vector<19x35xf32>
    %1194 = arith.mulf %927, %1193 : vector<19x35xf32>
    %1195 = arith.addf %1183, %1194 : vector<19x35xf32>
    %cst_372 = arith.constant 2.500000e-01 : f32
    %1196 = vector.broadcast %cst_372 : f32 to vector<19x35xf32>
    %1197 = arith.mulf %946, %1196 : vector<19x35xf32>
    %1198 = arith.addf %1186, %1197 : vector<19x35xf32>
    %cst_373 = arith.constant 2.500000e-01 : f32
    %1199 = vector.broadcast %cst_373 : f32 to vector<19x35xf32>
    %1200 = arith.mulf %946, %1199 : vector<19x35xf32>
    %1201 = arith.addf %1189, %1200 : vector<19x35xf32>
    %cst_374 = arith.constant 2.500000e-01 : f32
    %1202 = vector.broadcast %cst_374 : f32 to vector<19x35xf32>
    %1203 = arith.mulf %946, %1202 : vector<19x35xf32>
    %1204 = arith.addf %1192, %1203 : vector<19x35xf32>
    %cst_375 = arith.constant 2.500000e-01 : f32
    %1205 = vector.broadcast %cst_375 : f32 to vector<19x35xf32>
    %1206 = arith.mulf %946, %1205 : vector<19x35xf32>
    %1207 = arith.addf %1195, %1206 : vector<19x35xf32>
    %cst_376 = arith.constant 0.326640725 : f32
    %1208 = vector.broadcast %cst_376 : f32 to vector<19x35xf32>
    %1209 = arith.mulf %965, %1208 : vector<19x35xf32>
    %1210 = arith.addf %1198, %1209 : vector<19x35xf32>
    %cst_377 = arith.constant 0.135299012 : f32
    %1211 = vector.broadcast %cst_377 : f32 to vector<19x35xf32>
    %1212 = arith.mulf %965, %1211 : vector<19x35xf32>
    %1213 = arith.addf %1201, %1212 : vector<19x35xf32>
    %cst_378 = arith.constant -0.135299012 : f32
    %1214 = vector.broadcast %cst_378 : f32 to vector<19x35xf32>
    %1215 = arith.mulf %965, %1214 : vector<19x35xf32>
    %1216 = arith.addf %1204, %1215 : vector<19x35xf32>
    %cst_379 = arith.constant -0.326640725 : f32
    %1217 = vector.broadcast %cst_379 : f32 to vector<19x35xf32>
    %1218 = arith.mulf %965, %1217 : vector<19x35xf32>
    %1219 = arith.addf %1207, %1218 : vector<19x35xf32>
    %cst_380 = arith.constant 2.500000e-01 : f32
    %1220 = vector.broadcast %cst_380 : f32 to vector<19x35xf32>
    %1221 = arith.mulf %984, %1220 : vector<19x35xf32>
    %1222 = arith.addf %1210, %1221 : vector<19x35xf32>
    %cst_381 = arith.constant -2.500000e-01 : f32
    %1223 = vector.broadcast %cst_381 : f32 to vector<19x35xf32>
    %1224 = arith.mulf %984, %1223 : vector<19x35xf32>
    %1225 = arith.addf %1213, %1224 : vector<19x35xf32>
    %cst_382 = arith.constant -2.500000e-01 : f32
    %1226 = vector.broadcast %cst_382 : f32 to vector<19x35xf32>
    %1227 = arith.mulf %984, %1226 : vector<19x35xf32>
    %1228 = arith.addf %1216, %1227 : vector<19x35xf32>
    %cst_383 = arith.constant 2.500000e-01 : f32
    %1229 = vector.broadcast %cst_383 : f32 to vector<19x35xf32>
    %1230 = arith.mulf %984, %1229 : vector<19x35xf32>
    %1231 = arith.addf %1219, %1230 : vector<19x35xf32>
    %cst_384 = arith.constant 0.135299012 : f32
    %1232 = vector.broadcast %cst_384 : f32 to vector<19x35xf32>
    %1233 = arith.mulf %1003, %1232 : vector<19x35xf32>
    %1234 = arith.addf %1222, %1233 : vector<19x35xf32>
    %cst_385 = arith.constant -0.326640725 : f32
    %1235 = vector.broadcast %cst_385 : f32 to vector<19x35xf32>
    %1236 = arith.mulf %1003, %1235 : vector<19x35xf32>
    %1237 = arith.addf %1225, %1236 : vector<19x35xf32>
    %cst_386 = arith.constant 0.326640725 : f32
    %1238 = vector.broadcast %cst_386 : f32 to vector<19x35xf32>
    %1239 = arith.mulf %1003, %1238 : vector<19x35xf32>
    %1240 = arith.addf %1228, %1239 : vector<19x35xf32>
    %cst_387 = arith.constant -0.135299012 : f32
    %1241 = vector.broadcast %cst_387 : f32 to vector<19x35xf32>
    %1242 = arith.mulf %1003, %1241 : vector<19x35xf32>
    %1243 = arith.addf %1231, %1242 : vector<19x35xf32>
    %cst_388 = arith.constant 0.135299012 : f32
    %1244 = vector.broadcast %cst_388 : f32 to vector<19x35xf32>
    %1245 = arith.mulf %1022, %1244 : vector<19x35xf32>
    %1246 = arith.addf %1234, %1245 : vector<19x35xf32>
    %cst_389 = arith.constant 0.135299012 : f32
    %1247 = vector.broadcast %cst_389 : f32 to vector<19x35xf32>
    %1248 = arith.mulf %1022, %1247 : vector<19x35xf32>
    %1249 = arith.addf %1237, %1248 : vector<19x35xf32>
    %cst_390 = arith.constant 0.135299012 : f32
    %1250 = vector.broadcast %cst_390 : f32 to vector<19x35xf32>
    %1251 = arith.mulf %1022, %1250 : vector<19x35xf32>
    %1252 = arith.addf %1240, %1251 : vector<19x35xf32>
    %cst_391 = arith.constant 0.135299012 : f32
    %1253 = vector.broadcast %cst_391 : f32 to vector<19x35xf32>
    %1254 = arith.mulf %1022, %1253 : vector<19x35xf32>
    %1255 = arith.addf %1243, %1254 : vector<19x35xf32>
    %cst_392 = arith.constant 0.176776692 : f32
    %1256 = vector.broadcast %cst_392 : f32 to vector<19x35xf32>
    %1257 = arith.mulf %1041, %1256 : vector<19x35xf32>
    %1258 = arith.addf %1246, %1257 : vector<19x35xf32>
    %cst_393 = arith.constant 0.0732232928 : f32
    %1259 = vector.broadcast %cst_393 : f32 to vector<19x35xf32>
    %1260 = arith.mulf %1041, %1259 : vector<19x35xf32>
    %1261 = arith.addf %1249, %1260 : vector<19x35xf32>
    %cst_394 = arith.constant -0.0732232928 : f32
    %1262 = vector.broadcast %cst_394 : f32 to vector<19x35xf32>
    %1263 = arith.mulf %1041, %1262 : vector<19x35xf32>
    %1264 = arith.addf %1252, %1263 : vector<19x35xf32>
    %cst_395 = arith.constant -0.176776692 : f32
    %1265 = vector.broadcast %cst_395 : f32 to vector<19x35xf32>
    %1266 = arith.mulf %1041, %1265 : vector<19x35xf32>
    %1267 = arith.addf %1255, %1266 : vector<19x35xf32>
    %cst_396 = arith.constant 0.135299012 : f32
    %1268 = vector.broadcast %cst_396 : f32 to vector<19x35xf32>
    %1269 = arith.mulf %1060, %1268 : vector<19x35xf32>
    %1270 = arith.addf %1258, %1269 : vector<19x35xf32>
    %cst_397 = arith.constant -0.135299012 : f32
    %1271 = vector.broadcast %cst_397 : f32 to vector<19x35xf32>
    %1272 = arith.mulf %1060, %1271 : vector<19x35xf32>
    %1273 = arith.addf %1261, %1272 : vector<19x35xf32>
    %cst_398 = arith.constant -0.135299012 : f32
    %1274 = vector.broadcast %cst_398 : f32 to vector<19x35xf32>
    %1275 = arith.mulf %1060, %1274 : vector<19x35xf32>
    %1276 = arith.addf %1264, %1275 : vector<19x35xf32>
    %cst_399 = arith.constant 0.135299012 : f32
    %1277 = vector.broadcast %cst_399 : f32 to vector<19x35xf32>
    %1278 = arith.mulf %1060, %1277 : vector<19x35xf32>
    %1279 = arith.addf %1267, %1278 : vector<19x35xf32>
    %cst_400 = arith.constant 0.0732232928 : f32
    %1280 = vector.broadcast %cst_400 : f32 to vector<19x35xf32>
    %1281 = arith.mulf %1079, %1280 : vector<19x35xf32>
    %1282 = arith.addf %1270, %1281 : vector<19x35xf32>
    %cst_401 = arith.constant -0.176776692 : f32
    %1283 = vector.broadcast %cst_401 : f32 to vector<19x35xf32>
    %1284 = arith.mulf %1079, %1283 : vector<19x35xf32>
    %1285 = arith.addf %1273, %1284 : vector<19x35xf32>
    %cst_402 = arith.constant 0.176776692 : f32
    %1286 = vector.broadcast %cst_402 : f32 to vector<19x35xf32>
    %1287 = arith.mulf %1079, %1286 : vector<19x35xf32>
    %1288 = arith.addf %1276, %1287 : vector<19x35xf32>
    %cst_403 = arith.constant -0.0732232928 : f32
    %1289 = vector.broadcast %cst_403 : f32 to vector<19x35xf32>
    %1290 = arith.mulf %1079, %1289 : vector<19x35xf32>
    %1291 = arith.addf %1279, %1290 : vector<19x35xf32>
    %1292 = arith.mulf %1282, %1102 : vector<19x35xf32>
    %1293 = vector.extract_strided_slice %1292 {offsets = [3, 3], sizes = [16, 32], strides = [1, 1]} : vector<19x35xf32> to vector<16x32xf32>
    %1294 = arith.addf %1103, %1293 : vector<16x32xf32>
    %1295 = arith.mulf %1285, %1102 : vector<19x35xf32>
    %1296 = vector.extract_strided_slice %1295 {offsets = [3, 2], sizes = [16, 32], strides = [1, 1]} : vector<19x35xf32> to vector<16x32xf32>
    %1297 = arith.addf %1294, %1296 : vector<16x32xf32>
    %1298 = arith.mulf %1288, %1102 : vector<19x35xf32>
    %1299 = vector.extract_strided_slice %1298 {offsets = [3, 1], sizes = [16, 32], strides = [1, 1]} : vector<19x35xf32> to vector<16x32xf32>
    %1300 = arith.addf %1297, %1299 : vector<16x32xf32>
    %1301 = arith.mulf %1291, %1102 : vector<19x35xf32>
    %1302 = vector.extract_strided_slice %1301 {offsets = [3, 0], sizes = [16, 32], strides = [1, 1]} : vector<19x35xf32> to vector<16x32xf32>
    %1303 = arith.addf %1300, %1302 : vector<16x32xf32>
    %cst_404 = arith.constant 2.500000e-01 : f32
    %1304 = vector.broadcast %cst_404 : f32 to vector<19x35xf32>
    %1305 = arith.mulf %795, %1304 : vector<19x35xf32>
    %cst_405 = arith.constant 2.500000e-01 : f32
    %1306 = vector.broadcast %cst_405 : f32 to vector<19x35xf32>
    %1307 = arith.mulf %795, %1306 : vector<19x35xf32>
    %cst_406 = arith.constant 2.500000e-01 : f32
    %1308 = vector.broadcast %cst_406 : f32 to vector<19x35xf32>
    %1309 = arith.mulf %795, %1308 : vector<19x35xf32>
    %cst_407 = arith.constant 2.500000e-01 : f32
    %1310 = vector.broadcast %cst_407 : f32 to vector<19x35xf32>
    %1311 = arith.mulf %795, %1310 : vector<19x35xf32>
    %cst_408 = arith.constant 0.326640725 : f32
    %1312 = vector.broadcast %cst_408 : f32 to vector<19x35xf32>
    %1313 = arith.mulf %813, %1312 : vector<19x35xf32>
    %1314 = arith.addf %1305, %1313 : vector<19x35xf32>
    %cst_409 = arith.constant 0.135299012 : f32
    %1315 = vector.broadcast %cst_409 : f32 to vector<19x35xf32>
    %1316 = arith.mulf %813, %1315 : vector<19x35xf32>
    %1317 = arith.addf %1307, %1316 : vector<19x35xf32>
    %cst_410 = arith.constant -0.135299012 : f32
    %1318 = vector.broadcast %cst_410 : f32 to vector<19x35xf32>
    %1319 = arith.mulf %813, %1318 : vector<19x35xf32>
    %1320 = arith.addf %1309, %1319 : vector<19x35xf32>
    %cst_411 = arith.constant -0.326640725 : f32
    %1321 = vector.broadcast %cst_411 : f32 to vector<19x35xf32>
    %1322 = arith.mulf %813, %1321 : vector<19x35xf32>
    %1323 = arith.addf %1311, %1322 : vector<19x35xf32>
    %cst_412 = arith.constant 2.500000e-01 : f32
    %1324 = vector.broadcast %cst_412 : f32 to vector<19x35xf32>
    %1325 = arith.mulf %832, %1324 : vector<19x35xf32>
    %1326 = arith.addf %1314, %1325 : vector<19x35xf32>
    %cst_413 = arith.constant -2.500000e-01 : f32
    %1327 = vector.broadcast %cst_413 : f32 to vector<19x35xf32>
    %1328 = arith.mulf %832, %1327 : vector<19x35xf32>
    %1329 = arith.addf %1317, %1328 : vector<19x35xf32>
    %cst_414 = arith.constant -2.500000e-01 : f32
    %1330 = vector.broadcast %cst_414 : f32 to vector<19x35xf32>
    %1331 = arith.mulf %832, %1330 : vector<19x35xf32>
    %1332 = arith.addf %1320, %1331 : vector<19x35xf32>
    %cst_415 = arith.constant 2.500000e-01 : f32
    %1333 = vector.broadcast %cst_415 : f32 to vector<19x35xf32>
    %1334 = arith.mulf %832, %1333 : vector<19x35xf32>
    %1335 = arith.addf %1323, %1334 : vector<19x35xf32>
    %cst_416 = arith.constant 0.135299012 : f32
    %1336 = vector.broadcast %cst_416 : f32 to vector<19x35xf32>
    %1337 = arith.mulf %851, %1336 : vector<19x35xf32>
    %1338 = arith.addf %1326, %1337 : vector<19x35xf32>
    %cst_417 = arith.constant -0.326640725 : f32
    %1339 = vector.broadcast %cst_417 : f32 to vector<19x35xf32>
    %1340 = arith.mulf %851, %1339 : vector<19x35xf32>
    %1341 = arith.addf %1329, %1340 : vector<19x35xf32>
    %cst_418 = arith.constant 0.326640725 : f32
    %1342 = vector.broadcast %cst_418 : f32 to vector<19x35xf32>
    %1343 = arith.mulf %851, %1342 : vector<19x35xf32>
    %1344 = arith.addf %1332, %1343 : vector<19x35xf32>
    %cst_419 = arith.constant -0.135299012 : f32
    %1345 = vector.broadcast %cst_419 : f32 to vector<19x35xf32>
    %1346 = arith.mulf %851, %1345 : vector<19x35xf32>
    %1347 = arith.addf %1335, %1346 : vector<19x35xf32>
    %cst_420 = arith.constant 0.135299012 : f32
    %1348 = vector.broadcast %cst_420 : f32 to vector<19x35xf32>
    %1349 = arith.mulf %870, %1348 : vector<19x35xf32>
    %1350 = arith.addf %1338, %1349 : vector<19x35xf32>
    %cst_421 = arith.constant 0.135299012 : f32
    %1351 = vector.broadcast %cst_421 : f32 to vector<19x35xf32>
    %1352 = arith.mulf %870, %1351 : vector<19x35xf32>
    %1353 = arith.addf %1341, %1352 : vector<19x35xf32>
    %cst_422 = arith.constant 0.135299012 : f32
    %1354 = vector.broadcast %cst_422 : f32 to vector<19x35xf32>
    %1355 = arith.mulf %870, %1354 : vector<19x35xf32>
    %1356 = arith.addf %1344, %1355 : vector<19x35xf32>
    %cst_423 = arith.constant 0.135299012 : f32
    %1357 = vector.broadcast %cst_423 : f32 to vector<19x35xf32>
    %1358 = arith.mulf %870, %1357 : vector<19x35xf32>
    %1359 = arith.addf %1347, %1358 : vector<19x35xf32>
    %cst_424 = arith.constant 0.176776692 : f32
    %1360 = vector.broadcast %cst_424 : f32 to vector<19x35xf32>
    %1361 = arith.mulf %889, %1360 : vector<19x35xf32>
    %1362 = arith.addf %1350, %1361 : vector<19x35xf32>
    %cst_425 = arith.constant 0.0732232928 : f32
    %1363 = vector.broadcast %cst_425 : f32 to vector<19x35xf32>
    %1364 = arith.mulf %889, %1363 : vector<19x35xf32>
    %1365 = arith.addf %1353, %1364 : vector<19x35xf32>
    %cst_426 = arith.constant -0.0732232928 : f32
    %1366 = vector.broadcast %cst_426 : f32 to vector<19x35xf32>
    %1367 = arith.mulf %889, %1366 : vector<19x35xf32>
    %1368 = arith.addf %1356, %1367 : vector<19x35xf32>
    %cst_427 = arith.constant -0.176776692 : f32
    %1369 = vector.broadcast %cst_427 : f32 to vector<19x35xf32>
    %1370 = arith.mulf %889, %1369 : vector<19x35xf32>
    %1371 = arith.addf %1359, %1370 : vector<19x35xf32>
    %cst_428 = arith.constant 0.135299012 : f32
    %1372 = vector.broadcast %cst_428 : f32 to vector<19x35xf32>
    %1373 = arith.mulf %908, %1372 : vector<19x35xf32>
    %1374 = arith.addf %1362, %1373 : vector<19x35xf32>
    %cst_429 = arith.constant -0.135299012 : f32
    %1375 = vector.broadcast %cst_429 : f32 to vector<19x35xf32>
    %1376 = arith.mulf %908, %1375 : vector<19x35xf32>
    %1377 = arith.addf %1365, %1376 : vector<19x35xf32>
    %cst_430 = arith.constant -0.135299012 : f32
    %1378 = vector.broadcast %cst_430 : f32 to vector<19x35xf32>
    %1379 = arith.mulf %908, %1378 : vector<19x35xf32>
    %1380 = arith.addf %1368, %1379 : vector<19x35xf32>
    %cst_431 = arith.constant 0.135299012 : f32
    %1381 = vector.broadcast %cst_431 : f32 to vector<19x35xf32>
    %1382 = arith.mulf %908, %1381 : vector<19x35xf32>
    %1383 = arith.addf %1371, %1382 : vector<19x35xf32>
    %cst_432 = arith.constant 0.0732232928 : f32
    %1384 = vector.broadcast %cst_432 : f32 to vector<19x35xf32>
    %1385 = arith.mulf %927, %1384 : vector<19x35xf32>
    %1386 = arith.addf %1374, %1385 : vector<19x35xf32>
    %cst_433 = arith.constant -0.176776692 : f32
    %1387 = vector.broadcast %cst_433 : f32 to vector<19x35xf32>
    %1388 = arith.mulf %927, %1387 : vector<19x35xf32>
    %1389 = arith.addf %1377, %1388 : vector<19x35xf32>
    %cst_434 = arith.constant 0.176776692 : f32
    %1390 = vector.broadcast %cst_434 : f32 to vector<19x35xf32>
    %1391 = arith.mulf %927, %1390 : vector<19x35xf32>
    %1392 = arith.addf %1380, %1391 : vector<19x35xf32>
    %cst_435 = arith.constant -0.0732232928 : f32
    %1393 = vector.broadcast %cst_435 : f32 to vector<19x35xf32>
    %1394 = arith.mulf %927, %1393 : vector<19x35xf32>
    %1395 = arith.addf %1383, %1394 : vector<19x35xf32>
    %cst_436 = arith.constant -2.500000e-01 : f32
    %1396 = vector.broadcast %cst_436 : f32 to vector<19x35xf32>
    %1397 = arith.mulf %946, %1396 : vector<19x35xf32>
    %1398 = arith.addf %1386, %1397 : vector<19x35xf32>
    %cst_437 = arith.constant -2.500000e-01 : f32
    %1399 = vector.broadcast %cst_437 : f32 to vector<19x35xf32>
    %1400 = arith.mulf %946, %1399 : vector<19x35xf32>
    %1401 = arith.addf %1389, %1400 : vector<19x35xf32>
    %cst_438 = arith.constant -2.500000e-01 : f32
    %1402 = vector.broadcast %cst_438 : f32 to vector<19x35xf32>
    %1403 = arith.mulf %946, %1402 : vector<19x35xf32>
    %1404 = arith.addf %1392, %1403 : vector<19x35xf32>
    %cst_439 = arith.constant -2.500000e-01 : f32
    %1405 = vector.broadcast %cst_439 : f32 to vector<19x35xf32>
    %1406 = arith.mulf %946, %1405 : vector<19x35xf32>
    %1407 = arith.addf %1395, %1406 : vector<19x35xf32>
    %cst_440 = arith.constant -0.326640725 : f32
    %1408 = vector.broadcast %cst_440 : f32 to vector<19x35xf32>
    %1409 = arith.mulf %965, %1408 : vector<19x35xf32>
    %1410 = arith.addf %1398, %1409 : vector<19x35xf32>
    %cst_441 = arith.constant -0.135299012 : f32
    %1411 = vector.broadcast %cst_441 : f32 to vector<19x35xf32>
    %1412 = arith.mulf %965, %1411 : vector<19x35xf32>
    %1413 = arith.addf %1401, %1412 : vector<19x35xf32>
    %cst_442 = arith.constant 0.135299012 : f32
    %1414 = vector.broadcast %cst_442 : f32 to vector<19x35xf32>
    %1415 = arith.mulf %965, %1414 : vector<19x35xf32>
    %1416 = arith.addf %1404, %1415 : vector<19x35xf32>
    %cst_443 = arith.constant 0.326640725 : f32
    %1417 = vector.broadcast %cst_443 : f32 to vector<19x35xf32>
    %1418 = arith.mulf %965, %1417 : vector<19x35xf32>
    %1419 = arith.addf %1407, %1418 : vector<19x35xf32>
    %cst_444 = arith.constant -2.500000e-01 : f32
    %1420 = vector.broadcast %cst_444 : f32 to vector<19x35xf32>
    %1421 = arith.mulf %984, %1420 : vector<19x35xf32>
    %1422 = arith.addf %1410, %1421 : vector<19x35xf32>
    %cst_445 = arith.constant 2.500000e-01 : f32
    %1423 = vector.broadcast %cst_445 : f32 to vector<19x35xf32>
    %1424 = arith.mulf %984, %1423 : vector<19x35xf32>
    %1425 = arith.addf %1413, %1424 : vector<19x35xf32>
    %cst_446 = arith.constant 2.500000e-01 : f32
    %1426 = vector.broadcast %cst_446 : f32 to vector<19x35xf32>
    %1427 = arith.mulf %984, %1426 : vector<19x35xf32>
    %1428 = arith.addf %1416, %1427 : vector<19x35xf32>
    %cst_447 = arith.constant -2.500000e-01 : f32
    %1429 = vector.broadcast %cst_447 : f32 to vector<19x35xf32>
    %1430 = arith.mulf %984, %1429 : vector<19x35xf32>
    %1431 = arith.addf %1419, %1430 : vector<19x35xf32>
    %cst_448 = arith.constant -0.135299012 : f32
    %1432 = vector.broadcast %cst_448 : f32 to vector<19x35xf32>
    %1433 = arith.mulf %1003, %1432 : vector<19x35xf32>
    %1434 = arith.addf %1422, %1433 : vector<19x35xf32>
    %cst_449 = arith.constant 0.326640725 : f32
    %1435 = vector.broadcast %cst_449 : f32 to vector<19x35xf32>
    %1436 = arith.mulf %1003, %1435 : vector<19x35xf32>
    %1437 = arith.addf %1425, %1436 : vector<19x35xf32>
    %cst_450 = arith.constant -0.326640725 : f32
    %1438 = vector.broadcast %cst_450 : f32 to vector<19x35xf32>
    %1439 = arith.mulf %1003, %1438 : vector<19x35xf32>
    %1440 = arith.addf %1428, %1439 : vector<19x35xf32>
    %cst_451 = arith.constant 0.135299012 : f32
    %1441 = vector.broadcast %cst_451 : f32 to vector<19x35xf32>
    %1442 = arith.mulf %1003, %1441 : vector<19x35xf32>
    %1443 = arith.addf %1431, %1442 : vector<19x35xf32>
    %cst_452 = arith.constant -0.326640725 : f32
    %1444 = vector.broadcast %cst_452 : f32 to vector<19x35xf32>
    %1445 = arith.mulf %1022, %1444 : vector<19x35xf32>
    %1446 = arith.addf %1434, %1445 : vector<19x35xf32>
    %cst_453 = arith.constant -0.326640725 : f32
    %1447 = vector.broadcast %cst_453 : f32 to vector<19x35xf32>
    %1448 = arith.mulf %1022, %1447 : vector<19x35xf32>
    %1449 = arith.addf %1437, %1448 : vector<19x35xf32>
    %cst_454 = arith.constant -0.326640725 : f32
    %1450 = vector.broadcast %cst_454 : f32 to vector<19x35xf32>
    %1451 = arith.mulf %1022, %1450 : vector<19x35xf32>
    %1452 = arith.addf %1440, %1451 : vector<19x35xf32>
    %cst_455 = arith.constant -0.326640725 : f32
    %1453 = vector.broadcast %cst_455 : f32 to vector<19x35xf32>
    %1454 = arith.mulf %1022, %1453 : vector<19x35xf32>
    %1455 = arith.addf %1443, %1454 : vector<19x35xf32>
    %cst_456 = arith.constant -0.426776677 : f32
    %1456 = vector.broadcast %cst_456 : f32 to vector<19x35xf32>
    %1457 = arith.mulf %1041, %1456 : vector<19x35xf32>
    %1458 = arith.addf %1446, %1457 : vector<19x35xf32>
    %cst_457 = arith.constant -0.176776692 : f32
    %1459 = vector.broadcast %cst_457 : f32 to vector<19x35xf32>
    %1460 = arith.mulf %1041, %1459 : vector<19x35xf32>
    %1461 = arith.addf %1449, %1460 : vector<19x35xf32>
    %cst_458 = arith.constant 0.176776692 : f32
    %1462 = vector.broadcast %cst_458 : f32 to vector<19x35xf32>
    %1463 = arith.mulf %1041, %1462 : vector<19x35xf32>
    %1464 = arith.addf %1452, %1463 : vector<19x35xf32>
    %cst_459 = arith.constant 0.426776677 : f32
    %1465 = vector.broadcast %cst_459 : f32 to vector<19x35xf32>
    %1466 = arith.mulf %1041, %1465 : vector<19x35xf32>
    %1467 = arith.addf %1455, %1466 : vector<19x35xf32>
    %cst_460 = arith.constant -0.326640725 : f32
    %1468 = vector.broadcast %cst_460 : f32 to vector<19x35xf32>
    %1469 = arith.mulf %1060, %1468 : vector<19x35xf32>
    %1470 = arith.addf %1458, %1469 : vector<19x35xf32>
    %cst_461 = arith.constant 0.326640725 : f32
    %1471 = vector.broadcast %cst_461 : f32 to vector<19x35xf32>
    %1472 = arith.mulf %1060, %1471 : vector<19x35xf32>
    %1473 = arith.addf %1461, %1472 : vector<19x35xf32>
    %cst_462 = arith.constant 0.326640725 : f32
    %1474 = vector.broadcast %cst_462 : f32 to vector<19x35xf32>
    %1475 = arith.mulf %1060, %1474 : vector<19x35xf32>
    %1476 = arith.addf %1464, %1475 : vector<19x35xf32>
    %cst_463 = arith.constant -0.326640725 : f32
    %1477 = vector.broadcast %cst_463 : f32 to vector<19x35xf32>
    %1478 = arith.mulf %1060, %1477 : vector<19x35xf32>
    %1479 = arith.addf %1467, %1478 : vector<19x35xf32>
    %cst_464 = arith.constant -0.176776692 : f32
    %1480 = vector.broadcast %cst_464 : f32 to vector<19x35xf32>
    %1481 = arith.mulf %1079, %1480 : vector<19x35xf32>
    %1482 = arith.addf %1470, %1481 : vector<19x35xf32>
    %cst_465 = arith.constant 0.426776677 : f32
    %1483 = vector.broadcast %cst_465 : f32 to vector<19x35xf32>
    %1484 = arith.mulf %1079, %1483 : vector<19x35xf32>
    %1485 = arith.addf %1473, %1484 : vector<19x35xf32>
    %cst_466 = arith.constant -0.426776677 : f32
    %1486 = vector.broadcast %cst_466 : f32 to vector<19x35xf32>
    %1487 = arith.mulf %1079, %1486 : vector<19x35xf32>
    %1488 = arith.addf %1476, %1487 : vector<19x35xf32>
    %cst_467 = arith.constant 0.176776692 : f32
    %1489 = vector.broadcast %cst_467 : f32 to vector<19x35xf32>
    %1490 = arith.mulf %1079, %1489 : vector<19x35xf32>
    %1491 = arith.addf %1479, %1490 : vector<19x35xf32>
    %1492 = arith.mulf %1482, %1102 : vector<19x35xf32>
    %1493 = vector.extract_strided_slice %1492 {offsets = [2, 3], sizes = [16, 32], strides = [1, 1]} : vector<19x35xf32> to vector<16x32xf32>
    %1494 = arith.addf %1303, %1493 : vector<16x32xf32>
    %1495 = arith.mulf %1485, %1102 : vector<19x35xf32>
    %1496 = vector.extract_strided_slice %1495 {offsets = [2, 2], sizes = [16, 32], strides = [1, 1]} : vector<19x35xf32> to vector<16x32xf32>
    %1497 = arith.addf %1494, %1496 : vector<16x32xf32>
    %1498 = arith.mulf %1488, %1102 : vector<19x35xf32>
    %1499 = vector.extract_strided_slice %1498 {offsets = [2, 1], sizes = [16, 32], strides = [1, 1]} : vector<19x35xf32> to vector<16x32xf32>
    %1500 = arith.addf %1497, %1499 : vector<16x32xf32>
    %1501 = arith.mulf %1491, %1102 : vector<19x35xf32>
    %1502 = vector.extract_strided_slice %1501 {offsets = [2, 0], sizes = [16, 32], strides = [1, 1]} : vector<19x35xf32> to vector<16x32xf32>
    %1503 = arith.addf %1500, %1502 : vector<16x32xf32>
    %cst_468 = arith.constant 2.500000e-01 : f32
    %1504 = vector.broadcast %cst_468 : f32 to vector<19x35xf32>
    %1505 = arith.mulf %795, %1504 : vector<19x35xf32>
    %cst_469 = arith.constant 2.500000e-01 : f32
    %1506 = vector.broadcast %cst_469 : f32 to vector<19x35xf32>
    %1507 = arith.mulf %795, %1506 : vector<19x35xf32>
    %cst_470 = arith.constant 2.500000e-01 : f32
    %1508 = vector.broadcast %cst_470 : f32 to vector<19x35xf32>
    %1509 = arith.mulf %795, %1508 : vector<19x35xf32>
    %cst_471 = arith.constant 2.500000e-01 : f32
    %1510 = vector.broadcast %cst_471 : f32 to vector<19x35xf32>
    %1511 = arith.mulf %795, %1510 : vector<19x35xf32>
    %cst_472 = arith.constant 0.326640725 : f32
    %1512 = vector.broadcast %cst_472 : f32 to vector<19x35xf32>
    %1513 = arith.mulf %813, %1512 : vector<19x35xf32>
    %1514 = arith.addf %1505, %1513 : vector<19x35xf32>
    %cst_473 = arith.constant 0.135299012 : f32
    %1515 = vector.broadcast %cst_473 : f32 to vector<19x35xf32>
    %1516 = arith.mulf %813, %1515 : vector<19x35xf32>
    %1517 = arith.addf %1507, %1516 : vector<19x35xf32>
    %cst_474 = arith.constant -0.135299012 : f32
    %1518 = vector.broadcast %cst_474 : f32 to vector<19x35xf32>
    %1519 = arith.mulf %813, %1518 : vector<19x35xf32>
    %1520 = arith.addf %1509, %1519 : vector<19x35xf32>
    %cst_475 = arith.constant -0.326640725 : f32
    %1521 = vector.broadcast %cst_475 : f32 to vector<19x35xf32>
    %1522 = arith.mulf %813, %1521 : vector<19x35xf32>
    %1523 = arith.addf %1511, %1522 : vector<19x35xf32>
    %cst_476 = arith.constant 2.500000e-01 : f32
    %1524 = vector.broadcast %cst_476 : f32 to vector<19x35xf32>
    %1525 = arith.mulf %832, %1524 : vector<19x35xf32>
    %1526 = arith.addf %1514, %1525 : vector<19x35xf32>
    %cst_477 = arith.constant -2.500000e-01 : f32
    %1527 = vector.broadcast %cst_477 : f32 to vector<19x35xf32>
    %1528 = arith.mulf %832, %1527 : vector<19x35xf32>
    %1529 = arith.addf %1517, %1528 : vector<19x35xf32>
    %cst_478 = arith.constant -2.500000e-01 : f32
    %1530 = vector.broadcast %cst_478 : f32 to vector<19x35xf32>
    %1531 = arith.mulf %832, %1530 : vector<19x35xf32>
    %1532 = arith.addf %1520, %1531 : vector<19x35xf32>
    %cst_479 = arith.constant 2.500000e-01 : f32
    %1533 = vector.broadcast %cst_479 : f32 to vector<19x35xf32>
    %1534 = arith.mulf %832, %1533 : vector<19x35xf32>
    %1535 = arith.addf %1523, %1534 : vector<19x35xf32>
    %cst_480 = arith.constant 0.135299012 : f32
    %1536 = vector.broadcast %cst_480 : f32 to vector<19x35xf32>
    %1537 = arith.mulf %851, %1536 : vector<19x35xf32>
    %1538 = arith.addf %1526, %1537 : vector<19x35xf32>
    %cst_481 = arith.constant -0.326640725 : f32
    %1539 = vector.broadcast %cst_481 : f32 to vector<19x35xf32>
    %1540 = arith.mulf %851, %1539 : vector<19x35xf32>
    %1541 = arith.addf %1529, %1540 : vector<19x35xf32>
    %cst_482 = arith.constant 0.326640725 : f32
    %1542 = vector.broadcast %cst_482 : f32 to vector<19x35xf32>
    %1543 = arith.mulf %851, %1542 : vector<19x35xf32>
    %1544 = arith.addf %1532, %1543 : vector<19x35xf32>
    %cst_483 = arith.constant -0.135299012 : f32
    %1545 = vector.broadcast %cst_483 : f32 to vector<19x35xf32>
    %1546 = arith.mulf %851, %1545 : vector<19x35xf32>
    %1547 = arith.addf %1535, %1546 : vector<19x35xf32>
    %cst_484 = arith.constant -0.135299012 : f32
    %1548 = vector.broadcast %cst_484 : f32 to vector<19x35xf32>
    %1549 = arith.mulf %870, %1548 : vector<19x35xf32>
    %1550 = arith.addf %1538, %1549 : vector<19x35xf32>
    %cst_485 = arith.constant -0.135299012 : f32
    %1551 = vector.broadcast %cst_485 : f32 to vector<19x35xf32>
    %1552 = arith.mulf %870, %1551 : vector<19x35xf32>
    %1553 = arith.addf %1541, %1552 : vector<19x35xf32>
    %cst_486 = arith.constant -0.135299012 : f32
    %1554 = vector.broadcast %cst_486 : f32 to vector<19x35xf32>
    %1555 = arith.mulf %870, %1554 : vector<19x35xf32>
    %1556 = arith.addf %1544, %1555 : vector<19x35xf32>
    %cst_487 = arith.constant -0.135299012 : f32
    %1557 = vector.broadcast %cst_487 : f32 to vector<19x35xf32>
    %1558 = arith.mulf %870, %1557 : vector<19x35xf32>
    %1559 = arith.addf %1547, %1558 : vector<19x35xf32>
    %cst_488 = arith.constant -0.176776692 : f32
    %1560 = vector.broadcast %cst_488 : f32 to vector<19x35xf32>
    %1561 = arith.mulf %889, %1560 : vector<19x35xf32>
    %1562 = arith.addf %1550, %1561 : vector<19x35xf32>
    %cst_489 = arith.constant -0.0732232928 : f32
    %1563 = vector.broadcast %cst_489 : f32 to vector<19x35xf32>
    %1564 = arith.mulf %889, %1563 : vector<19x35xf32>
    %1565 = arith.addf %1553, %1564 : vector<19x35xf32>
    %cst_490 = arith.constant 0.0732232928 : f32
    %1566 = vector.broadcast %cst_490 : f32 to vector<19x35xf32>
    %1567 = arith.mulf %889, %1566 : vector<19x35xf32>
    %1568 = arith.addf %1556, %1567 : vector<19x35xf32>
    %cst_491 = arith.constant 0.176776692 : f32
    %1569 = vector.broadcast %cst_491 : f32 to vector<19x35xf32>
    %1570 = arith.mulf %889, %1569 : vector<19x35xf32>
    %1571 = arith.addf %1559, %1570 : vector<19x35xf32>
    %cst_492 = arith.constant -0.135299012 : f32
    %1572 = vector.broadcast %cst_492 : f32 to vector<19x35xf32>
    %1573 = arith.mulf %908, %1572 : vector<19x35xf32>
    %1574 = arith.addf %1562, %1573 : vector<19x35xf32>
    %cst_493 = arith.constant 0.135299012 : f32
    %1575 = vector.broadcast %cst_493 : f32 to vector<19x35xf32>
    %1576 = arith.mulf %908, %1575 : vector<19x35xf32>
    %1577 = arith.addf %1565, %1576 : vector<19x35xf32>
    %cst_494 = arith.constant 0.135299012 : f32
    %1578 = vector.broadcast %cst_494 : f32 to vector<19x35xf32>
    %1579 = arith.mulf %908, %1578 : vector<19x35xf32>
    %1580 = arith.addf %1568, %1579 : vector<19x35xf32>
    %cst_495 = arith.constant -0.135299012 : f32
    %1581 = vector.broadcast %cst_495 : f32 to vector<19x35xf32>
    %1582 = arith.mulf %908, %1581 : vector<19x35xf32>
    %1583 = arith.addf %1571, %1582 : vector<19x35xf32>
    %cst_496 = arith.constant -0.0732232928 : f32
    %1584 = vector.broadcast %cst_496 : f32 to vector<19x35xf32>
    %1585 = arith.mulf %927, %1584 : vector<19x35xf32>
    %1586 = arith.addf %1574, %1585 : vector<19x35xf32>
    %cst_497 = arith.constant 0.176776692 : f32
    %1587 = vector.broadcast %cst_497 : f32 to vector<19x35xf32>
    %1588 = arith.mulf %927, %1587 : vector<19x35xf32>
    %1589 = arith.addf %1577, %1588 : vector<19x35xf32>
    %cst_498 = arith.constant -0.176776692 : f32
    %1590 = vector.broadcast %cst_498 : f32 to vector<19x35xf32>
    %1591 = arith.mulf %927, %1590 : vector<19x35xf32>
    %1592 = arith.addf %1580, %1591 : vector<19x35xf32>
    %cst_499 = arith.constant 0.0732232928 : f32
    %1593 = vector.broadcast %cst_499 : f32 to vector<19x35xf32>
    %1594 = arith.mulf %927, %1593 : vector<19x35xf32>
    %1595 = arith.addf %1583, %1594 : vector<19x35xf32>
    %cst_500 = arith.constant -2.500000e-01 : f32
    %1596 = vector.broadcast %cst_500 : f32 to vector<19x35xf32>
    %1597 = arith.mulf %946, %1596 : vector<19x35xf32>
    %1598 = arith.addf %1586, %1597 : vector<19x35xf32>
    %cst_501 = arith.constant -2.500000e-01 : f32
    %1599 = vector.broadcast %cst_501 : f32 to vector<19x35xf32>
    %1600 = arith.mulf %946, %1599 : vector<19x35xf32>
    %1601 = arith.addf %1589, %1600 : vector<19x35xf32>
    %cst_502 = arith.constant -2.500000e-01 : f32
    %1602 = vector.broadcast %cst_502 : f32 to vector<19x35xf32>
    %1603 = arith.mulf %946, %1602 : vector<19x35xf32>
    %1604 = arith.addf %1592, %1603 : vector<19x35xf32>
    %cst_503 = arith.constant -2.500000e-01 : f32
    %1605 = vector.broadcast %cst_503 : f32 to vector<19x35xf32>
    %1606 = arith.mulf %946, %1605 : vector<19x35xf32>
    %1607 = arith.addf %1595, %1606 : vector<19x35xf32>
    %cst_504 = arith.constant -0.326640725 : f32
    %1608 = vector.broadcast %cst_504 : f32 to vector<19x35xf32>
    %1609 = arith.mulf %965, %1608 : vector<19x35xf32>
    %1610 = arith.addf %1598, %1609 : vector<19x35xf32>
    %cst_505 = arith.constant -0.135299012 : f32
    %1611 = vector.broadcast %cst_505 : f32 to vector<19x35xf32>
    %1612 = arith.mulf %965, %1611 : vector<19x35xf32>
    %1613 = arith.addf %1601, %1612 : vector<19x35xf32>
    %cst_506 = arith.constant 0.135299012 : f32
    %1614 = vector.broadcast %cst_506 : f32 to vector<19x35xf32>
    %1615 = arith.mulf %965, %1614 : vector<19x35xf32>
    %1616 = arith.addf %1604, %1615 : vector<19x35xf32>
    %cst_507 = arith.constant 0.326640725 : f32
    %1617 = vector.broadcast %cst_507 : f32 to vector<19x35xf32>
    %1618 = arith.mulf %965, %1617 : vector<19x35xf32>
    %1619 = arith.addf %1607, %1618 : vector<19x35xf32>
    %cst_508 = arith.constant -2.500000e-01 : f32
    %1620 = vector.broadcast %cst_508 : f32 to vector<19x35xf32>
    %1621 = arith.mulf %984, %1620 : vector<19x35xf32>
    %1622 = arith.addf %1610, %1621 : vector<19x35xf32>
    %cst_509 = arith.constant 2.500000e-01 : f32
    %1623 = vector.broadcast %cst_509 : f32 to vector<19x35xf32>
    %1624 = arith.mulf %984, %1623 : vector<19x35xf32>
    %1625 = arith.addf %1613, %1624 : vector<19x35xf32>
    %cst_510 = arith.constant 2.500000e-01 : f32
    %1626 = vector.broadcast %cst_510 : f32 to vector<19x35xf32>
    %1627 = arith.mulf %984, %1626 : vector<19x35xf32>
    %1628 = arith.addf %1616, %1627 : vector<19x35xf32>
    %cst_511 = arith.constant -2.500000e-01 : f32
    %1629 = vector.broadcast %cst_511 : f32 to vector<19x35xf32>
    %1630 = arith.mulf %984, %1629 : vector<19x35xf32>
    %1631 = arith.addf %1619, %1630 : vector<19x35xf32>
    %cst_512 = arith.constant -0.135299012 : f32
    %1632 = vector.broadcast %cst_512 : f32 to vector<19x35xf32>
    %1633 = arith.mulf %1003, %1632 : vector<19x35xf32>
    %1634 = arith.addf %1622, %1633 : vector<19x35xf32>
    %cst_513 = arith.constant 0.326640725 : f32
    %1635 = vector.broadcast %cst_513 : f32 to vector<19x35xf32>
    %1636 = arith.mulf %1003, %1635 : vector<19x35xf32>
    %1637 = arith.addf %1625, %1636 : vector<19x35xf32>
    %cst_514 = arith.constant -0.326640725 : f32
    %1638 = vector.broadcast %cst_514 : f32 to vector<19x35xf32>
    %1639 = arith.mulf %1003, %1638 : vector<19x35xf32>
    %1640 = arith.addf %1628, %1639 : vector<19x35xf32>
    %cst_515 = arith.constant 0.135299012 : f32
    %1641 = vector.broadcast %cst_515 : f32 to vector<19x35xf32>
    %1642 = arith.mulf %1003, %1641 : vector<19x35xf32>
    %1643 = arith.addf %1631, %1642 : vector<19x35xf32>
    %cst_516 = arith.constant 0.326640725 : f32
    %1644 = vector.broadcast %cst_516 : f32 to vector<19x35xf32>
    %1645 = arith.mulf %1022, %1644 : vector<19x35xf32>
    %1646 = arith.addf %1634, %1645 : vector<19x35xf32>
    %cst_517 = arith.constant 0.326640725 : f32
    %1647 = vector.broadcast %cst_517 : f32 to vector<19x35xf32>
    %1648 = arith.mulf %1022, %1647 : vector<19x35xf32>
    %1649 = arith.addf %1637, %1648 : vector<19x35xf32>
    %cst_518 = arith.constant 0.326640725 : f32
    %1650 = vector.broadcast %cst_518 : f32 to vector<19x35xf32>
    %1651 = arith.mulf %1022, %1650 : vector<19x35xf32>
    %1652 = arith.addf %1640, %1651 : vector<19x35xf32>
    %cst_519 = arith.constant 0.326640725 : f32
    %1653 = vector.broadcast %cst_519 : f32 to vector<19x35xf32>
    %1654 = arith.mulf %1022, %1653 : vector<19x35xf32>
    %1655 = arith.addf %1643, %1654 : vector<19x35xf32>
    %cst_520 = arith.constant 0.426776677 : f32
    %1656 = vector.broadcast %cst_520 : f32 to vector<19x35xf32>
    %1657 = arith.mulf %1041, %1656 : vector<19x35xf32>
    %1658 = arith.addf %1646, %1657 : vector<19x35xf32>
    %cst_521 = arith.constant 0.176776692 : f32
    %1659 = vector.broadcast %cst_521 : f32 to vector<19x35xf32>
    %1660 = arith.mulf %1041, %1659 : vector<19x35xf32>
    %1661 = arith.addf %1649, %1660 : vector<19x35xf32>
    %cst_522 = arith.constant -0.176776692 : f32
    %1662 = vector.broadcast %cst_522 : f32 to vector<19x35xf32>
    %1663 = arith.mulf %1041, %1662 : vector<19x35xf32>
    %1664 = arith.addf %1652, %1663 : vector<19x35xf32>
    %cst_523 = arith.constant -0.426776677 : f32
    %1665 = vector.broadcast %cst_523 : f32 to vector<19x35xf32>
    %1666 = arith.mulf %1041, %1665 : vector<19x35xf32>
    %1667 = arith.addf %1655, %1666 : vector<19x35xf32>
    %cst_524 = arith.constant 0.326640725 : f32
    %1668 = vector.broadcast %cst_524 : f32 to vector<19x35xf32>
    %1669 = arith.mulf %1060, %1668 : vector<19x35xf32>
    %1670 = arith.addf %1658, %1669 : vector<19x35xf32>
    %cst_525 = arith.constant -0.326640725 : f32
    %1671 = vector.broadcast %cst_525 : f32 to vector<19x35xf32>
    %1672 = arith.mulf %1060, %1671 : vector<19x35xf32>
    %1673 = arith.addf %1661, %1672 : vector<19x35xf32>
    %cst_526 = arith.constant -0.326640725 : f32
    %1674 = vector.broadcast %cst_526 : f32 to vector<19x35xf32>
    %1675 = arith.mulf %1060, %1674 : vector<19x35xf32>
    %1676 = arith.addf %1664, %1675 : vector<19x35xf32>
    %cst_527 = arith.constant 0.326640725 : f32
    %1677 = vector.broadcast %cst_527 : f32 to vector<19x35xf32>
    %1678 = arith.mulf %1060, %1677 : vector<19x35xf32>
    %1679 = arith.addf %1667, %1678 : vector<19x35xf32>
    %cst_528 = arith.constant 0.176776692 : f32
    %1680 = vector.broadcast %cst_528 : f32 to vector<19x35xf32>
    %1681 = arith.mulf %1079, %1680 : vector<19x35xf32>
    %1682 = arith.addf %1670, %1681 : vector<19x35xf32>
    %cst_529 = arith.constant -0.426776677 : f32
    %1683 = vector.broadcast %cst_529 : f32 to vector<19x35xf32>
    %1684 = arith.mulf %1079, %1683 : vector<19x35xf32>
    %1685 = arith.addf %1673, %1684 : vector<19x35xf32>
    %cst_530 = arith.constant 0.426776677 : f32
    %1686 = vector.broadcast %cst_530 : f32 to vector<19x35xf32>
    %1687 = arith.mulf %1079, %1686 : vector<19x35xf32>
    %1688 = arith.addf %1676, %1687 : vector<19x35xf32>
    %cst_531 = arith.constant -0.176776692 : f32
    %1689 = vector.broadcast %cst_531 : f32 to vector<19x35xf32>
    %1690 = arith.mulf %1079, %1689 : vector<19x35xf32>
    %1691 = arith.addf %1679, %1690 : vector<19x35xf32>
    %1692 = arith.mulf %1682, %1102 : vector<19x35xf32>
    %1693 = vector.extract_strided_slice %1692 {offsets = [1, 3], sizes = [16, 32], strides = [1, 1]} : vector<19x35xf32> to vector<16x32xf32>
    %1694 = arith.addf %1503, %1693 : vector<16x32xf32>
    %1695 = arith.mulf %1685, %1102 : vector<19x35xf32>
    %1696 = vector.extract_strided_slice %1695 {offsets = [1, 2], sizes = [16, 32], strides = [1, 1]} : vector<19x35xf32> to vector<16x32xf32>
    %1697 = arith.addf %1694, %1696 : vector<16x32xf32>
    %1698 = arith.mulf %1688, %1102 : vector<19x35xf32>
    %1699 = vector.extract_strided_slice %1698 {offsets = [1, 1], sizes = [16, 32], strides = [1, 1]} : vector<19x35xf32> to vector<16x32xf32>
    %1700 = arith.addf %1697, %1699 : vector<16x32xf32>
    %1701 = arith.mulf %1691, %1102 : vector<19x35xf32>
    %1702 = vector.extract_strided_slice %1701 {offsets = [1, 0], sizes = [16, 32], strides = [1, 1]} : vector<19x35xf32> to vector<16x32xf32>
    %1703 = arith.addf %1700, %1702 : vector<16x32xf32>
    %cst_532 = arith.constant 2.500000e-01 : f32
    %1704 = vector.broadcast %cst_532 : f32 to vector<19x35xf32>
    %1705 = arith.mulf %795, %1704 : vector<19x35xf32>
    %cst_533 = arith.constant 2.500000e-01 : f32
    %1706 = vector.broadcast %cst_533 : f32 to vector<19x35xf32>
    %1707 = arith.mulf %795, %1706 : vector<19x35xf32>
    %cst_534 = arith.constant 2.500000e-01 : f32
    %1708 = vector.broadcast %cst_534 : f32 to vector<19x35xf32>
    %1709 = arith.mulf %795, %1708 : vector<19x35xf32>
    %cst_535 = arith.constant 2.500000e-01 : f32
    %1710 = vector.broadcast %cst_535 : f32 to vector<19x35xf32>
    %1711 = arith.mulf %795, %1710 : vector<19x35xf32>
    %cst_536 = arith.constant 0.326640725 : f32
    %1712 = vector.broadcast %cst_536 : f32 to vector<19x35xf32>
    %1713 = arith.mulf %813, %1712 : vector<19x35xf32>
    %1714 = arith.addf %1705, %1713 : vector<19x35xf32>
    %cst_537 = arith.constant 0.135299012 : f32
    %1715 = vector.broadcast %cst_537 : f32 to vector<19x35xf32>
    %1716 = arith.mulf %813, %1715 : vector<19x35xf32>
    %1717 = arith.addf %1707, %1716 : vector<19x35xf32>
    %cst_538 = arith.constant -0.135299012 : f32
    %1718 = vector.broadcast %cst_538 : f32 to vector<19x35xf32>
    %1719 = arith.mulf %813, %1718 : vector<19x35xf32>
    %1720 = arith.addf %1709, %1719 : vector<19x35xf32>
    %cst_539 = arith.constant -0.326640725 : f32
    %1721 = vector.broadcast %cst_539 : f32 to vector<19x35xf32>
    %1722 = arith.mulf %813, %1721 : vector<19x35xf32>
    %1723 = arith.addf %1711, %1722 : vector<19x35xf32>
    %cst_540 = arith.constant 2.500000e-01 : f32
    %1724 = vector.broadcast %cst_540 : f32 to vector<19x35xf32>
    %1725 = arith.mulf %832, %1724 : vector<19x35xf32>
    %1726 = arith.addf %1714, %1725 : vector<19x35xf32>
    %cst_541 = arith.constant -2.500000e-01 : f32
    %1727 = vector.broadcast %cst_541 : f32 to vector<19x35xf32>
    %1728 = arith.mulf %832, %1727 : vector<19x35xf32>
    %1729 = arith.addf %1717, %1728 : vector<19x35xf32>
    %cst_542 = arith.constant -2.500000e-01 : f32
    %1730 = vector.broadcast %cst_542 : f32 to vector<19x35xf32>
    %1731 = arith.mulf %832, %1730 : vector<19x35xf32>
    %1732 = arith.addf %1720, %1731 : vector<19x35xf32>
    %cst_543 = arith.constant 2.500000e-01 : f32
    %1733 = vector.broadcast %cst_543 : f32 to vector<19x35xf32>
    %1734 = arith.mulf %832, %1733 : vector<19x35xf32>
    %1735 = arith.addf %1723, %1734 : vector<19x35xf32>
    %cst_544 = arith.constant 0.135299012 : f32
    %1736 = vector.broadcast %cst_544 : f32 to vector<19x35xf32>
    %1737 = arith.mulf %851, %1736 : vector<19x35xf32>
    %1738 = arith.addf %1726, %1737 : vector<19x35xf32>
    %cst_545 = arith.constant -0.326640725 : f32
    %1739 = vector.broadcast %cst_545 : f32 to vector<19x35xf32>
    %1740 = arith.mulf %851, %1739 : vector<19x35xf32>
    %1741 = arith.addf %1729, %1740 : vector<19x35xf32>
    %cst_546 = arith.constant 0.326640725 : f32
    %1742 = vector.broadcast %cst_546 : f32 to vector<19x35xf32>
    %1743 = arith.mulf %851, %1742 : vector<19x35xf32>
    %1744 = arith.addf %1732, %1743 : vector<19x35xf32>
    %cst_547 = arith.constant -0.135299012 : f32
    %1745 = vector.broadcast %cst_547 : f32 to vector<19x35xf32>
    %1746 = arith.mulf %851, %1745 : vector<19x35xf32>
    %1747 = arith.addf %1735, %1746 : vector<19x35xf32>
    %cst_548 = arith.constant -0.326640725 : f32
    %1748 = vector.broadcast %cst_548 : f32 to vector<19x35xf32>
    %1749 = arith.mulf %870, %1748 : vector<19x35xf32>
    %1750 = arith.addf %1738, %1749 : vector<19x35xf32>
    %cst_549 = arith.constant -0.326640725 : f32
    %1751 = vector.broadcast %cst_549 : f32 to vector<19x35xf32>
    %1752 = arith.mulf %870, %1751 : vector<19x35xf32>
    %1753 = arith.addf %1741, %1752 : vector<19x35xf32>
    %cst_550 = arith.constant -0.326640725 : f32
    %1754 = vector.broadcast %cst_550 : f32 to vector<19x35xf32>
    %1755 = arith.mulf %870, %1754 : vector<19x35xf32>
    %1756 = arith.addf %1744, %1755 : vector<19x35xf32>
    %cst_551 = arith.constant -0.326640725 : f32
    %1757 = vector.broadcast %cst_551 : f32 to vector<19x35xf32>
    %1758 = arith.mulf %870, %1757 : vector<19x35xf32>
    %1759 = arith.addf %1747, %1758 : vector<19x35xf32>
    %cst_552 = arith.constant -0.426776677 : f32
    %1760 = vector.broadcast %cst_552 : f32 to vector<19x35xf32>
    %1761 = arith.mulf %889, %1760 : vector<19x35xf32>
    %1762 = arith.addf %1750, %1761 : vector<19x35xf32>
    %cst_553 = arith.constant -0.176776692 : f32
    %1763 = vector.broadcast %cst_553 : f32 to vector<19x35xf32>
    %1764 = arith.mulf %889, %1763 : vector<19x35xf32>
    %1765 = arith.addf %1753, %1764 : vector<19x35xf32>
    %cst_554 = arith.constant 0.176776692 : f32
    %1766 = vector.broadcast %cst_554 : f32 to vector<19x35xf32>
    %1767 = arith.mulf %889, %1766 : vector<19x35xf32>
    %1768 = arith.addf %1756, %1767 : vector<19x35xf32>
    %cst_555 = arith.constant 0.426776677 : f32
    %1769 = vector.broadcast %cst_555 : f32 to vector<19x35xf32>
    %1770 = arith.mulf %889, %1769 : vector<19x35xf32>
    %1771 = arith.addf %1759, %1770 : vector<19x35xf32>
    %cst_556 = arith.constant -0.326640725 : f32
    %1772 = vector.broadcast %cst_556 : f32 to vector<19x35xf32>
    %1773 = arith.mulf %908, %1772 : vector<19x35xf32>
    %1774 = arith.addf %1762, %1773 : vector<19x35xf32>
    %cst_557 = arith.constant 0.326640725 : f32
    %1775 = vector.broadcast %cst_557 : f32 to vector<19x35xf32>
    %1776 = arith.mulf %908, %1775 : vector<19x35xf32>
    %1777 = arith.addf %1765, %1776 : vector<19x35xf32>
    %cst_558 = arith.constant 0.326640725 : f32
    %1778 = vector.broadcast %cst_558 : f32 to vector<19x35xf32>
    %1779 = arith.mulf %908, %1778 : vector<19x35xf32>
    %1780 = arith.addf %1768, %1779 : vector<19x35xf32>
    %cst_559 = arith.constant -0.326640725 : f32
    %1781 = vector.broadcast %cst_559 : f32 to vector<19x35xf32>
    %1782 = arith.mulf %908, %1781 : vector<19x35xf32>
    %1783 = arith.addf %1771, %1782 : vector<19x35xf32>
    %cst_560 = arith.constant -0.176776692 : f32
    %1784 = vector.broadcast %cst_560 : f32 to vector<19x35xf32>
    %1785 = arith.mulf %927, %1784 : vector<19x35xf32>
    %1786 = arith.addf %1774, %1785 : vector<19x35xf32>
    %cst_561 = arith.constant 0.426776677 : f32
    %1787 = vector.broadcast %cst_561 : f32 to vector<19x35xf32>
    %1788 = arith.mulf %927, %1787 : vector<19x35xf32>
    %1789 = arith.addf %1777, %1788 : vector<19x35xf32>
    %cst_562 = arith.constant -0.426776677 : f32
    %1790 = vector.broadcast %cst_562 : f32 to vector<19x35xf32>
    %1791 = arith.mulf %927, %1790 : vector<19x35xf32>
    %1792 = arith.addf %1780, %1791 : vector<19x35xf32>
    %cst_563 = arith.constant 0.176776692 : f32
    %1793 = vector.broadcast %cst_563 : f32 to vector<19x35xf32>
    %1794 = arith.mulf %927, %1793 : vector<19x35xf32>
    %1795 = arith.addf %1783, %1794 : vector<19x35xf32>
    %cst_564 = arith.constant 2.500000e-01 : f32
    %1796 = vector.broadcast %cst_564 : f32 to vector<19x35xf32>
    %1797 = arith.mulf %946, %1796 : vector<19x35xf32>
    %1798 = arith.addf %1786, %1797 : vector<19x35xf32>
    %cst_565 = arith.constant 2.500000e-01 : f32
    %1799 = vector.broadcast %cst_565 : f32 to vector<19x35xf32>
    %1800 = arith.mulf %946, %1799 : vector<19x35xf32>
    %1801 = arith.addf %1789, %1800 : vector<19x35xf32>
    %cst_566 = arith.constant 2.500000e-01 : f32
    %1802 = vector.broadcast %cst_566 : f32 to vector<19x35xf32>
    %1803 = arith.mulf %946, %1802 : vector<19x35xf32>
    %1804 = arith.addf %1792, %1803 : vector<19x35xf32>
    %cst_567 = arith.constant 2.500000e-01 : f32
    %1805 = vector.broadcast %cst_567 : f32 to vector<19x35xf32>
    %1806 = arith.mulf %946, %1805 : vector<19x35xf32>
    %1807 = arith.addf %1795, %1806 : vector<19x35xf32>
    %cst_568 = arith.constant 0.326640725 : f32
    %1808 = vector.broadcast %cst_568 : f32 to vector<19x35xf32>
    %1809 = arith.mulf %965, %1808 : vector<19x35xf32>
    %1810 = arith.addf %1798, %1809 : vector<19x35xf32>
    %cst_569 = arith.constant 0.135299012 : f32
    %1811 = vector.broadcast %cst_569 : f32 to vector<19x35xf32>
    %1812 = arith.mulf %965, %1811 : vector<19x35xf32>
    %1813 = arith.addf %1801, %1812 : vector<19x35xf32>
    %cst_570 = arith.constant -0.135299012 : f32
    %1814 = vector.broadcast %cst_570 : f32 to vector<19x35xf32>
    %1815 = arith.mulf %965, %1814 : vector<19x35xf32>
    %1816 = arith.addf %1804, %1815 : vector<19x35xf32>
    %cst_571 = arith.constant -0.326640725 : f32
    %1817 = vector.broadcast %cst_571 : f32 to vector<19x35xf32>
    %1818 = arith.mulf %965, %1817 : vector<19x35xf32>
    %1819 = arith.addf %1807, %1818 : vector<19x35xf32>
    %cst_572 = arith.constant 2.500000e-01 : f32
    %1820 = vector.broadcast %cst_572 : f32 to vector<19x35xf32>
    %1821 = arith.mulf %984, %1820 : vector<19x35xf32>
    %1822 = arith.addf %1810, %1821 : vector<19x35xf32>
    %cst_573 = arith.constant -2.500000e-01 : f32
    %1823 = vector.broadcast %cst_573 : f32 to vector<19x35xf32>
    %1824 = arith.mulf %984, %1823 : vector<19x35xf32>
    %1825 = arith.addf %1813, %1824 : vector<19x35xf32>
    %cst_574 = arith.constant -2.500000e-01 : f32
    %1826 = vector.broadcast %cst_574 : f32 to vector<19x35xf32>
    %1827 = arith.mulf %984, %1826 : vector<19x35xf32>
    %1828 = arith.addf %1816, %1827 : vector<19x35xf32>
    %cst_575 = arith.constant 2.500000e-01 : f32
    %1829 = vector.broadcast %cst_575 : f32 to vector<19x35xf32>
    %1830 = arith.mulf %984, %1829 : vector<19x35xf32>
    %1831 = arith.addf %1819, %1830 : vector<19x35xf32>
    %cst_576 = arith.constant 0.135299012 : f32
    %1832 = vector.broadcast %cst_576 : f32 to vector<19x35xf32>
    %1833 = arith.mulf %1003, %1832 : vector<19x35xf32>
    %1834 = arith.addf %1822, %1833 : vector<19x35xf32>
    %cst_577 = arith.constant -0.326640725 : f32
    %1835 = vector.broadcast %cst_577 : f32 to vector<19x35xf32>
    %1836 = arith.mulf %1003, %1835 : vector<19x35xf32>
    %1837 = arith.addf %1825, %1836 : vector<19x35xf32>
    %cst_578 = arith.constant 0.326640725 : f32
    %1838 = vector.broadcast %cst_578 : f32 to vector<19x35xf32>
    %1839 = arith.mulf %1003, %1838 : vector<19x35xf32>
    %1840 = arith.addf %1828, %1839 : vector<19x35xf32>
    %cst_579 = arith.constant -0.135299012 : f32
    %1841 = vector.broadcast %cst_579 : f32 to vector<19x35xf32>
    %1842 = arith.mulf %1003, %1841 : vector<19x35xf32>
    %1843 = arith.addf %1831, %1842 : vector<19x35xf32>
    %cst_580 = arith.constant -0.135299012 : f32
    %1844 = vector.broadcast %cst_580 : f32 to vector<19x35xf32>
    %1845 = arith.mulf %1022, %1844 : vector<19x35xf32>
    %1846 = arith.addf %1834, %1845 : vector<19x35xf32>
    %cst_581 = arith.constant -0.135299012 : f32
    %1847 = vector.broadcast %cst_581 : f32 to vector<19x35xf32>
    %1848 = arith.mulf %1022, %1847 : vector<19x35xf32>
    %1849 = arith.addf %1837, %1848 : vector<19x35xf32>
    %cst_582 = arith.constant -0.135299012 : f32
    %1850 = vector.broadcast %cst_582 : f32 to vector<19x35xf32>
    %1851 = arith.mulf %1022, %1850 : vector<19x35xf32>
    %1852 = arith.addf %1840, %1851 : vector<19x35xf32>
    %cst_583 = arith.constant -0.135299012 : f32
    %1853 = vector.broadcast %cst_583 : f32 to vector<19x35xf32>
    %1854 = arith.mulf %1022, %1853 : vector<19x35xf32>
    %1855 = arith.addf %1843, %1854 : vector<19x35xf32>
    %cst_584 = arith.constant -0.176776692 : f32
    %1856 = vector.broadcast %cst_584 : f32 to vector<19x35xf32>
    %1857 = arith.mulf %1041, %1856 : vector<19x35xf32>
    %1858 = arith.addf %1846, %1857 : vector<19x35xf32>
    %cst_585 = arith.constant -0.0732232928 : f32
    %1859 = vector.broadcast %cst_585 : f32 to vector<19x35xf32>
    %1860 = arith.mulf %1041, %1859 : vector<19x35xf32>
    %1861 = arith.addf %1849, %1860 : vector<19x35xf32>
    %cst_586 = arith.constant 0.0732232928 : f32
    %1862 = vector.broadcast %cst_586 : f32 to vector<19x35xf32>
    %1863 = arith.mulf %1041, %1862 : vector<19x35xf32>
    %1864 = arith.addf %1852, %1863 : vector<19x35xf32>
    %cst_587 = arith.constant 0.176776692 : f32
    %1865 = vector.broadcast %cst_587 : f32 to vector<19x35xf32>
    %1866 = arith.mulf %1041, %1865 : vector<19x35xf32>
    %1867 = arith.addf %1855, %1866 : vector<19x35xf32>
    %cst_588 = arith.constant -0.135299012 : f32
    %1868 = vector.broadcast %cst_588 : f32 to vector<19x35xf32>
    %1869 = arith.mulf %1060, %1868 : vector<19x35xf32>
    %1870 = arith.addf %1858, %1869 : vector<19x35xf32>
    %cst_589 = arith.constant 0.135299012 : f32
    %1871 = vector.broadcast %cst_589 : f32 to vector<19x35xf32>
    %1872 = arith.mulf %1060, %1871 : vector<19x35xf32>
    %1873 = arith.addf %1861, %1872 : vector<19x35xf32>
    %cst_590 = arith.constant 0.135299012 : f32
    %1874 = vector.broadcast %cst_590 : f32 to vector<19x35xf32>
    %1875 = arith.mulf %1060, %1874 : vector<19x35xf32>
    %1876 = arith.addf %1864, %1875 : vector<19x35xf32>
    %cst_591 = arith.constant -0.135299012 : f32
    %1877 = vector.broadcast %cst_591 : f32 to vector<19x35xf32>
    %1878 = arith.mulf %1060, %1877 : vector<19x35xf32>
    %1879 = arith.addf %1867, %1878 : vector<19x35xf32>
    %cst_592 = arith.constant -0.0732232928 : f32
    %1880 = vector.broadcast %cst_592 : f32 to vector<19x35xf32>
    %1881 = arith.mulf %1079, %1880 : vector<19x35xf32>
    %1882 = arith.addf %1870, %1881 : vector<19x35xf32>
    %cst_593 = arith.constant 0.176776692 : f32
    %1883 = vector.broadcast %cst_593 : f32 to vector<19x35xf32>
    %1884 = arith.mulf %1079, %1883 : vector<19x35xf32>
    %1885 = arith.addf %1873, %1884 : vector<19x35xf32>
    %cst_594 = arith.constant -0.176776692 : f32
    %1886 = vector.broadcast %cst_594 : f32 to vector<19x35xf32>
    %1887 = arith.mulf %1079, %1886 : vector<19x35xf32>
    %1888 = arith.addf %1876, %1887 : vector<19x35xf32>
    %cst_595 = arith.constant 0.0732232928 : f32
    %1889 = vector.broadcast %cst_595 : f32 to vector<19x35xf32>
    %1890 = arith.mulf %1079, %1889 : vector<19x35xf32>
    %1891 = arith.addf %1879, %1890 : vector<19x35xf32>
    %1892 = arith.mulf %1882, %1102 : vector<19x35xf32>
    %1893 = vector.extract_strided_slice %1892 {offsets = [0, 3], sizes = [16, 32], strides = [1, 1]} : vector<19x35xf32> to vector<16x32xf32>
    %1894 = arith.addf %1703, %1893 : vector<16x32xf32>
    %1895 = arith.mulf %1885, %1102 : vector<19x35xf32>
    %1896 = vector.extract_strided_slice %1895 {offsets = [0, 2], sizes = [16, 32], strides = [1, 1]} : vector<19x35xf32> to vector<16x32xf32>
    %1897 = arith.addf %1894, %1896 : vector<16x32xf32>
    %1898 = arith.mulf %1888, %1102 : vector<19x35xf32>
    %1899 = vector.extract_strided_slice %1898 {offsets = [0, 1], sizes = [16, 32], strides = [1, 1]} : vector<19x35xf32> to vector<16x32xf32>
    %1900 = arith.addf %1897, %1899 : vector<16x32xf32>
    %1901 = arith.mulf %1891, %1102 : vector<19x35xf32>
    %1902 = vector.extract_strided_slice %1901 {offsets = [0, 0], sizes = [16, 32], strides = [1, 1]} : vector<19x35xf32> to vector<16x32xf32>
    %1903 = arith.addf %1900, %1902 : vector<16x32xf32>
    %1904 = vector.extract_strided_slice %1102 {offsets = [3, 0], sizes = [16, 35], strides = [1, 1]} : vector<19x35xf32> to vector<16x35xf32>
    %1905 = vector.extract_strided_slice %1102 {offsets = [2, 0], sizes = [16, 35], strides = [1, 1]} : vector<19x35xf32> to vector<16x35xf32>
    %1906 = arith.addf %1904, %1905 : vector<16x35xf32>
    %1907 = vector.extract_strided_slice %1102 {offsets = [1, 0], sizes = [16, 35], strides = [1, 1]} : vector<19x35xf32> to vector<16x35xf32>
    %1908 = arith.addf %1906, %1907 : vector<16x35xf32>
    %1909 = vector.extract_strided_slice %1102 {offsets = [0, 0], sizes = [16, 35], strides = [1, 1]} : vector<19x35xf32> to vector<16x35xf32>
    %1910 = arith.addf %1908, %1909 : vector<16x35xf32>
    %1911 = vector.extract_strided_slice %1910 {offsets = [0, 3], sizes = [16, 32], strides = [1, 1]} : vector<16x35xf32> to vector<16x32xf32>
    %1912 = vector.extract_strided_slice %1910 {offsets = [0, 2], sizes = [16, 32], strides = [1, 1]} : vector<16x35xf32> to vector<16x32xf32>
    %1913 = arith.addf %1911, %1912 : vector<16x32xf32>
    %1914 = vector.extract_strided_slice %1910 {offsets = [0, 1], sizes = [16, 32], strides = [1, 1]} : vector<16x35xf32> to vector<16x32xf32>
    %1915 = arith.addf %1913, %1914 : vector<16x32xf32>
    %1916 = vector.extract_strided_slice %1910 {offsets = [0, 0], sizes = [16, 32], strides = [1, 1]} : vector<16x35xf32> to vector<16x32xf32>
    %1917 = arith.addf %1915, %1916 : vector<16x32xf32>
    %1918 = tpu.reciprocal %1917 {approx = true} : vector<16x32xf32> -> vector<16x32xf32>
    %1919 = arith.mulf %1903, %1918 : vector<16x32xf32>
    %c0_596 = arith.constant 0 : index
    %c0_597 = arith.constant 0 : index
    %c0_598 = arith.constant 0 : index
    %1920 = vector.load %arg4[%c0_596, %c0_597, %c0_598] : memref<1x16x32xf32, #tpu.memory_space<vmem>>, vector<1x16x32xf32>
    %1921 = vector.shape_cast %1920 : vector<1x16x32xf32> to vector<16x32xf32>
    %1922 = vector.shape_cast %1919 : vector<16x32xf32> to vector<1x16x32xf32>
    tpu.vector_store %arg4[%c0_596, %c0_597, %c0_598], %1922 {strides = array<i32>} : memref<1x16x32xf32, #tpu.memory_space<vmem>>, vector<1x16x32xf32>,
    return
  }
  func.func @transform_0(%arg0: i32, %arg1: i32, %arg2: i32) -> (i32, i32, i32, i32, i32) {
    %c0_i32 = arith.constant 0 : i32
    %c0_i32_0 = arith.constant 0 : i32
    %c0_i32_1 = arith.constant 0 : i32
    return %arg0, %arg1, %arg2, %c0_i32, %c0_i32_0 : i32, i32, i32, i32, i32
  }
  func.func @transform_1(%arg0: i32, %arg1: i32, %arg2: i32) -> (i32, i32, i32) {
    %c0_i32 = arith.constant 0 : i32
    return %arg0, %arg1, %arg2 : i32, i32, i32
  }
}

</mosaic_0001>

<llo_original>
// kernel: tpu_custom_call.1
$region0: #{tpu_custom_call.1}
  #allocation0 [shape = 'u32[]', space=smem, size = 0x4, offset = 0x4, fixed_abs, tag = 'smem constant byte address 0x4 - core index']
  #allocation1 [shape = 'u32[144,128]{1,0:T(1,128)}', space=vmem, size = 0x12000, scoped, tag = 'internal scratch']
  %s0 = inlined_call_operand.hbm [shape: f32[2,2,1,22,38], index: 0, kind: input, shape index: {}]
  %s1 = inlined_call_operand.hbm [shape: f32[2,32,32], index: 1, kind: output, shape index: {}]
  %s2 = sld [smem:[#allocation0]]
  $region41: #{tpu_custom_call.1} parent=0
    _
  %s4 = ssub.s32 1, %s2
  %s5 = scalar_select 0, %s4, %s2
  $region1: #{tpu_custom_call.1} parent=0
    #allocation2 [shape = 'u8[24576]{0}', space=vmem, size = 0x6000, scoped, tag = 'input window, operand 0']
    #allocation3 [shape = 's32[2]{0}', space=sflag, size = 0x8, scoped, tag = 'scoped memory for tpu_custom_call.1']
    #allocation4 [shape = 's32[2]{0}', space=sflag, size = 0x8, scoped, tag = 'scoped memory for tpu_custom_call.1']
    #allocation5 [shape = 'u8[16384]{0}', space=vmem, size = 0x4000, scoped, tag = 'output window, operand 0']
    %6 = vsyncpa [#allocation3], 0
    %s7 = scalar_lea.sflag [#allocation3], 1
    %8 = vsyncpa %s7, 0
    %9 = vsyncpa [#allocation4], 0
    %s10 = scalar_lea.sflag [#allocation4], 1
    %11 = vsyncpa %s10, 0
    loop: start=0, step=1, limit=6
    $region2: #{tpu_custom_call.1} parent=1 // loop_pre_header
      _
    $region3: #{tpu_custom_call.1} parent=1 // loop_header
      %s13 = sphi 0, %s17
      %p14 = scmp.ge.s32.totalorder %s13, 6
      %s20 = sphi 0, %s39
      %s21 = sphi 0, %s35
      %s22 = sphi 0, %s31
      %s23 = sphi 0, %s20
      %s24 = sphi 0, %s21
      %s25 = sphi 0, %s22
      %s26 = sphi 0, %s23
      %s27 = sphi 0, %s24
      %s28 = sphi 0, %s25
      %s46 = sphi 0, %s48
      %s49 = sphi 0, %s46
      %s50 = sphi 0, %s49
      %s66 = sphi 0, %s50
      %s76 = sphi 0, %s78
      %s79 = sphi 0, %s76
      %s80 = sphi 0, %s79
      %s96 = sphi 0, %s80
    $region4: #{tpu_custom_call.1} parent=1 // loop_header_branch
      %16 = sbr.rel (%p14) target = $region8
    $region5: #{tpu_custom_call.1} parent=1 // loop_body
      %s18 = ssub.s32 %s13, 1
      %s19 = ssub.s32 %s13, 2
      %s29 = sadd.s32 1, %s22
      %p30 = scmp.ge.s32.totalorder %s29, 1
      %s31 = scalar_select %p30, 0, %s29
      %s32 = sadd.s32 1, %s21
      %s33 = scalar_select %p30, %s32, %s21
      %p34 = scmp.ge.s32.totalorder %s33, 2
      %s35 = scalar_select %p34, 0, %s33
      %s36 = sadd.s32 1, %s20
      %s37 = scalar_select %p34, %s36, %s20
      %p38 = scmp.ge.s32.totalorder %s37, 2
      %s39 = scalar_select %p38, 0, %s37
      %s40 = ssub.s32 %s20, %s39
      %s41 = ssub.s32 %s21, %s35
      %s42 = sor.u32 %s40, %s41
      %s43 = ssub.s32 %s22, %s31
      %s44 = sor.u32 %s42, %s43
      %p45 = scmp.eq.s32.totalorder %s44, 0
      %s47 = sadd.s32 %s46, 1
      %s48 = scalar_select %p45, %s46, %s47
      %p51 = pneg %p45
      %p52 = scmp.eq.s32.totalorder %s13, 3
      %p53 = por %p51, %p52
      %p54 = scmp.ne.s32.totalorder %s46, %s49
      %p55 = scmp.eq.s32.totalorder %s13, 0
      %p56 = por %p54, %p55
      %p57 = scmp.ne.s32.totalorder %s46, %s49
      %p58 = scmp.eq.s32.totalorder %s18, 3
      %p59 = por %p57, %p58
      %p60 = scmp.ne.s32.totalorder %s49, %s50
      %p61 = scmp.eq.s32.totalorder %s18, 0
      %p62 = por %p60, %p61
      %p63 = scmp.ne.s32.totalorder %s49, %s50
      %p64 = scmp.eq.s32.totalorder %s19, 3
      %p65 = por %p63, %p64
      %p67 = scmp.ne.s32.totalorder %s50, %s66
      %p68 = scmp.eq.s32.totalorder %s19, 0
      %p69 = por %p67, %p68
      %s70 = ssub.s32 %s20, %s39
      %s71 = ssub.s32 %s21, %s35
      %s72 = sor.u32 %s70, %s71
      %s73 = ssub.s32 %s22, %s31
      %s74 = sor.u32 %s72, %s73
      %p75 = scmp.eq.s32.totalorder %s74, 0
      %s77 = sadd.s32 %s76, 1
      %s78 = scalar_select %p75, %s76, %s77
      %p81 = pneg %p75
      %p82 = scmp.eq.s32.totalorder %s13, 3
      %p83 = por %p81, %p82
      %p84 = scmp.ne.s32.totalorder %s76, %s79
      %p85 = scmp.eq.s32.totalorder %s13, 0
      %p86 = por %p84, %p85
      %p87 = scmp.ne.s32.totalorder %s76, %s79
      %p88 = scmp.eq.s32.totalorder %s18, 3
      %p89 = por %p87, %p88
      %p90 = scmp.ne.s32.totalorder %s79, %s80
      %p91 = scmp.eq.s32.totalorder %s18, 0
      %p92 = por %p90, %p91
      %p93 = scmp.ne.s32.totalorder %s79, %s80
      %p94 = scmp.eq.s32.totalorder %s19, 3
      %p95 = por %p93, %p94
      %p97 = scmp.ne.s32.totalorder %s80, %s96
      %p98 = scmp.eq.s32.totalorder %s19, 0
      %p99 = por %p97, %p98
      %p100 = scmp.le.s32.totalorder 1, %s13
      %p101 = scmp.lt.s32.totalorder %s13, 5
      %p102 = pnand %p100, %p101
      %p103 = pneg %p102
      // Predicated region
      $region9: #{tpu_custom_call.1} parent=5 // pred_check
        _
      $region10: #{tpu_custom_call.1} parent=5 // pred_check_branch
        %105 = sbr.rel (%p102) target = $region12
      $region11: #{tpu_custom_call.1} parent=5 // pred_region
        %s106 = ssub.s32 %s13, 1
      $region12: #{tpu_custom_call.1} parent=5 // pred_fallthru
        _
      %p107 = scmp.lt.s32.totalorder %s13, 4
      // Predicated region
      $region13: #{tpu_custom_call.1} parent=5 // pred_check
        %p108 = pneg %p107
      $region14: #{tpu_custom_call.1} parent=5 // pred_check_branch
        %110 = sbr.rel (%p108) target = $region16
      $region15: #{tpu_custom_call.1} parent=5 // pred_region
        // Predicated region
        $region17: #{tpu_custom_call.1} parent=15 // pred_check
          %p111 = pneg %p56
        $region18: #{tpu_custom_call.1} parent=15 // pred_check_branch
          %113 = sbr.rel (%p111) target = $region20
        $region19: #{tpu_custom_call.1} parent=15 // pred_region
          %s114 = sand.u32 %s46, 1
          %s115 = scalar_lea.sflag [#allocation3], %s114
          %s116 = sand.u32 %s46, 1
          %s117 = smul.addr %s116, 24
          %s118 = scalar_lea.vmem [#allocation2], %s117
          %s120 = ssub.s32 384, 384
          %121 = vsyncadd %s115, %s120
          %s122 = smul.addr %s22, 3
          %s123 = smul.addr %s21, 3
          %s124 = sadd.s32 %s122, %s123
          %s125 = smul.addr %s20, 6
          %s126 = sadd.s32 %s124, %s125
          %s127 = smul.addr %s126, 128
          %s128 = scalar_lea.hbm %s0, %s127
          %s129 = sshll.u32 %s118, 4
          %s130 = int_to_ptr.vmem [resolvable:$true] %s129
          %135 = dma.hbm_to_vmem [thread:$0]  %s128, 384, %s130, %s115, 128, 128, 8
        $region20: #{tpu_custom_call.1} parent=15 // pred_fallthru
          _
      $region16: #{tpu_custom_call.1} parent=5 // pred_fallthru
        _
      %p136 = scmp.le.s32.totalorder 1, %s13
      %p137 = scmp.lt.s32.totalorder %s13, 5
      %p138 = pnand %p136, %p137
      %p139 = pneg %p138
      // Predicated region
      $region21: #{tpu_custom_call.1} parent=5 // pred_check
        _
      $region22: #{tpu_custom_call.1} parent=5 // pred_check_branch
        %141 = sbr.rel (%p138) target = $region24
      $region23: #{tpu_custom_call.1} parent=5 // pred_region
        %s142 = ssub.s32 %s13, 1
        %s143 = sand.u32 %s49, 1
        %s144 = scalar_lea.sflag [#allocation3], %s143
        %s145 = sand.u32 %s49, 1
        %s146 = smul.addr %s145, 24
        %s147 = scalar_lea.vmem [#allocation2], %s146
        // Predicated region
        $region25: #{tpu_custom_call.1} parent=23 // pred_check
          %p148 = pneg %p62
        $region26: #{tpu_custom_call.1} parent=23 // pred_check_branch
          %150 = sbr.rel (%p148) target = $region28
        $region27: #{tpu_custom_call.1} parent=23 // pred_region
          %151 = dma.done %s144, 384
        $region28: #{tpu_custom_call.1} parent=23 // pred_fallthru
          _
        %s152 = sand.u32 %s49, 1
        %s153 = scalar_lea.sflag [#allocation3], %s152
        %s154 = sand.u32 %s49, 1
        %s155 = smul.addr %s154, 24
        %s156 = scalar_lea.vmem [#allocation2], %s155
        %p157 = pneg %p62
        %p158 = pneg %p59
        %p159 = pneg %p92
        %p160 = pneg %p89
        %s161 = sand.u32 %s79, 1
        %s162 = scalar_lea.sflag [#allocation4], %s161
        %s163 = sand.u32 %s79, 1
        %s164 = smul.addr %s163, 16
        %s165 = scalar_lea.vmem [#allocation5], %s164
        %s166 = smul.u32 2, %s24
        %s167 = smul.u32 %s24, 16
        %s168 = smul.u32 %s25, 32
        %v169 = vld [vmem:[%s147] sm:$0xff]
        %v170 = vld [vmem:[%s147 + $0x8] sm:$0xff]
        %v171 = vld [vmem:[%s147 + $0x10] sm:$0x3f]
        %v172 = vmul.f32 %v169, 0.25
        %v173 = vmul.f32 %v170, 0.25
        %v174 = vmul.f32 %v171, 0.25
        %v175 = vmul.f32 %v169, 0.32664075
        %v176 = vmul.f32 %v170, 0.32664075
        %v177 = vmul.f32 %v171, 0.32664075
        %v178 = vmul.f32 %v169, 0.13529903
        %v179 = vmul.f32 %v170, 0.13529903
        %v180 = vmul.f32 %v171, 0.13529903
        %v181 = vmul.f32 %v169, 0.4267767
        %v182 = vmul.f32 %v170, 0.4267767
        %v183 = vmul.f32 %v171, 0.4267767
        %v184 = vmul.f32 %v169, 0.17677669
        %v185 = vmul.f32 %v170, 0.17677669
        %v186 = vmul.f32 %v171, 0.17677669
        %v187 = vmul.f32 %v169, 0.07322331
        %v188 = vmul.f32 %v170, 0.07322331
        %v189 = vmul.f32 %v171, 0.07322331
        %193 = vrot.lane.b32.xlu0 %v172, 127
        %v194 = vpop.permute.xlu0 %193
        %195 = vrot.lane.b32.xlu0 %v173, 127
        %v196 = vpop.permute.xlu0 %195
        %197 = vrot.lane.b32.xlu0 %v174, 127
        %v198 = vpop.permute.xlu0 %197
        %v202 = vadd.f32 %v172, %v194
        %v203 = vadd.f32 %v173, %v196
        %v204 = vadd.f32 %v174, %v198
        %208 = vrot.lane.b32.xlu0 %v178, 127
        %v209 = vpop.permute.xlu0 %208
        %210 = vrot.lane.b32.xlu0 %v179, 127
        %v211 = vpop.permute.xlu0 %210
        %212 = vrot.lane.b32.xlu0 %v180, 127
        %v213 = vpop.permute.xlu0 %212
        %v217 = vadd.f32 %v175, %v209
        %v218 = vadd.f32 %v176, %v211
        %v219 = vadd.f32 %v177, %v213
        %v220 = vmul.f32 %v169, -0.25
        %v221 = vmul.f32 %v170, -0.25
        %v222 = vmul.f32 %v171, -0.25
        %226 = vrot.lane.b32.xlu0 %v220, 127
        %v227 = vpop.permute.xlu0 %226
        %228 = vrot.lane.b32.xlu0 %v221, 127
        %v229 = vpop.permute.xlu0 %228
        %230 = vrot.lane.b32.xlu0 %v222, 127
        %v231 = vpop.permute.xlu0 %230
        %v235 = vadd.f32 %v172, %v227
        %v236 = vadd.f32 %v173, %v229
        %v237 = vadd.f32 %v174, %v231
        %v238 = vmul.f32 %v169, -0.32664075
        %v239 = vmul.f32 %v170, -0.32664075
        %v240 = vmul.f32 %v171, -0.32664075
        %244 = vrot.lane.b32.xlu0 %v238, 127
        %v245 = vpop.permute.xlu0 %244
        %246 = vrot.lane.b32.xlu0 %v239, 127
        %v247 = vpop.permute.xlu0 %246
        %248 = vrot.lane.b32.xlu0 %v240, 127
        %v249 = vpop.permute.xlu0 %248
        %v253 = vadd.f32 %v178, %v245
        %v254 = vadd.f32 %v179, %v247
        %v255 = vadd.f32 %v180, %v249
        %259 = vrot.lane.b32.xlu0 %v175, 127
        %v260 = vpop.permute.xlu0 %259
        %261 = vrot.lane.b32.xlu0 %v176, 127
        %v262 = vpop.permute.xlu0 %261
        %263 = vrot.lane.b32.xlu0 %v177, 127
        %v264 = vpop.permute.xlu0 %263
        %v268 = vadd.f32 %v175, %v260
        %v269 = vadd.f32 %v176, %v262
        %v270 = vadd.f32 %v177, %v264
        %274 = vrot.lane.b32.xlu0 %v184, 127
        %v275 = vpop.permute.xlu0 %274
        %276 = vrot.lane.b32.xlu0 %v185, 127
        %v277 = vpop.permute.xlu0 %276
        %278 = vrot.lane.b32.xlu0 %v186, 127
        %v279 = vpop.permute.xlu0 %278
        %v283 = vadd.f32 %v181, %v275
        %v284 = vadd.f32 %v182, %v277
        %v285 = vadd.f32 %v183, %v279
        %v286 = vadd.f32 %v175, %v245
        %v287 = vadd.f32 %v176, %v247
        %v288 = vadd.f32 %v177, %v249
        %v289 = vmul.f32 %v169, -0.4267767
        %v290 = vmul.f32 %v170, -0.4267767
        %v291 = vmul.f32 %v171, -0.4267767
        %295 = vrot.lane.b32.xlu0 %v289, 127
        %v296 = vpop.permute.xlu0 %295
        %297 = vrot.lane.b32.xlu0 %v290, 127
        %v298 = vpop.permute.xlu0 %297
        %299 = vrot.lane.b32.xlu0 %v291, 127
        %v300 = vpop.permute.xlu0 %299
        %v304 = vadd.f32 %v184, %v296
        %v305 = vadd.f32 %v185, %v298
        %v306 = vadd.f32 %v186, %v300
        %v307 = vadd.f32 %v178, %v209
        %v308 = vadd.f32 %v179, %v211
        %v309 = vadd.f32 %v180, %v213
        %313 = vrot.lane.b32.xlu0 %v187, 127
        %v314 = vpop.permute.xlu0 %313
        %315 = vrot.lane.b32.xlu0 %v188, 127
        %v316 = vpop.permute.xlu0 %315
        %317 = vrot.lane.b32.xlu0 %v189, 127
        %v318 = vpop.permute.xlu0 %317
        %v322 = vadd.f32 %v184, %v314
        %v323 = vadd.f32 %v185, %v316
        %v324 = vadd.f32 %v186, %v318
        %v325 = vmul.f32 %v169, -0.13529903
        %v326 = vmul.f32 %v170, -0.13529903
        %v327 = vmul.f32 %v171, -0.13529903
        %331 = vrot.lane.b32.xlu0 %v325, 127
        %v332 = vpop.permute.xlu0 %331
        %333 = vrot.lane.b32.xlu0 %v326, 127
        %v334 = vpop.permute.xlu0 %333
        %335 = vrot.lane.b32.xlu0 %v327, 127
        %v336 = vpop.permute.xlu0 %335
        %v340 = vadd.f32 %v178, %v332
        %v341 = vadd.f32 %v179, %v334
        %v342 = vadd.f32 %v180, %v336
        %v343 = vmul.f32 %v169, -0.17677669
        %v344 = vmul.f32 %v170, -0.17677669
        %v345 = vmul.f32 %v171, -0.17677669
        %349 = vrot.lane.b32.xlu0 %v343, 127
        %v350 = vpop.permute.xlu0 %349
        %351 = vrot.lane.b32.xlu0 %v344, 127
        %v352 = vpop.permute.xlu0 %351
        %353 = vrot.lane.b32.xlu0 %v345, 127
        %v354 = vpop.permute.xlu0 %353
        %v358 = vadd.f32 %v187, %v350
        %v359 = vadd.f32 %v188, %v352
        %v360 = vadd.f32 %v189, %v354
        %361 = vrot.lane.b32.xlu0 %v172, 126
        %v362 = vpop.permute.xlu0 %361
        %363 = vrot.lane.b32.xlu0 %v173, 126
        %v364 = vpop.permute.xlu0 %363
        %365 = vrot.lane.b32.xlu0 %v174, 126
        %v366 = vpop.permute.xlu0 %365
        %v370 = vadd.f32 %v202, %v362
        %v371 = vadd.f32 %v203, %v364
        %v372 = vadd.f32 %v204, %v366
        %373 = vrot.lane.b32.xlu0 %v325, 126
        %v374 = vpop.permute.xlu0 %373
        %375 = vrot.lane.b32.xlu0 %v326, 126
        %v376 = vpop.permute.xlu0 %375
        %377 = vrot.lane.b32.xlu0 %v327, 126
        %v378 = vpop.permute.xlu0 %377
        %v382 = vadd.f32 %v217, %v374
        %v383 = vadd.f32 %v218, %v376
        %v384 = vadd.f32 %v219, %v378
        %385 = vrot.lane.b32.xlu0 %v220, 126
        %v386 = vpop.permute.xlu0 %385
        %387 = vrot.lane.b32.xlu0 %v221, 126
        %v388 = vpop.permute.xlu0 %387
        %389 = vrot.lane.b32.xlu0 %v222, 126
        %v390 = vpop.permute.xlu0 %389
        %v394 = vadd.f32 %v235, %v386
        %v395 = vadd.f32 %v236, %v388
        %v396 = vadd.f32 %v237, %v390
        %397 = vrot.lane.b32.xlu0 %v175, 126
        %v398 = vpop.permute.xlu0 %397
        %399 = vrot.lane.b32.xlu0 %v176, 126
        %v400 = vpop.permute.xlu0 %399
        %401 = vrot.lane.b32.xlu0 %v177, 126
        %v402 = vpop.permute.xlu0 %401
        %v406 = vadd.f32 %v253, %v398
        %v407 = vadd.f32 %v254, %v400
        %v408 = vadd.f32 %v255, %v402
        %v409 = vadd.f32 %v268, %v398
        %v410 = vadd.f32 %v269, %v400
        %v411 = vadd.f32 %v270, %v402
        %412 = vrot.lane.b32.xlu0 %v343, 126
        %v413 = vpop.permute.xlu0 %412
        %414 = vrot.lane.b32.xlu0 %v344, 126
        %v415 = vpop.permute.xlu0 %414
        %416 = vrot.lane.b32.xlu0 %v345, 126
        %v417 = vpop.permute.xlu0 %416
        %v421 = vadd.f32 %v283, %v413
        %v422 = vadd.f32 %v284, %v415
        %v423 = vadd.f32 %v285, %v417
        %424 = vrot.lane.b32.xlu0 %v238, 126
        %v425 = vpop.permute.xlu0 %424
        %426 = vrot.lane.b32.xlu0 %v239, 126
        %v427 = vpop.permute.xlu0 %426
        %428 = vrot.lane.b32.xlu0 %v240, 126
        %v429 = vpop.permute.xlu0 %428
        %v433 = vadd.f32 %v286, %v425
        %v434 = vadd.f32 %v287, %v427
        %v435 = vadd.f32 %v288, %v429
        %439 = vrot.lane.b32.xlu0 %v181, 126
        %v440 = vpop.permute.xlu0 %439
        %441 = vrot.lane.b32.xlu0 %v182, 126
        %v442 = vpop.permute.xlu0 %441
        %443 = vrot.lane.b32.xlu0 %v183, 126
        %v444 = vpop.permute.xlu0 %443
        %v448 = vadd.f32 %v304, %v440
        %v449 = vadd.f32 %v305, %v442
        %v450 = vadd.f32 %v306, %v444
        %451 = vrot.lane.b32.xlu0 %v178, 126
        %v452 = vpop.permute.xlu0 %451
        %453 = vrot.lane.b32.xlu0 %v179, 126
        %v454 = vpop.permute.xlu0 %453
        %455 = vrot.lane.b32.xlu0 %v180, 126
        %v456 = vpop.permute.xlu0 %455
        %v460 = vadd.f32 %v307, %v452
        %v461 = vadd.f32 %v308, %v454
        %v462 = vadd.f32 %v309, %v456
        %v463 = vmul.f32 %v169, -0.07322331
        %v464 = vmul.f32 %v170, -0.07322331
        %v465 = vmul.f32 %v171, -0.07322331
        %469 = vrot.lane.b32.xlu0 %v463, 126
        %v470 = vpop.permute.xlu0 %469
        %471 = vrot.lane.b32.xlu0 %v464, 126
        %v472 = vpop.permute.xlu0 %471
        %473 = vrot.lane.b32.xlu0 %v465, 126
        %v474 = vpop.permute.xlu0 %473
        %v478 = vadd.f32 %v322, %v470
        %v479 = vadd.f32 %v323, %v472
        %v480 = vadd.f32 %v324, %v474
        %v481 = vadd.f32 %v340, %v374
        %v482 = vadd.f32 %v341, %v376
        %v483 = vadd.f32 %v342, %v378
        %484 = vrot.lane.b32.xlu0 %v184, 126
        %v485 = vpop.permute.xlu0 %484
        %486 = vrot.lane.b32.xlu0 %v185, 126
        %v487 = vpop.permute.xlu0 %486
        %488 = vrot.lane.b32.xlu0 %v186, 126
        %v489 = vpop.permute.xlu0 %488
        %v493 = vadd.f32 %v358, %v485
        %v494 = vadd.f32 %v359, %v487
        %v495 = vadd.f32 %v360, %v489
        %496 = vrot.lane.b32.xlu0 %v172, 125
        %v497 = vpop.permute.xlu0 %496
        %498 = vrot.lane.b32.xlu0 %v173, 125
        %v499 = vpop.permute.xlu0 %498
        %500 = vrot.lane.b32.xlu0 %v174, 125
        %v501 = vpop.permute.xlu0 %500
        %v505 = vadd.f32 %v370, %v497
        %v506 = vadd.f32 %v371, %v499
        %v507 = vadd.f32 %v372, %v501
        %508 = vrot.lane.b32.xlu0 %v238, 125
        %v509 = vpop.permute.xlu0 %508
        %510 = vrot.lane.b32.xlu0 %v239, 125
        %v511 = vpop.permute.xlu0 %510
        %512 = vrot.lane.b32.xlu0 %v240, 125
        %v513 = vpop.permute.xlu0 %512
        %v517 = vadd.f32 %v382, %v509
        %v518 = vadd.f32 %v383, %v511
        %v519 = vadd.f32 %v384, %v513
        %v520 = vadd.f32 %v394, %v497
        %v521 = vadd.f32 %v395, %v499
        %v522 = vadd.f32 %v396, %v501
        %523 = vrot.lane.b32.xlu0 %v325, 125
        %v524 = vpop.permute.xlu0 %523
        %525 = vrot.lane.b32.xlu0 %v326, 125
        %v526 = vpop.permute.xlu0 %525
        %527 = vrot.lane.b32.xlu0 %v327, 125
        %v528 = vpop.permute.xlu0 %527
        %v532 = vadd.f32 %v406, %v524
        %v533 = vadd.f32 %v407, %v526
        %v534 = vadd.f32 %v408, %v528
        %535 = vrot.lane.b32.xlu0 %v175, 125
        %v536 = vpop.permute.xlu0 %535
        %537 = vrot.lane.b32.xlu0 %v176, 125
        %v538 = vpop.permute.xlu0 %537
        %539 = vrot.lane.b32.xlu0 %v177, 125
        %v540 = vpop.permute.xlu0 %539
        %v544 = vadd.f32 %v409, %v536
        %v545 = vadd.f32 %v410, %v538
        %v546 = vadd.f32 %v411, %v540
        %547 = vrot.lane.b32.xlu0 %v289, 125
        %v548 = vpop.permute.xlu0 %547
        %549 = vrot.lane.b32.xlu0 %v290, 125
        %v550 = vpop.permute.xlu0 %549
        %551 = vrot.lane.b32.xlu0 %v291, 125
        %v552 = vpop.permute.xlu0 %551
        %v556 = vadd.f32 %v421, %v548
        %v557 = vadd.f32 %v422, %v550
        %v558 = vadd.f32 %v423, %v552
        %v559 = vadd.f32 %v433, %v536
        %v560 = vadd.f32 %v434, %v538
        %v561 = vadd.f32 %v435, %v540
        %562 = vrot.lane.b32.xlu0 %v343, 125
        %v563 = vpop.permute.xlu0 %562
        %564 = vrot.lane.b32.xlu0 %v344, 125
        %v565 = vpop.permute.xlu0 %564
        %566 = vrot.lane.b32.xlu0 %v345, 125
        %v567 = vpop.permute.xlu0 %566
        %v571 = vadd.f32 %v448, %v563
        %v572 = vadd.f32 %v449, %v565
        %v573 = vadd.f32 %v450, %v567
        %574 = vrot.lane.b32.xlu0 %v178, 125
        %v575 = vpop.permute.xlu0 %574
        %576 = vrot.lane.b32.xlu0 %v179, 125
        %v577 = vpop.permute.xlu0 %576
        %578 = vrot.lane.b32.xlu0 %v180, 125
        %v579 = vpop.permute.xlu0 %578
        %v583 = vadd.f32 %v460, %v575
        %v584 = vadd.f32 %v461, %v577
        %v585 = vadd.f32 %v462, %v579
        %v586 = vadd.f32 %v478, %v563
        %v587 = vadd.f32 %v479, %v565
        %v588 = vadd.f32 %v480, %v567
        %v589 = vadd.f32 %v481, %v575
        %v590 = vadd.f32 %v482, %v577
        %v591 = vadd.f32 %v483, %v579
        %592 = vrot.lane.b32.xlu0 %v463, 125
        %v593 = vpop.permute.xlu0 %592
        %594 = vrot.lane.b32.xlu0 %v464, 125
        %v595 = vpop.permute.xlu0 %594
        %596 = vrot.lane.b32.xlu0 %v465, 125
        %v597 = vpop.permute.xlu0 %596
        %v601 = vadd.f32 %v493, %v593
        %v602 = vadd.f32 %v494, %v595
        %v603 = vadd.f32 %v495, %v597
        %vm604 = vcmask 1046528
        %v605 = vrot.slane %v172, 1
        %v606 = vrot.slane %v173, 1
        %v607 = vsel %vm604, %v605, %v606
        %v608 = vrot.slane %v174, 1
        %v609 = vsel %vm604, %v606, %v608
        %v613 = vadd.f32 %v505, %v607
        %v614 = vadd.f32 %v506, %v609
        %v615 = vadd.f32 %v507, %v608
        %v616 = vrot.slane %v175, 1
        %v617 = vrot.slane %v176, 1
        %v618 = vsel %vm604, %v616, %v617
        %v619 = vrot.slane %v177, 1
        %v620 = vsel %vm604, %v617, %v619
        %v624 = vadd.f32 %v517, %v618
        %v625 = vadd.f32 %v518, %v620
        %v626 = vadd.f32 %v519, %v619
        %v627 = vadd.f32 %v520, %v607
        %v628 = vadd.f32 %v521, %v609
        %v629 = vadd.f32 %v522, %v608
        %v630 = vrot.slane %v178, 1
        %v631 = vrot.slane %v179, 1
        %v632 = vsel %vm604, %v630, %v631
        %v633 = vrot.slane %v180, 1
        %v634 = vsel %vm604, %v631, %v633
        %v638 = vadd.f32 %v532, %v632
        %v639 = vadd.f32 %v533, %v634
        %v640 = vadd.f32 %v534, %v633
        %v641 = vadd.f32 %v544, %v632
        %v642 = vadd.f32 %v545, %v634
        %v643 = vadd.f32 %v546, %v633
        %v644 = vrot.slane %v184, 1
        %v645 = vrot.slane %v185, 1
        %v646 = vsel %vm604, %v644, %v645
        %v647 = vrot.slane %v186, 1
        %v648 = vsel %vm604, %v645, %v647
        %v652 = vadd.f32 %v556, %v646
        %v653 = vadd.f32 %v557, %v648
        %v654 = vadd.f32 %v558, %v647
        %v655 = vadd.f32 %v559, %v632
        %v656 = vadd.f32 %v560, %v634
        %v657 = vadd.f32 %v561, %v633
        %v658 = vrot.slane %v187, 1
        %v659 = vrot.slane %v188, 1
        %v660 = vsel %vm604, %v658, %v659
        %v661 = vrot.slane %v189, 1
        %v662 = vsel %vm604, %v659, %v661
        %v666 = vadd.f32 %v571, %v660
        %v667 = vadd.f32 %v572, %v662
        %v668 = vadd.f32 %v573, %v661
        %v669 = vrot.slane %v220, 1
        %v670 = vrot.slane %v221, 1
        %v671 = vsel %vm604, %v669, %v670
        %v672 = vrot.slane %v222, 1
        %v673 = vsel %vm604, %v670, %v672
        %v677 = vadd.f32 %v505, %v671
        %v678 = vadd.f32 %v506, %v673
        %v679 = vadd.f32 %v507, %v672
        %v680 = vrot.slane %v238, 1
        %v681 = vrot.slane %v239, 1
        %v682 = vsel %vm604, %v680, %v681
        %v683 = vrot.slane %v240, 1
        %v684 = vsel %vm604, %v681, %v683
        %v688 = vadd.f32 %v517, %v682
        %v689 = vadd.f32 %v518, %v684
        %v690 = vadd.f32 %v519, %v683
        %v691 = vadd.f32 %v520, %v671
        %v692 = vadd.f32 %v521, %v673
        %v693 = vadd.f32 %v522, %v672
        %v694 = vrot.slane %v325, 1
        %v695 = vrot.slane %v326, 1
        %v696 = vsel %vm604, %v694, %v695
        %v697 = vrot.slane %v327, 1
        %v698 = vsel %vm604, %v695, %v697
        %v702 = vadd.f32 %v532, %v696
        %v703 = vadd.f32 %v533, %v698
        %v704 = vadd.f32 %v534, %v697
        %v705 = vadd.f32 %v583, %v682
        %v706 = vadd.f32 %v584, %v684
        %v707 = vadd.f32 %v585, %v683
        %v708 = vrot.slane %v289, 1
        %v709 = vrot.slane %v290, 1
        %v710 = vsel %vm604, %v708, %v709
        %v711 = vrot.slane %v291, 1
        %v712 = vsel %vm604, %v709, %v711
        %v716 = vadd.f32 %v586, %v710
        %v717 = vadd.f32 %v587, %v712
        %v718 = vadd.f32 %v588, %v711
        %v719 = vadd.f32 %v589, %v682
        %v720 = vadd.f32 %v590, %v684
        %v721 = vadd.f32 %v591, %v683
        %v722 = vrot.slane %v343, 1
        %v723 = vrot.slane %v344, 1
        %v724 = vsel %vm604, %v722, %v723
        %v725 = vrot.slane %v345, 1
        %v726 = vsel %vm604, %v723, %v725
        %v730 = vadd.f32 %v601, %v724
        %v731 = vadd.f32 %v602, %v726
        %v732 = vadd.f32 %v603, %v725
        %733 = vrot.lane.b32.xlu0 %v607, 127
        %v734 = vpop.permute.xlu0 %733
        %735 = vrot.lane.b32.xlu0 %v609, 127
        %v736 = vpop.permute.xlu0 %735
        %737 = vrot.lane.b32.xlu0 %v608, 127
        %v738 = vpop.permute.xlu0 %737
        %v742 = vadd.f32 %v613, %v734
        %v743 = vadd.f32 %v614, %v736
        %v744 = vadd.f32 %v615, %v738
        %745 = vrot.lane.b32.xlu0 %v632, 127
        %v746 = vpop.permute.xlu0 %745
        %747 = vrot.lane.b32.xlu0 %v634, 127
        %v748 = vpop.permute.xlu0 %747
        %749 = vrot.lane.b32.xlu0 %v633, 127
        %v750 = vpop.permute.xlu0 %749
        %v754 = vadd.f32 %v624, %v746
        %v755 = vadd.f32 %v625, %v748
        %v756 = vadd.f32 %v626, %v750
        %757 = vrot.lane.b32.xlu0 %v671, 127
        %v758 = vpop.permute.xlu0 %757
        %759 = vrot.lane.b32.xlu0 %v673, 127
        %v760 = vpop.permute.xlu0 %759
        %761 = vrot.lane.b32.xlu0 %v672, 127
        %v762 = vpop.permute.xlu0 %761
        %v766 = vadd.f32 %v627, %v758
        %v767 = vadd.f32 %v628, %v760
        %v768 = vadd.f32 %v629, %v762
        %769 = vrot.lane.b32.xlu0 %v682, 127
        %v770 = vpop.permute.xlu0 %769
        %771 = vrot.lane.b32.xlu0 %v684, 127
        %v772 = vpop.permute.xlu0 %771
        %773 = vrot.lane.b32.xlu0 %v683, 127
        %v774 = vpop.permute.xlu0 %773
        %v778 = vadd.f32 %v638, %v770
        %v779 = vadd.f32 %v639, %v772
        %v780 = vadd.f32 %v640, %v774
        %v781 = vadd.f32 %v641, %v746
        %v782 = vadd.f32 %v642, %v748
        %v783 = vadd.f32 %v643, %v750
        %784 = vrot.lane.b32.xlu0 %v660, 127
        %v785 = vpop.permute.xlu0 %784
        %786 = vrot.lane.b32.xlu0 %v662, 127
        %v787 = vpop.permute.xlu0 %786
        %788 = vrot.lane.b32.xlu0 %v661, 127
        %v789 = vpop.permute.xlu0 %788
        %v793 = vadd.f32 %v652, %v785
        %v794 = vadd.f32 %v653, %v787
        %v795 = vadd.f32 %v654, %v789
        %796 = vrot.lane.b32.xlu0 %v696, 127
        %v797 = vpop.permute.xlu0 %796
        %798 = vrot.lane.b32.xlu0 %v698, 127
        %v799 = vpop.permute.xlu0 %798
        %800 = vrot.lane.b32.xlu0 %v697, 127
        %v801 = vpop.permute.xlu0 %800
        %v805 = vadd.f32 %v655, %v797
        %v806 = vadd.f32 %v656, %v799
        %v807 = vadd.f32 %v657, %v801
        %808 = vrot.lane.b32.xlu0 %v724, 127
        %v809 = vpop.permute.xlu0 %808
        %810 = vrot.lane.b32.xlu0 %v726, 127
        %v811 = vpop.permute.xlu0 %810
        %812 = vrot.lane.b32.xlu0 %v725, 127
        %v813 = vpop.permute.xlu0 %812
        %v817 = vadd.f32 %v666, %v809
        %v818 = vadd.f32 %v667, %v811
        %v819 = vadd.f32 %v668, %v813
        %v820 = vadd.f32 %v677, %v758
        %v821 = vadd.f32 %v678, %v760
        %v822 = vadd.f32 %v679, %v762
        %v823 = vadd.f32 %v688, %v797
        %v824 = vadd.f32 %v689, %v799
        %v825 = vadd.f32 %v690, %v801
        %v826 = vadd.f32 %v691, %v734
        %v827 = vadd.f32 %v692, %v736
        %v828 = vadd.f32 %v693, %v738
        %829 = vrot.lane.b32.xlu0 %v618, 127
        %v830 = vpop.permute.xlu0 %829
        %831 = vrot.lane.b32.xlu0 %v620, 127
        %v832 = vpop.permute.xlu0 %831
        %833 = vrot.lane.b32.xlu0 %v619, 127
        %v834 = vpop.permute.xlu0 %833
        %v838 = vadd.f32 %v702, %v830
        %v839 = vadd.f32 %v703, %v832
        %v840 = vadd.f32 %v704, %v834
        %v841 = vadd.f32 %v705, %v770
        %v842 = vadd.f32 %v706, %v772
        %v843 = vadd.f32 %v707, %v774
        %v844 = vadd.f32 %v716, %v809
        %v845 = vadd.f32 %v717, %v811
        %v846 = vadd.f32 %v718, %v813
        %v847 = vadd.f32 %v719, %v830
        %v848 = vadd.f32 %v720, %v832
        %v849 = vadd.f32 %v721, %v834
        %v850 = vrot.slane %v181, 1
        %v851 = vrot.slane %v182, 1
        %v852 = vsel %vm604, %v850, %v851
        %v853 = vrot.slane %v183, 1
        %v854 = vsel %vm604, %v851, %v853
        %855 = vrot.lane.b32.xlu0 %v852, 127
        %v856 = vpop.permute.xlu0 %855
        %857 = vrot.lane.b32.xlu0 %v854, 127
        %v858 = vpop.permute.xlu0 %857
        %859 = vrot.lane.b32.xlu0 %v853, 127
        %v860 = vpop.permute.xlu0 %859
        %v864 = vadd.f32 %v730, %v856
        %v865 = vadd.f32 %v731, %v858
        %v866 = vadd.f32 %v732, %v860
        %867 = vrot.lane.b32.xlu0 %v607, 126
        %v868 = vpop.permute.xlu0 %867
        %869 = vrot.lane.b32.xlu0 %v609, 126
        %v870 = vpop.permute.xlu0 %869
        %871 = vrot.lane.b32.xlu0 %v608, 126
        %v872 = vpop.permute.xlu0 %871
        %v876 = vadd.f32 %v742, %v868
        %v877 = vadd.f32 %v743, %v870
        %v878 = vadd.f32 %v744, %v872
        %879 = vrot.lane.b32.xlu0 %v696, 126
        %v880 = vpop.permute.xlu0 %879
        %881 = vrot.lane.b32.xlu0 %v698, 126
        %v882 = vpop.permute.xlu0 %881
        %883 = vrot.lane.b32.xlu0 %v697, 126
        %v884 = vpop.permute.xlu0 %883
        %v888 = vadd.f32 %v754, %v880
        %v889 = vadd.f32 %v755, %v882
        %v890 = vadd.f32 %v756, %v884
        %891 = vrot.lane.b32.xlu0 %v671, 126
        %v892 = vpop.permute.xlu0 %891
        %893 = vrot.lane.b32.xlu0 %v673, 126
        %v894 = vpop.permute.xlu0 %893
        %895 = vrot.lane.b32.xlu0 %v672, 126
        %v896 = vpop.permute.xlu0 %895
        %v900 = vadd.f32 %v766, %v892
        %v901 = vadd.f32 %v767, %v894
        %v902 = vadd.f32 %v768, %v896
        %903 = vrot.lane.b32.xlu0 %v618, 126
        %v904 = vpop.permute.xlu0 %903
        %905 = vrot.lane.b32.xlu0 %v620, 126
        %v906 = vpop.permute.xlu0 %905
        %907 = vrot.lane.b32.xlu0 %v619, 126
        %v908 = vpop.permute.xlu0 %907
        %v912 = vadd.f32 %v778, %v904
        %v913 = vadd.f32 %v779, %v906
        %v914 = vadd.f32 %v780, %v908
        %915 = vrot.lane.b32.xlu0 %v632, 126
        %v916 = vpop.permute.xlu0 %915
        %917 = vrot.lane.b32.xlu0 %v634, 126
        %v918 = vpop.permute.xlu0 %917
        %919 = vrot.lane.b32.xlu0 %v633, 126
        %v920 = vpop.permute.xlu0 %919
        %v924 = vadd.f32 %v781, %v916
        %v925 = vadd.f32 %v782, %v918
        %v926 = vadd.f32 %v783, %v920
        %v927 = vrot.slane %v463, 1
        %v928 = vrot.slane %v464, 1
        %v929 = vsel %vm604, %v927, %v928
        %v930 = vrot.slane %v465, 1
        %v931 = vsel %vm604, %v928, %v930
        %932 = vrot.lane.b32.xlu0 %v929, 126
        %v933 = vpop.permute.xlu0 %932
        %934 = vrot.lane.b32.xlu0 %v931, 126
        %v935 = vpop.permute.xlu0 %934
        %936 = vrot.lane.b32.xlu0 %v930, 126
        %v937 = vpop.permute.xlu0 %936
        %v941 = vadd.f32 %v793, %v933
        %v942 = vadd.f32 %v794, %v935
        %v943 = vadd.f32 %v795, %v937
        %v944 = vadd.f32 %v805, %v880
        %v945 = vadd.f32 %v806, %v882
        %v946 = vadd.f32 %v807, %v884
        %947 = vrot.lane.b32.xlu0 %v646, 126
        %v948 = vpop.permute.xlu0 %947
        %949 = vrot.lane.b32.xlu0 %v648, 126
        %v950 = vpop.permute.xlu0 %949
        %951 = vrot.lane.b32.xlu0 %v647, 126
        %v952 = vpop.permute.xlu0 %951
        %v956 = vadd.f32 %v817, %v948
        %v957 = vadd.f32 %v818, %v950
        %v958 = vadd.f32 %v819, %v952
        %v959 = vadd.f32 %v820, %v892
        %v960 = vadd.f32 %v821, %v894
        %v961 = vadd.f32 %v822, %v896
        %v962 = vadd.f32 %v823, %v916
        %v963 = vadd.f32 %v824, %v918
        %v964 = vadd.f32 %v825, %v920
        %v965 = vadd.f32 %v826, %v868
        %v966 = vadd.f32 %v827, %v870
        %v967 = vadd.f32 %v828, %v872
        %968 = vrot.lane.b32.xlu0 %v682, 126
        %v969 = vpop.permute.xlu0 %968
        %970 = vrot.lane.b32.xlu0 %v684, 126
        %v971 = vpop.permute.xlu0 %970
        %972 = vrot.lane.b32.xlu0 %v683, 126
        %v973 = vpop.permute.xlu0 %972
        %v977 = vadd.f32 %v838, %v969
        %v978 = vadd.f32 %v839, %v971
        %v979 = vadd.f32 %v840, %v973
        %v980 = vadd.f32 %v841, %v969
        %v981 = vadd.f32 %v842, %v971
        %v982 = vadd.f32 %v843, %v973
        %v983 = vadd.f32 %v844, %v948
        %v984 = vadd.f32 %v845, %v950
        %v985 = vadd.f32 %v846, %v952
        %v986 = vadd.f32 %v847, %v904
        %v987 = vadd.f32 %v848, %v906
        %v988 = vadd.f32 %v849, %v908
        %989 = vrot.lane.b32.xlu0 %v710, 126
        %v990 = vpop.permute.xlu0 %989
        %991 = vrot.lane.b32.xlu0 %v712, 126
        %v992 = vpop.permute.xlu0 %991
        %993 = vrot.lane.b32.xlu0 %v711, 126
        %v994 = vpop.permute.xlu0 %993
        %v998 = vadd.f32 %v864, %v990
        %v999 = vadd.f32 %v865, %v992
        %v1000 = vadd.f32 %v866, %v994
        %1001 = vrot.lane.b32.xlu0 %v607, 125
        %v1002 = vpop.permute.xlu0 %1001
        %1003 = vrot.lane.b32.xlu0 %v609, 125
        %v1004 = vpop.permute.xlu0 %1003
        %1005 = vrot.lane.b32.xlu0 %v608, 125
        %v1006 = vpop.permute.xlu0 %1005
        %v1010 = vadd.f32 %v876, %v1002
        %v1011 = vadd.f32 %v877, %v1004
        %v1012 = vadd.f32 %v878, %v1006
        %1013 = vrot.lane.b32.xlu0 %v682, 125
        %v1014 = vpop.permute.xlu0 %1013
        %1015 = vrot.lane.b32.xlu0 %v684, 125
        %v1016 = vpop.permute.xlu0 %1015
        %1017 = vrot.lane.b32.xlu0 %v683, 125
        %v1018 = vpop.permute.xlu0 %1017
        %v1022 = vadd.f32 %v888, %v1014
        %v1023 = vadd.f32 %v889, %v1016
        %v1024 = vadd.f32 %v890, %v1018
        %v1025 = vadd.f32 %v900, %v1002
        %v1026 = vadd.f32 %v901, %v1004
        %v1027 = vadd.f32 %v902, %v1006
        %1028 = vrot.lane.b32.xlu0 %v696, 125
        %v1029 = vpop.permute.xlu0 %1028
        %1030 = vrot.lane.b32.xlu0 %v698, 125
        %v1031 = vpop.permute.xlu0 %1030
        %1032 = vrot.lane.b32.xlu0 %v697, 125
        %v1033 = vpop.permute.xlu0 %1032
        %v1037 = vadd.f32 %v912, %v1029
        %v1038 = vadd.f32 %v913, %v1031
        %v1039 = vadd.f32 %v914, %v1033
        %1040 = vrot.lane.b32.xlu0 %v632, 125
        %v1041 = vpop.permute.xlu0 %1040
        %1042 = vrot.lane.b32.xlu0 %v634, 125
        %v1043 = vpop.permute.xlu0 %1042
        %1044 = vrot.lane.b32.xlu0 %v633, 125
        %v1045 = vpop.permute.xlu0 %1044
        %v1049 = vadd.f32 %v924, %v1041
        %v1050 = vadd.f32 %v925, %v1043
        %v1051 = vadd.f32 %v926, %v1045
        %1052 = vrot.lane.b32.xlu0 %v724, 125
        %v1053 = vpop.permute.xlu0 %1052
        %1054 = vrot.lane.b32.xlu0 %v726, 125
        %v1055 = vpop.permute.xlu0 %1054
        %1056 = vrot.lane.b32.xlu0 %v725, 125
        %v1057 = vpop.permute.xlu0 %1056
        %v1061 = vadd.f32 %v941, %v1053
        %v1062 = vadd.f32 %v942, %v1055
        %v1063 = vadd.f32 %v943, %v1057
        %v1064 = vadd.f32 %v944, %v1041
        %v1065 = vadd.f32 %v945, %v1043
        %v1066 = vadd.f32 %v946, %v1045
        %1067 = vrot.lane.b32.xlu0 %v929, 125
        %v1068 = vpop.permute.xlu0 %1067
        %1069 = vrot.lane.b32.xlu0 %v931, 125
        %v1070 = vpop.permute.xlu0 %1069
        %1071 = vrot.lane.b32.xlu0 %v930, 125
        %v1072 = vpop.permute.xlu0 %1071
        %v1076 = vadd.f32 %v956, %v1068
        %v1077 = vadd.f32 %v957, %v1070
        %v1078 = vadd.f32 %v958, %v1072
        %1079 = vrot.lane.b32.xlu0 %v671, 125
        %v1080 = vpop.permute.xlu0 %1079
        %1081 = vrot.lane.b32.xlu0 %v673, 125
        %v1082 = vpop.permute.xlu0 %1081
        %1083 = vrot.lane.b32.xlu0 %v672, 125
        %v1084 = vpop.permute.xlu0 %1083
        %v1088 = vadd.f32 %v959, %v1080
        %v1089 = vadd.f32 %v960, %v1082
        %v1090 = vadd.f32 %v961, %v1084
        %1091 = vrot.lane.b32.xlu0 %v618, 125
        %v1092 = vpop.permute.xlu0 %1091
        %1093 = vrot.lane.b32.xlu0 %v620, 125
        %v1094 = vpop.permute.xlu0 %1093
        %1095 = vrot.lane.b32.xlu0 %v619, 125
        %v1096 = vpop.permute.xlu0 %1095
        %v1100 = vadd.f32 %v962, %v1092
        %v1101 = vadd.f32 %v963, %v1094
        %v1102 = vadd.f32 %v964, %v1096
        %v1103 = vadd.f32 %v965, %v1080
        %v1104 = vadd.f32 %v966, %v1082
        %v1105 = vadd.f32 %v967, %v1084
        %v1106 = vadd.f32 %v977, %v1041
        %v1107 = vadd.f32 %v978, %v1043
        %v1108 = vadd.f32 %v979, %v1045
        %v1109 = vadd.f32 %v980, %v1014
        %v1110 = vadd.f32 %v981, %v1016
        %v1111 = vadd.f32 %v982, %v1018
        %1112 = vrot.lane.b32.xlu0 %v852, 125
        %v1113 = vpop.permute.xlu0 %1112
        %1114 = vrot.lane.b32.xlu0 %v854, 125
        %v1115 = vpop.permute.xlu0 %1114
        %1116 = vrot.lane.b32.xlu0 %v853, 125
        %v1117 = vpop.permute.xlu0 %1116
        %v1121 = vadd.f32 %v983, %v1113
        %v1122 = vadd.f32 %v984, %v1115
        %v1123 = vadd.f32 %v985, %v1117
        %v1124 = vadd.f32 %v986, %v1014
        %v1125 = vadd.f32 %v987, %v1016
        %v1126 = vadd.f32 %v988, %v1018
        %1127 = vrot.lane.b32.xlu0 %v646, 125
        %v1128 = vpop.permute.xlu0 %1127
        %1129 = vrot.lane.b32.xlu0 %v648, 125
        %v1130 = vpop.permute.xlu0 %1129
        %1131 = vrot.lane.b32.xlu0 %v647, 125
        %v1132 = vpop.permute.xlu0 %1131
        %v1136 = vadd.f32 %v998, %v1128
        %v1137 = vadd.f32 %v999, %v1130
        %v1138 = vadd.f32 %v1000, %v1132
        %vm1139 = vcmask 1045504
        %v1140 = vrot.slane %v172, 2
        %v1141 = vrot.slane %v173, 2
        %v1142 = vsel %vm1139, %v1140, %v1141
        %v1143 = vrot.slane %v174, 2
        %v1144 = vsel %vm1139, %v1141, %v1143
        %v1148 = vadd.f32 %v1010, %v1142
        %v1149 = vadd.f32 %v1011, %v1144
        %v1150 = vadd.f32 %v1012, %v1143
        %v1151 = vrot.slane %v175, 2
        %v1152 = vrot.slane %v176, 2
        %v1153 = vsel %vm1139, %v1151, %v1152
        %v1154 = vrot.slane %v177, 2
        %v1155 = vsel %vm1139, %v1152, %v1154
        %v1159 = vadd.f32 %v1022, %v1153
        %v1160 = vadd.f32 %v1023, %v1155
        %v1161 = vadd.f32 %v1024, %v1154
        %v1162 = vadd.f32 %v1025, %v1142
        %v1163 = vadd.f32 %v1026, %v1144
        %v1164 = vadd.f32 %v1027, %v1143
        %v1165 = vrot.slane %v178, 2
        %v1166 = vrot.slane %v179, 2
        %v1167 = vsel %vm1139, %v1165, %v1166
        %v1168 = vrot.slane %v180, 2
        %v1169 = vsel %vm1139, %v1166, %v1168
        %v1173 = vadd.f32 %v1037, %v1167
        %v1174 = vadd.f32 %v1038, %v1169
        %v1175 = vadd.f32 %v1039, %v1168
        %v1176 = vrot.slane %v325, 2
        %v1177 = vrot.slane %v326, 2
        %v1178 = vsel %vm1139, %v1176, %v1177
        %v1179 = vrot.slane %v327, 2
        %v1180 = vsel %vm1139, %v1177, %v1179
        %v1184 = vadd.f32 %v1049, %v1178
        %v1185 = vadd.f32 %v1050, %v1180
        %v1186 = vadd.f32 %v1051, %v1179
        %v1187 = vrot.slane %v343, 2
        %v1188 = vrot.slane %v344, 2
        %v1189 = vsel %vm1139, %v1187, %v1188
        %v1190 = vrot.slane %v345, 2
        %v1191 = vsel %vm1139, %v1188, %v1190
        %v1195 = vadd.f32 %v1061, %v1189
        %v1196 = vadd.f32 %v1062, %v1191
        %v1197 = vadd.f32 %v1063, %v1190
        %v1198 = vadd.f32 %v1064, %v1178
        %v1199 = vadd.f32 %v1065, %v1180
        %v1200 = vadd.f32 %v1066, %v1179
        %v1201 = vrot.slane %v463, 2
        %v1202 = vrot.slane %v464, 2
        %v1203 = vsel %vm1139, %v1201, %v1202
        %v1204 = vrot.slane %v465, 2
        %v1205 = vsel %vm1139, %v1202, %v1204
        %v1209 = vadd.f32 %v1076, %v1203
        %v1210 = vadd.f32 %v1077, %v1205
        %v1211 = vadd.f32 %v1078, %v1204
        %v1212 = vrot.slane %v220, 2
        %v1213 = vrot.slane %v221, 2
        %v1214 = vsel %vm1139, %v1212, %v1213
        %v1215 = vrot.slane %v222, 2
        %v1216 = vsel %vm1139, %v1213, %v1215
        %v1220 = vadd.f32 %v1088, %v1214
        %v1221 = vadd.f32 %v1089, %v1216
        %v1222 = vadd.f32 %v1090, %v1215
        %v1223 = vrot.slane %v238, 2
        %v1224 = vrot.slane %v239, 2
        %v1225 = vsel %vm1139, %v1223, %v1224
        %v1226 = vrot.slane %v240, 2
        %v1227 = vsel %vm1139, %v1224, %v1226
        %v1231 = vadd.f32 %v1100, %v1225
        %v1232 = vadd.f32 %v1101, %v1227
        %v1233 = vadd.f32 %v1102, %v1226
        %v1234 = vadd.f32 %v1103, %v1214
        %v1235 = vadd.f32 %v1104, %v1216
        %v1236 = vadd.f32 %v1105, %v1215
        %v1237 = vadd.f32 %v1106, %v1178
        %v1238 = vadd.f32 %v1107, %v1180
        %v1239 = vadd.f32 %v1108, %v1179
        %v1240 = vadd.f32 %v1109, %v1153
        %v1241 = vadd.f32 %v1110, %v1155
        %v1242 = vadd.f32 %v1111, %v1154
        %v1243 = vrot.slane %v181, 2
        %v1244 = vrot.slane %v182, 2
        %v1245 = vsel %vm1139, %v1243, %v1244
        %v1246 = vrot.slane %v183, 2
        %v1247 = vsel %vm1139, %v1244, %v1246
        %v1251 = vadd.f32 %v1121, %v1245
        %v1252 = vadd.f32 %v1122, %v1247
        %v1253 = vadd.f32 %v1123, %v1246
        %v1254 = vadd.f32 %v1124, %v1153
        %v1255 = vadd.f32 %v1125, %v1155
        %v1256 = vadd.f32 %v1126, %v1154
        %v1257 = vrot.slane %v184, 2
        %v1258 = vrot.slane %v185, 2
        %v1259 = vsel %vm1139, %v1257, %v1258
        %v1260 = vrot.slane %v186, 2
        %v1261 = vsel %vm1139, %v1258, %v1260
        %v1265 = vadd.f32 %v1136, %v1259
        %v1266 = vadd.f32 %v1137, %v1261
        %v1267 = vadd.f32 %v1138, %v1260
        %1268 = vrot.lane.b32.xlu0 %v1142, 127
        %v1269 = vpop.permute.xlu0 %1268
        %1270 = vrot.lane.b32.xlu0 %v1144, 127
        %v1271 = vpop.permute.xlu0 %1270
        %1272 = vrot.lane.b32.xlu0 %v1143, 127
        %v1273 = vpop.permute.xlu0 %1272
        %v1277 = vadd.f32 %v1148, %v1269
        %v1278 = vadd.f32 %v1149, %v1271
        %v1279 = vadd.f32 %v1150, %v1273
        %1280 = vrot.lane.b32.xlu0 %v1167, 127
        %v1281 = vpop.permute.xlu0 %1280
        %1282 = vrot.lane.b32.xlu0 %v1169, 127
        %v1283 = vpop.permute.xlu0 %1282
        %1284 = vrot.lane.b32.xlu0 %v1168, 127
        %v1285 = vpop.permute.xlu0 %1284
        %v1289 = vadd.f32 %v1159, %v1281
        %v1290 = vadd.f32 %v1160, %v1283
        %v1291 = vadd.f32 %v1161, %v1285
        %1292 = vrot.lane.b32.xlu0 %v1214, 127
        %v1293 = vpop.permute.xlu0 %1292
        %1294 = vrot.lane.b32.xlu0 %v1216, 127
        %v1295 = vpop.permute.xlu0 %1294
        %1296 = vrot.lane.b32.xlu0 %v1215, 127
        %v1297 = vpop.permute.xlu0 %1296
        %v1301 = vadd.f32 %v1162, %v1293
        %v1302 = vadd.f32 %v1163, %v1295
        %v1303 = vadd.f32 %v1164, %v1297
        %1304 = vrot.lane.b32.xlu0 %v1225, 127
        %v1305 = vpop.permute.xlu0 %1304
        %1306 = vrot.lane.b32.xlu0 %v1227, 127
        %v1307 = vpop.permute.xlu0 %1306
        %1308 = vrot.lane.b32.xlu0 %v1226, 127
        %v1309 = vpop.permute.xlu0 %1308
        %v1313 = vadd.f32 %v1173, %v1305
        %v1314 = vadd.f32 %v1174, %v1307
        %v1315 = vadd.f32 %v1175, %v1309
        %1316 = vrot.lane.b32.xlu0 %v1178, 127
        %v1317 = vpop.permute.xlu0 %1316
        %1318 = vrot.lane.b32.xlu0 %v1180, 127
        %v1319 = vpop.permute.xlu0 %1318
        %1320 = vrot.lane.b32.xlu0 %v1179, 127
        %v1321 = vpop.permute.xlu0 %1320
        %v1325 = vadd.f32 %v1184, %v1317
        %v1326 = vadd.f32 %v1185, %v1319
        %v1327 = vadd.f32 %v1186, %v1321
        %1328 = vrot.lane.b32.xlu0 %v1203, 127
        %v1329 = vpop.permute.xlu0 %1328
        %1330 = vrot.lane.b32.xlu0 %v1205, 127
        %v1331 = vpop.permute.xlu0 %1330
        %1332 = vrot.lane.b32.xlu0 %v1204, 127
        %v1333 = vpop.permute.xlu0 %1332
        %v1337 = vadd.f32 %v1195, %v1329
        %v1338 = vadd.f32 %v1196, %v1331
        %v1339 = vadd.f32 %v1197, %v1333
        %v1340 = vadd.f32 %v1198, %v1281
        %v1341 = vadd.f32 %v1199, %v1283
        %v1342 = vadd.f32 %v1200, %v1285
        %1343 = vrot.lane.b32.xlu0 %v1259, 127
        %v1344 = vpop.permute.xlu0 %1343
        %1345 = vrot.lane.b32.xlu0 %v1261, 127
        %v1346 = vpop.permute.xlu0 %1345
        %1347 = vrot.lane.b32.xlu0 %v1260, 127
        %v1348 = vpop.permute.xlu0 %1347
        %v1352 = vadd.f32 %v1209, %v1344
        %v1353 = vadd.f32 %v1210, %v1346
        %v1354 = vadd.f32 %v1211, %v1348
        %v1355 = vadd.f32 %v1220, %v1293
        %v1356 = vadd.f32 %v1221, %v1295
        %v1357 = vadd.f32 %v1222, %v1297
        %v1358 = vadd.f32 %v1231, %v1317
        %v1359 = vadd.f32 %v1232, %v1319
        %v1360 = vadd.f32 %v1233, %v1321
        %v1361 = vadd.f32 %v1234, %v1269
        %v1362 = vadd.f32 %v1235, %v1271
        %v1363 = vadd.f32 %v1236, %v1273
        %1364 = vrot.lane.b32.xlu0 %v1153, 127
        %v1365 = vpop.permute.xlu0 %1364
        %1366 = vrot.lane.b32.xlu0 %v1155, 127
        %v1367 = vpop.permute.xlu0 %1366
        %1368 = vrot.lane.b32.xlu0 %v1154, 127
        %v1369 = vpop.permute.xlu0 %1368
        %v1373 = vadd.f32 %v1237, %v1365
        %v1374 = vadd.f32 %v1238, %v1367
        %v1375 = vadd.f32 %v1239, %v1369
        %v1376 = vadd.f32 %v1240, %v1365
        %v1377 = vadd.f32 %v1241, %v1367
        %v1378 = vadd.f32 %v1242, %v1369
        %v1379 = vadd.f32 %v1251, %v1344
        %v1380 = vadd.f32 %v1252, %v1346
        %v1381 = vadd.f32 %v1253, %v1348
        %v1382 = vadd.f32 %v1254, %v1305
        %v1383 = vadd.f32 %v1255, %v1307
        %v1384 = vadd.f32 %v1256, %v1309
        %v1385 = vrot.slane %v289, 2
        %v1386 = vrot.slane %v290, 2
        %v1387 = vsel %vm1139, %v1385, %v1386
        %v1388 = vrot.slane %v291, 2
        %v1389 = vsel %vm1139, %v1386, %v1388
        %1390 = vrot.lane.b32.xlu0 %v1387, 127
        %v1391 = vpop.permute.xlu0 %1390
        %1392 = vrot.lane.b32.xlu0 %v1389, 127
        %v1393 = vpop.permute.xlu0 %1392
        %1394 = vrot.lane.b32.xlu0 %v1388, 127
        %v1395 = vpop.permute.xlu0 %1394
        %v1399 = vadd.f32 %v1265, %v1391
        %v1400 = vadd.f32 %v1266, %v1393
        %v1401 = vadd.f32 %v1267, %v1395
        %1402 = vrot.lane.b32.xlu0 %v1142, 126
        %v1403 = vpop.permute.xlu0 %1402
        %1404 = vrot.lane.b32.xlu0 %v1144, 126
        %v1405 = vpop.permute.xlu0 %1404
        %1406 = vrot.lane.b32.xlu0 %v1143, 126
        %v1407 = vpop.permute.xlu0 %1406
        %v1411 = vadd.f32 %v1277, %v1403
        %v1412 = vadd.f32 %v1278, %v1405
        %v1413 = vadd.f32 %v1279, %v1407
        %1414 = vrot.lane.b32.xlu0 %v1178, 126
        %v1415 = vpop.permute.xlu0 %1414
        %1416 = vrot.lane.b32.xlu0 %v1180, 126
        %v1417 = vpop.permute.xlu0 %1416
        %1418 = vrot.lane.b32.xlu0 %v1179, 126
        %v1419 = vpop.permute.xlu0 %1418
        %v1423 = vadd.f32 %v1289, %v1415
        %v1424 = vadd.f32 %v1290, %v1417
        %v1425 = vadd.f32 %v1291, %v1419
        %1426 = vrot.lane.b32.xlu0 %v1214, 126
        %v1427 = vpop.permute.xlu0 %1426
        %1428 = vrot.lane.b32.xlu0 %v1216, 126
        %v1429 = vpop.permute.xlu0 %1428
        %1430 = vrot.lane.b32.xlu0 %v1215, 126
        %v1431 = vpop.permute.xlu0 %1430
        %v1435 = vadd.f32 %v1301, %v1427
        %v1436 = vadd.f32 %v1302, %v1429
        %v1437 = vadd.f32 %v1303, %v1431
        %1438 = vrot.lane.b32.xlu0 %v1153, 126
        %v1439 = vpop.permute.xlu0 %1438
        %1440 = vrot.lane.b32.xlu0 %v1155, 126
        %v1441 = vpop.permute.xlu0 %1440
        %1442 = vrot.lane.b32.xlu0 %v1154, 126
        %v1443 = vpop.permute.xlu0 %1442
        %v1447 = vadd.f32 %v1313, %v1439
        %v1448 = vadd.f32 %v1314, %v1441
        %v1449 = vadd.f32 %v1315, %v1443
        %v1450 = vadd.f32 %v1325, %v1415
        %v1451 = vadd.f32 %v1326, %v1417
        %v1452 = vadd.f32 %v1327, %v1419
        %v1453 = vrot.slane %v187, 2
        %v1454 = vrot.slane %v188, 2
        %v1455 = vsel %vm1139, %v1453, %v1454
        %v1456 = vrot.slane %v189, 2
        %v1457 = vsel %vm1139, %v1454, %v1456
        %1458 = vrot.lane.b32.xlu0 %v1455, 126
        %v1459 = vpop.permute.xlu0 %1458
        %1460 = vrot.lane.b32.xlu0 %v1457, 126
        %v1461 = vpop.permute.xlu0 %1460
        %1462 = vrot.lane.b32.xlu0 %v1456, 126
        %v1463 = vpop.permute.xlu0 %1462
        %v1467 = vadd.f32 %v1337, %v1459
        %v1468 = vadd.f32 %v1338, %v1461
        %v1469 = vadd.f32 %v1339, %v1463
        %1470 = vrot.lane.b32.xlu0 %v1167, 126
        %v1471 = vpop.permute.xlu0 %1470
        %1472 = vrot.lane.b32.xlu0 %v1169, 126
        %v1473 = vpop.permute.xlu0 %1472
        %1474 = vrot.lane.b32.xlu0 %v1168, 126
        %v1475 = vpop.permute.xlu0 %1474
        %v1479 = vadd.f32 %v1340, %v1471
        %v1480 = vadd.f32 %v1341, %v1473
        %v1481 = vadd.f32 %v1342, %v1475
        %1482 = vrot.lane.b32.xlu0 %v1189, 126
        %v1483 = vpop.permute.xlu0 %1482
        %1484 = vrot.lane.b32.xlu0 %v1191, 126
        %v1485 = vpop.permute.xlu0 %1484
        %1486 = vrot.lane.b32.xlu0 %v1190, 126
        %v1487 = vpop.permute.xlu0 %1486
        %v1491 = vadd.f32 %v1352, %v1483
        %v1492 = vadd.f32 %v1353, %v1485
        %v1493 = vadd.f32 %v1354, %v1487
        %v1494 = vadd.f32 %v1355, %v1427
        %v1495 = vadd.f32 %v1356, %v1429
        %v1496 = vadd.f32 %v1357, %v1431
        %v1497 = vadd.f32 %v1358, %v1471
        %v1498 = vadd.f32 %v1359, %v1473
        %v1499 = vadd.f32 %v1360, %v1475
        %v1500 = vadd.f32 %v1361, %v1403
        %v1501 = vadd.f32 %v1362, %v1405
        %v1502 = vadd.f32 %v1363, %v1407
        %1503 = vrot.lane.b32.xlu0 %v1225, 126
        %v1504 = vpop.permute.xlu0 %1503
        %1505 = vrot.lane.b32.xlu0 %v1227, 126
        %v1506 = vpop.permute.xlu0 %1505
        %1507 = vrot.lane.b32.xlu0 %v1226, 126
        %v1508 = vpop.permute.xlu0 %1507
        %v1512 = vadd.f32 %v1373, %v1504
        %v1513 = vadd.f32 %v1374, %v1506
        %v1514 = vadd.f32 %v1375, %v1508
        %v1515 = vadd.f32 %v1376, %v1439
        %v1516 = vadd.f32 %v1377, %v1441
        %v1517 = vadd.f32 %v1378, %v1443
        %v1518 = vadd.f32 %v1379, %v1483
        %v1519 = vadd.f32 %v1380, %v1485
        %v1520 = vadd.f32 %v1381, %v1487
        %v1521 = vadd.f32 %v1382, %v1504
        %v1522 = vadd.f32 %v1383, %v1506
        %v1523 = vadd.f32 %v1384, %v1508
        %1524 = vrot.lane.b32.xlu0 %v1245, 126
        %v1525 = vpop.permute.xlu0 %1524
        %1526 = vrot.lane.b32.xlu0 %v1247, 126
        %v1527 = vpop.permute.xlu0 %1526
        %1528 = vrot.lane.b32.xlu0 %v1246, 126
        %v1529 = vpop.permute.xlu0 %1528
        %v1533 = vadd.f32 %v1399, %v1525
        %v1534 = vadd.f32 %v1400, %v1527
        %v1535 = vadd.f32 %v1401, %v1529
        %1536 = vrot.lane.b32.xlu0 %v1142, 125
        %v1537 = vpop.permute.xlu0 %1536
        %1538 = vrot.lane.b32.xlu0 %v1144, 125
        %v1539 = vpop.permute.xlu0 %1538
        %1540 = vrot.lane.b32.xlu0 %v1143, 125
        %v1541 = vpop.permute.xlu0 %1540
        %v1545 = vadd.f32 %v1411, %v1537
        %v1546 = vadd.f32 %v1412, %v1539
        %v1547 = vadd.f32 %v1413, %v1541
        %1548 = vrot.lane.b32.xlu0 %v1225, 125
        %v1549 = vpop.permute.xlu0 %1548
        %1550 = vrot.lane.b32.xlu0 %v1227, 125
        %v1551 = vpop.permute.xlu0 %1550
        %1552 = vrot.lane.b32.xlu0 %v1226, 125
        %v1553 = vpop.permute.xlu0 %1552
        %v1557 = vadd.f32 %v1423, %v1549
        %v1558 = vadd.f32 %v1424, %v1551
        %v1559 = vadd.f32 %v1425, %v1553
        %v1560 = vadd.f32 %v1435, %v1537
        %v1561 = vadd.f32 %v1436, %v1539
        %v1562 = vadd.f32 %v1437, %v1541
        %1563 = vrot.lane.b32.xlu0 %v1178, 125
        %v1564 = vpop.permute.xlu0 %1563
        %1565 = vrot.lane.b32.xlu0 %v1180, 125
        %v1566 = vpop.permute.xlu0 %1565
        %1567 = vrot.lane.b32.xlu0 %v1179, 125
        %v1568 = vpop.permute.xlu0 %1567
        %v1572 = vadd.f32 %v1447, %v1564
        %v1573 = vadd.f32 %v1448, %v1566
        %v1574 = vadd.f32 %v1449, %v1568
        %v1575 = vadd.f32 %v1450, %v1564
        %v1576 = vadd.f32 %v1451, %v1566
        %v1577 = vadd.f32 %v1452, %v1568
        %1578 = vrot.lane.b32.xlu0 %v1259, 125
        %v1579 = vpop.permute.xlu0 %1578
        %1580 = vrot.lane.b32.xlu0 %v1261, 125
        %v1581 = vpop.permute.xlu0 %1580
        %1582 = vrot.lane.b32.xlu0 %v1260, 125
        %v1583 = vpop.permute.xlu0 %1582
        %v1587 = vadd.f32 %v1467, %v1579
        %v1588 = vadd.f32 %v1468, %v1581
        %v1589 = vadd.f32 %v1469, %v1583
        %v1590 = vadd.f32 %v1479, %v1564
        %v1591 = vadd.f32 %v1480, %v1566
        %v1592 = vadd.f32 %v1481, %v1568
        %1593 = vrot.lane.b32.xlu0 %v1455, 125
        %v1594 = vpop.permute.xlu0 %1593
        %1595 = vrot.lane.b32.xlu0 %v1457, 125
        %v1596 = vpop.permute.xlu0 %1595
        %1597 = vrot.lane.b32.xlu0 %v1456, 125
        %v1598 = vpop.permute.xlu0 %1597
        %v1602 = vadd.f32 %v1491, %v1594
        %v1603 = vadd.f32 %v1492, %v1596
        %v1604 = vadd.f32 %v1493, %v1598
        %1605 = vrot.lane.b32.xlu0 %v1214, 125
        %v1606 = vpop.permute.xlu0 %1605
        %1607 = vrot.lane.b32.xlu0 %v1216, 125
        %v1608 = vpop.permute.xlu0 %1607
        %1609 = vrot.lane.b32.xlu0 %v1215, 125
        %v1610 = vpop.permute.xlu0 %1609
        %v1614 = vadd.f32 %v1494, %v1606
        %v1615 = vadd.f32 %v1495, %v1608
        %v1616 = vadd.f32 %v1496, %v1610
        %1617 = vrot.lane.b32.xlu0 %v1153, 125
        %v1618 = vpop.permute.xlu0 %1617
        %1619 = vrot.lane.b32.xlu0 %v1155, 125
        %v1620 = vpop.permute.xlu0 %1619
        %1621 = vrot.lane.b32.xlu0 %v1154, 125
        %v1622 = vpop.permute.xlu0 %1621
        %v1626 = vadd.f32 %v1497, %v1618
        %v1627 = vadd.f32 %v1498, %v1620
        %v1628 = vadd.f32 %v1499, %v1622
        %v1629 = vadd.f32 %v1500, %v1606
        %v1630 = vadd.f32 %v1501, %v1608
        %v1631 = vadd.f32 %v1502, %v1610
        %1632 = vrot.lane.b32.xlu0 %v1167, 125
        %v1633 = vpop.permute.xlu0 %1632
        %1634 = vrot.lane.b32.xlu0 %v1169, 125
        %v1635 = vpop.permute.xlu0 %1634
        %1636 = vrot.lane.b32.xlu0 %v1168, 125
        %v1637 = vpop.permute.xlu0 %1636
        %v1641 = vadd.f32 %v1512, %v1633
        %v1642 = vadd.f32 %v1513, %v1635
        %v1643 = vadd.f32 %v1514, %v1637
        %v1644 = vadd.f32 %v1515, %v1618
        %v1645 = vadd.f32 %v1516, %v1620
        %v1646 = vadd.f32 %v1517, %v1622
        %1647 = vrot.lane.b32.xlu0 %v1387, 125
        %v1648 = vpop.permute.xlu0 %1647
        %1649 = vrot.lane.b32.xlu0 %v1389, 125
        %v1650 = vpop.permute.xlu0 %1649
        %1651 = vrot.lane.b32.xlu0 %v1388, 125
        %v1652 = vpop.permute.xlu0 %1651
        %v1656 = vadd.f32 %v1518, %v1648
        %v1657 = vadd.f32 %v1519, %v1650
        %v1658 = vadd.f32 %v1520, %v1652
        %v1659 = vadd.f32 %v1521, %v1618
        %v1660 = vadd.f32 %v1522, %v1620
        %v1661 = vadd.f32 %v1523, %v1622
        %1662 = vrot.lane.b32.xlu0 %v1189, 125
        %v1663 = vpop.permute.xlu0 %1662
        %1664 = vrot.lane.b32.xlu0 %v1191, 125
        %v1665 = vpop.permute.xlu0 %1664
        %1666 = vrot.lane.b32.xlu0 %v1190, 125
        %v1667 = vpop.permute.xlu0 %1666
        %v1671 = vadd.f32 %v1533, %v1663
        %v1672 = vadd.f32 %v1534, %v1665
        %v1673 = vadd.f32 %v1535, %v1667
        %vm1674 = vcmask 1044480
        %v1675 = vrot.slane %v172, 3
        %v1676 = vrot.slane %v173, 3
        %v1677 = vsel %vm1674, %v1675, %v1676
        %v1678 = vrot.slane %v174, 3
        %v1679 = vsel %vm1674, %v1676, %v1678
        %v1683 = vadd.f32 %v1545, %v1677
        %v1684 = vadd.f32 %v1546, %v1679
        %v1685 = vadd.f32 %v1547, %v1678
        %v1686 = vrot.slane %v175, 3
        %v1687 = vrot.slane %v176, 3
        %v1688 = vsel %vm1674, %v1686, %v1687
        %v1689 = vrot.slane %v177, 3
        %v1690 = vsel %vm1674, %v1687, %v1689
        %v1694 = vadd.f32 %v1557, %v1688
        %v1695 = vadd.f32 %v1558, %v1690
        %v1696 = vadd.f32 %v1559, %v1689
        %v1697 = vadd.f32 %v1560, %v1677
        %v1698 = vadd.f32 %v1561, %v1679
        %v1699 = vadd.f32 %v1562, %v1678
        %v1700 = vrot.slane %v178, 3
        %v1701 = vrot.slane %v179, 3
        %v1702 = vsel %vm1674, %v1700, %v1701
        %v1703 = vrot.slane %v180, 3
        %v1704 = vsel %vm1674, %v1701, %v1703
        %v1708 = vadd.f32 %v1572, %v1702
        %v1709 = vadd.f32 %v1573, %v1704
        %v1710 = vadd.f32 %v1574, %v1703
        %v1711 = vrot.slane %v238, 3
        %v1712 = vrot.slane %v239, 3
        %v1713 = vsel %vm1674, %v1711, %v1712
        %v1714 = vrot.slane %v240, 3
        %v1715 = vsel %vm1674, %v1712, %v1714
        %v1719 = vadd.f32 %v1575, %v1713
        %v1720 = vadd.f32 %v1576, %v1715
        %v1721 = vadd.f32 %v1577, %v1714
        %v1722 = vrot.slane %v289, 3
        %v1723 = vrot.slane %v290, 3
        %v1724 = vsel %vm1674, %v1722, %v1723
        %v1725 = vrot.slane %v291, 3
        %v1726 = vsel %vm1674, %v1723, %v1725
        %v1730 = vadd.f32 %v1587, %v1724
        %v1731 = vadd.f32 %v1588, %v1726
        %v1732 = vadd.f32 %v1589, %v1725
        %v1733 = vadd.f32 %v1590, %v1713
        %v1734 = vadd.f32 %v1591, %v1715
        %v1735 = vadd.f32 %v1592, %v1714
        %v1736 = vrot.slane %v343, 3
        %v1737 = vrot.slane %v344, 3
        %v1738 = vsel %vm1674, %v1736, %v1737
        %v1739 = vrot.slane %v345, 3
        %v1740 = vsel %vm1674, %v1737, %v1739
        %v1744 = vadd.f32 %v1602, %v1738
        %v1745 = vadd.f32 %v1603, %v1740
        %v1746 = vadd.f32 %v1604, %v1739
        %v1747 = vadd.f32 %v1614, %v1677
        %v1748 = vadd.f32 %v1615, %v1679
        %v1749 = vadd.f32 %v1616, %v1678
        %v1750 = vadd.f32 %v1626, %v1688
        %v1751 = vadd.f32 %v1627, %v1690
        %v1752 = vadd.f32 %v1628, %v1689
        %v1753 = vadd.f32 %v1629, %v1677
        %v1754 = vadd.f32 %v1630, %v1679
        %v1755 = vadd.f32 %v1631, %v1678
        %v1756 = vadd.f32 %v1641, %v1702
        %v1757 = vadd.f32 %v1642, %v1704
        %v1758 = vadd.f32 %v1643, %v1703
        %v1759 = vrot.slane %v325, 3
        %v1760 = vrot.slane %v326, 3
        %v1761 = vsel %vm1674, %v1759, %v1760
        %v1762 = vrot.slane %v327, 3
        %v1763 = vsel %vm1674, %v1760, %v1762
        %v1767 = vadd.f32 %v1644, %v1761
        %v1768 = vadd.f32 %v1645, %v1763
        %v1769 = vadd.f32 %v1646, %v1762
        %v1770 = vadd.f32 %v1656, %v1738
        %v1771 = vadd.f32 %v1657, %v1740
        %v1772 = vadd.f32 %v1658, %v1739
        %v1773 = vadd.f32 %v1659, %v1761
        %v1774 = vadd.f32 %v1660, %v1763
        %v1775 = vadd.f32 %v1661, %v1762
        %v1776 = vrot.slane %v463, 3
        %v1777 = vrot.slane %v464, 3
        %v1778 = vsel %vm1674, %v1776, %v1777
        %v1779 = vrot.slane %v465, 3
        %v1780 = vsel %vm1674, %v1777, %v1779
        %v1784 = vadd.f32 %v1671, %v1778
        %v1785 = vadd.f32 %v1672, %v1780
        %v1786 = vadd.f32 %v1673, %v1779
        %1787 = vrot.lane.b32.xlu0 %v1677, 127
        %v1788 = vpop.permute.xlu0 %1787
        %1789 = vrot.lane.b32.xlu0 %v1679, 127
        %v1790 = vpop.permute.xlu0 %1789
        %1791 = vrot.lane.b32.xlu0 %v1678, 127
        %v1792 = vpop.permute.xlu0 %1791
        %v1796 = vadd.f32 %v1683, %v1788
        %v1797 = vadd.f32 %v1684, %v1790
        %v1798 = vadd.f32 %v1685, %v1792
        %1799 = vrot.lane.b32.xlu0 %v1702, 127
        %v1800 = vpop.permute.xlu0 %1799
        %1801 = vrot.lane.b32.xlu0 %v1704, 127
        %v1802 = vpop.permute.xlu0 %1801
        %1803 = vrot.lane.b32.xlu0 %v1703, 127
        %v1804 = vpop.permute.xlu0 %1803
        %v1808 = vadd.f32 %v1694, %v1800
        %v1809 = vadd.f32 %v1695, %v1802
        %v1810 = vadd.f32 %v1696, %v1804
        %v1811 = vrot.slane %v220, 3
        %v1812 = vrot.slane %v221, 3
        %v1813 = vsel %vm1674, %v1811, %v1812
        %v1814 = vrot.slane %v222, 3
        %v1815 = vsel %vm1674, %v1812, %v1814
        %1816 = vrot.lane.b32.xlu0 %v1813, 127
        %v1817 = vpop.permute.xlu0 %1816
        %1818 = vrot.lane.b32.xlu0 %v1815, 127
        %v1819 = vpop.permute.xlu0 %1818
        %1820 = vrot.lane.b32.xlu0 %v1814, 127
        %v1821 = vpop.permute.xlu0 %1820
        %v1825 = vadd.f32 %v1697, %v1817
        %v1826 = vadd.f32 %v1698, %v1819
        %v1827 = vadd.f32 %v1699, %v1821
        %1828 = vrot.lane.b32.xlu0 %v1713, 127
        %v1829 = vpop.permute.xlu0 %1828
        %1830 = vrot.lane.b32.xlu0 %v1715, 127
        %v1831 = vpop.permute.xlu0 %1830
        %1832 = vrot.lane.b32.xlu0 %v1714, 127
        %v1833 = vpop.permute.xlu0 %1832
        %v1837 = vadd.f32 %v1708, %v1829
        %v1838 = vadd.f32 %v1709, %v1831
        %v1839 = vadd.f32 %v1710, %v1833
        %v1840 = vadd.f32 %v1719, %v1829
        %v1841 = vadd.f32 %v1720, %v1831
        %v1842 = vadd.f32 %v1721, %v1833
        %1843 = vrot.lane.b32.xlu0 %v1738, 127
        %v1844 = vpop.permute.xlu0 %1843
        %1845 = vrot.lane.b32.xlu0 %v1740, 127
        %v1846 = vpop.permute.xlu0 %1845
        %1847 = vrot.lane.b32.xlu0 %v1739, 127
        %v1848 = vpop.permute.xlu0 %1847
        %v1852 = vadd.f32 %v1730, %v1844
        %v1853 = vadd.f32 %v1731, %v1846
        %v1854 = vadd.f32 %v1732, %v1848
        %1855 = vrot.lane.b32.xlu0 %v1688, 127
        %v1856 = vpop.permute.xlu0 %1855
        %1857 = vrot.lane.b32.xlu0 %v1690, 127
        %v1858 = vpop.permute.xlu0 %1857
        %1859 = vrot.lane.b32.xlu0 %v1689, 127
        %v1860 = vpop.permute.xlu0 %1859
        %v1864 = vadd.f32 %v1733, %v1856
        %v1865 = vadd.f32 %v1734, %v1858
        %v1866 = vadd.f32 %v1735, %v1860
        %v1867 = vrot.slane %v181, 3
        %v1868 = vrot.slane %v182, 3
        %v1869 = vsel %vm1674, %v1867, %v1868
        %v1870 = vrot.slane %v183, 3
        %v1871 = vsel %vm1674, %v1868, %v1870
        %1872 = vrot.lane.b32.xlu0 %v1869, 127
        %v1873 = vpop.permute.xlu0 %1872
        %1874 = vrot.lane.b32.xlu0 %v1871, 127
        %v1875 = vpop.permute.xlu0 %1874
        %1876 = vrot.lane.b32.xlu0 %v1870, 127
        %v1877 = vpop.permute.xlu0 %1876
        %v1881 = vadd.f32 %v1744, %v1873
        %v1882 = vadd.f32 %v1745, %v1875
        %v1883 = vadd.f32 %v1746, %v1877
        %v1884 = vadd.f32 %v1747, %v1788
        %v1885 = vadd.f32 %v1748, %v1790
        %v1886 = vadd.f32 %v1749, %v1792
        %v1887 = vadd.f32 %v1750, %v1800
        %v1888 = vadd.f32 %v1751, %v1802
        %v1889 = vadd.f32 %v1752, %v1804
        %v1890 = vadd.f32 %v1753, %v1817
        %v1891 = vadd.f32 %v1754, %v1819
        %v1892 = vadd.f32 %v1755, %v1821
        %v1893 = vadd.f32 %v1756, %v1829
        %v1894 = vadd.f32 %v1757, %v1831
        %v1895 = vadd.f32 %v1758, %v1833
        %1896 = vrot.lane.b32.xlu0 %v1761, 127
        %v1897 = vpop.permute.xlu0 %1896
        %1898 = vrot.lane.b32.xlu0 %v1763, 127
        %v1899 = vpop.permute.xlu0 %1898
        %1900 = vrot.lane.b32.xlu0 %v1762, 127
        %v1901 = vpop.permute.xlu0 %1900
        %v1905 = vadd.f32 %v1767, %v1897
        %v1906 = vadd.f32 %v1768, %v1899
        %v1907 = vadd.f32 %v1769, %v1901
        %1908 = vrot.lane.b32.xlu0 %v1778, 127
        %v1909 = vpop.permute.xlu0 %1908
        %1910 = vrot.lane.b32.xlu0 %v1780, 127
        %v1911 = vpop.permute.xlu0 %1910
        %1912 = vrot.lane.b32.xlu0 %v1779, 127
        %v1913 = vpop.permute.xlu0 %1912
        %v1917 = vadd.f32 %v1770, %v1909
        %v1918 = vadd.f32 %v1771, %v1911
        %v1919 = vadd.f32 %v1772, %v1913
        %v1920 = vadd.f32 %v1773, %v1800
        %v1921 = vadd.f32 %v1774, %v1802
        %v1922 = vadd.f32 %v1775, %v1804
        %v1923 = vrot.slane %v184, 3
        %v1924 = vrot.slane %v185, 3
        %v1925 = vsel %vm1674, %v1923, %v1924
        %v1926 = vrot.slane %v186, 3
        %v1927 = vsel %vm1674, %v1924, %v1926
        %1928 = vrot.lane.b32.xlu0 %v1925, 127
        %v1929 = vpop.permute.xlu0 %1928
        %1930 = vrot.lane.b32.xlu0 %v1927, 127
        %v1931 = vpop.permute.xlu0 %1930
        %1932 = vrot.lane.b32.xlu0 %v1926, 127
        %v1933 = vpop.permute.xlu0 %1932
        %v1937 = vadd.f32 %v1784, %v1929
        %v1938 = vadd.f32 %v1785, %v1931
        %v1939 = vadd.f32 %v1786, %v1933
        %1940 = vrot.lane.b32.xlu0 %v1677, 126
        %v1941 = vpop.permute.xlu0 %1940
        %1942 = vrot.lane.b32.xlu0 %v1679, 126
        %v1943 = vpop.permute.xlu0 %1942
        %1944 = vrot.lane.b32.xlu0 %v1678, 126
        %v1945 = vpop.permute.xlu0 %1944
        %v1949 = vadd.f32 %v1796, %v1941
        %v1950 = vadd.f32 %v1797, %v1943
        %v1951 = vadd.f32 %v1798, %v1945
        %1952 = vrot.lane.b32.xlu0 %v1761, 126
        %v1953 = vpop.permute.xlu0 %1952
        %1954 = vrot.lane.b32.xlu0 %v1763, 126
        %v1955 = vpop.permute.xlu0 %1954
        %1956 = vrot.lane.b32.xlu0 %v1762, 126
        %v1957 = vpop.permute.xlu0 %1956
        %v1961 = vadd.f32 %v1808, %v1953
        %v1962 = vadd.f32 %v1809, %v1955
        %v1963 = vadd.f32 %v1810, %v1957
        %1964 = vrot.lane.b32.xlu0 %v1813, 126
        %v1965 = vpop.permute.xlu0 %1964
        %1966 = vrot.lane.b32.xlu0 %v1815, 126
        %v1967 = vpop.permute.xlu0 %1966
        %1968 = vrot.lane.b32.xlu0 %v1814, 126
        %v1969 = vpop.permute.xlu0 %1968
        %v1973 = vadd.f32 %v1825, %v1965
        %v1974 = vadd.f32 %v1826, %v1967
        %v1975 = vadd.f32 %v1827, %v1969
        %1976 = vrot.lane.b32.xlu0 %v1688, 126
        %v1977 = vpop.permute.xlu0 %1976
        %1978 = vrot.lane.b32.xlu0 %v1690, 126
        %v1979 = vpop.permute.xlu0 %1978
        %1980 = vrot.lane.b32.xlu0 %v1689, 126
        %v1981 = vpop.permute.xlu0 %1980
        %v1985 = vadd.f32 %v1837, %v1977
        %v1986 = vadd.f32 %v1838, %v1979
        %v1987 = vadd.f32 %v1839, %v1981
        %1988 = vrot.lane.b32.xlu0 %v1713, 126
        %v1989 = vpop.permute.xlu0 %1988
        %1990 = vrot.lane.b32.xlu0 %v1715, 126
        %v1991 = vpop.permute.xlu0 %1990
        %1992 = vrot.lane.b32.xlu0 %v1714, 126
        %v1993 = vpop.permute.xlu0 %1992
        %v1997 = vadd.f32 %v1840, %v1989
        %v1998 = vadd.f32 %v1841, %v1991
        %v1999 = vadd.f32 %v1842, %v1993
        %2000 = vrot.lane.b32.xlu0 %v1925, 126
        %v2001 = vpop.permute.xlu0 %2000
        %2002 = vrot.lane.b32.xlu0 %v1927, 126
        %v2003 = vpop.permute.xlu0 %2002
        %2004 = vrot.lane.b32.xlu0 %v1926, 126
        %v2005 = vpop.permute.xlu0 %2004
        %v2009 = vadd.f32 %v1852, %v2001
        %v2010 = vadd.f32 %v1853, %v2003
        %v2011 = vadd.f32 %v1854, %v2005
        %v2012 = vadd.f32 %v1864, %v1977
        %v2013 = vadd.f32 %v1865, %v1979
        %v2014 = vadd.f32 %v1866, %v1981
        %2015 = vrot.lane.b32.xlu0 %v1724, 126
        %v2016 = vpop.permute.xlu0 %2015
        %2017 = vrot.lane.b32.xlu0 %v1726, 126
        %v2018 = vpop.permute.xlu0 %2017
        %2019 = vrot.lane.b32.xlu0 %v1725, 126
        %v2020 = vpop.permute.xlu0 %2019
        %v2024 = vadd.f32 %v1881, %v2016
        %v2025 = vadd.f32 %v1882, %v2018
        %v2026 = vadd.f32 %v1883, %v2020
        %v2027 = vadd.f32 %v1884, %v1941
        %v2028 = vadd.f32 %v1885, %v1943
        %v2029 = vadd.f32 %v1886, %v1945
        %v2030 = vadd.f32 %v1887, %v1953
        %v2031 = vadd.f32 %v1888, %v1955
        %v2032 = vadd.f32 %v1889, %v1957
        %v2033 = vadd.f32 %v1890, %v1965
        %v2034 = vadd.f32 %v1891, %v1967
        %v2035 = vadd.f32 %v1892, %v1969
        %v2036 = vadd.f32 %v1893, %v1977
        %v2037 = vadd.f32 %v1894, %v1979
        %v2038 = vadd.f32 %v1895, %v1981
        %v2039 = vadd.f32 %v1905, %v1953
        %v2040 = vadd.f32 %v1906, %v1955
        %v2041 = vadd.f32 %v1907, %v1957
        %v2042 = vrot.slane %v187, 3
        %v2043 = vrot.slane %v188, 3
        %v2044 = vsel %vm1674, %v2042, %v2043
        %v2045 = vrot.slane %v189, 3
        %v2046 = vsel %vm1674, %v2043, %v2045
        %2047 = vrot.lane.b32.xlu0 %v2044, 126
        %v2048 = vpop.permute.xlu0 %2047
        %2049 = vrot.lane.b32.xlu0 %v2046, 126
        %v2050 = vpop.permute.xlu0 %2049
        %2051 = vrot.lane.b32.xlu0 %v2045, 126
        %v2052 = vpop.permute.xlu0 %2051
        %v2056 = vadd.f32 %v1917, %v2048
        %v2057 = vadd.f32 %v1918, %v2050
        %v2058 = vadd.f32 %v1919, %v2052
        %2059 = vrot.lane.b32.xlu0 %v1702, 126
        %v2060 = vpop.permute.xlu0 %2059
        %2061 = vrot.lane.b32.xlu0 %v1704, 126
        %v2062 = vpop.permute.xlu0 %2061
        %2063 = vrot.lane.b32.xlu0 %v1703, 126
        %v2064 = vpop.permute.xlu0 %2063
        %v2068 = vadd.f32 %v1920, %v2060
        %v2069 = vadd.f32 %v1921, %v2062
        %v2070 = vadd.f32 %v1922, %v2064
        %2071 = vrot.lane.b32.xlu0 %v1738, 126
        %v2072 = vpop.permute.xlu0 %2071
        %2073 = vrot.lane.b32.xlu0 %v1740, 126
        %v2074 = vpop.permute.xlu0 %2073
        %2075 = vrot.lane.b32.xlu0 %v1739, 126
        %v2076 = vpop.permute.xlu0 %2075
        %v2080 = vadd.f32 %v1937, %v2072
        %v2081 = vadd.f32 %v1938, %v2074
        %v2082 = vadd.f32 %v1939, %v2076
        %2083 = vrot.lane.b32.xlu0 %v1677, 125
        %v2084 = vpop.permute.xlu0 %2083
        %2085 = vrot.lane.b32.xlu0 %v1679, 125
        %v2086 = vpop.permute.xlu0 %2085
        %2087 = vrot.lane.b32.xlu0 %v1678, 125
        %v2088 = vpop.permute.xlu0 %2087
        %v2092 = vadd.f32 %v1949, %v2084
        %v2093 = vadd.f32 %v1950, %v2086
        %v2094 = vadd.f32 %v1951, %v2088
        %2095 = vrot.lane.b32.xlu0 %v1713, 125
        %v2096 = vpop.permute.xlu0 %2095
        %2097 = vrot.lane.b32.xlu0 %v1715, 125
        %v2098 = vpop.permute.xlu0 %2097
        %2099 = vrot.lane.b32.xlu0 %v1714, 125
        %v2100 = vpop.permute.xlu0 %2099
        %v2104 = vadd.f32 %v1961, %v2096
        %v2105 = vadd.f32 %v1962, %v2098
        %v2106 = vadd.f32 %v1963, %v2100
        %v2107 = vadd.f32 %v1973, %v2084
        %v2108 = vadd.f32 %v1974, %v2086
        %v2109 = vadd.f32 %v1975, %v2088
        %2110 = vrot.lane.b32.xlu0 %v1761, 125
        %v2111 = vpop.permute.xlu0 %2110
        %2112 = vrot.lane.b32.xlu0 %v1763, 125
        %v2113 = vpop.permute.xlu0 %2112
        %2114 = vrot.lane.b32.xlu0 %v1762, 125
        %v2115 = vpop.permute.xlu0 %2114
        %v2119 = vadd.f32 %v1985, %v2111
        %v2120 = vadd.f32 %v1986, %v2113
        %v2121 = vadd.f32 %v1987, %v2115
        %v2122 = vadd.f32 %v1997, %v2096
        %v2123 = vadd.f32 %v1998, %v2098
        %v2124 = vadd.f32 %v1999, %v2100
        %2125 = vrot.lane.b32.xlu0 %v1869, 125
        %v2126 = vpop.permute.xlu0 %2125
        %2127 = vrot.lane.b32.xlu0 %v1871, 125
        %v2128 = vpop.permute.xlu0 %2127
        %2129 = vrot.lane.b32.xlu0 %v1870, 125
        %v2130 = vpop.permute.xlu0 %2129
        %v2134 = vadd.f32 %v2009, %v2126
        %v2135 = vadd.f32 %v2010, %v2128
        %v2136 = vadd.f32 %v2011, %v2130
        %v2137 = vadd.f32 %v2012, %v2096
        %v2138 = vadd.f32 %v2013, %v2098
        %v2139 = vadd.f32 %v2014, %v2100
        %2140 = vrot.lane.b32.xlu0 %v1925, 125
        %v2141 = vpop.permute.xlu0 %2140
        %2142 = vrot.lane.b32.xlu0 %v1927, 125
        %v2143 = vpop.permute.xlu0 %2142
        %2144 = vrot.lane.b32.xlu0 %v1926, 125
        %v2145 = vpop.permute.xlu0 %2144
        %v2149 = vadd.f32 %v2024, %v2141
        %v2150 = vadd.f32 %v2025, %v2143
        %v2151 = vadd.f32 %v2026, %v2145
        %v2152 = vadd.f32 %v2027, %v2084
        %v2153 = vadd.f32 %v2028, %v2086
        %v2154 = vadd.f32 %v2029, %v2088
        %v2155 = vadd.f32 %v2030, %v2096
        %v2156 = vadd.f32 %v2031, %v2098
        %v2157 = vadd.f32 %v2032, %v2100
        %v2158 = vadd.f32 %v2033, %v2084
        %v2159 = vadd.f32 %v2034, %v2086
        %v2160 = vadd.f32 %v2035, %v2088
        %v2161 = vadd.f32 %v2036, %v2111
        %v2162 = vadd.f32 %v2037, %v2113
        %v2163 = vadd.f32 %v2038, %v2115
        %v2164 = vadd.f32 %v2039, %v2111
        %v2165 = vadd.f32 %v2040, %v2113
        %v2166 = vadd.f32 %v2041, %v2115
        %v2167 = vadd.f32 %v2056, %v2141
        %v2168 = vadd.f32 %v2057, %v2143
        %v2169 = vadd.f32 %v2058, %v2145
        %v2170 = vadd.f32 %v2068, %v2111
        %v2171 = vadd.f32 %v2069, %v2113
        %v2172 = vadd.f32 %v2070, %v2115
        %2173 = vrot.lane.b32.xlu0 %v2044, 125
        %v2174 = vpop.permute.xlu0 %2173
        %2175 = vrot.lane.b32.xlu0 %v2046, 125
        %v2176 = vpop.permute.xlu0 %2175
        %2177 = vrot.lane.b32.xlu0 %v2045, 125
        %v2178 = vpop.permute.xlu0 %2177
        %v2182 = vadd.f32 %v2080, %v2174
        %v2183 = vadd.f32 %v2081, %v2176
        %v2184 = vadd.f32 %v2082, %v2178
        %v2185 = vmul.f32 %v2092, 1.1111112
        %v2186 = vmul.f32 %v2093, 1.1111112
        %v2187 = vmul.f32 %v2094, 1.1111112
        %v2188 = vmul.f32 %v2185, %v2185
        %v2189 = vmul.f32 %v2186, %v2186
        %v2190 = vmul.f32 %v2187, %v2187
        %v2191 = vmul.f32 %v2188, %v2188
        %v2192 = vmul.f32 %v2189, %v2189
        %v2193 = vmul.f32 %v2190, %v2190
        %v2194 = vmul.f32 %v2191, %v2191
        %v2195 = vmul.f32 %v2192, %v2192
        %v2196 = vmul.f32 %v2193, %v2193
        %v2197 = vmul.f32 %v2194, %v2194
        %v2198 = vmul.f32 %v2195, %v2195
        %v2199 = vmul.f32 %v2196, %v2196
        %v2200 = vmul.f32 %v2197, %v2197
        %v2201 = vmul.f32 %v2198, %v2198
        %v2202 = vmul.f32 %v2199, %v2199
        %v2203 = vmul.f32 %v2200, %v2200
        %v2204 = vmul.f32 %v2201, %v2201
        %v2205 = vmul.f32 %v2202, %v2202
        %v2206 = vand.u32 2147483647, %v2185
        %v2207 = vand.u32 2147483647, %v2186
        %v2208 = vand.u32 2147483647, %v2187
        %vm2209 = vcmp.ge.f32.partialorder %v2206, 1.5
        %vm2210 = vcmp.ge.f32.partialorder %v2207, 1.5
        %vm2211 = vcmp.ge.f32.partialorder %v2208, 1.5
        %v2212 = vadd.f32 %v2203, 1.0
        %v2213 = vadd.f32 %v2204, 1.0
        %v2214 = vadd.f32 %v2205, 1.0
        %v2215 = vrcp.pop %v2212
        %v2216 = vrcp.pop %v2213
        %v2217 = vrcp.pop %v2214
        %v2218 = vmul.f32 %v2203, %v2215
        %v2219 = vmul.f32 %v2204, %v2216
        %v2220 = vmul.f32 %v2205, %v2217
        %v2221 = vsel %vm2209, 1.0, %v2218
        %v2222 = vsel %vm2210, 1.0, %v2219
        %v2223 = vsel %vm2211, 1.0, %v2220
        %v2224 = vmul.f32 %v2092, %v2221
        %v2225 = vmul.f32 %v2093, %v2222
        %v2226 = vmul.f32 %v2094, %v2223
        %v2227 = vmul.f32 %v2104, 1.1111112
        %v2228 = vmul.f32 %v2105, 1.1111112
        %v2229 = vmul.f32 %v2106, 1.1111112
        %v2230 = vmul.f32 %v2227, %v2227
        %v2231 = vmul.f32 %v2228, %v2228
        %v2232 = vmul.f32 %v2229, %v2229
        %v2233 = vmul.f32 %v2230, %v2230
        %v2234 = vmul.f32 %v2231, %v2231
        %v2235 = vmul.f32 %v2232, %v2232
        %v2236 = vmul.f32 %v2233, %v2233
        %v2237 = vmul.f32 %v2234, %v2234
        %v2238 = vmul.f32 %v2235, %v2235
        %v2239 = vmul.f32 %v2236, %v2236
        %v2240 = vmul.f32 %v2237, %v2237
        %v2241 = vmul.f32 %v2238, %v2238
        %v2242 = vmul.f32 %v2239, %v2239
        %v2243 = vmul.f32 %v2240, %v2240
        %v2244 = vmul.f32 %v2241, %v2241
        %v2245 = vmul.f32 %v2242, %v2242
        %v2246 = vmul.f32 %v2243, %v2243
        %v2247 = vmul.f32 %v2244, %v2244
        %v2248 = vand.u32 2147483647, %v2227
        %v2249 = vand.u32 2147483647, %v2228
        %v2250 = vand.u32 2147483647, %v2229
        %vm2251 = vcmp.ge.f32.partialorder %v2248, 1.5
        %vm2252 = vcmp.ge.f32.partialorder %v2249, 1.5
        %vm2253 = vcmp.ge.f32.partialorder %v2250, 1.5
        %v2254 = vadd.f32 %v2245, 1.0
        %v2255 = vadd.f32 %v2246, 1.0
        %v2256 = vadd.f32 %v2247, 1.0
        %v2257 = vrcp.pop %v2254
        %v2258 = vrcp.pop %v2255
        %v2259 = vrcp.pop %v2256
        %v2260 = vmul.f32 %v2245, %v2257
        %v2261 = vmul.f32 %v2246, %v2258
        %v2262 = vmul.f32 %v2247, %v2259
        %v2263 = vsel %vm2251, 1.0, %v2260
        %v2264 = vsel %vm2252, 1.0, %v2261
        %v2265 = vsel %vm2253, 1.0, %v2262
        %v2266 = vmul.f32 %v2104, %v2263
        %v2267 = vmul.f32 %v2105, %v2264
        %v2268 = vmul.f32 %v2106, %v2265
        %v2269 = vadd.f32 %v2221, %v2263
        %v2270 = vadd.f32 %v2222, %v2264
        %v2271 = vadd.f32 %v2223, %v2265
        %v2272 = vmul.f32 %v2107, 1.1111112
        %v2273 = vmul.f32 %v2108, 1.1111112
        %v2274 = vmul.f32 %v2109, 1.1111112
        %v2275 = vmul.f32 %v2272, %v2272
        %v2276 = vmul.f32 %v2273, %v2273
        %v2277 = vmul.f32 %v2274, %v2274
        %v2278 = vmul.f32 %v2275, %v2275
        %v2279 = vmul.f32 %v2276, %v2276
        %v2280 = vmul.f32 %v2277, %v2277
        %v2281 = vmul.f32 %v2278, %v2278
        %v2282 = vmul.f32 %v2279, %v2279
        %v2283 = vmul.f32 %v2280, %v2280
        %v2284 = vmul.f32 %v2281, %v2281
        %v2285 = vmul.f32 %v2282, %v2282
        %v2286 = vmul.f32 %v2283, %v2283
        %v2287 = vmul.f32 %v2284, %v2284
        %v2288 = vmul.f32 %v2285, %v2285
        %v2289 = vmul.f32 %v2286, %v2286
        %v2290 = vmul.f32 %v2287, %v2287
        %v2291 = vmul.f32 %v2288, %v2288
        %v2292 = vmul.f32 %v2289, %v2289
        %v2293 = vand.u32 2147483647, %v2272
        %v2294 = vand.u32 2147483647, %v2273
        %v2295 = vand.u32 2147483647, %v2274
        %vm2296 = vcmp.ge.f32.partialorder %v2293, 1.5
        %vm2297 = vcmp.ge.f32.partialorder %v2294, 1.5
        %vm2298 = vcmp.ge.f32.partialorder %v2295, 1.5
        %v2299 = vadd.f32 %v2290, 1.0
        %v2300 = vadd.f32 %v2291, 1.0
        %v2301 = vadd.f32 %v2292, 1.0
        %v2302 = vrcp.pop %v2299
        %v2303 = vrcp.pop %v2300
        %v2304 = vrcp.pop %v2301
        %v2305 = vmul.f32 %v2290, %v2302
        %v2306 = vmul.f32 %v2291, %v2303
        %v2307 = vmul.f32 %v2292, %v2304
        %v2308 = vsel %vm2296, 1.0, %v2305
        %v2309 = vsel %vm2297, 1.0, %v2306
        %v2310 = vsel %vm2298, 1.0, %v2307
        %v2311 = vmul.f32 %v2107, %v2308
        %v2312 = vmul.f32 %v2108, %v2309
        %v2313 = vmul.f32 %v2109, %v2310
        %v2314 = vadd.f32 %v2269, %v2308
        %v2315 = vadd.f32 %v2270, %v2309
        %v2316 = vadd.f32 %v2271, %v2310
        %v2317 = vmul.f32 %v2119, 1.1111112
        %v2318 = vmul.f32 %v2120, 1.1111112
        %v2319 = vmul.f32 %v2121, 1.1111112
        %v2320 = vmul.f32 %v2317, %v2317
        %v2321 = vmul.f32 %v2318, %v2318
        %v2322 = vmul.f32 %v2319, %v2319
        %v2323 = vmul.f32 %v2320, %v2320
        %v2324 = vmul.f32 %v2321, %v2321
        %v2325 = vmul.f32 %v2322, %v2322
        %v2326 = vmul.f32 %v2323, %v2323
        %v2327 = vmul.f32 %v2324, %v2324
        %v2328 = vmul.f32 %v2325, %v2325
        %v2329 = vmul.f32 %v2326, %v2326
        %v2330 = vmul.f32 %v2327, %v2327
        %v2331 = vmul.f32 %v2328, %v2328
        %v2332 = vmul.f32 %v2329, %v2329
        %v2333 = vmul.f32 %v2330, %v2330
        %v2334 = vmul.f32 %v2331, %v2331
        %v2335 = vmul.f32 %v2332, %v2332
        %v2336 = vmul.f32 %v2333, %v2333
        %v2337 = vmul.f32 %v2334, %v2334
        %v2338 = vand.u32 2147483647, %v2317
        %v2339 = vand.u32 2147483647, %v2318
        %v2340 = vand.u32 2147483647, %v2319
        %vm2341 = vcmp.ge.f32.partialorder %v2338, 1.5
        %vm2342 = vcmp.ge.f32.partialorder %v2339, 1.5
        %vm2343 = vcmp.ge.f32.partialorder %v2340, 1.5
        %v2344 = vadd.f32 %v2335, 1.0
        %v2345 = vadd.f32 %v2336, 1.0
        %v2346 = vadd.f32 %v2337, 1.0
        %v2347 = vrcp.pop %v2344
        %v2348 = vrcp.pop %v2345
        %v2349 = vrcp.pop %v2346
        %v2350 = vmul.f32 %v2335, %v2347
        %v2351 = vmul.f32 %v2336, %v2348
        %v2352 = vmul.f32 %v2337, %v2349
        %v2353 = vsel %vm2341, 1.0, %v2350
        %v2354 = vsel %vm2342, 1.0, %v2351
        %v2355 = vsel %vm2343, 1.0, %v2352
        %v2356 = vmul.f32 %v2119, %v2353
        %v2357 = vmul.f32 %v2120, %v2354
        %v2358 = vmul.f32 %v2121, %v2355
        %v2359 = vadd.f32 %v2314, %v2353
        %v2360 = vadd.f32 %v2315, %v2354
        %v2361 = vadd.f32 %v2316, %v2355
        %v2362 = vmul.f32 %v2122, 1.1111112
        %v2363 = vmul.f32 %v2123, 1.1111112
        %v2364 = vmul.f32 %v2124, 1.1111112
        %v2365 = vmul.f32 %v2362, %v2362
        %v2366 = vmul.f32 %v2363, %v2363
        %v2367 = vmul.f32 %v2364, %v2364
        %v2368 = vmul.f32 %v2365, %v2365
        %v2369 = vmul.f32 %v2366, %v2366
        %v2370 = vmul.f32 %v2367, %v2367
        %v2371 = vmul.f32 %v2368, %v2368
        %v2372 = vmul.f32 %v2369, %v2369
        %v2373 = vmul.f32 %v2370, %v2370
        %v2374 = vmul.f32 %v2371, %v2371
        %v2375 = vmul.f32 %v2372, %v2372
        %v2376 = vmul.f32 %v2373, %v2373
        %v2377 = vmul.f32 %v2374, %v2374
        %v2378 = vmul.f32 %v2375, %v2375
        %v2379 = vmul.f32 %v2376, %v2376
        %v2380 = vmul.f32 %v2377, %v2377
        %v2381 = vmul.f32 %v2378, %v2378
        %v2382 = vmul.f32 %v2379, %v2379
        %v2383 = vand.u32 2147483647, %v2362
        %v2384 = vand.u32 2147483647, %v2363
        %v2385 = vand.u32 2147483647, %v2364
        %vm2386 = vcmp.ge.f32.partialorder %v2383, 1.5
        %vm2387 = vcmp.ge.f32.partialorder %v2384, 1.5
        %vm2388 = vcmp.ge.f32.partialorder %v2385, 1.5
        %v2389 = vadd.f32 %v2380, 1.0
        %v2390 = vadd.f32 %v2381, 1.0
        %v2391 = vadd.f32 %v2382, 1.0
        %v2392 = vrcp.pop %v2389
        %v2393 = vrcp.pop %v2390
        %v2394 = vrcp.pop %v2391
        %v2395 = vmul.f32 %v2380, %v2392
        %v2396 = vmul.f32 %v2381, %v2393
        %v2397 = vmul.f32 %v2382, %v2394
        %v2398 = vsel %vm2386, 1.0, %v2395
        %v2399 = vsel %vm2387, 1.0, %v2396
        %v2400 = vsel %vm2388, 1.0, %v2397
        %v2401 = vmul.f32 %v2122, %v2398
        %v2402 = vmul.f32 %v2123, %v2399
        %v2403 = vmul.f32 %v2124, %v2400
        %v2404 = vadd.f32 %v2359, %v2398
        %v2405 = vadd.f32 %v2360, %v2399
        %v2406 = vadd.f32 %v2361, %v2400
        %v2407 = vmul.f32 %v2134, 1.1111112
        %v2408 = vmul.f32 %v2135, 1.1111112
        %v2409 = vmul.f32 %v2136, 1.1111112
        %v2410 = vmul.f32 %v2407, %v2407
        %v2411 = vmul.f32 %v2408, %v2408
        %v2412 = vmul.f32 %v2409, %v2409
        %v2413 = vmul.f32 %v2410, %v2410
        %v2414 = vmul.f32 %v2411, %v2411
        %v2415 = vmul.f32 %v2412, %v2412
        %v2416 = vmul.f32 %v2413, %v2413
        %v2417 = vmul.f32 %v2414, %v2414
        %v2418 = vmul.f32 %v2415, %v2415
        %v2419 = vmul.f32 %v2416, %v2416
        %v2420 = vmul.f32 %v2417, %v2417
        %v2421 = vmul.f32 %v2418, %v2418
        %v2422 = vmul.f32 %v2419, %v2419
        %v2423 = vmul.f32 %v2420, %v2420
        %v2424 = vmul.f32 %v2421, %v2421
        %v2425 = vmul.f32 %v2422, %v2422
        %v2426 = vmul.f32 %v2423, %v2423
        %v2427 = vmul.f32 %v2424, %v2424
        %v2428 = vand.u32 2147483647, %v2407
        %v2429 = vand.u32 2147483647, %v2408
        %v2430 = vand.u32 2147483647, %v2409
        %vm2431 = vcmp.ge.f32.partialorder %v2428, 1.5
        %vm2432 = vcmp.ge.f32.partialorder %v2429, 1.5
        %vm2433 = vcmp.ge.f32.partialorder %v2430, 1.5
        %v2434 = vadd.f32 %v2425, 1.0
        %v2435 = vadd.f32 %v2426, 1.0
        %v2436 = vadd.f32 %v2427, 1.0
        %v2437 = vrcp.pop %v2434
        %v2438 = vrcp.pop %v2435
        %v2439 = vrcp.pop %v2436
        %v2440 = vmul.f32 %v2425, %v2437
        %v2441 = vmul.f32 %v2426, %v2438
        %v2442 = vmul.f32 %v2427, %v2439
        %v2443 = vsel %vm2431, 1.0, %v2440
        %v2444 = vsel %vm2432, 1.0, %v2441
        %v2445 = vsel %vm2433, 1.0, %v2442
        %v2446 = vmul.f32 %v2134, %v2443
        %v2447 = vmul.f32 %v2135, %v2444
        %v2448 = vmul.f32 %v2136, %v2445
        %v2449 = vadd.f32 %v2404, %v2443
        %v2450 = vadd.f32 %v2405, %v2444
        %v2451 = vadd.f32 %v2406, %v2445
        %v2452 = vmul.f32 %v2137, 1.1111112
        %v2453 = vmul.f32 %v2138, 1.1111112
        %v2454 = vmul.f32 %v2139, 1.1111112
        %v2455 = vmul.f32 %v2452, %v2452
        %v2456 = vmul.f32 %v2453, %v2453
        %v2457 = vmul.f32 %v2454, %v2454
        %v2458 = vmul.f32 %v2455, %v2455
        %v2459 = vmul.f32 %v2456, %v2456
        %v2460 = vmul.f32 %v2457, %v2457
        %v2461 = vmul.f32 %v2458, %v2458
        %v2462 = vmul.f32 %v2459, %v2459
        %v2463 = vmul.f32 %v2460, %v2460
        %v2464 = vmul.f32 %v2461, %v2461
        %v2465 = vmul.f32 %v2462, %v2462
        %v2466 = vmul.f32 %v2463, %v2463
        %v2467 = vmul.f32 %v2464, %v2464
        %v2468 = vmul.f32 %v2465, %v2465
        %v2469 = vmul.f32 %v2466, %v2466
        %v2470 = vmul.f32 %v2467, %v2467
        %v2471 = vmul.f32 %v2468, %v2468
        %v2472 = vmul.f32 %v2469, %v2469
        %v2473 = vand.u32 2147483647, %v2452
        %v2474 = vand.u32 2147483647, %v2453
        %v2475 = vand.u32 2147483647, %v2454
        %vm2476 = vcmp.ge.f32.partialorder %v2473, 1.5
        %vm2477 = vcmp.ge.f32.partialorder %v2474, 1.5
        %vm2478 = vcmp.ge.f32.partialorder %v2475, 1.5
        %v2479 = vadd.f32 %v2470, 1.0
        %v2480 = vadd.f32 %v2471, 1.0
        %v2481 = vadd.f32 %v2472, 1.0
        %v2482 = vrcp.pop %v2479
        %v2483 = vrcp.pop %v2480
        %v2484 = vrcp.pop %v2481
        %v2485 = vmul.f32 %v2470, %v2482
        %v2486 = vmul.f32 %v2471, %v2483
        %v2487 = vmul.f32 %v2472, %v2484
        %v2488 = vsel %vm2476, 1.0, %v2485
        %v2489 = vsel %vm2477, 1.0, %v2486
        %v2490 = vsel %vm2478, 1.0, %v2487
        %v2491 = vmul.f32 %v2137, %v2488
        %v2492 = vmul.f32 %v2138, %v2489
        %v2493 = vmul.f32 %v2139, %v2490
        %v2494 = vadd.f32 %v2449, %v2488
        %v2495 = vadd.f32 %v2450, %v2489
        %v2496 = vadd.f32 %v2451, %v2490
        %v2497 = vmul.f32 %v2149, 1.1111112
        %v2498 = vmul.f32 %v2150, 1.1111112
        %v2499 = vmul.f32 %v2151, 1.1111112
        %v2500 = vmul.f32 %v2497, %v2497
        %v2501 = vmul.f32 %v2498, %v2498
        %v2502 = vmul.f32 %v2499, %v2499
        %v2503 = vmul.f32 %v2500, %v2500
        %v2504 = vmul.f32 %v2501, %v2501
        %v2505 = vmul.f32 %v2502, %v2502
        %v2506 = vmul.f32 %v2503, %v2503
        %v2507 = vmul.f32 %v2504, %v2504
        %v2508 = vmul.f32 %v2505, %v2505
        %v2509 = vmul.f32 %v2506, %v2506
        %v2510 = vmul.f32 %v2507, %v2507
        %v2511 = vmul.f32 %v2508, %v2508
        %v2512 = vmul.f32 %v2509, %v2509
        %v2513 = vmul.f32 %v2510, %v2510
        %v2514 = vmul.f32 %v2511, %v2511
        %v2515 = vmul.f32 %v2512, %v2512
        %v2516 = vmul.f32 %v2513, %v2513
        %v2517 = vmul.f32 %v2514, %v2514
        %v2518 = vand.u32 2147483647, %v2497
        %v2519 = vand.u32 2147483647, %v2498
        %v2520 = vand.u32 2147483647, %v2499
        %vm2521 = vcmp.ge.f32.partialorder %v2518, 1.5
        %vm2522 = vcmp.ge.f32.partialorder %v2519, 1.5
        %vm2523 = vcmp.ge.f32.partialorder %v2520, 1.5
        %v2524 = vadd.f32 %v2515, 1.0
        %v2525 = vadd.f32 %v2516, 1.0
        %v2526 = vadd.f32 %v2517, 1.0
        %v2527 = vrcp.pop %v2524
        %v2528 = vrcp.pop %v2525
        %v2529 = vrcp.pop %v2526
        %v2530 = vmul.f32 %v2515, %v2527
        %v2531 = vmul.f32 %v2516, %v2528
        %v2532 = vmul.f32 %v2517, %v2529
        %v2533 = vsel %vm2521, 1.0, %v2530
        %v2534 = vsel %vm2522, 1.0, %v2531
        %v2535 = vsel %vm2523, 1.0, %v2532
        %v2536 = vmul.f32 %v2149, %v2533
        %v2537 = vmul.f32 %v2150, %v2534
        %v2538 = vmul.f32 %v2151, %v2535
        %v2539 = vadd.f32 %v2494, %v2533
        %v2540 = vadd.f32 %v2495, %v2534
        %v2541 = vadd.f32 %v2496, %v2535
        %v2542 = vmul.f32 %v2152, 1.1111112
        %v2543 = vmul.f32 %v2153, 1.1111112
        %v2544 = vmul.f32 %v2154, 1.1111112
        %v2545 = vmul.f32 %v2542, %v2542
        %v2546 = vmul.f32 %v2543, %v2543
        %v2547 = vmul.f32 %v2544, %v2544
        %v2548 = vmul.f32 %v2545, %v2545
        %v2549 = vmul.f32 %v2546, %v2546
        %v2550 = vmul.f32 %v2547, %v2547
        %v2551 = vmul.f32 %v2548, %v2548
        %v2552 = vmul.f32 %v2549, %v2549
        %v2553 = vmul.f32 %v2550, %v2550
        %v2554 = vmul.f32 %v2551, %v2551
        %v2555 = vmul.f32 %v2552, %v2552
        %v2556 = vmul.f32 %v2553, %v2553
        %v2557 = vmul.f32 %v2554, %v2554
        %v2558 = vmul.f32 %v2555, %v2555
        %v2559 = vmul.f32 %v2556, %v2556
        %v2560 = vmul.f32 %v2557, %v2557
        %v2561 = vmul.f32 %v2558, %v2558
        %v2562 = vmul.f32 %v2559, %v2559
        %v2563 = vand.u32 2147483647, %v2542
        %v2564 = vand.u32 2147483647, %v2543
        %v2565 = vand.u32 2147483647, %v2544
        %vm2566 = vcmp.ge.f32.partialorder %v2563, 1.5
        %vm2567 = vcmp.ge.f32.partialorder %v2564, 1.5
        %vm2568 = vcmp.ge.f32.partialorder %v2565, 1.5
        %v2569 = vadd.f32 %v2560, 1.0
        %v2570 = vadd.f32 %v2561, 1.0
        %v2571 = vadd.f32 %v2562, 1.0
        %v2572 = vrcp.pop %v2569
        %v2573 = vrcp.pop %v2570
        %v2574 = vrcp.pop %v2571
        %v2575 = vmul.f32 %v2560, %v2572
        %v2576 = vmul.f32 %v2561, %v2573
        %v2577 = vmul.f32 %v2562, %v2574
        %v2578 = vsel %vm2566, 1.0, %v2575
        %v2579 = vsel %vm2567, 1.0, %v2576
        %v2580 = vsel %vm2568, 1.0, %v2577
        %v2581 = vmul.f32 %v2152, %v2578
        %v2582 = vmul.f32 %v2153, %v2579
        %v2583 = vmul.f32 %v2154, %v2580
        %v2584 = vadd.f32 %v2539, %v2578
        %v2585 = vadd.f32 %v2540, %v2579
        %v2586 = vadd.f32 %v2541, %v2580
        %v2587 = vmul.f32 %v2155, 1.1111112
        %v2588 = vmul.f32 %v2156, 1.1111112
        %v2589 = vmul.f32 %v2157, 1.1111112
        %v2590 = vmul.f32 %v2587, %v2587
        %v2591 = vmul.f32 %v2588, %v2588
        %v2592 = vmul.f32 %v2589, %v2589
        %v2593 = vmul.f32 %v2590, %v2590
        %v2594 = vmul.f32 %v2591, %v2591
        %v2595 = vmul.f32 %v2592, %v2592
        %v2596 = vmul.f32 %v2593, %v2593
        %v2597 = vmul.f32 %v2594, %v2594
        %v2598 = vmul.f32 %v2595, %v2595
        %v2599 = vmul.f32 %v2596, %v2596
        %v2600 = vmul.f32 %v2597, %v2597
        %v2601 = vmul.f32 %v2598, %v2598
        %v2602 = vmul.f32 %v2599, %v2599
        %v2603 = vmul.f32 %v2600, %v2600
        %v2604 = vmul.f32 %v2601, %v2601
        %v2605 = vmul.f32 %v2602, %v2602
        %v2606 = vmul.f32 %v2603, %v2603
        %v2607 = vmul.f32 %v2604, %v2604
        %v2608 = vand.u32 2147483647, %v2587
        %v2609 = vand.u32 2147483647, %v2588
        %v2610 = vand.u32 2147483647, %v2589
        %vm2611 = vcmp.ge.f32.partialorder %v2608, 1.5
        %vm2612 = vcmp.ge.f32.partialorder %v2609, 1.5
        %vm2613 = vcmp.ge.f32.partialorder %v2610, 1.5
        %v2614 = vadd.f32 %v2605, 1.0
        %v2615 = vadd.f32 %v2606, 1.0
        %v2616 = vadd.f32 %v2607, 1.0
        %v2617 = vrcp.pop %v2614
        %v2618 = vrcp.pop %v2615
        %v2619 = vrcp.pop %v2616
        %v2620 = vmul.f32 %v2605, %v2617
        %v2621 = vmul.f32 %v2606, %v2618
        %v2622 = vmul.f32 %v2607, %v2619
        %v2623 = vsel %vm2611, 1.0, %v2620
        %v2624 = vsel %vm2612, 1.0, %v2621
        %v2625 = vsel %vm2613, 1.0, %v2622
        %v2626 = vmul.f32 %v2155, %v2623
        %v2627 = vmul.f32 %v2156, %v2624
        %v2628 = vmul.f32 %v2157, %v2625
        %v2629 = vadd.f32 %v2584, %v2623
        %v2630 = vadd.f32 %v2585, %v2624
        %v2631 = vadd.f32 %v2586, %v2625
        %v2632 = vmul.f32 %v2158, 1.1111112
        %v2633 = vmul.f32 %v2159, 1.1111112
        %v2634 = vmul.f32 %v2160, 1.1111112
        %v2635 = vmul.f32 %v2632, %v2632
        %v2636 = vmul.f32 %v2633, %v2633
        %v2637 = vmul.f32 %v2634, %v2634
        %v2638 = vmul.f32 %v2635, %v2635
        %v2639 = vmul.f32 %v2636, %v2636
        %v2640 = vmul.f32 %v2637, %v2637
        %v2641 = vmul.f32 %v2638, %v2638
        %v2642 = vmul.f32 %v2639, %v2639
        %v2643 = vmul.f32 %v2640, %v2640
        %v2644 = vmul.f32 %v2641, %v2641
        %v2645 = vmul.f32 %v2642, %v2642
        %v2646 = vmul.f32 %v2643, %v2643
        %v2647 = vmul.f32 %v2644, %v2644
        %v2648 = vmul.f32 %v2645, %v2645
        %v2649 = vmul.f32 %v2646, %v2646
        %v2650 = vmul.f32 %v2647, %v2647
        %v2651 = vmul.f32 %v2648, %v2648
        %v2652 = vmul.f32 %v2649, %v2649
        %v2653 = vand.u32 2147483647, %v2632
        %v2654 = vand.u32 2147483647, %v2633
        %v2655 = vand.u32 2147483647, %v2634
        %vm2656 = vcmp.ge.f32.partialorder %v2653, 1.5
        %vm2657 = vcmp.ge.f32.partialorder %v2654, 1.5
        %vm2658 = vcmp.ge.f32.partialorder %v2655, 1.5
        %v2659 = vadd.f32 %v2650, 1.0
        %v2660 = vadd.f32 %v2651, 1.0
        %v2661 = vadd.f32 %v2652, 1.0
        %v2662 = vrcp.pop %v2659
        %v2663 = vrcp.pop %v2660
        %v2664 = vrcp.pop %v2661
        %v2665 = vmul.f32 %v2650, %v2662
        %v2666 = vmul.f32 %v2651, %v2663
        %v2667 = vmul.f32 %v2652, %v2664
        %v2668 = vsel %vm2656, 1.0, %v2665
        %v2669 = vsel %vm2657, 1.0, %v2666
        %v2670 = vsel %vm2658, 1.0, %v2667
        %v2671 = vmul.f32 %v2158, %v2668
        %v2672 = vmul.f32 %v2159, %v2669
        %v2673 = vmul.f32 %v2160, %v2670
        %v2674 = vadd.f32 %v2629, %v2668
        %v2675 = vadd.f32 %v2630, %v2669
        %v2676 = vadd.f32 %v2631, %v2670
        %v2677 = vmul.f32 %v2161, 1.1111112
        %v2678 = vmul.f32 %v2162, 1.1111112
        %v2679 = vmul.f32 %v2163, 1.1111112
        %v2680 = vmul.f32 %v2677, %v2677
        %v2681 = vmul.f32 %v2678, %v2678
        %v2682 = vmul.f32 %v2679, %v2679
        %v2683 = vmul.f32 %v2680, %v2680
        %v2684 = vmul.f32 %v2681, %v2681
        %v2685 = vmul.f32 %v2682, %v2682
        %v2686 = vmul.f32 %v2683, %v2683
        %v2687 = vmul.f32 %v2684, %v2684
        %v2688 = vmul.f32 %v2685, %v2685
        %v2689 = vmul.f32 %v2686, %v2686
        %v2690 = vmul.f32 %v2687, %v2687
        %v2691 = vmul.f32 %v2688, %v2688
        %v2692 = vmul.f32 %v2689, %v2689
        %v2693 = vmul.f32 %v2690, %v2690
        %v2694 = vmul.f32 %v2691, %v2691
        %v2695 = vmul.f32 %v2692, %v2692
        %v2696 = vmul.f32 %v2693, %v2693
        %v2697 = vmul.f32 %v2694, %v2694
        %v2698 = vand.u32 2147483647, %v2677
        %v2699 = vand.u32 2147483647, %v2678
        %v2700 = vand.u32 2147483647, %v2679
        %vm2701 = vcmp.ge.f32.partialorder %v2698, 1.5
        %vm2702 = vcmp.ge.f32.partialorder %v2699, 1.5
        %vm2703 = vcmp.ge.f32.partialorder %v2700, 1.5
        %v2704 = vadd.f32 %v2695, 1.0
        %v2705 = vadd.f32 %v2696, 1.0
        %v2706 = vadd.f32 %v2697, 1.0
        %v2707 = vrcp.pop %v2704
        %v2708 = vrcp.pop %v2705
        %v2709 = vrcp.pop %v2706
        %v2710 = vmul.f32 %v2695, %v2707
        %v2711 = vmul.f32 %v2696, %v2708
        %v2712 = vmul.f32 %v2697, %v2709
        %v2713 = vsel %vm2701, 1.0, %v2710
        %v2714 = vsel %vm2702, 1.0, %v2711
        %v2715 = vsel %vm2703, 1.0, %v2712
        %v2716 = vmul.f32 %v2161, %v2713
        %v2717 = vmul.f32 %v2162, %v2714
        %v2718 = vmul.f32 %v2163, %v2715
        %v2719 = vadd.f32 %v2674, %v2713
        %v2720 = vadd.f32 %v2675, %v2714
        %v2721 = vadd.f32 %v2676, %v2715
        %v2722 = vmul.f32 %v2164, 1.1111112
        %v2723 = vmul.f32 %v2165, 1.1111112
        %v2724 = vmul.f32 %v2166, 1.1111112
        %v2725 = vmul.f32 %v2722, %v2722
        %v2726 = vmul.f32 %v2723, %v2723
        %v2727 = vmul.f32 %v2724, %v2724
        %v2728 = vmul.f32 %v2725, %v2725
        %v2729 = vmul.f32 %v2726, %v2726
        %v2730 = vmul.f32 %v2727, %v2727
        %v2731 = vmul.f32 %v2728, %v2728
        %v2732 = vmul.f32 %v2729, %v2729
        %v2733 = vmul.f32 %v2730, %v2730
        %v2734 = vmul.f32 %v2731, %v2731
        %v2735 = vmul.f32 %v2732, %v2732
        %v2736 = vmul.f32 %v2733, %v2733
        %v2737 = vmul.f32 %v2734, %v2734
        %v2738 = vmul.f32 %v2735, %v2735
        %v2739 = vmul.f32 %v2736, %v2736
        %v2740 = vmul.f32 %v2737, %v2737
        %v2741 = vmul.f32 %v2738, %v2738
        %v2742 = vmul.f32 %v2739, %v2739
        %v2743 = vand.u32 2147483647, %v2722
        %v2744 = vand.u32 2147483647, %v2723
        %v2745 = vand.u32 2147483647, %v2724
        %vm2746 = vcmp.ge.f32.partialorder %v2743, 1.5
        %vm2747 = vcmp.ge.f32.partialorder %v2744, 1.5
        %vm2748 = vcmp.ge.f32.partialorder %v2745, 1.5
        %v2749 = vadd.f32 %v2740, 1.0
        %v2750 = vadd.f32 %v2741, 1.0
        %v2751 = vadd.f32 %v2742, 1.0
        %v2752 = vrcp.pop %v2749
        %v2753 = vrcp.pop %v2750
        %v2754 = vrcp.pop %v2751
        %v2755 = vmul.f32 %v2740, %v2752
        %v2756 = vmul.f32 %v2741, %v2753
        %v2757 = vmul.f32 %v2742, %v2754
        %v2758 = vsel %vm2746, 1.0, %v2755
        %v2759 = vsel %vm2747, 1.0, %v2756
        %v2760 = vsel %vm2748, 1.0, %v2757
        %v2761 = vmul.f32 %v2164, %v2758
        %v2762 = vmul.f32 %v2165, %v2759
        %v2763 = vmul.f32 %v2166, %v2760
        %v2764 = vadd.f32 %v2719, %v2758
        %v2765 = vadd.f32 %v2720, %v2759
        %v2766 = vadd.f32 %v2721, %v2760
        %v2767 = vmul.f32 %v2167, 1.1111112
        %v2768 = vmul.f32 %v2168, 1.1111112
        %v2769 = vmul.f32 %v2169, 1.1111112
        %v2770 = vmul.f32 %v2767, %v2767
        %v2771 = vmul.f32 %v2768, %v2768
        %v2772 = vmul.f32 %v2769, %v2769
        %v2773 = vmul.f32 %v2770, %v2770
        %v2774 = vmul.f32 %v2771, %v2771
        %v2775 = vmul.f32 %v2772, %v2772
        %v2776 = vmul.f32 %v2773, %v2773
        %v2777 = vmul.f32 %v2774, %v2774
        %v2778 = vmul.f32 %v2775, %v2775
        %v2779 = vmul.f32 %v2776, %v2776
        %v2780 = vmul.f32 %v2777, %v2777
        %v2781 = vmul.f32 %v2778, %v2778
        %v2782 = vmul.f32 %v2779, %v2779
        %v2783 = vmul.f32 %v2780, %v2780
        %v2784 = vmul.f32 %v2781, %v2781
        %v2785 = vmul.f32 %v2782, %v2782
        %v2786 = vmul.f32 %v2783, %v2783
        %v2787 = vmul.f32 %v2784, %v2784
        %v2788 = vand.u32 2147483647, %v2767
        %v2789 = vand.u32 2147483647, %v2768
        %v2790 = vand.u32 2147483647, %v2769
        %vm2791 = vcmp.ge.f32.partialorder %v2788, 1.5
        %vm2792 = vcmp.ge.f32.partialorder %v2789, 1.5
        %vm2793 = vcmp.ge.f32.partialorder %v2790, 1.5
        %v2794 = vadd.f32 %v2785, 1.0
        %v2795 = vadd.f32 %v2786, 1.0
        %v2796 = vadd.f32 %v2787, 1.0
        %v2797 = vrcp.pop %v2794
        %v2798 = vrcp.pop %v2795
        %v2799 = vrcp.pop %v2796
        %v2800 = vmul.f32 %v2785, %v2797
        %v2801 = vmul.f32 %v2786, %v2798
        %v2802 = vmul.f32 %v2787, %v2799
        %v2803 = vsel %vm2791, 1.0, %v2800
        %v2804 = vsel %vm2792, 1.0, %v2801
        %v2805 = vsel %vm2793, 1.0, %v2802
        %v2806 = vmul.f32 %v2167, %v2803
        %v2807 = vmul.f32 %v2168, %v2804
        %v2808 = vmul.f32 %v2169, %v2805
        %v2809 = vadd.f32 %v2764, %v2803
        %v2810 = vadd.f32 %v2765, %v2804
        %v2811 = vadd.f32 %v2766, %v2805
        %v2812 = vmul.f32 %v2170, 1.1111112
        %v2813 = vmul.f32 %v2171, 1.1111112
        %v2814 = vmul.f32 %v2172, 1.1111112
        %v2815 = vmul.f32 %v2812, %v2812
        %v2816 = vmul.f32 %v2813, %v2813
        %v2817 = vmul.f32 %v2814, %v2814
        %v2818 = vmul.f32 %v2815, %v2815
        %v2819 = vmul.f32 %v2816, %v2816
        %v2820 = vmul.f32 %v2817, %v2817
        %v2821 = vmul.f32 %v2818, %v2818
        %v2822 = vmul.f32 %v2819, %v2819
        %v2823 = vmul.f32 %v2820, %v2820
        %v2824 = vmul.f32 %v2821, %v2821
        %v2825 = vmul.f32 %v2822, %v2822
        %v2826 = vmul.f32 %v2823, %v2823
        %v2827 = vmul.f32 %v2824, %v2824
        %v2828 = vmul.f32 %v2825, %v2825
        %v2829 = vmul.f32 %v2826, %v2826
        %v2830 = vmul.f32 %v2827, %v2827
        %v2831 = vmul.f32 %v2828, %v2828
        %v2832 = vmul.f32 %v2829, %v2829
        %v2833 = vand.u32 2147483647, %v2812
        %v2834 = vand.u32 2147483647, %v2813
        %v2835 = vand.u32 2147483647, %v2814
        %vm2836 = vcmp.ge.f32.partialorder %v2833, 1.5
        %vm2837 = vcmp.ge.f32.partialorder %v2834, 1.5
        %vm2838 = vcmp.ge.f32.partialorder %v2835, 1.5
        %v2839 = vadd.f32 %v2830, 1.0
        %v2840 = vadd.f32 %v2831, 1.0
        %v2841 = vadd.f32 %v2832, 1.0
        %v2842 = vrcp.pop %v2839
        %v2843 = vrcp.pop %v2840
        %v2844 = vrcp.pop %v2841
        %v2845 = vmul.f32 %v2830, %v2842
        %v2846 = vmul.f32 %v2831, %v2843
        %v2847 = vmul.f32 %v2832, %v2844
        %v2848 = vsel %vm2836, 1.0, %v2845
        %v2849 = vsel %vm2837, 1.0, %v2846
        %v2850 = vsel %vm2838, 1.0, %v2847
        %v2851 = vmul.f32 %v2170, %v2848
        %v2852 = vmul.f32 %v2171, %v2849
        %v2853 = vmul.f32 %v2172, %v2850
        %v2854 = vadd.f32 %v2809, %v2848
        %v2855 = vadd.f32 %v2810, %v2849
        %v2856 = vadd.f32 %v2811, %v2850
        %v2857 = vmul.f32 %v2182, 1.1111112
        %v2858 = vmul.f32 %v2183, 1.1111112
        %v2859 = vmul.f32 %v2184, 1.1111112
        %v2860 = vmul.f32 %v2857, %v2857
        %v2861 = vmul.f32 %v2858, %v2858
        %v2862 = vmul.f32 %v2859, %v2859
        %v2863 = vmul.f32 %v2860, %v2860
        %v2864 = vmul.f32 %v2861, %v2861
        %v2865 = vmul.f32 %v2862, %v2862
        %v2866 = vmul.f32 %v2863, %v2863
        %v2867 = vmul.f32 %v2864, %v2864
        %v2868 = vmul.f32 %v2865, %v2865
        %v2869 = vmul.f32 %v2866, %v2866
        %v2870 = vmul.f32 %v2867, %v2867
        %v2871 = vmul.f32 %v2868, %v2868
        %v2872 = vmul.f32 %v2869, %v2869
        %v2873 = vmul.f32 %v2870, %v2870
        %v2874 = vmul.f32 %v2871, %v2871
        %v2875 = vmul.f32 %v2872, %v2872
        %v2876 = vmul.f32 %v2873, %v2873
        %v2877 = vmul.f32 %v2874, %v2874
        %v2878 = vand.u32 2147483647, %v2857
        %v2879 = vand.u32 2147483647, %v2858
        %v2880 = vand.u32 2147483647, %v2859
        %vm2881 = vcmp.ge.f32.partialorder %v2878, 1.5
        %vm2882 = vcmp.ge.f32.partialorder %v2879, 1.5
        %vm2883 = vcmp.ge.f32.partialorder %v2880, 1.5
        %v2884 = vadd.f32 %v2875, 1.0
        %v2885 = vadd.f32 %v2876, 1.0
        %v2886 = vadd.f32 %v2877, 1.0
        %v2887 = vrcp.pop %v2884
        %v2888 = vrcp.pop %v2885
        %v2889 = vrcp.pop %v2886
        %v2890 = vmul.f32 %v2875, %v2887
        %v2891 = vmul.f32 %v2876, %v2888
        %v2892 = vmul.f32 %v2877, %v2889
        %v2893 = vsel %vm2881, 1.0, %v2890
        %v2894 = vsel %vm2882, 1.0, %v2891
        %v2895 = vsel %vm2883, 1.0, %v2892
        %v2896 = vmul.f32 %v2182, %v2893
        %v2897 = vmul.f32 %v2183, %v2894
        %v2898 = vmul.f32 %v2184, %v2895
        %v2899 = vadd.f32 %v2854, %v2893
        %v2900 = vadd.f32 %v2855, %v2894
        %v2901 = vadd.f32 %v2856, %v2895
        %v2902 = vlaneseq
        %v2903 = vshrl.u32 %v2902, 7
        %v2904 = vadd.s32 %v2903, 8
        %v2905 = vadd.s32 %v2903, 16
        %v2906 = vstv %s167
        %v2907 = vadd.s32 %v2903, %v2906
        %v2908 = vadd.s32 %v2904, %v2906
        %v2909 = vadd.s32 %v2905, %v2906
        %v2910 = vlaneseq
        %v2911 = vand.u32 %v2910, 127
        %v2912 = vstv %s168
        %v2913 = vadd.s32 %v2911, %v2912
        %vm2914 = vcmp.ge.s32.totalorder %v2907, 3
        %vm2915 = vcmp.ge.s32.totalorder %v2908, 3
        %vm2916 = vcmp.ge.s32.totalorder %v2909, 3
        %vm2917 = vcmp.le.s32.totalorder %v2907, 31
        %vm2918 = vcmp.le.s32.totalorder %v2908, 31
        %vm2919 = vcmp.le.s32.totalorder %v2909, 31
        %vm2920 = vmand %vm2914, %vm2917
        %vm2921 = vmand %vm2915, %vm2918
        %vm2922 = vmand %vm2916, %vm2919
        %vm2923 = vcmp.ge.s32.totalorder %v2913, 3
        %vm2924 = vmand %vm2920, %vm2923
        %vm2925 = vmand %vm2921, %vm2923
        %vm2926 = vmand %vm2922, %vm2923
        %vm2927 = vcmp.le.s32.totalorder %v2913, 31
        %vm2928 = vmand %vm2924, %vm2927
        %vm2929 = vmand %vm2925, %vm2927
        %vm2930 = vmand %vm2926, %vm2927
        %v2931 = vadd.f32 %v2899, 1.0
        %v2932 = vadd.f32 %v2900, 1.0
        %v2933 = vadd.f32 %v2901, 1.0
        %v2934 = vrcp.pop %v2931
        %v2935 = vrcp.pop %v2932
        %v2936 = vrcp.pop %v2933
        %v2937 = vsel %vm2928, %v2934, 0.0
        %v2938 = vsel %vm2929, %v2935, 0.0
        %v2939 = vsel %vm2930, %v2936, 0.0
        %v2940 = vmul.f32 %v2224, 0.25
        %v2941 = vmul.f32 %v2225, 0.25
        %v2942 = vmul.f32 %v2226, 0.25
        %v2943 = vmul.f32 %v2266, 0.32664073
        %v2944 = vmul.f32 %v2267, 0.32664073
        %v2945 = vmul.f32 %v2268, 0.32664073
        %v2946 = vadd.f32 %v2940, %v2943
        %v2947 = vadd.f32 %v2941, %v2944
        %v2948 = vadd.f32 %v2942, %v2945
        %v2949 = vmul.f32 %v2266, 0.13529901
        %v2950 = vmul.f32 %v2267, 0.13529901
        %v2951 = vmul.f32 %v2268, 0.13529901
        %v2952 = vadd.f32 %v2940, %v2949
        %v2953 = vadd.f32 %v2941, %v2950
        %v2954 = vadd.f32 %v2942, %v2951
        %v2955 = vmul.f32 %v2266, -0.13529901
        %v2956 = vmul.f32 %v2267, -0.13529901
        %v2957 = vmul.f32 %v2268, -0.13529901
        %v2958 = vadd.f32 %v2940, %v2955
        %v2959 = vadd.f32 %v2941, %v2956
        %v2960 = vadd.f32 %v2942, %v2957
        %v2961 = vmul.f32 %v2266, -0.32664073
        %v2962 = vmul.f32 %v2267, -0.32664073
        %v2963 = vmul.f32 %v2268, -0.32664073
        %v2964 = vadd.f32 %v2940, %v2961
        %v2965 = vadd.f32 %v2941, %v2962
        %v2966 = vadd.f32 %v2942, %v2963
        %v2967 = vmul.f32 %v2311, 0.25
        %v2968 = vmul.f32 %v2312, 0.25
        %v2969 = vmul.f32 %v2313, 0.25
        %v2970 = vadd.f32 %v2946, %v2967
        %v2971 = vadd.f32 %v2947, %v2968
        %v2972 = vadd.f32 %v2948, %v2969
        %v2973 = vmul.f32 %v2311, -0.25
        %v2974 = vmul.f32 %v2312, -0.25
        %v2975 = vmul.f32 %v2313, -0.25
        %v2976 = vadd.f32 %v2952, %v2973
        %v2977 = vadd.f32 %v2953, %v2974
        %v2978 = vadd.f32 %v2954, %v2975
        %v2979 = vadd.f32 %v2958, %v2973
        %v2980 = vadd.f32 %v2959, %v2974
        %v2981 = vadd.f32 %v2960, %v2975
        %v2982 = vadd.f32 %v2964, %v2967
        %v2983 = vadd.f32 %v2965, %v2968
        %v2984 = vadd.f32 %v2966, %v2969
        %v2985 = vmul.f32 %v2356, 0.13529901
        %v2986 = vmul.f32 %v2357, 0.13529901
        %v2987 = vmul.f32 %v2358, 0.13529901
        %v2988 = vadd.f32 %v2970, %v2985
        %v2989 = vadd.f32 %v2971, %v2986
        %v2990 = vadd.f32 %v2972, %v2987
        %v2991 = vmul.f32 %v2356, -0.32664073
        %v2992 = vmul.f32 %v2357, -0.32664073
        %v2993 = vmul.f32 %v2358, -0.32664073
        %v2994 = vadd.f32 %v2976, %v2991
        %v2995 = vadd.f32 %v2977, %v2992
        %v2996 = vadd.f32 %v2978, %v2993
        %v2997 = vmul.f32 %v2356, 0.32664073
        %v2998 = vmul.f32 %v2357, 0.32664073
        %v2999 = vmul.f32 %v2358, 0.32664073
        %v3000 = vadd.f32 %v2979, %v2997
        %v3001 = vadd.f32 %v2980, %v2998
        %v3002 = vadd.f32 %v2981, %v2999
        %v3003 = vmul.f32 %v2356, -0.13529901
        %v3004 = vmul.f32 %v2357, -0.13529901
        %v3005 = vmul.f32 %v2358, -0.13529901
        %v3006 = vadd.f32 %v2982, %v3003
        %v3007 = vadd.f32 %v2983, %v3004
        %v3008 = vadd.f32 %v2984, %v3005
        %v3009 = vmul.f32 %v2401, 0.32664073
        %v3010 = vmul.f32 %v2402, 0.32664073
        %v3011 = vmul.f32 %v2403, 0.32664073
        %v3012 = vadd.f32 %v2988, %v3009
        %v3013 = vadd.f32 %v2989, %v3010
        %v3014 = vadd.f32 %v2990, %v3011
        %v3015 = vadd.f32 %v2994, %v3009
        %v3016 = vadd.f32 %v2995, %v3010
        %v3017 = vadd.f32 %v2996, %v3011
        %v3018 = vadd.f32 %v3000, %v3009
        %v3019 = vadd.f32 %v3001, %v3010
        %v3020 = vadd.f32 %v3002, %v3011
        %v3021 = vadd.f32 %v3006, %v3009
        %v3022 = vadd.f32 %v3007, %v3010
        %v3023 = vadd.f32 %v3008, %v3011
        %v3024 = vmul.f32 %v2446, 0.42677668
        %v3025 = vmul.f32 %v2447, 0.42677668
        %v3026 = vmul.f32 %v2448, 0.42677668
        %v3027 = vadd.f32 %v3012, %v3024
        %v3028 = vadd.f32 %v3013, %v3025
        %v3029 = vadd.f32 %v3014, %v3026
        %v3030 = vmul.f32 %v2446, 0.17677669
        %v3031 = vmul.f32 %v2447, 0.17677669
        %v3032 = vmul.f32 %v2448, 0.17677669
        %v3033 = vadd.f32 %v3015, %v3030
        %v3034 = vadd.f32 %v3016, %v3031
        %v3035 = vadd.f32 %v3017, %v3032
        %v3036 = vmul.f32 %v2446, -0.17677669
        %v3037 = vmul.f32 %v2447, -0.17677669
        %v3038 = vmul.f32 %v2448, -0.17677669
        %v3039 = vadd.f32 %v3018, %v3036
        %v3040 = vadd.f32 %v3019, %v3037
        %v3041 = vadd.f32 %v3020, %v3038
        %v3042 = vmul.f32 %v2446, -0.42677668
        %v3043 = vmul.f32 %v2447, -0.42677668
        %v3044 = vmul.f32 %v2448, -0.42677668
        %v3045 = vadd.f32 %v3021, %v3042
        %v3046 = vadd.f32 %v3022, %v3043
        %v3047 = vadd.f32 %v3023, %v3044
        %v3048 = vmul.f32 %v2491, 0.32664073
        %v3049 = vmul.f32 %v2492, 0.32664073
        %v3050 = vmul.f32 %v2493, 0.32664073
        %v3051 = vadd.f32 %v3027, %v3048
        %v3052 = vadd.f32 %v3028, %v3049
        %v3053 = vadd.f32 %v3029, %v3050
        %v3054 = vmul.f32 %v2491, -0.32664073
        %v3055 = vmul.f32 %v2492, -0.32664073
        %v3056 = vmul.f32 %v2493, -0.32664073
        %v3057 = vadd.f32 %v3033, %v3054
        %v3058 = vadd.f32 %v3034, %v3055
        %v3059 = vadd.f32 %v3035, %v3056
        %v3060 = vadd.f32 %v3039, %v3054
        %v3061 = vadd.f32 %v3040, %v3055
        %v3062 = vadd.f32 %v3041, %v3056
        %v3063 = vadd.f32 %v3045, %v3048
        %v3064 = vadd.f32 %v3046, %v3049
        %v3065 = vadd.f32 %v3047, %v3050
        %v3066 = vmul.f32 %v2536, 0.17677669
        %v3067 = vmul.f32 %v2537, 0.17677669
        %v3068 = vmul.f32 %v2538, 0.17677669
        %v3069 = vadd.f32 %v3051, %v3066
        %v3070 = vadd.f32 %v3052, %v3067
        %v3071 = vadd.f32 %v3053, %v3068
        %v3072 = vmul.f32 %v2536, -0.42677668
        %v3073 = vmul.f32 %v2537, -0.42677668
        %v3074 = vmul.f32 %v2538, -0.42677668
        %v3075 = vadd.f32 %v3057, %v3072
        %v3076 = vadd.f32 %v3058, %v3073
        %v3077 = vadd.f32 %v3059, %v3074
        %v3078 = vmul.f32 %v2536, 0.42677668
        %v3079 = vmul.f32 %v2537, 0.42677668
        %v3080 = vmul.f32 %v2538, 0.42677668
        %v3081 = vadd.f32 %v3060, %v3078
        %v3082 = vadd.f32 %v3061, %v3079
        %v3083 = vadd.f32 %v3062, %v3080
        %v3084 = vmul.f32 %v2536, -0.17677669
        %v3085 = vmul.f32 %v2537, -0.17677669
        %v3086 = vmul.f32 %v2538, -0.17677669
        %v3087 = vadd.f32 %v3063, %v3084
        %v3088 = vadd.f32 %v3064, %v3085
        %v3089 = vadd.f32 %v3065, %v3086
        %v3090 = vmul.f32 %v2581, 0.25
        %v3091 = vmul.f32 %v2582, 0.25
        %v3092 = vmul.f32 %v2583, 0.25
        %v3093 = vadd.f32 %v3069, %v3090
        %v3094 = vadd.f32 %v3070, %v3091
        %v3095 = vadd.f32 %v3071, %v3092
        %v3096 = vadd.f32 %v3075, %v3090
        %v3097 = vadd.f32 %v3076, %v3091
        %v3098 = vadd.f32 %v3077, %v3092
        %v3099 = vadd.f32 %v3081, %v3090
        %v3100 = vadd.f32 %v3082, %v3091
        %v3101 = vadd.f32 %v3083, %v3092
        %v3102 = vadd.f32 %v3087, %v3090
        %v3103 = vadd.f32 %v3088, %v3091
        %v3104 = vadd.f32 %v3089, %v3092
        %v3105 = vmul.f32 %v2626, 0.32664073
        %v3106 = vmul.f32 %v2627, 0.32664073
        %v3107 = vmul.f32 %v2628, 0.32664073
        %v3108 = vadd.f32 %v3093, %v3105
        %v3109 = vadd.f32 %v3094, %v3106
        %v3110 = vadd.f32 %v3095, %v3107
        %v3111 = vmul.f32 %v2626, 0.13529901
        %v3112 = vmul.f32 %v2627, 0.13529901
        %v3113 = vmul.f32 %v2628, 0.13529901
        %v3114 = vadd.f32 %v3096, %v3111
        %v3115 = vadd.f32 %v3097, %v3112
        %v3116 = vadd.f32 %v3098, %v3113
        %v3117 = vmul.f32 %v2626, -0.13529901
        %v3118 = vmul.f32 %v2627, -0.13529901
        %v3119 = vmul.f32 %v2628, -0.13529901
        %v3120 = vadd.f32 %v3099, %v3117
        %v3121 = vadd.f32 %v3100, %v3118
        %v3122 = vadd.f32 %v3101, %v3119
        %v3123 = vmul.f32 %v2626, -0.32664073
        %v3124 = vmul.f32 %v2627, -0.32664073
        %v3125 = vmul.f32 %v2628, -0.32664073
        %v3126 = vadd.f32 %v3102, %v3123
        %v3127 = vadd.f32 %v3103, %v3124
        %v3128 = vadd.f32 %v3104, %v3125
        %v3129 = vmul.f32 %v2671, 0.25
        %v3130 = vmul.f32 %v2672, 0.25
        %v3131 = vmul.f32 %v2673, 0.25
        %v3132 = vadd.f32 %v3108, %v3129
        %v3133 = vadd.f32 %v3109, %v3130
        %v3134 = vadd.f32 %v3110, %v3131
        %v3135 = vmul.f32 %v2671, -0.25
        %v3136 = vmul.f32 %v2672, -0.25
        %v3137 = vmul.f32 %v2673, -0.25
        %v3138 = vadd.f32 %v3114, %v3135
        %v3139 = vadd.f32 %v3115, %v3136
        %v3140 = vadd.f32 %v3116, %v3137
        %v3141 = vadd.f32 %v3120, %v3135
        %v3142 = vadd.f32 %v3121, %v3136
        %v3143 = vadd.f32 %v3122, %v3137
        %v3144 = vadd.f32 %v3126, %v3129
        %v3145 = vadd.f32 %v3127, %v3130
        %v3146 = vadd.f32 %v3128, %v3131
        %v3147 = vmul.f32 %v2716, 0.13529901
        %v3148 = vmul.f32 %v2717, 0.13529901
        %v3149 = vmul.f32 %v2718, 0.13529901
        %v3150 = vadd.f32 %v3132, %v3147
        %v3151 = vadd.f32 %v3133, %v3148
        %v3152 = vadd.f32 %v3134, %v3149
        %v3153 = vmul.f32 %v2716, -0.32664073
        %v3154 = vmul.f32 %v2717, -0.32664073
        %v3155 = vmul.f32 %v2718, -0.32664073
        %v3156 = vadd.f32 %v3138, %v3153
        %v3157 = vadd.f32 %v3139, %v3154
        %v3158 = vadd.f32 %v3140, %v3155
        %v3159 = vmul.f32 %v2716, 0.32664073
        %v3160 = vmul.f32 %v2717, 0.32664073
        %v3161 = vmul.f32 %v2718, 0.32664073
        %v3162 = vadd.f32 %v3141, %v3159
        %v3163 = vadd.f32 %v3142, %v3160
        %v3164 = vadd.f32 %v3143, %v3161
        %v3165 = vmul.f32 %v2716, -0.13529901
        %v3166 = vmul.f32 %v2717, -0.13529901
        %v3167 = vmul.f32 %v2718, -0.13529901
        %v3168 = vadd.f32 %v3144, %v3165
        %v3169 = vadd.f32 %v3145, %v3166
        %v3170 = vadd.f32 %v3146, %v3167
        %v3171 = vmul.f32 %v2761, 0.13529901
        %v3172 = vmul.f32 %v2762, 0.13529901
        %v3173 = vmul.f32 %v2763, 0.13529901
        %v3174 = vadd.f32 %v3150, %v3171
        %v3175 = vadd.f32 %v3151, %v3172
        %v3176 = vadd.f32 %v3152, %v3173
        %v3177 = vadd.f32 %v3156, %v3171
        %v3178 = vadd.f32 %v3157, %v3172
        %v3179 = vadd.f32 %v3158, %v3173
        %v3180 = vadd.f32 %v3162, %v3171
        %v3181 = vadd.f32 %v3163, %v3172
        %v3182 = vadd.f32 %v3164, %v3173
        %v3183 = vadd.f32 %v3168, %v3171
        %v3184 = vadd.f32 %v3169, %v3172
        %v3185 = vadd.f32 %v3170, %v3173
        %v3186 = vmul.f32 %v2806, 0.17677669
        %v3187 = vmul.f32 %v2807, 0.17677669
        %v3188 = vmul.f32 %v2808, 0.17677669
        %v3189 = vadd.f32 %v3174, %v3186
        %v3190 = vadd.f32 %v3175, %v3187
        %v3191 = vadd.f32 %v3176, %v3188
        %v3192 = vmul.f32 %v2806, 0.07322329
        %v3193 = vmul.f32 %v2807, 0.07322329
        %v3194 = vmul.f32 %v2808, 0.07322329
        %v3195 = vadd.f32 %v3177, %v3192
        %v3196 = vadd.f32 %v3178, %v3193
        %v3197 = vadd.f32 %v3179, %v3194
        %v3198 = vmul.f32 %v2806, -0.07322329
        %v3199 = vmul.f32 %v2807, -0.07322329
        %v3200 = vmul.f32 %v2808, -0.07322329
        %v3201 = vadd.f32 %v3180, %v3198
        %v3202 = vadd.f32 %v3181, %v3199
        %v3203 = vadd.f32 %v3182, %v3200
        %v3204 = vmul.f32 %v2806, -0.17677669
        %v3205 = vmul.f32 %v2807, -0.17677669
        %v3206 = vmul.f32 %v2808, -0.17677669
        %v3207 = vadd.f32 %v3183, %v3204
        %v3208 = vadd.f32 %v3184, %v3205
        %v3209 = vadd.f32 %v3185, %v3206
        %v3210 = vmul.f32 %v2851, 0.13529901
        %v3211 = vmul.f32 %v2852, 0.13529901
        %v3212 = vmul.f32 %v2853, 0.13529901
        %v3213 = vadd.f32 %v3189, %v3210
        %v3214 = vadd.f32 %v3190, %v3211
        %v3215 = vadd.f32 %v3191, %v3212
        %v3216 = vmul.f32 %v2851, -0.13529901
        %v3217 = vmul.f32 %v2852, -0.13529901
        %v3218 = vmul.f32 %v2853, -0.13529901
        %v3219 = vadd.f32 %v3195, %v3216
        %v3220 = vadd.f32 %v3196, %v3217
        %v3221 = vadd.f32 %v3197, %v3218
        %v3222 = vadd.f32 %v3201, %v3216
        %v3223 = vadd.f32 %v3202, %v3217
        %v3224 = vadd.f32 %v3203, %v3218
        %v3225 = vadd.f32 %v3207, %v3210
        %v3226 = vadd.f32 %v3208, %v3211
        %v3227 = vadd.f32 %v3209, %v3212
        %v3228 = vmul.f32 %v2896, 0.07322329
        %v3229 = vmul.f32 %v2897, 0.07322329
        %v3230 = vmul.f32 %v2898, 0.07322329
        %v3231 = vadd.f32 %v3213, %v3228
        %v3232 = vadd.f32 %v3214, %v3229
        %v3233 = vadd.f32 %v3215, %v3230
        %v3234 = vmul.f32 %v2896, -0.17677669
        %v3235 = vmul.f32 %v2897, -0.17677669
        %v3236 = vmul.f32 %v2898, -0.17677669
        %v3237 = vadd.f32 %v3219, %v3234
        %v3238 = vadd.f32 %v3220, %v3235
        %v3239 = vadd.f32 %v3221, %v3236
        %v3240 = vmul.f32 %v2896, 0.17677669
        %v3241 = vmul.f32 %v2897, 0.17677669
        %v3242 = vmul.f32 %v2898, 0.17677669
        %v3243 = vadd.f32 %v3222, %v3240
        %v3244 = vadd.f32 %v3223, %v3241
        %v3245 = vadd.f32 %v3224, %v3242
        %v3246 = vmul.f32 %v2896, -0.07322329
        %v3247 = vmul.f32 %v2897, -0.07322329
        %v3248 = vmul.f32 %v2898, -0.07322329
        %v3249 = vadd.f32 %v3225, %v3246
        %v3250 = vadd.f32 %v3226, %v3247
        %v3251 = vadd.f32 %v3227, %v3248
        %v3252 = vmul.f32 %v3231, %v2937
        %v3253 = vmul.f32 %v3232, %v2938
        %v3254 = vmul.f32 %v3233, %v2939
        %v3255 = vadd.f32 %v3252, 0.0
        %v3256 = vadd.f32 %v3253, 0.0
        %v3257 = vadd.f32 %v3254, 0.0
        %v3258 = vmul.f32 %v3237, %v2937
        %v3259 = vmul.f32 %v3238, %v2938
        %v3260 = vmul.f32 %v3239, %v2939
        %3264 = vrot.lane.b32.xlu0 %v3258, 1
        %v3265 = vpop.permute.xlu0 %3264
        %3266 = vrot.lane.b32.xlu0 %v3259, 1
        %v3267 = vpop.permute.xlu0 %3266
        %3268 = vrot.lane.b32.xlu0 %v3260, 1
        %v3269 = vpop.permute.xlu0 %3268
        %v3273 = vadd.f32 %v3255, %v3265
        %v3274 = vadd.f32 %v3256, %v3267
        %v3275 = vadd.f32 %v3257, %v3269
        %v3276 = vmul.f32 %v3243, %v2937
        %v3277 = vmul.f32 %v3244, %v2938
        %v3278 = vmul.f32 %v3245, %v2939
        %3282 = vrot.lane.b32.xlu0 %v3276, 2
        %v3283 = vpop.permute.xlu0 %3282
        %3284 = vrot.lane.b32.xlu0 %v3277, 2
        %v3285 = vpop.permute.xlu0 %3284
        %3286 = vrot.lane.b32.xlu0 %v3278, 2
        %v3287 = vpop.permute.xlu0 %3286
        %v3291 = vadd.f32 %v3273, %v3283
        %v3292 = vadd.f32 %v3274, %v3285
        %v3293 = vadd.f32 %v3275, %v3287
        %v3294 = vmul.f32 %v3249, %v2937
        %v3295 = vmul.f32 %v3250, %v2938
        %v3296 = vmul.f32 %v3251, %v2939
        %3300 = vrot.lane.b32.xlu0 %v3294, 3
        %v3301 = vpop.permute.xlu0 %3300
        %3302 = vrot.lane.b32.xlu0 %v3295, 3
        %v3303 = vpop.permute.xlu0 %3302
        %3304 = vrot.lane.b32.xlu0 %v3296, 3
        %v3305 = vpop.permute.xlu0 %3304
        %v3309 = vadd.f32 %v3291, %v3301
        %v3310 = vadd.f32 %v3292, %v3303
        %v3311 = vadd.f32 %v3293, %v3305
        %v3312 = vmul.f32 %v2401, 0.13529901
        %v3313 = vmul.f32 %v2402, 0.13529901
        %v3314 = vmul.f32 %v2403, 0.13529901
        %v3315 = vadd.f32 %v2988, %v3312
        %v3316 = vadd.f32 %v2989, %v3313
        %v3317 = vadd.f32 %v2990, %v3314
        %v3318 = vadd.f32 %v2994, %v3312
        %v3319 = vadd.f32 %v2995, %v3313
        %v3320 = vadd.f32 %v2996, %v3314
        %v3321 = vadd.f32 %v3000, %v3312
        %v3322 = vadd.f32 %v3001, %v3313
        %v3323 = vadd.f32 %v3002, %v3314
        %v3324 = vadd.f32 %v3006, %v3312
        %v3325 = vadd.f32 %v3007, %v3313
        %v3326 = vadd.f32 %v3008, %v3314
        %v3327 = vadd.f32 %v3315, %v3030
        %v3328 = vadd.f32 %v3316, %v3031
        %v3329 = vadd.f32 %v3317, %v3032
        %v3330 = vmul.f32 %v2446, 0.07322329
        %v3331 = vmul.f32 %v2447, 0.07322329
        %v3332 = vmul.f32 %v2448, 0.07322329
        %v3333 = vadd.f32 %v3318, %v3330
        %v3334 = vadd.f32 %v3319, %v3331
        %v3335 = vadd.f32 %v3320, %v3332
        %v3336 = vmul.f32 %v2446, -0.07322329
        %v3337 = vmul.f32 %v2447, -0.07322329
        %v3338 = vmul.f32 %v2448, -0.07322329
        %v3339 = vadd.f32 %v3321, %v3336
        %v3340 = vadd.f32 %v3322, %v3337
        %v3341 = vadd.f32 %v3323, %v3338
        %v3342 = vadd.f32 %v3324, %v3036
        %v3343 = vadd.f32 %v3325, %v3037
        %v3344 = vadd.f32 %v3326, %v3038
        %v3345 = vmul.f32 %v2491, 0.13529901
        %v3346 = vmul.f32 %v2492, 0.13529901
        %v3347 = vmul.f32 %v2493, 0.13529901
        %v3348 = vadd.f32 %v3327, %v3345
        %v3349 = vadd.f32 %v3328, %v3346
        %v3350 = vadd.f32 %v3329, %v3347
        %v3351 = vmul.f32 %v2491, -0.13529901
        %v3352 = vmul.f32 %v2492, -0.13529901
        %v3353 = vmul.f32 %v2493, -0.13529901
        %v3354 = vadd.f32 %v3333, %v3351
        %v3355 = vadd.f32 %v3334, %v3352
        %v3356 = vadd.f32 %v3335, %v3353
        %v3357 = vadd.f32 %v3339, %v3351
        %v3358 = vadd.f32 %v3340, %v3352
        %v3359 = vadd.f32 %v3341, %v3353
        %v3360 = vadd.f32 %v3342, %v3345
        %v3361 = vadd.f32 %v3343, %v3346
        %v3362 = vadd.f32 %v3344, %v3347
        %v3363 = vmul.f32 %v2536, 0.07322329
        %v3364 = vmul.f32 %v2537, 0.07322329
        %v3365 = vmul.f32 %v2538, 0.07322329
        %v3366 = vadd.f32 %v3348, %v3363
        %v3367 = vadd.f32 %v3349, %v3364
        %v3368 = vadd.f32 %v3350, %v3365
        %v3369 = vadd.f32 %v3354, %v3084
        %v3370 = vadd.f32 %v3355, %v3085
        %v3371 = vadd.f32 %v3356, %v3086
        %v3372 = vadd.f32 %v3357, %v3066
        %v3373 = vadd.f32 %v3358, %v3067
        %v3374 = vadd.f32 %v3359, %v3068
        %v3375 = vmul.f32 %v2536, -0.07322329
        %v3376 = vmul.f32 %v2537, -0.07322329
        %v3377 = vmul.f32 %v2538, -0.07322329
        %v3378 = vadd.f32 %v3360, %v3375
        %v3379 = vadd.f32 %v3361, %v3376
        %v3380 = vadd.f32 %v3362, %v3377
        %v3381 = vmul.f32 %v2581, -0.25
        %v3382 = vmul.f32 %v2582, -0.25
        %v3383 = vmul.f32 %v2583, -0.25
        %v3384 = vadd.f32 %v3366, %v3381
        %v3385 = vadd.f32 %v3367, %v3382
        %v3386 = vadd.f32 %v3368, %v3383
        %v3387 = vadd.f32 %v3369, %v3381
        %v3388 = vadd.f32 %v3370, %v3382
        %v3389 = vadd.f32 %v3371, %v3383
        %v3390 = vadd.f32 %v3372, %v3381
        %v3391 = vadd.f32 %v3373, %v3382
        %v3392 = vadd.f32 %v3374, %v3383
        %v3393 = vadd.f32 %v3378, %v3381
        %v3394 = vadd.f32 %v3379, %v3382
        %v3395 = vadd.f32 %v3380, %v3383
        %v3396 = vadd.f32 %v3384, %v3123
        %v3397 = vadd.f32 %v3385, %v3124
        %v3398 = vadd.f32 %v3386, %v3125
        %v3399 = vadd.f32 %v3387, %v3117
        %v3400 = vadd.f32 %v3388, %v3118
        %v3401 = vadd.f32 %v3389, %v3119
        %v3402 = vadd.f32 %v3390, %v3111
        %v3403 = vadd.f32 %v3391, %v3112
        %v3404 = vadd.f32 %v3392, %v3113
        %v3405 = vadd.f32 %v3393, %v3105
        %v3406 = vadd.f32 %v3394, %v3106
        %v3407 = vadd.f32 %v3395, %v3107
        %v3408 = vadd.f32 %v3396, %v3135
        %v3409 = vadd.f32 %v3397, %v3136
        %v3410 = vadd.f32 %v3398, %v3137
        %v3411 = vadd.f32 %v3399, %v3129
        %v3412 = vadd.f32 %v3400, %v3130
        %v3413 = vadd.f32 %v3401, %v3131
        %v3414 = vadd.f32 %v3402, %v3129
        %v3415 = vadd.f32 %v3403, %v3130
        %v3416 = vadd.f32 %v3404, %v3131
        %v3417 = vadd.f32 %v3405, %v3135
        %v3418 = vadd.f32 %v3406, %v3136
        %v3419 = vadd.f32 %v3407, %v3137
        %v3420 = vadd.f32 %v3408, %v3165
        %v3421 = vadd.f32 %v3409, %v3166
        %v3422 = vadd.f32 %v3410, %v3167
        %v3423 = vadd.f32 %v3411, %v3159
        %v3424 = vadd.f32 %v3412, %v3160
        %v3425 = vadd.f32 %v3413, %v3161
        %v3426 = vadd.f32 %v3414, %v3153
        %v3427 = vadd.f32 %v3415, %v3154
        %v3428 = vadd.f32 %v3416, %v3155
        %v3429 = vadd.f32 %v3417, %v3147
        %v3430 = vadd.f32 %v3418, %v3148
        %v3431 = vadd.f32 %v3419, %v3149
        %v3432 = vmul.f32 %v2761, -0.32664073
        %v3433 = vmul.f32 %v2762, -0.32664073
        %v3434 = vmul.f32 %v2763, -0.32664073
        %v3435 = vadd.f32 %v3420, %v3432
        %v3436 = vadd.f32 %v3421, %v3433
        %v3437 = vadd.f32 %v3422, %v3434
        %v3438 = vadd.f32 %v3423, %v3432
        %v3439 = vadd.f32 %v3424, %v3433
        %v3440 = vadd.f32 %v3425, %v3434
        %v3441 = vadd.f32 %v3426, %v3432
        %v3442 = vadd.f32 %v3427, %v3433
        %v3443 = vadd.f32 %v3428, %v3434
        %v3444 = vadd.f32 %v3429, %v3432
        %v3445 = vadd.f32 %v3430, %v3433
        %v3446 = vadd.f32 %v3431, %v3434
        %v3447 = vmul.f32 %v2806, -0.42677668
        %v3448 = vmul.f32 %v2807, -0.42677668
        %v3449 = vmul.f32 %v2808, -0.42677668
        %v3450 = vadd.f32 %v3435, %v3447
        %v3451 = vadd.f32 %v3436, %v3448
        %v3452 = vadd.f32 %v3437, %v3449
        %v3453 = vadd.f32 %v3438, %v3204
        %v3454 = vadd.f32 %v3439, %v3205
        %v3455 = vadd.f32 %v3440, %v3206
        %v3456 = vadd.f32 %v3441, %v3186
        %v3457 = vadd.f32 %v3442, %v3187
        %v3458 = vadd.f32 %v3443, %v3188
        %v3459 = vmul.f32 %v2806, 0.42677668
        %v3460 = vmul.f32 %v2807, 0.42677668
        %v3461 = vmul.f32 %v2808, 0.42677668
        %v3462 = vadd.f32 %v3444, %v3459
        %v3463 = vadd.f32 %v3445, %v3460
        %v3464 = vadd.f32 %v3446, %v3461
        %v3465 = vmul.f32 %v2851, -0.32664073
        %v3466 = vmul.f32 %v2852, -0.32664073
        %v3467 = vmul.f32 %v2853, -0.32664073
        %v3468 = vadd.f32 %v3450, %v3465
        %v3469 = vadd.f32 %v3451, %v3466
        %v3470 = vadd.f32 %v3452, %v3467
        %v3471 = vmul.f32 %v2851, 0.32664073
        %v3472 = vmul.f32 %v2852, 0.32664073
        %v3473 = vmul.f32 %v2853, 0.32664073
        %v3474 = vadd.f32 %v3453, %v3471
        %v3475 = vadd.f32 %v3454, %v3472
        %v3476 = vadd.f32 %v3455, %v3473
        %v3477 = vadd.f32 %v3456, %v3471
        %v3478 = vadd.f32 %v3457, %v3472
        %v3479 = vadd.f32 %v3458, %v3473
        %v3480 = vadd.f32 %v3462, %v3465
        %v3481 = vadd.f32 %v3463, %v3466
        %v3482 = vadd.f32 %v3464, %v3467
        %v3483 = vadd.f32 %v3468, %v3234
        %v3484 = vadd.f32 %v3469, %v3235
        %v3485 = vadd.f32 %v3470, %v3236
        %v3486 = vmul.f32 %v2896, 0.42677668
        %v3487 = vmul.f32 %v2897, 0.42677668
        %v3488 = vmul.f32 %v2898, 0.42677668
        %v3489 = vadd.f32 %v3474, %v3486
        %v3490 = vadd.f32 %v3475, %v3487
        %v3491 = vadd.f32 %v3476, %v3488
        %v3492 = vmul.f32 %v2896, -0.42677668
        %v3493 = vmul.f32 %v2897, -0.42677668
        %v3494 = vmul.f32 %v2898, -0.42677668
        %v3495 = vadd.f32 %v3477, %v3492
        %v3496 = vadd.f32 %v3478, %v3493
        %v3497 = vadd.f32 %v3479, %v3494
        %v3498 = vadd.f32 %v3480, %v3240
        %v3499 = vadd.f32 %v3481, %v3241
        %v3500 = vadd.f32 %v3482, %v3242
        %v3501 = vmul.f32 %v3483, %v2937
        %v3502 = vmul.f32 %v3484, %v2938
        %v3503 = vmul.f32 %v3485, %v2939
        %vm3507 = vcmask 1040384
        %v3508 = vrot.slane %v3501, 7
        %v3509 = vrot.slane %v3502, 7
        %v3510 = vsel %vm3507, %v3508, %v3509
        %v3511 = vrot.slane %v3503, 7
        %v3512 = vsel %vm3507, %v3509, %v3511
        %v3516 = vadd.f32 %v3309, %v3508
        %v3517 = vadd.f32 %v3310, %v3510
        %v3518 = vadd.f32 %v3311, %v3512
        %v3519 = vmul.f32 %v3489, %v2937
        %v3520 = vmul.f32 %v3490, %v2938
        %v3521 = vmul.f32 %v3491, %v2939
        %v3525 = vrot.slane %v3519, 7
        %v3526 = vrot.slane %v3520, 7
        %v3527 = vsel %vm3507, %v3525, %v3526
        %v3528 = vrot.slane %v3521, 7
        %v3529 = vsel %vm3507, %v3526, %v3528
        %3530 = vrot.lane.b32.xlu0 %v3525, 1
        %v3531 = vpop.permute.xlu0 %3530
        %3532 = vrot.lane.b32.xlu0 %v3527, 1
        %v3533 = vpop.permute.xlu0 %3532
        %3534 = vrot.lane.b32.xlu0 %v3529, 1
        %v3535 = vpop.permute.xlu0 %3534
        %v3539 = vadd.f32 %v3516, %v3531
        %v3540 = vadd.f32 %v3517, %v3533
        %v3541 = vadd.f32 %v3518, %v3535
        %v3542 = vmul.f32 %v3495, %v2937
        %v3543 = vmul.f32 %v3496, %v2938
        %v3544 = vmul.f32 %v3497, %v2939
        %v3548 = vrot.slane %v3542, 7
        %v3549 = vrot.slane %v3543, 7
        %v3550 = vsel %vm3507, %v3548, %v3549
        %v3551 = vrot.slane %v3544, 7
        %v3552 = vsel %vm3507, %v3549, %v3551
        %3553 = vrot.lane.b32.xlu0 %v3548, 2
        %v3554 = vpop.permute.xlu0 %3553
        %3555 = vrot.lane.b32.xlu0 %v3550, 2
        %v3556 = vpop.permute.xlu0 %3555
        %3557 = vrot.lane.b32.xlu0 %v3552, 2
        %v3558 = vpop.permute.xlu0 %3557
        %v3562 = vadd.f32 %v3539, %v3554
        %v3563 = vadd.f32 %v3540, %v3556
        %v3564 = vadd.f32 %v3541, %v3558
        %v3565 = vmul.f32 %v3498, %v2937
        %v3566 = vmul.f32 %v3499, %v2938
        %v3567 = vmul.f32 %v3500, %v2939
        %v3571 = vrot.slane %v3565, 7
        %v3572 = vrot.slane %v3566, 7
        %v3573 = vsel %vm3507, %v3571, %v3572
        %v3574 = vrot.slane %v3567, 7
        %v3575 = vsel %vm3507, %v3572, %v3574
        %3576 = vrot.lane.b32.xlu0 %v3571, 3
        %v3577 = vpop.permute.xlu0 %3576
        %3578 = vrot.lane.b32.xlu0 %v3573, 3
        %v3579 = vpop.permute.xlu0 %3578
        %3580 = vrot.lane.b32.xlu0 %v3575, 3
        %v3581 = vpop.permute.xlu0 %3580
        %v3585 = vadd.f32 %v3562, %v3577
        %v3586 = vadd.f32 %v3563, %v3579
        %v3587 = vadd.f32 %v3564, %v3581
        %v3588 = vmul.f32 %v2401, -0.13529901
        %v3589 = vmul.f32 %v2402, -0.13529901
        %v3590 = vmul.f32 %v2403, -0.13529901
        %v3591 = vadd.f32 %v2988, %v3588
        %v3592 = vadd.f32 %v2989, %v3589
        %v3593 = vadd.f32 %v2990, %v3590
        %v3594 = vadd.f32 %v2994, %v3588
        %v3595 = vadd.f32 %v2995, %v3589
        %v3596 = vadd.f32 %v2996, %v3590
        %v3597 = vadd.f32 %v3000, %v3588
        %v3598 = vadd.f32 %v3001, %v3589
        %v3599 = vadd.f32 %v3002, %v3590
        %v3600 = vadd.f32 %v3006, %v3588
        %v3601 = vadd.f32 %v3007, %v3589
        %v3602 = vadd.f32 %v3008, %v3590
        %v3603 = vadd.f32 %v3591, %v3036
        %v3604 = vadd.f32 %v3592, %v3037
        %v3605 = vadd.f32 %v3593, %v3038
        %v3606 = vadd.f32 %v3594, %v3336
        %v3607 = vadd.f32 %v3595, %v3337
        %v3608 = vadd.f32 %v3596, %v3338
        %v3609 = vadd.f32 %v3597, %v3330
        %v3610 = vadd.f32 %v3598, %v3331
        %v3611 = vadd.f32 %v3599, %v3332
        %v3612 = vadd.f32 %v3600, %v3030
        %v3613 = vadd.f32 %v3601, %v3031
        %v3614 = vadd.f32 %v3602, %v3032
        %v3615 = vadd.f32 %v3603, %v3351
        %v3616 = vadd.f32 %v3604, %v3352
        %v3617 = vadd.f32 %v3605, %v3353
        %v3618 = vadd.f32 %v3606, %v3345
        %v3619 = vadd.f32 %v3607, %v3346
        %v3620 = vadd.f32 %v3608, %v3347
        %v3621 = vadd.f32 %v3609, %v3345
        %v3622 = vadd.f32 %v3610, %v3346
        %v3623 = vadd.f32 %v3611, %v3347
        %v3624 = vadd.f32 %v3612, %v3351
        %v3625 = vadd.f32 %v3613, %v3352
        %v3626 = vadd.f32 %v3614, %v3353
        %v3627 = vadd.f32 %v3615, %v3375
        %v3628 = vadd.f32 %v3616, %v3376
        %v3629 = vadd.f32 %v3617, %v3377
        %v3630 = vadd.f32 %v3618, %v3066
        %v3631 = vadd.f32 %v3619, %v3067
        %v3632 = vadd.f32 %v3620, %v3068
        %v3633 = vadd.f32 %v3621, %v3084
        %v3634 = vadd.f32 %v3622, %v3085
        %v3635 = vadd.f32 %v3623, %v3086
        %v3636 = vadd.f32 %v3624, %v3363
        %v3637 = vadd.f32 %v3625, %v3364
        %v3638 = vadd.f32 %v3626, %v3365
        %v3639 = vadd.f32 %v3627, %v3381
        %v3640 = vadd.f32 %v3628, %v3382
        %v3641 = vadd.f32 %v3629, %v3383
        %v3642 = vadd.f32 %v3630, %v3381
        %v3643 = vadd.f32 %v3631, %v3382
        %v3644 = vadd.f32 %v3632, %v3383
        %v3645 = vadd.f32 %v3633, %v3381
        %v3646 = vadd.f32 %v3634, %v3382
        %v3647 = vadd.f32 %v3635, %v3383
        %v3648 = vadd.f32 %v3636, %v3381
        %v3649 = vadd.f32 %v3637, %v3382
        %v3650 = vadd.f32 %v3638, %v3383
        %v3651 = vadd.f32 %v3639, %v3123
        %v3652 = vadd.f32 %v3640, %v3124
        %v3653 = vadd.f32 %v3641, %v3125
        %v3654 = vadd.f32 %v3642, %v3117
        %v3655 = vadd.f32 %v3643, %v3118
        %v3656 = vadd.f32 %v3644, %v3119
        %v3657 = vadd.f32 %v3645, %v3111
        %v3658 = vadd.f32 %v3646, %v3112
        %v3659 = vadd.f32 %v3647, %v3113
        %v3660 = vadd.f32 %v3648, %v3105
        %v3661 = vadd.f32 %v3649, %v3106
        %v3662 = vadd.f32 %v3650, %v3107
        %v3663 = vadd.f32 %v3651, %v3135
        %v3664 = vadd.f32 %v3652, %v3136
        %v3665 = vadd.f32 %v3653, %v3137
        %v3666 = vadd.f32 %v3654, %v3129
        %v3667 = vadd.f32 %v3655, %v3130
        %v3668 = vadd.f32 %v3656, %v3131
        %v3669 = vadd.f32 %v3657, %v3129
        %v3670 = vadd.f32 %v3658, %v3130
        %v3671 = vadd.f32 %v3659, %v3131
        %v3672 = vadd.f32 %v3660, %v3135
        %v3673 = vadd.f32 %v3661, %v3136
        %v3674 = vadd.f32 %v3662, %v3137
        %v3675 = vadd.f32 %v3663, %v3165
        %v3676 = vadd.f32 %v3664, %v3166
        %v3677 = vadd.f32 %v3665, %v3167
        %v3678 = vadd.f32 %v3666, %v3159
        %v3679 = vadd.f32 %v3667, %v3160
        %v3680 = vadd.f32 %v3668, %v3161
        %v3681 = vadd.f32 %v3669, %v3153
        %v3682 = vadd.f32 %v3670, %v3154
        %v3683 = vadd.f32 %v3671, %v3155
        %v3684 = vadd.f32 %v3672, %v3147
        %v3685 = vadd.f32 %v3673, %v3148
        %v3686 = vadd.f32 %v3674, %v3149
        %v3687 = vmul.f32 %v2761, 0.32664073
        %v3688 = vmul.f32 %v2762, 0.32664073
        %v3689 = vmul.f32 %v2763, 0.32664073
        %v3690 = vadd.f32 %v3675, %v3687
        %v3691 = vadd.f32 %v3676, %v3688
        %v3692 = vadd.f32 %v3677, %v3689
        %v3693 = vadd.f32 %v3678, %v3687
        %v3694 = vadd.f32 %v3679, %v3688
        %v3695 = vadd.f32 %v3680, %v3689
        %v3696 = vadd.f32 %v3681, %v3687
        %v3697 = vadd.f32 %v3682, %v3688
        %v3698 = vadd.f32 %v3683, %v3689
        %v3699 = vadd.f32 %v3684, %v3687
        %v3700 = vadd.f32 %v3685, %v3688
        %v3701 = vadd.f32 %v3686, %v3689
        %v3702 = vadd.f32 %v3690, %v3459
        %v3703 = vadd.f32 %v3691, %v3460
        %v3704 = vadd.f32 %v3692, %v3461
        %v3705 = vadd.f32 %v3693, %v3186
        %v3706 = vadd.f32 %v3694, %v3187
        %v3707 = vadd.f32 %v3695, %v3188
        %v3708 = vadd.f32 %v3696, %v3204
        %v3709 = vadd.f32 %v3697, %v3205
        %v3710 = vadd.f32 %v3698, %v3206
        %v3711 = vadd.f32 %v3699, %v3447
        %v3712 = vadd.f32 %v3700, %v3448
        %v3713 = vadd.f32 %v3701, %v3449
        %v3714 = vadd.f32 %v3702, %v3471
        %v3715 = vadd.f32 %v3703, %v3472
        %v3716 = vadd.f32 %v3704, %v3473
        %v3717 = vadd.f32 %v3705, %v3465
        %v3718 = vadd.f32 %v3706, %v3466
        %v3719 = vadd.f32 %v3707, %v3467
        %v3720 = vadd.f32 %v3708, %v3465
        %v3721 = vadd.f32 %v3709, %v3466
        %v3722 = vadd.f32 %v3710, %v3467
        %v3723 = vadd.f32 %v3711, %v3471
        %v3724 = vadd.f32 %v3712, %v3472
        %v3725 = vadd.f32 %v3713, %v3473
        %v3726 = vadd.f32 %v3714, %v3240
        %v3727 = vadd.f32 %v3715, %v3241
        %v3728 = vadd.f32 %v3716, %v3242
        %v3729 = vadd.f32 %v3717, %v3492
        %v3730 = vadd.f32 %v3718, %v3493
        %v3731 = vadd.f32 %v3719, %v3494
        %v3732 = vadd.f32 %v3720, %v3486
        %v3733 = vadd.f32 %v3721, %v3487
        %v3734 = vadd.f32 %v3722, %v3488
        %v3735 = vadd.f32 %v3723, %v3234
        %v3736 = vadd.f32 %v3724, %v3235
        %v3737 = vadd.f32 %v3725, %v3236
        %v3738 = vmul.f32 %v3726, %v2937
        %v3739 = vmul.f32 %v3727, %v2938
        %v3740 = vmul.f32 %v3728, %v2939
        %vm3744 = vcmask 1041408
        %v3745 = vrot.slane %v3738, 6
        %v3746 = vrot.slane %v3739, 6
        %v3747 = vsel %vm3744, %v3745, %v3746
        %v3748 = vrot.slane %v3740, 6
        %v3749 = vsel %vm3744, %v3746, %v3748
        %v3753 = vadd.f32 %v3585, %v3745
        %v3754 = vadd.f32 %v3586, %v3747
        %v3755 = vadd.f32 %v3587, %v3749
        %v3756 = vmul.f32 %v3729, %v2937
        %v3757 = vmul.f32 %v3730, %v2938
        %v3758 = vmul.f32 %v3731, %v2939
        %v3762 = vrot.slane %v3756, 6
        %v3763 = vrot.slane %v3757, 6
        %v3764 = vsel %vm3744, %v3762, %v3763
        %v3765 = vrot.slane %v3758, 6
        %v3766 = vsel %vm3744, %v3763, %v3765
        %3767 = vrot.lane.b32.xlu0 %v3762, 1
        %v3768 = vpop.permute.xlu0 %3767
        %3769 = vrot.lane.b32.xlu0 %v3764, 1
        %v3770 = vpop.permute.xlu0 %3769
        %3771 = vrot.lane.b32.xlu0 %v3766, 1
        %v3772 = vpop.permute.xlu0 %3771
        %v3776 = vadd.f32 %v3753, %v3768
        %v3777 = vadd.f32 %v3754, %v3770
        %v3778 = vadd.f32 %v3755, %v3772
        %v3779 = vmul.f32 %v3732, %v2937
        %v3780 = vmul.f32 %v3733, %v2938
        %v3781 = vmul.f32 %v3734, %v2939
        %v3785 = vrot.slane %v3779, 6
        %v3786 = vrot.slane %v3780, 6
        %v3787 = vsel %vm3744, %v3785, %v3786
        %v3788 = vrot.slane %v3781, 6
        %v3789 = vsel %vm3744, %v3786, %v3788
        %3790 = vrot.lane.b32.xlu0 %v3785, 2
        %v3791 = vpop.permute.xlu0 %3790
        %3792 = vrot.lane.b32.xlu0 %v3787, 2
        %v3793 = vpop.permute.xlu0 %3792
        %3794 = vrot.lane.b32.xlu0 %v3789, 2
        %v3795 = vpop.permute.xlu0 %3794
        %v3799 = vadd.f32 %v3776, %v3791
        %v3800 = vadd.f32 %v3777, %v3793
        %v3801 = vadd.f32 %v3778, %v3795
        %v3802 = vmul.f32 %v3735, %v2937
        %v3803 = vmul.f32 %v3736, %v2938
        %v3804 = vmul.f32 %v3737, %v2939
        %v3808 = vrot.slane %v3802, 6
        %v3809 = vrot.slane %v3803, 6
        %v3810 = vsel %vm3744, %v3808, %v3809
        %v3811 = vrot.slane %v3804, 6
        %v3812 = vsel %vm3744, %v3809, %v3811
        %3813 = vrot.lane.b32.xlu0 %v3808, 3
        %v3814 = vpop.permute.xlu0 %3813
        %3815 = vrot.lane.b32.xlu0 %v3810, 3
        %v3816 = vpop.permute.xlu0 %3815
        %3817 = vrot.lane.b32.xlu0 %v3812, 3
        %v3818 = vpop.permute.xlu0 %3817
        %v3822 = vadd.f32 %v3799, %v3814
        %v3823 = vadd.f32 %v3800, %v3816
        %v3824 = vadd.f32 %v3801, %v3818
        %v3825 = vmul.f32 %v2401, -0.32664073
        %v3826 = vmul.f32 %v2402, -0.32664073
        %v3827 = vadd.f32 %v2988, %v3825
        %v3828 = vadd.f32 %v2989, %v3826
        %v3829 = vadd.f32 %v2994, %v3825
        %v3830 = vadd.f32 %v2995, %v3826
        %v3831 = vadd.f32 %v3000, %v3825
        %v3832 = vadd.f32 %v3001, %v3826
        %v3833 = vadd.f32 %v3006, %v3825
        %v3834 = vadd.f32 %v3007, %v3826
        %v3835 = vadd.f32 %v3827, %v3042
        %v3836 = vadd.f32 %v3828, %v3043
        %v3837 = vadd.f32 %v3829, %v3036
        %v3838 = vadd.f32 %v3830, %v3037
        %v3839 = vadd.f32 %v3831, %v3030
        %v3840 = vadd.f32 %v3832, %v3031
        %v3841 = vadd.f32 %v3833, %v3024
        %v3842 = vadd.f32 %v3834, %v3025
        %v3843 = vadd.f32 %v3835, %v3054
        %v3844 = vadd.f32 %v3836, %v3055
        %v3845 = vadd.f32 %v3837, %v3048
        %v3846 = vadd.f32 %v3838, %v3049
        %v3847 = vadd.f32 %v3839, %v3048
        %v3848 = vadd.f32 %v3840, %v3049
        %v3849 = vadd.f32 %v3841, %v3054
        %v3850 = vadd.f32 %v3842, %v3055
        %v3851 = vadd.f32 %v3843, %v3084
        %v3852 = vadd.f32 %v3844, %v3085
        %v3853 = vadd.f32 %v3845, %v3078
        %v3854 = vadd.f32 %v3846, %v3079
        %v3855 = vadd.f32 %v3847, %v3072
        %v3856 = vadd.f32 %v3848, %v3073
        %v3857 = vadd.f32 %v3849, %v3066
        %v3858 = vadd.f32 %v3850, %v3067
        %v3859 = vadd.f32 %v3851, %v3090
        %v3860 = vadd.f32 %v3852, %v3091
        %v3861 = vadd.f32 %v3853, %v3090
        %v3862 = vadd.f32 %v3854, %v3091
        %v3863 = vadd.f32 %v3855, %v3090
        %v3864 = vadd.f32 %v3856, %v3091
        %v3865 = vadd.f32 %v3857, %v3090
        %v3866 = vadd.f32 %v3858, %v3091
        %v3867 = vadd.f32 %v3859, %v3105
        %v3868 = vadd.f32 %v3860, %v3106
        %v3869 = vadd.f32 %v3861, %v3111
        %v3870 = vadd.f32 %v3862, %v3112
        %v3871 = vadd.f32 %v3863, %v3117
        %v3872 = vadd.f32 %v3864, %v3118
        %v3873 = vadd.f32 %v3865, %v3123
        %v3874 = vadd.f32 %v3866, %v3124
        %v3875 = vadd.f32 %v3867, %v3129
        %v3876 = vadd.f32 %v3868, %v3130
        %v3877 = vadd.f32 %v3869, %v3135
        %v3878 = vadd.f32 %v3870, %v3136
        %v3879 = vadd.f32 %v3871, %v3135
        %v3880 = vadd.f32 %v3872, %v3136
        %v3881 = vadd.f32 %v3873, %v3129
        %v3882 = vadd.f32 %v3874, %v3130
        %v3883 = vadd.f32 %v3875, %v3147
        %v3884 = vadd.f32 %v3876, %v3148
        %v3885 = vadd.f32 %v3877, %v3153
        %v3886 = vadd.f32 %v3878, %v3154
        %v3887 = vadd.f32 %v3879, %v3159
        %v3888 = vadd.f32 %v3880, %v3160
        %v3889 = vadd.f32 %v3881, %v3165
        %v3890 = vadd.f32 %v3882, %v3166
        %v3891 = vmul.f32 %v2761, -0.13529901
        %v3892 = vmul.f32 %v2762, -0.13529901
        %v3893 = vadd.f32 %v3883, %v3891
        %v3894 = vadd.f32 %v3884, %v3892
        %v3895 = vadd.f32 %v3885, %v3891
        %v3896 = vadd.f32 %v3886, %v3892
        %v3897 = vadd.f32 %v3887, %v3891
        %v3898 = vadd.f32 %v3888, %v3892
        %v3899 = vadd.f32 %v3889, %v3891
        %v3900 = vadd.f32 %v3890, %v3892
        %v3901 = vadd.f32 %v3893, %v3204
        %v3902 = vadd.f32 %v3894, %v3205
        %v3903 = vadd.f32 %v3895, %v3198
        %v3904 = vadd.f32 %v3896, %v3199
        %v3905 = vadd.f32 %v3897, %v3192
        %v3906 = vadd.f32 %v3898, %v3193
        %v3907 = vadd.f32 %v3899, %v3186
        %v3908 = vadd.f32 %v3900, %v3187
        %v3909 = vadd.f32 %v3901, %v3216
        %v3910 = vadd.f32 %v3902, %v3217
        %v3911 = vadd.f32 %v3903, %v3210
        %v3912 = vadd.f32 %v3904, %v3211
        %v3913 = vadd.f32 %v3905, %v3210
        %v3914 = vadd.f32 %v3906, %v3211
        %v3915 = vadd.f32 %v3907, %v3216
        %v3916 = vadd.f32 %v3908, %v3217
        %v3917 = vadd.f32 %v3909, %v3246
        %v3918 = vadd.f32 %v3910, %v3247
        %v3919 = vadd.f32 %v3911, %v3240
        %v3920 = vadd.f32 %v3912, %v3241
        %v3921 = vadd.f32 %v3913, %v3234
        %v3922 = vadd.f32 %v3914, %v3235
        %v3923 = vadd.f32 %v3915, %v3228
        %v3924 = vadd.f32 %v3916, %v3229
        %v3925 = vmul.f32 %v3917, %v2937
        %v3926 = vmul.f32 %v3918, %v2938
        %vm3929 = vcmask 1042432
        %v3930 = vrot.slane %v3925, 5
        %v3931 = vrot.slane %v3926, 5
        %v3932 = vsel %vm3929, %v3930, %v3931
        %v3936 = vadd.f32 %v3822, %v3930
        %v3937 = vadd.f32 %v3823, %v3932
        %v3938 = vadd.f32 %v3824, %v3931
        %v3939 = vmul.f32 %v3919, %v2937
        %v3940 = vmul.f32 %v3920, %v2938
        %v3943 = vrot.slane %v3939, 5
        %v3944 = vrot.slane %v3940, 5
        %v3945 = vsel %vm3929, %v3943, %v3944
        %3946 = vrot.lane.b32.xlu0 %v3943, 1
        %v3947 = vpop.permute.xlu0 %3946
        %3948 = vrot.lane.b32.xlu0 %v3945, 1
        %v3949 = vpop.permute.xlu0 %3948
        %3950 = vrot.lane.b32.xlu0 %v3944, 1
        %v3951 = vpop.permute.xlu0 %3950
        %v3955 = vadd.f32 %v3936, %v3947
        %v3956 = vadd.f32 %v3937, %v3949
        %v3957 = vadd.f32 %v3938, %v3951
        %v3958 = vmul.f32 %v3921, %v2937
        %v3959 = vmul.f32 %v3922, %v2938
        %v3962 = vrot.slane %v3958, 5
        %v3963 = vrot.slane %v3959, 5
        %v3964 = vsel %vm3929, %v3962, %v3963
        %3965 = vrot.lane.b32.xlu0 %v3962, 2
        %v3966 = vpop.permute.xlu0 %3965
        %3967 = vrot.lane.b32.xlu0 %v3964, 2
        %v3968 = vpop.permute.xlu0 %3967
        %3969 = vrot.lane.b32.xlu0 %v3963, 2
        %v3970 = vpop.permute.xlu0 %3969
        %v3974 = vadd.f32 %v3955, %v3966
        %v3975 = vadd.f32 %v3956, %v3968
        %v3976 = vadd.f32 %v3957, %v3970
        %v3977 = vmul.f32 %v3923, %v2937
        %v3978 = vmul.f32 %v3924, %v2938
        %v3981 = vrot.slane %v3977, 5
        %v3982 = vrot.slane %v3978, 5
        %v3983 = vsel %vm3929, %v3981, %v3982
        %3984 = vrot.lane.b32.xlu0 %v3981, 3
        %v3985 = vpop.permute.xlu0 %3984
        %3986 = vrot.lane.b32.xlu0 %v3983, 3
        %v3987 = vpop.permute.xlu0 %3986
        %3988 = vrot.lane.b32.xlu0 %v3982, 3
        %v3989 = vpop.permute.xlu0 %3988
        %v3993 = vadd.f32 %v3974, %v3985
        %v3994 = vadd.f32 %v3975, %v3987
        %v3995 = vadd.f32 %v3976, %v3989
        %v3999 = vrot.slane %v2937, 7
        %v4000 = vrot.slane %v2938, 7
        %v4001 = vsel %vm3507, %v3999, %v4000
        %v4002 = vrot.slane %v2939, 7
        %v4003 = vsel %vm3507, %v4000, %v4002
        %v4007 = vadd.f32 %v2937, %v3999
        %v4008 = vadd.f32 %v2938, %v4001
        %v4009 = vadd.f32 %v2939, %v4003
        %v4010 = vrot.slane %v2937, 6
        %v4011 = vrot.slane %v2938, 6
        %v4012 = vsel %vm3744, %v4010, %v4011
        %v4013 = vrot.slane %v2939, 6
        %v4014 = vsel %vm3744, %v4011, %v4013
        %v4018 = vadd.f32 %v4007, %v4010
        %v4019 = vadd.f32 %v4008, %v4012
        %v4020 = vadd.f32 %v4009, %v4014
        %v4021 = vrot.slane %v2937, 5
        %v4022 = vrot.slane %v2938, 5
        %v4023 = vsel %vm3929, %v4021, %v4022
        %v4027 = vadd.f32 %v4018, %v4021
        %v4028 = vadd.f32 %v4019, %v4023
        %v4029 = vadd.f32 %v4020, %v4022
        %4033 = vrot.lane.b32.xlu0 %v4027, 1
        %v4034 = vpop.permute.xlu0 %4033
        %4035 = vrot.lane.b32.xlu0 %v4028, 1
        %v4036 = vpop.permute.xlu0 %4035
        %4037 = vrot.lane.b32.xlu0 %v4029, 1
        %v4038 = vpop.permute.xlu0 %4037
        %v4042 = vadd.f32 %v4027, %v4034
        %v4043 = vadd.f32 %v4028, %v4036
        %v4044 = vadd.f32 %v4029, %v4038
        %4045 = vrot.lane.b32.xlu0 %v4027, 2
        %v4046 = vpop.permute.xlu0 %4045
        %4047 = vrot.lane.b32.xlu0 %v4028, 2
        %v4048 = vpop.permute.xlu0 %4047
        %4049 = vrot.lane.b32.xlu0 %v4029, 2
        %v4050 = vpop.permute.xlu0 %4049
        %v4054 = vadd.f32 %v4042, %v4046
        %v4055 = vadd.f32 %v4043, %v4048
        %v4056 = vadd.f32 %v4044, %v4050
        %4057 = vrot.lane.b32.xlu0 %v4027, 3
        %v4058 = vpop.permute.xlu0 %4057
        %4059 = vrot.lane.b32.xlu0 %v4028, 3
        %v4060 = vpop.permute.xlu0 %4059
        %4061 = vrot.lane.b32.xlu0 %v4029, 3
        %v4062 = vpop.permute.xlu0 %4061
        %v4066 = vadd.f32 %v4054, %v4058
        %v4067 = vadd.f32 %v4055, %v4060
        %v4068 = vadd.f32 %v4056, %v4062
        %v4069 = vrcp.pop %v4066
        %v4070 = vrcp.pop %v4067
        %v4071 = vrcp.pop %v4068
        %v4072 = vmul.f32 %v3993, %v4069
        %v4073 = vmul.f32 %v3994, %v4070
        %v4074 = vmul.f32 %v3995, %v4071
        %4078 = vrot.lane.b32.xlu0 %v4072, 125
        %v4079 = vpop.permute.xlu0 %4078
        %4080 = vrot.lane.b32.xlu0 %v4073, 125
        %v4081 = vpop.permute.xlu0 %4080
        %4082 = vrot.lane.b32.xlu0 %v4074, 125
        %v4083 = vpop.permute.xlu0 %4082
        %vm4087 = vcmask 261123
        %4088 = vst.msk [vmem:[%s165 - $0x3] sm:$0xf8] %vm4087, %v4079
        %vm4089 = vcmask 261120
        %4090 = vst.msk [vmem:[%s165 + $0x5] sm:$0xff] %vm4089, %v4081
        %vm4091 = vcmask 256000
        %4092 = vst.msk [vmem:[%s165 + $0xd] sm:$0x7] %vm4091, %v4083
        %s4093 = sand.u32 %s79, 1
        %s4094 = scalar_lea.sflag [#allocation4], %s4093
        %s4095 = sand.u32 %s79, 1
        %s4096 = smul.addr %s4095, 16
        %s4097 = scalar_lea.vmem [#allocation5], %s4096
        // Predicated region
        $region29: #{tpu_custom_call.1} parent=23 // pred_check
          %p4098 = pneg %p89
        $region30: #{tpu_custom_call.1} parent=23 // pred_check_branch
          %4100 = sbr.rel (%p4098) target = $region32
        $region31: #{tpu_custom_call.1} parent=23 // pred_region
          %s4101 = smul.u32 2, %s24
          %s4103 = ssub.s32 256, 256
          %4104 = vsyncadd %s4094, %s4103
          %s4105 = sadd.s32 %s25, %s4101
          %s4106 = smul.addr %s23, 4
          %s4107 = sadd.s32 %s4105, %s4106
          %s4108 = smul.addr %s4107, 128
          %s4109 = scalar_lea.hbm %s1, %s4108
          %s4110 = sshll.u32 %s4097, 4
          %s4111 = int_to_ptr.vmem [resolvable:$true] %s4110
          %4116 = dma.vmem_to_hbm [thread:$0]  %s4111, 256, %s4109, %s4094, 128, 128, 8
        $region32: #{tpu_custom_call.1} parent=23 // pred_fallthru
          _
      $region24: #{tpu_custom_call.1} parent=5 // pred_fallthru
        _
      %p4117 = scmp.le.s32.totalorder 2, %s13
      // Predicated region
      $region33: #{tpu_custom_call.1} parent=5 // pred_check
        %p4118 = pneg %p4117
      $region34: #{tpu_custom_call.1} parent=5 // pred_check_branch
        %4120 = sbr.rel (%p4118) target = $region36
      $region35: #{tpu_custom_call.1} parent=5 // pred_region
        %s4121 = ssub.s32 %s13, 2
        // Predicated region
        $region37: #{tpu_custom_call.1} parent=35 // pred_check
          %p4122 = pneg %p95
        $region38: #{tpu_custom_call.1} parent=35 // pred_check_branch
          %4124 = sbr.rel (%p4122) target = $region40
        $region39: #{tpu_custom_call.1} parent=35 // pred_region
          %s4125 = sand.u32 %s80, 1
          %s4126 = scalar_lea.sflag [#allocation4], %s4125
          %s4127 = sand.u32 %s80, 1
          %s4128 = smul.addr %s4127, 16
          %s4129 = scalar_lea.vmem [#allocation5], %s4128
          %4130 = dma.done %s4126, 256
        $region40: #{tpu_custom_call.1} parent=35 // pred_fallthru
          _
      $region36: #{tpu_custom_call.1} parent=5 // pred_fallthru
        _
    $region6: #{tpu_custom_call.1} parent=1 // loop_footer
      %s17 = sadd.s32 1, %s13
    $region7: #{tpu_custom_call.1} parent=1 // loop_footer_branch
      %12 = sbr.rel target = $region3
    $region8: #{tpu_custom_call.1} parent=1 // loop_exit
      _
    %4131 = vsyncpa [#allocation3], 1
    %s4132 = scalar_lea.sflag [#allocation3], 1
    %4133 = vsyncpa %s4132, 1
    %4134 = vsyncpa [#allocation4], 1
    %s4135 = scalar_lea.sflag [#allocation4], 1
    %4136 = vsyncpa %s4135, 1

</llo_original>
